<compile_context>
chip_gen: v5e
topology: v5e:2x2
jax: 0.10.0
libtpu: 0.0.40
codegen_flags: <defaults>
</compile_context>

<pallas_src>
import numpy as np
import jax
import jax.numpy as jnp
from jax import lax
from jax.experimental import pallas as pl
from jax.experimental.pallas import tpu as pltpu

# ----- model hyper-parameters (mirror args of DAGNet.__init__) -----
X_DIM = 2          # args.x_dim
H_DIM = 32         # args.h_dim
Z_DIM = 8          # args.z_dim
G_DIM = 4          # args.g_dim
RNN_DIM = 16       # args.rnn_dim
GRAPH_HID = 8      # args.graph_hid
N_LAYERS = 1       # args.n_layers (single-layer GRU)
N_MAX_AGENTS = 3
D_DIM = N_MAX_AGENTS * 2
TIMESTEPS = 8
BATCH = 6          # two sequences of 3 agents each
SEQ_START_END = [(0, 3), (3, 6)]
NEG_SLOPE = 0.01   # nn.LeakyReLU default

# static-input column layout: [ d (6) | g_t (4) | g_{t-1} (4) | x_t (2) | 1 ]
S_DIM = D_DIM + 2 * G_DIM + X_DIM           # 16
S_AUG = S_DIM + 1                           # 17 (constant-1 column for bias-as-row)
IN_ROWS = S_AUG + RNN_DIM                   # 33 rows of the fused first-layer weight
FUSE_COLS = 5 * H_DIM + 3 * RNN_DIM         # 208: dec_goal|enc|prior|dec|phi_x|GRU gh
PX_OUT_COLS = H_DIM + 3 * RNN_DIM           # 80 : enc part | GRU gi_x
PACK_COLS = FUSE_COLS                       # 208 lanes for the weight pack

# ----- original (unfused) Linear weights, stored (in_features, out_features) -----
W_SPECS = [
    ("dg_W1_d", (D_DIM, H_DIM)), ("dg_W1_h", (RNN_DIM, H_DIM)),
    ("dg_W1_g", (G_DIM, H_DIM)), ("dg_b1", (1, H_DIM)),
    ("dg_W2", (H_DIM, G_DIM)), ("dg_b2", (1, G_DIM)),
    ("gg_W1", (G_DIM, GRAPH_HID)), ("gg_b1", (1, GRAPH_HID)),
    ("gg_W2", (GRAPH_HID, G_DIM)), ("gg_b2", (1, G_DIM)),
    ("lgg_Wa", (G_DIM, G_DIM)), ("lgg_Wb", (G_DIM, G_DIM)), ("lgg_b", (1, G_DIM)),
    ("px_W1", (X_DIM, H_DIM)), ("px_b1", (1, H_DIM)),
    ("px_W2", (H_DIM, H_DIM)), ("px_b2", (1, H_DIM)),
    ("enc_W1_x", (H_DIM, H_DIM)), ("enc_W1_g", (G_DIM, H_DIM)),
    ("enc_W1_h", (RNN_DIM, H_DIM)), ("enc_b1", (1, H_DIM)),
    ("enc_W2", (H_DIM, H_DIM)), ("enc_b2", (1, H_DIM)),
    ("em_W", (H_DIM, Z_DIM)), ("em_b", (1, Z_DIM)),
    ("el_W", (H_DIM, Z_DIM)), ("el_b", (1, Z_DIM)),
    ("pr_W1_g", (G_DIM, H_DIM)), ("pr_W1_h", (RNN_DIM, H_DIM)), ("pr_b1", (1, H_DIM)),
    ("pr_W2", (H_DIM, H_DIM)), ("pr_b2", (1, H_DIM)),
    ("pm_W", (H_DIM, Z_DIM)), ("pm_b", (1, Z_DIM)),
    ("plv_W", (H_DIM, Z_DIM)), ("plv_b", (1, Z_DIM)),
    ("pz_W1", (Z_DIM, H_DIM)), ("pz_b1", (1, H_DIM)),
    ("pz_W2", (H_DIM, H_DIM)), ("pz_b2", (1, H_DIM)),
    ("dec_W1_d", (D_DIM, H_DIM)), ("dec_W1_g", (G_DIM, H_DIM)),
    ("dec_W1_z", (H_DIM, H_DIM)), ("dec_W1_h", (RNN_DIM, H_DIM)), ("dec_b1", (1, H_DIM)),
    ("dec_W2", (H_DIM, H_DIM)), ("dec_b2", (1, H_DIM)),
    ("dm_W", (H_DIM, X_DIM)), ("dm_b", (1, X_DIM)),
    ("dl_W", (H_DIM, X_DIM)), ("dl_b", (1, X_DIM)),
    ("rnn_Wih_x_r", (H_DIM, RNN_DIM)), ("rnn_Wih_x_z", (H_DIM, RNN_DIM)), ("rnn_Wih_x_n", (H_DIM, RNN_DIM)),
    ("rnn_Wih_z_r", (H_DIM, RNN_DIM)), ("rnn_Wih_z_z", (H_DIM, RNN_DIM)), ("rnn_Wih_z_n", (H_DIM, RNN_DIM)),
    ("rnn_bih_r", (1, RNN_DIM)), ("rnn_bih_z", (1, RNN_DIM)), ("rnn_bih_n", (1, RNN_DIM)),
    ("rnn_Whh_r", (RNN_DIM, RNN_DIM)), ("rnn_Whh_z", (RNN_DIM, RNN_DIM)), ("rnn_Whh_n", (RNN_DIM, RNN_DIM)),
    ("rnn_bhh_r", (1, RNN_DIM)), ("rnn_bhh_z", (1, RNN_DIM)), ("rnn_bhh_n", (1, RNN_DIM)),
    ("gh_W1", (RNN_DIM, GRAPH_HID)), ("gh_b1", (1, GRAPH_HID)),
    ("gh_W2", (GRAPH_HID, RNN_DIM)), ("gh_b2", (1, RNN_DIM)),
    ("lgh_Wg", (RNN_DIM, RNN_DIM)), ("lgh_Wh", (RNN_DIM, RNN_DIM)), ("lgh_b", (1, RNN_DIM)),
]

# ----- lane-dense fused weight pack: blocks packed side-by-side in row bands ---
PACK_BANDS = [
    [("W_in", (IN_ROWS, FUSE_COLS))],
    [("px_W2", (H_DIM, H_DIM)), ("W_px_out", (H_DIM, PX_OUT_COLS)),
     ("pz_W2", (H_DIM, H_DIM)), ("dec_W2", (H_DIM, H_DIM)),
     ("W_lgh", (2 * RNN_DIM, RNN_DIM)), ("dg_W2", (H_DIM, G_DIM)),
     ("W_dec_head", (H_DIM, 2 * X_DIM))],
    [("W_pz_out", (H_DIM, PX_OUT_COLS)), ("pz_W1", (Z_DIM, H_DIM)),
     ("gh_W1", (RNN_DIM, GRAPH_HID)), ("gh_W2", (GRAPH_HID, RNN_DIM)),
     ("gg_W1", (G_DIM, GRAPH_HID)), ("gg_W2", (GRAPH_HID, G_DIM)),
     ("W_lgg", (2 * G_DIM, G_DIM))],
    [("W_ep2", (2 * H_DIM, 2 * H_DIM)), ("W_ep_head", (2 * H_DIM, 4 * Z_DIM))],
]

BIAS_SPECS = [
    ("px_b2", H_DIM), ("b_px_out", PX_OUT_COLS), ("pz_b1", H_DIM), ("pz_b2", H_DIM),
    ("b_ep2", 2 * H_DIM), ("b_ep_head", 4 * Z_DIM), ("dec_b2", H_DIM),
    ("b_dec_head", 2 * X_DIM), ("dg_b2", G_DIM), ("gg_b1", GRAPH_HID),
    ("gg_b2", G_DIM), ("lgg_b", G_DIM), ("gh_b1", GRAPH_HID),
    ("gh_b2", RNN_DIM), ("lgh_b", RNN_DIM),
]


def _build_pack_layout():
    layout, row = {}, 0
    for band in PACK_BANDS:
        col, band_rows = 0, 0
        for name, (r, c) in band:
            layout[name] = (row, col, r, c)
            col += c
            band_rows = max(band_rows, r)
        assert col <= PACK_COLS, (col, PACK_COLS)
        row += ((band_rows + 7) // 8) * 8       # sublane-align each band
    return layout, row


def _build_bias_layout():
    layout, col = {}, 0
    for name, c in BIAS_SPECS:
        layout[name] = (col, c)
        col += c
    return layout, col


PACK_LAYOUT, PACK_ROWS = _build_pack_layout()     # 168 x 208 f32 (~140 KB)
BIAS_LAYOUT, BIAS_COLS = _build_bias_layout()     # 1 x 368


# ----------------------------- kernel ---------------------------------------
def dagnet_kernel(static_ref, eps_ref, w_ref, b_ref, loss_ref, h_ref):
    H, R, Z, X, G = H_DIM, RNN_DIM, Z_DIM, X_DIM, G_DIM
    LOG2PI = float(np.log(2.0 * np.pi))

    # ---- hoist loop-invariant weights (bf16 for the MXU) and bias broadcasts ----
    def wtile(name):
        r0, c0, r, c = PACK_LAYOUT[name]
        return w_ref[r0:r0 + r, c0:c0 + c].astype(jnp.bfloat16)

    def btile(name):
        c0, c = BIAS_LAYOUT[name]
        return jnp.broadcast_to(b_ref[:, c0:c0 + c], (BATCH, c))

    W = {name: wtile(name) for band in PACK_BANDS for name, _ in band}
    B_ = {name: btile(name) for name, _ in BIAS_SPECS}

    # per-sequence masks: adjacency is block-diagonal, fully-connected and
    # row-normalized, so adj @ X == per-sequence mean broadcast (VPU/XLU work).
    row_idx = lax.broadcasted_iota(jnp.int32, (BATCH, 1), 0)
    seg_masks = [jnp.where((row_idx >= s) & (row_idx < e), 1.0, 0.0).astype(jnp.float32)
                 for (s, e) in SEQ_START_END]
    seg_inv = [1.0 / float(e - s) for (s, e) in SEQ_START_END]

    def seg_mean(x):
        out = None
        for msk, inv in zip(seg_masks, seg_inv):
            m = jnp.sum(x * msk, axis=0, keepdims=True) * inv
            t = msk * m
            out = t if out is None else out + t
        return out

    def mm(a, b):   # bf16 MXU operands, f32 accumulate
        return jnp.dot(a.astype(jnp.bfloat16), b, preferred_element_type=jnp.float32)

    def leaky(v):
        return jnp.where(v > 0, v, NEG_SLOPE * v)

    def relu(v):
        return jnp.maximum(v, 0.0)

    def softmax(v):
        m = jnp.max(v, axis=-1, keepdims=True)
        e = jnp.exp(v - m)
        return e * pl.reciprocal(jnp.sum(e, axis=-1, keepdims=True), approx=True)

    def step(t, carry):
        h_last, kld, nll, ce = carry
        s_t = static_ref[t]                                   # (B, 17) [d|g|g_prev|x|1]
        eps = eps_ref[t]                                      # (B, Z)
        g_t = s_t[:, D_DIM:D_DIM + G]
        x_t = s_t[:, D_DIM + 2 * G:D_DIM + 2 * G + X]

        # single fused first-layer matmul; biases folded via the constant-1 column
        u = jnp.concatenate([s_t, h_last], axis=1)            # (B, 33)
        fused = mm(u, W["W_in"])                              # (B, 208)

        # dec_goal
        dg1 = relu(fused[:, 0:H])
        dec_goal_t = softmax(mm(dg1, W["dg_W2"]) + B_["dg_b2"])

        # graph_goals (2-layer GCN, adjacency as per-sequence mean)
        gg1 = relu(seg_mean(mm(dec_goal_t, W["gg_W1"])) + B_["gg_b1"])
        g_graph = seg_mean(mm(gg1, W["gg_W2"])) + B_["gg_b2"]

        # lg_goals (fused (2G,G) matmul) + cross-entropy (reference applies no log)
        g_comb = softmax(mm(jnp.concatenate([dec_goal_t, g_graph], axis=1),
                            W["W_lgg"]) + B_["lgg_b"])
        ce = ce - jnp.sum(g_t * g_comb, keepdims=True)

        # phi_x (first layer arrives fused inside `fused`)
        phi_x = leaky(mm(leaky(fused[:, 4 * H:5 * H]), W["px_W2"]) + B_["px_b2"])
        px_proj = mm(phi_x, W["W_px_out"]) + B_["b_px_out"]   # [enc part | GRU gi_x + b_ih]

        # encoder & prior: independent until z_t -> block-diagonal fused layers
        e1 = leaky(fused[:, H:2 * H] + px_proj[:, 0:H])
        p1 = leaky(fused[:, 2 * H:3 * H])
        ep2 = leaky(mm(jnp.concatenate([e1, p1], axis=1), W["W_ep2"]) + B_["b_ep2"])
        heads = mm(ep2, W["W_ep_head"]) + B_["b_ep_head"]     # [em | el | pm | plv]
        enc_mean, enc_logvar = heads[:, 0:Z], heads[:, Z:2 * Z]
        prior_mean, prior_logvar = heads[:, 2 * Z:3 * Z], heads[:, 3 * Z:4 * Z]

        # reparameterize (uniform eps precomputed host-side -> torch.rand_like)
        z_t = eps * jnp.exp(0.5 * enc_logvar) + enc_mean

        # phi_z
        phi_z = leaky(mm(leaky(mm(z_t, W["pz_W1"]) + B_["pz_b1"]),
                         W["pz_W2"]) + B_["pz_b2"])
        pz_proj = mm(phi_z, W["W_pz_out"])                    # [dec part | GRU gi_z]

        # decoder
        dd1 = leaky(fused[:, 3 * H:4 * H] + pz_proj[:, 0:H])
        dec_t = leaky(mm(dd1, W["dec_W2"]) + B_["dec_b2"])
        dhead = mm(dec_t, W["W_dec_head"]) + B_["b_dec_head"]
        dec_mean, dec_logvar = dhead[:, 0:X], dhead[:, X:2 * X]

        # GRU cell (n_layers == 1), gates r|z|n fused along lanes
        gi = px_proj[:, H:H + 3 * R] + pz_proj[:, H:H + 3 * R]   # includes b_ih
        gh = fused[:, 5 * H:5 * H + 3 * R]                       # Whh @ h + b_hh
        r_gate = jax.nn.sigmoid(gi[:, 0:R] + gh[:, 0:R])
        z_gate = jax.nn.sigmoid(gi[:, R:2 * R] + gh[:, R:2 * R])
        n_gate = jnp.tanh(gi[:, 2 * R:3 * R] + r_gate * gh[:, 2 * R:3 * R])
        h_new = (1.0 - z_gate) * n_gate + z_gate * h_last

        # KLD (per-timestep batch mean, accumulated)
        k1 = jnp.sum(prior_logvar - enc_logvar, axis=1, keepdims=True)
        k2 = jnp.sum(jnp.exp(enc_logvar - prior_logvar), axis=1, keepdims=True)
        k3 = jnp.sum((enc_mean - prior_mean) ** 2 / jnp.exp(prior_logvar),
                     axis=1, keepdims=True)
        kld = kld + (0.5 / BATCH) * jnp.sum(k1 - float(Z) + k2 + k3, keepdims=True)

        # NLL (matches _nll_gauss)
        n1 = jnp.sum((x_t - dec_mean) ** 2 / jnp.exp(dec_logvar), axis=1, keepdims=True)
        n3 = jnp.sum(dec_logvar, axis=1, keepdims=True)
        nll = nll + (0.5 / BATCH) * jnp.sum(n1 + float(X) * LOG2PI + n3, keepdims=True)

        # graph_hiddens (GCN) + lg_hiddens (fused (2R,R) matmul)
        hg1 = relu(seg_mean(mm(h_new, W["gh_W1"])) + B_["gh_b1"])
        h_graph = seg_mean(mm(hg1, W["gh_W2"])) + B_["gh_b2"]
        h_final = mm(jnp.concatenate([h_graph, h_new], axis=1), W["W_lgh"]) + B_["lgh_b"]
        return (h_final, kld, nll, ce)

    h0 = jnp.zeros((BATCH, RNN_DIM), jnp.float32)
    zero = jnp.zeros((1, 1), jnp.float32)
    # TODO(synk): on v7x the two independent agent sequences (rows 0:3 / 3:6)
    # could be split across the 2 TensorCores (pl.core_map) for ~2x; kept
    # single-core here so v5e/v6e do not serialize two half-batches.
    h_fin, kld, nll, ce = lax.fori_loop(
        0, TIMESTEPS - 1, step, (h0, zero, zero, zero), unroll=True)

    loss_ref[...] = jnp.concatenate([kld, nll, ce, zero], axis=1)   # [KLD|NLL|CE|0]
    h_ref[0] = h_fin


# ----------------------------- wrapper ---------------------------------------
def dagnet_forward(w_packed, b_packed, static_seq, eps_seq):
    vmem = lambda: pl.BlockSpec(memory_space=pltpu.MemorySpace.VMEM)

    mm_dims = [
        (IN_ROWS, FUSE_COLS), (H_DIM, G_DIM), (G_DIM, GRAPH_HID), (GRAPH_HID, G_DIM),
        (2 * G_DIM, G_DIM), (H_DIM, H_DIM), (H_DIM, PX_OUT_COLS),
        (2 * H_DIM, 2 * H_DIM), (2 * H_DIM, 4 * Z_DIM), (Z_DIM, H_DIM),
        (H_DIM, H_DIM), (H_DIM, PX_OUT_COLS), (H_DIM, H_DIM), (H_DIM, 2 * X_DIM),
        (RNN_DIM, GRAPH_HID), (GRAPH_HID, RNN_DIM), (2 * RNN_DIM, RNN_DIM),
    ]
    flops = int(2 * BATCH * sum(k * n for k, n in mm_dims) * (TIMESTEPS - 1))
    transcendentals = int(BATCH * (TIMESTEPS - 1)
                          * (2 * G_DIM + 4 * Z_DIM + 3 * RNN_DIM + 2 * X_DIM))
    bytes_accessed = int(sum(int(x.size) * x.dtype.itemsize
                             for x in (w_packed, b_packed, static_seq, eps_seq))
                         + 4 * (4 + N_LAYERS * BATCH * RNN_DIM))

    out_shapes = (
        jax.ShapeDtypeStruct((1, 4), jnp.float32),                      # [KLD, NLL, CE, 0]
        jax.ShapeDtypeStruct((N_LAYERS, BATCH, RNN_DIM), jnp.float32),  # h
    )
    fn = pl.pallas_call(
        dagnet_kernel,
        out_shape=out_shapes,
        in_specs=[vmem(), vmem(), vmem(), vmem()],
        out_specs=(vmem(), vmem()),
        compiler_params=pltpu.CompilerParams(vmem_limit_bytes=32 * 1024 * 1024),
        cost_estimate=pl.CostEstimate(flops=flops, transcendentals=transcendentals,
                                      bytes_accessed=bytes_accessed),
    )
    return fn(static_seq, eps_seq, w_packed, b_packed)


# ----------------------------- host-side glue --------------------------------
def fuse_params(p):
    """Fuse the per-layer Linear weights into the packed kernel layout."""
    H, R, G, Z = H_DIM, RNN_DIM, G_DIM, Z_DIM
    z = lambda r, c: np.zeros((r, c), np.float32)
    f = {}

    rd = slice(0, D_DIM)                       # d_t rows
    rg = slice(D_DIM, D_DIM + G)               # g_t rows
    rgp = slice(D_DIM + G, D_DIM + 2 * G)      # g_{t-1} rows
    rx = slice(D_DIM + 2 * G, S_DIM)           # x_t rows
    r1 = S_DIM                                 # constant-1 row (bias-as-row)
    rh = slice(S_AUG, IN_ROWS)                 # h[-1] rows

    Win = z(IN_ROWS, FUSE_COLS)
    # dec_goal L1 (cols 0:H) : Linear(d + h + g_prev -> H)
    Win[rd, 0:H] = p["dg_W1_d"]; Win[rgp, 0:H] = p["dg_W1_g"]
    Win[rh, 0:H] = p["dg_W1_h"]; Win[r1, 0:H] = p["dg_b1"][0]
    # enc L1 partial (cols H:2H) : g + h (+bias); phi_x part arrives via W_px_out
    Win[rg, H:2 * H] = p["enc_W1_g"]; Win[rh, H:2 * H] = p["enc_W1_h"]
    Win[r1, H:2 * H] = p["enc_b1"][0]
    # prior L1 (cols 2H:3H)
    Win[rg, 2 * H:3 * H] = p["pr_W1_g"]; Win[rh, 2 * H:3 * H] = p["pr_W1_h"]
    Win[r1, 2 * H:3 * H] = p["pr_b1"][0]
    # dec L1 partial (cols 3H:4H) : d + g + h (+bias); phi_z part via W_pz_out
    Win[rd, 3 * H:4 * H] = p["dec_W1_d"]; Win[rg, 3 * H:4 * H] = p["dec_W1_g"]
    Win[rh, 3 * H:4 * H] = p["dec_W1_h"]; Win[r1, 3 * H:4 * H] = p["dec_b1"][0]
    # phi_x L1 (cols 4H:5H)
    Win[rx, 4 * H:5 * H] = p["px_W1"]; Win[r1, 4 * H:5 * H] = p["px_b1"][0]
    # GRU hidden gates gh = Whh @ h + b_hh (cols 5H:5H+3R), order r|z|n
    Win[rh, 5 * H:5 * H + R] = p["rnn_Whh_r"]; Win[r1, 5 * H:5 * H + R] = p["rnn_bhh_r"][0]
    Win[rh, 5 * H + R:5 * H + 2 * R] = p["rnn_Whh_z"]
    Win[r1, 5 * H + R:5 * H + 2 * R] = p["rnn_bhh_z"][0]
    Win[rh, 5 * H + 2 * R:5 * H + 3 * R] = p["rnn_Whh_n"]
    Win[r1, 5 * H + 2 * R:5 * H + 3 * R] = p["rnn_bhh_n"][0]
    f["W_in"] = Win

    f["px_W2"], f["px_b2"] = p["px_W2"], p["px_b2"]
    f["W_px_out"] = np.concatenate(
        [p["enc_W1_x"], p["rnn_Wih_x_r"], p["rnn_Wih_x_z"], p["rnn_Wih_x_n"]], axis=1)
    f["b_px_out"] = np.concatenate(
        [z(1, H), p["rnn_bih_r"], p["rnn_bih_z"], p["rnn_bih_n"]], axis=1)
    f["pz_W1"], f["pz_b1"] = p["pz_W1"], p["pz_b1"]
    f["pz_W2"], f["pz_b2"] = p["pz_W2"], p["pz_b2"]
    f["W_pz_out"] = np.concatenate(
        [p["dec_W1_z"], p["rnn_Wih_z_r"], p["rnn_Wih_z_z"], p["rnn_Wih_z_n"]], axis=1)

    # enc/prior second layers + mean/logvar heads (block-diagonal)
    Wep2 = z(2 * H, 2 * H)
    Wep2[0:H, 0:H] = p["enc_W2"]; Wep2[H:2 * H, H:2 * H] = p["pr_W2"]
    f["W_ep2"] = Wep2
    f["b_ep2"] = np.concatenate([p["enc_b2"], p["pr_b2"]], axis=1)
    Weph = z(2 * H, 4 * Z)
    Weph[0:H, 0:Z] = p["em_W"]; Weph[0:H, Z:2 * Z] = p["el_W"]
    Weph[H:2 * H, 2 * Z:3 * Z] = p["pm_W"]; Weph[H:2 * H, 3 * Z:4 * Z] = p["plv_W"]
    f["W_ep_head"] = Weph
    f["b_ep_head"] = np.concatenate([p["em_b"], p["el_b"], p["pm_b"], p["plv_b"]], axis=1)

    f["dec_W2"], f["dec_b2"] = p["dec_W2"], p["dec_b2"]
    f["W_dec_head"] = np.concatenate([p["dm_W"], p["dl_W"]], axis=1)
    f["b_dec_head"] = np.concatenate([p["dm_b"], p["dl_b"]], axis=1)
    f["dg_W2"], f["dg_b2"] = p["dg_W2"], p["dg_b2"]
    f["W_lgg"] = np.concatenate([p["lgg_Wa"], p["lgg_Wb"]], axis=0)   # input [dec_goal|g_graph]
    f["W_lgh"] = np.concatenate([p["lgh_Wg"], p["lgh_Wh"]], axis=0)   # input [h_graph|h_new]
    for n in ("gg_W1", "gg_b1", "gg_W2", "gg_b2", "lgg_b",
              "gh_W1", "gh_b1", "gh_W2", "gh_b2", "lgh_b"):
        f[n] = p[n]
    return f


def pack_weights(fused):
    buf = np.zeros((PACK_ROWS, PACK_COLS), np.float32)
    for band in PACK_BANDS:
        for name, (r, c) in band:
            r0, c0, rr, cc = PACK_LAYOUT[name]
            arr = np.asarray(fused[name], np.float32)
            assert arr.shape == (r, c) == (rr, cc), (name, arr.shape, (r, c))
            buf[r0:r0 + r, c0:c0 + c] = arr
    return jnp.asarray(buf)


def pack_biases(fused):
    buf = np.zeros((1, BIAS_COLS), np.float32)
    for name, c in BIAS_SPECS:
        c0, cc = BIAS_LAYOUT[name]
        arr = np.asarray(fused[name], np.float32)
        assert arr.shape == (1, c) and cc == c, (name, arr.shape, c)
        buf[:, c0:c0 + c] = arr
    return jnp.asarray(buf)


def build_d(traj_np):
    # d[:, start:end, :n*2] = traj[:, start:end, :].reshape(T, -1) broadcast over agents
    d = np.zeros((TIMESTEPS, BATCH, D_DIM), np.float32)
    for (start, end) in SEQ_START_END:
        na = end - start
        flat = traj_np[:, start:end, :].reshape(TIMESTEPS, -1)
        d[:, start:end, :na * 2] = flat[:, None, :]
    return d


def build_goals():
    idx = (np.arange(TIMESTEPS)[:, None] + np.arange(BATCH)[None, :]) % G_DIM
    return np.eye(G_DIM, dtype=np.float32)[idx]


def init_params(key):
    params = {}
    for i, (name, shape) in enumerate(W_SPECS):
        k = jax.random.fold_in(key, i)
        fan_in = shape[0] if shape[0] > 1 else max(shape[1], 1)
        params[name] = np.asarray(
            jax.random.normal(k, shape, jnp.float32) / np.sqrt(float(fan_in)),
            dtype=np.float32)
    return params


if __name__ == "__main__":
    key = jax.random.PRNGKey(0)
    k_traj, k_rel, k_eps, k_w = jax.random.split(key, 4)
    traj = np.asarray(jax.random.normal(k_traj, (TIMESTEPS, BATCH, X_DIM), jnp.float32))
    traj_rel = np.asarray(jax.random.normal(k_rel, (TIMESTEPS, BATCH, X_DIM), jnp.float32))
    # TODO(synk): torch.rand_like (uniform) reparameterization noise is precomputed
    # host-side and fed as an input to keep the kernel deterministic.
    eps = jax.random.uniform(k_eps, (TIMESTEPS - 1, BATCH, Z_DIM), jnp.float32)

    params = init_params(k_w)
    fused = fuse_params(params)
    w_packed = pack_weights(fused)
    b_packed = pack_biases(fused)

    d = build_d(traj)
    goals_ohe = build_goals()
    ones = np.ones((TIMESTEPS - 1, BATCH, 1), np.float32)
    static_seq = jnp.asarray(np.concatenate(
        [d[1:], goals_ohe[1:], goals_ohe[:-1], traj_rel[1:], ones], axis=-1)
        .astype(np.float32))

    losses, h = dagnet_forward(w_packed, b_packed, static_seq, eps)
    jax.block_until_ready((losses, h))
    kld, nll, ce = losses[0, 0], losses[0, 1], losses[0, 2]
    assert np.all(np.isfinite(np.asarray(losses)))
    assert np.all(np.isfinite(np.asarray(h)))
    print("KERNEL_OK")
</pallas_src>

<mosaic_0001>
module attributes {stable_mosaic.version = 11 : i64} {
  func.func @dagnet_kernel(%arg0: memref<7x6x17xf32, #tpu.memory_space<vmem>>, %arg1: memref<7x6x8xf32, #tpu.memory_space<vmem>>, %arg2: memref<168x208xf32, #tpu.memory_space<vmem>>, %arg3: memref<1x368xf32, #tpu.memory_space<vmem>>, %arg4: memref<1x4xf32, #tpu.memory_space<vmem>>, %arg5: memref<1x6x16xf32, #tpu.memory_space<vmem>>) attributes {dimension_semantics = [], scalar_prefetch = 0 : i64, scratch_operands = 0 : i64, tpu.core_type = #tpu.core_type<tc>} {
    %c0 = arith.constant 0 : index
    %c0_0 = arith.constant 0 : index
    %0 = vector.load %arg2[%c0, %c0_0] : memref<168x208xf32, #tpu.memory_space<vmem>>, vector<33x208xf32>
    %1 = arith.truncf %0 : vector<33x208xf32> to vector<33x208xbf16>
    %c40 = arith.constant 40 : index
    %c0_1 = arith.constant 0 : index
    %2 = vector.load %arg2[%c40, %c0_1] : memref<168x208xf32, #tpu.memory_space<vmem>>, vector<32x32xf32>
    %3 = arith.truncf %2 : vector<32x32xf32> to vector<32x32xbf16>
    %c40_2 = arith.constant 40 : index
    %c32 = arith.constant 32 : index
    %4 = vector.load %arg2[%c40_2, %c32] : memref<168x208xf32, #tpu.memory_space<vmem>>, vector<32x80xf32>
    %5 = arith.truncf %4 : vector<32x80xf32> to vector<32x80xbf16>
    %c40_3 = arith.constant 40 : index
    %c112 = arith.constant 112 : index
    %6 = vector.load %arg2[%c40_3, %c112] : memref<168x208xf32, #tpu.memory_space<vmem>>, vector<32x32xf32>
    %7 = arith.truncf %6 : vector<32x32xf32> to vector<32x32xbf16>
    %c40_4 = arith.constant 40 : index
    %c144 = arith.constant 144 : index
    %8 = vector.load %arg2[%c40_4, %c144] : memref<168x208xf32, #tpu.memory_space<vmem>>, vector<32x32xf32>
    %9 = arith.truncf %8 : vector<32x32xf32> to vector<32x32xbf16>
    %c40_5 = arith.constant 40 : index
    %c176 = arith.constant 176 : index
    %10 = vector.load %arg2[%c40_5, %c176] : memref<168x208xf32, #tpu.memory_space<vmem>>, vector<32x16xf32>
    %11 = arith.truncf %10 : vector<32x16xf32> to vector<32x16xbf16>
    %c40_6 = arith.constant 40 : index
    %c192 = arith.constant 192 : index
    %12 = vector.load %arg2[%c40_6, %c192] : memref<168x208xf32, #tpu.memory_space<vmem>>, vector<32x4xf32>
    %13 = arith.truncf %12 : vector<32x4xf32> to vector<32x4xbf16>
    %c40_7 = arith.constant 40 : index
    %c196 = arith.constant 196 : index
    %14 = vector.load %arg2[%c40_7, %c196] : memref<168x208xf32, #tpu.memory_space<vmem>>, vector<32x4xf32>
    %15 = arith.truncf %14 : vector<32x4xf32> to vector<32x4xbf16>
    %c72 = arith.constant 72 : index
    %c0_8 = arith.constant 0 : index
    %16 = vector.load %arg2[%c72, %c0_8] : memref<168x208xf32, #tpu.memory_space<vmem>>, vector<32x80xf32>
    %17 = arith.truncf %16 : vector<32x80xf32> to vector<32x80xbf16>
    %c72_9 = arith.constant 72 : index
    %c80 = arith.constant 80 : index
    %18 = vector.load %arg2[%c72_9, %c80] : memref<168x208xf32, #tpu.memory_space<vmem>>, vector<8x32xf32>
    %19 = arith.truncf %18 : vector<8x32xf32> to vector<8x32xbf16>
    %c72_10 = arith.constant 72 : index
    %c112_11 = arith.constant 112 : index
    %20 = vector.load %arg2[%c72_10, %c112_11] : memref<168x208xf32, #tpu.memory_space<vmem>>, vector<16x8xf32>
    %21 = arith.truncf %20 : vector<16x8xf32> to vector<16x8xbf16>
    %c72_12 = arith.constant 72 : index
    %c120 = arith.constant 120 : index
    %22 = vector.load %arg2[%c72_12, %c120] : memref<168x208xf32, #tpu.memory_space<vmem>>, vector<8x16xf32>
    %23 = arith.truncf %22 : vector<8x16xf32> to vector<8x16xbf16>
    %c72_13 = arith.constant 72 : index
    %c136 = arith.constant 136 : index
    %24 = vector.load %arg2[%c72_13, %c136] : memref<168x208xf32, #tpu.memory_space<vmem>>, vector<4x8xf32>
    %25 = arith.truncf %24 : vector<4x8xf32> to vector<4x8xbf16>
    %c72_14 = arith.constant 72 : index
    %c144_15 = arith.constant 144 : index
    %26 = vector.load %arg2[%c72_14, %c144_15] : memref<168x208xf32, #tpu.memory_space<vmem>>, vector<8x4xf32>
    %27 = arith.truncf %26 : vector<8x4xf32> to vector<8x4xbf16>
    %c72_16 = arith.constant 72 : index
    %c148 = arith.constant 148 : index
    %28 = vector.load %arg2[%c72_16, %c148] : memref<168x208xf32, #tpu.memory_space<vmem>>, vector<8x4xf32>
    %29 = arith.truncf %28 : vector<8x4xf32> to vector<8x4xbf16>
    %c104 = arith.constant 104 : index
    %c0_17 = arith.constant 0 : index
    %30 = vector.load %arg2[%c104, %c0_17] : memref<168x208xf32, #tpu.memory_space<vmem>>, vector<64x64xf32>
    %31 = arith.truncf %30 : vector<64x64xf32> to vector<64x64xbf16>
    %c104_18 = arith.constant 104 : index
    %c64 = arith.constant 64 : index
    %32 = vector.load %arg2[%c104_18, %c64] : memref<168x208xf32, #tpu.memory_space<vmem>>, vector<64x32xf32>
    %33 = arith.truncf %32 : vector<64x32xf32> to vector<64x32xbf16>
    %c0_19 = arith.constant 0 : index
    %c0_20 = arith.constant 0 : index
    %34 = vector.load %arg3[%c0_19, %c0_20] : memref<1x368xf32, #tpu.memory_space<vmem>>, vector<1x32xf32>
    %35 = vector.shape_cast %34 : vector<1x32xf32> to vector<1x32xf32>
    %36 = vector.broadcast %35 : vector<1x32xf32> to vector<6x32xf32>
    %c0_21 = arith.constant 0 : index
    %c32_22 = arith.constant 32 : index
    %37 = vector.load %arg3[%c0_21, %c32_22] : memref<1x368xf32, #tpu.memory_space<vmem>>, vector<1x80xf32>
    %38 = vector.shape_cast %37 : vector<1x80xf32> to vector<1x80xf32>
    %39 = vector.broadcast %38 : vector<1x80xf32> to vector<6x80xf32>
    %c0_23 = arith.constant 0 : index
    %c112_24 = arith.constant 112 : index
    %40 = vector.load %arg3[%c0_23, %c112_24] : memref<1x368xf32, #tpu.memory_space<vmem>>, vector<1x32xf32>
    %41 = vector.shape_cast %40 : vector<1x32xf32> to vector<1x32xf32>
    %42 = vector.broadcast %41 : vector<1x32xf32> to vector<6x32xf32>
    %c0_25 = arith.constant 0 : index
    %c144_26 = arith.constant 144 : index
    %43 = vector.load %arg3[%c0_25, %c144_26] : memref<1x368xf32, #tpu.memory_space<vmem>>, vector<1x32xf32>
    %44 = vector.shape_cast %43 : vector<1x32xf32> to vector<1x32xf32>
    %45 = vector.broadcast %44 : vector<1x32xf32> to vector<6x32xf32>
    %c0_27 = arith.constant 0 : index
    %c176_28 = arith.constant 176 : index
    %46 = vector.load %arg3[%c0_27, %c176_28] : memref<1x368xf32, #tpu.memory_space<vmem>>, vector<1x64xf32>
    %47 = vector.shape_cast %46 : vector<1x64xf32> to vector<1x64xf32>
    %48 = vector.broadcast %47 : vector<1x64xf32> to vector<6x64xf32>
    %c0_29 = arith.constant 0 : index
    %c240 = arith.constant 240 : index
    %49 = vector.load %arg3[%c0_29, %c240] : memref<1x368xf32, #tpu.memory_space<vmem>>, vector<1x32xf32>
    %50 = vector.shape_cast %49 : vector<1x32xf32> to vector<1x32xf32>
    %51 = vector.broadcast %50 : vector<1x32xf32> to vector<6x32xf32>
    %c0_30 = arith.constant 0 : index
    %c272 = arith.constant 272 : index
    %52 = vector.load %arg3[%c0_30, %c272] : memref<1x368xf32, #tpu.memory_space<vmem>>, vector<1x32xf32>
    %53 = vector.shape_cast %52 : vector<1x32xf32> to vector<1x32xf32>
    %54 = vector.broadcast %53 : vector<1x32xf32> to vector<6x32xf32>
    %c0_31 = arith.constant 0 : index
    %c304 = arith.constant 304 : index
    %55 = vector.load %arg3[%c0_31, %c304] : memref<1x368xf32, #tpu.memory_space<vmem>>, vector<1x4xf32>
    %56 = vector.shape_cast %55 : vector<1x4xf32> to vector<1x4xf32>
    %57 = vector.broadcast %56 : vector<1x4xf32> to vector<6x4xf32>
    %c0_32 = arith.constant 0 : index
    %c308 = arith.constant 308 : index
    %58 = vector.load %arg3[%c0_32, %c308] : memref<1x368xf32, #tpu.memory_space<vmem>>, vector<1x4xf32>
    %59 = vector.shape_cast %58 : vector<1x4xf32> to vector<1x4xf32>
    %60 = vector.broadcast %59 : vector<1x4xf32> to vector<6x4xf32>
    %c0_33 = arith.constant 0 : index
    %c312 = arith.constant 312 : index
    %61 = vector.load %arg3[%c0_33, %c312] : memref<1x368xf32, #tpu.memory_space<vmem>>, vector<1x8xf32>
    %62 = vector.shape_cast %61 : vector<1x8xf32> to vector<1x8xf32>
    %63 = vector.broadcast %62 : vector<1x8xf32> to vector<6x8xf32>
    %c0_34 = arith.constant 0 : index
    %c320 = arith.constant 320 : index
    %64 = vector.load %arg3[%c0_34, %c320] : memref<1x368xf32, #tpu.memory_space<vmem>>, vector<1x4xf32>
    %65 = vector.shape_cast %64 : vector<1x4xf32> to vector<1x4xf32>
    %66 = vector.broadcast %65 : vector<1x4xf32> to vector<6x4xf32>
    %c0_35 = arith.constant 0 : index
    %c324 = arith.constant 324 : index
    %67 = vector.load %arg3[%c0_35, %c324] : memref<1x368xf32, #tpu.memory_space<vmem>>, vector<1x4xf32>
    %68 = vector.shape_cast %67 : vector<1x4xf32> to vector<1x4xf32>
    %69 = vector.broadcast %68 : vector<1x4xf32> to vector<6x4xf32>
    %c0_36 = arith.constant 0 : index
    %c328 = arith.constant 328 : index
    %70 = vector.load %arg3[%c0_36, %c328] : memref<1x368xf32, #tpu.memory_space<vmem>>, vector<1x8xf32>
    %71 = vector.shape_cast %70 : vector<1x8xf32> to vector<1x8xf32>
    %72 = vector.broadcast %71 : vector<1x8xf32> to vector<6x8xf32>
    %c0_37 = arith.constant 0 : index
    %c336 = arith.constant 336 : index
    %73 = vector.load %arg3[%c0_37, %c336] : memref<1x368xf32, #tpu.memory_space<vmem>>, vector<1x16xf32>
    %74 = vector.shape_cast %73 : vector<1x16xf32> to vector<1x16xf32>
    %75 = vector.broadcast %74 : vector<1x16xf32> to vector<6x16xf32>
    %c0_38 = arith.constant 0 : index
    %c352 = arith.constant 352 : index
    %76 = vector.load %arg3[%c0_38, %c352] : memref<1x368xf32, #tpu.memory_space<vmem>>, vector<1x16xf32>
    %77 = vector.shape_cast %76 : vector<1x16xf32> to vector<1x16xf32>
    %78 = vector.broadcast %77 : vector<1x16xf32> to vector<6x16xf32>
    %79 = tpu.iota {dimensions = array<i32: 0>} : vector<6x1xi32>
    %c0_i32 = arith.constant 0 : i32
    %80 = vector.broadcast %c0_i32 : i32 to vector<6x1xi32>
    %81 = arith.cmpi sge, %79, %80 : vector<6x1xi32>
    %c3_i32 = arith.constant 3 : i32
    %82 = vector.broadcast %c3_i32 : i32 to vector<6x1xi32>
    %83 = arith.cmpi slt, %79, %82 : vector<6x1xi32>
    %84 = arith.andi %81, %83 : vector<6x1xi1>
    %cst = arith.constant 1.000000e+00 : f32
    %cst_39 = arith.constant 0.000000e+00 : f32
    %85 = vector.broadcast %cst : f32 to vector<6x1xf32>
    %86 = vector.broadcast %cst_39 : f32 to vector<6x1xf32>
    %87 = arith.select %84, %85, %86 : vector<6x1xi1>, vector<6x1xf32>
    %c3_i32_40 = arith.constant 3 : i32
    %88 = vector.broadcast %c3_i32_40 : i32 to vector<6x1xi32>
    %89 = arith.cmpi sge, %79, %88 : vector<6x1xi32>
    %c6_i32 = arith.constant 6 : i32
    %90 = vector.broadcast %c6_i32 : i32 to vector<6x1xi32>
    %91 = arith.cmpi slt, %79, %90 : vector<6x1xi32>
    %92 = arith.andi %89, %91 : vector<6x1xi1>
    %cst_41 = arith.constant 1.000000e+00 : f32
    %cst_42 = arith.constant 0.000000e+00 : f32
    %93 = vector.broadcast %cst_41 : f32 to vector<6x1xf32>
    %94 = vector.broadcast %cst_42 : f32 to vector<6x1xf32>
    %95 = arith.select %92, %93, %94 : vector<6x1xi1>, vector<6x1xf32>
    %cst_43 = arith.constant 0.000000e+00 : f32
    %96 = vector.broadcast %cst_43 : f32 to vector<6x16xf32>
    %cst_44 = arith.constant 0.000000e+00 : f32
    %97 = vector.broadcast %cst_44 : f32 to vector<1x1xf32>
    %c0_i32_45 = arith.constant 0 : i32
    %98 = arith.index_cast %c0_i32_45 : i32 to index
    %c0_46 = arith.constant 0 : index
    %c0_47 = arith.constant 0 : index
    %99 = vector.load %arg0[%98, %c0_46, %c0_47] : memref<7x6x17xf32, #tpu.memory_space<vmem>>, vector<1x6x17xf32>
    %100 = vector.shape_cast %99 : vector<1x6x17xf32> to vector<6x17xf32>
    %101 = arith.index_cast %c0_i32_45 : i32 to index
    %c0_48 = arith.constant 0 : index
    %c0_49 = arith.constant 0 : index
    %102 = vector.load %arg1[%101, %c0_48, %c0_49] : memref<7x6x8xf32, #tpu.memory_space<vmem>>, vector<1x6x8xf32>
    %103 = vector.shape_cast %102 : vector<1x6x8xf32> to vector<6x8xf32>
    %104 = vector.extract_strided_slice %100 {offsets = [0, 6], sizes = [6, 4], strides = [1, 1]} : vector<6x17xf32> to vector<6x4xf32>
    %105 = vector.extract_strided_slice %100 {offsets = [0, 14], sizes = [6, 2], strides = [1, 1]} : vector<6x17xf32> to vector<6x2xf32>
    %106 = tpu.concatenate %100, %96 in 1 : vector<6x17xf32>, vector<6x16xf32> -> vector<6x33xf32>
    %107 = arith.truncf %106 : vector<6x33xf32> to vector<6x33xbf16>
    %cst_50 = arith.constant dense<0.000000e+00> : vector<6x208xf32>
    %108 = tpu.matmul %107, %1, %cst_50 {dimension_numbers = #tpu.dot_dimension_numbers<[1], [0], [0], [1], [0, 0, 1, 1], [], []>} : vector<6x33xbf16>, vector<33x208xbf16>, vector<6x208xf32> -> vector<6x208xf32>
    %109 = vector.extract_strided_slice %108 {offsets = [0, 0], sizes = [6, 32], strides = [1, 1]} : vector<6x208xf32> to vector<6x32xf32>
    %cst_51 = arith.constant 0.000000e+00 : f32
    %110 = vector.broadcast %cst_51 : f32 to vector<6x32xf32>
    %111 = arith.maximumf %109, %110 : vector<6x32xf32>
    %112 = arith.truncf %111 : vector<6x32xf32> to vector<6x32xbf16>
    %cst_52 = arith.constant dense<0.000000e+00> : vector<6x4xf32>
    %113 = tpu.matmul %112, %13, %cst_52 {dimension_numbers = #tpu.dot_dimension_numbers<[1], [0], [0], [1], [0, 0, 1, 1], [], []>} : vector<6x32xbf16>, vector<32x4xbf16>, vector<6x4xf32> -> vector<6x4xf32>
    %114 = arith.addf %113, %60 : vector<6x4xf32>
    %cst_53 = arith.constant dense<0xFF800000> : vector<6xf32>
    %115 = vector.multi_reduction <maximumf>, %114, %cst_53 [1] : vector<6x4xf32> to vector<6xf32>
    %116 = vector.shape_cast %115 : vector<6xf32> to vector<6x1xf32>
    %117 = vector.broadcast %116 : vector<6x1xf32> to vector<6x4xf32>
    %118 = arith.subf %114, %117 : vector<6x4xf32>
    %119 = math.exp %118 : vector<6x4xf32>
    %cst_54 = arith.constant dense<0.000000e+00> : vector<6xf32>
    %120 = vector.multi_reduction <add>, %119, %cst_54 [1] : vector<6x4xf32> to vector<6xf32>
    %121 = vector.shape_cast %120 : vector<6xf32> to vector<6x1xf32>
    %122 = tpu.reciprocal %121 {approx = true} : vector<6x1xf32> -> vector<6x1xf32>
    %123 = vector.broadcast %122 : vector<6x1xf32> to vector<6x4xf32>
    %124 = arith.mulf %119, %123 : vector<6x4xf32>
    %125 = arith.truncf %124 : vector<6x4xf32> to vector<6x4xbf16>
    %cst_55 = arith.constant dense<0.000000e+00> : vector<6x8xf32>
    %126 = tpu.matmul %125, %25, %cst_55 {dimension_numbers = #tpu.dot_dimension_numbers<[1], [0], [0], [1], [0, 0, 1, 1], [], []>} : vector<6x4xbf16>, vector<4x8xbf16>, vector<6x8xf32> -> vector<6x8xf32>
    %127 = vector.broadcast %87 : vector<6x1xf32> to vector<6x8xf32>
    %128 = arith.mulf %126, %127 : vector<6x8xf32>
    %cst_56 = arith.constant dense<0.000000e+00> : vector<8xf32>
    %129 = vector.multi_reduction <add>, %128, %cst_56 [0] : vector<6x8xf32> to vector<8xf32>
    %130 = vector.shape_cast %129 : vector<8xf32> to vector<1x8xf32>
    %cst_57 = arith.constant 0.333333343 : f32
    %131 = vector.broadcast %cst_57 : f32 to vector<1x8xf32>
    %132 = arith.mulf %130, %131 : vector<1x8xf32>
    %133 = vector.broadcast %87 : vector<6x1xf32> to vector<6x8xf32>
    %134 = vector.broadcast %132 : vector<1x8xf32> to vector<6x8xf32>
    %135 = arith.mulf %133, %134 : vector<6x8xf32>
    %136 = vector.broadcast %95 : vector<6x1xf32> to vector<6x8xf32>
    %137 = arith.mulf %126, %136 : vector<6x8xf32>
    %cst_58 = arith.constant dense<0.000000e+00> : vector<8xf32>
    %138 = vector.multi_reduction <add>, %137, %cst_58 [0] : vector<6x8xf32> to vector<8xf32>
    %139 = vector.shape_cast %138 : vector<8xf32> to vector<1x8xf32>
    %cst_59 = arith.constant 0.333333343 : f32
    %140 = vector.broadcast %cst_59 : f32 to vector<1x8xf32>
    %141 = arith.mulf %139, %140 : vector<1x8xf32>
    %142 = vector.broadcast %95 : vector<6x1xf32> to vector<6x8xf32>
    %143 = vector.broadcast %141 : vector<1x8xf32> to vector<6x8xf32>
    %144 = arith.mulf %142, %143 : vector<6x8xf32>
    %145 = arith.addf %135, %144 : vector<6x8xf32>
    %146 = arith.addf %145, %63 : vector<6x8xf32>
    %cst_60 = arith.constant 0.000000e+00 : f32
    %147 = vector.broadcast %cst_60 : f32 to vector<6x8xf32>
    %148 = arith.maximumf %146, %147 : vector<6x8xf32>
    %149 = arith.truncf %148 : vector<6x8xf32> to vector<6x8xbf16>
    %cst_61 = arith.constant dense<0.000000e+00> : vector<6x4xf32>
    %150 = tpu.matmul %149, %27, %cst_61 {dimension_numbers = #tpu.dot_dimension_numbers<[1], [0], [0], [1], [0, 0, 1, 1], [], []>} : vector<6x8xbf16>, vector<8x4xbf16>, vector<6x4xf32> -> vector<6x4xf32>
    %151 = vector.broadcast %87 : vector<6x1xf32> to vector<6x4xf32>
    %152 = arith.mulf %150, %151 : vector<6x4xf32>
    %cst_62 = arith.constant dense<0.000000e+00> : vector<4xf32>
    %153 = vector.multi_reduction <add>, %152, %cst_62 [0] : vector<6x4xf32> to vector<4xf32>
    %154 = vector.shape_cast %153 : vector<4xf32> to vector<1x4xf32>
    %cst_63 = arith.constant 0.333333343 : f32
    %155 = vector.broadcast %cst_63 : f32 to vector<1x4xf32>
    %156 = arith.mulf %154, %155 : vector<1x4xf32>
    %157 = vector.broadcast %87 : vector<6x1xf32> to vector<6x4xf32>
    %158 = vector.broadcast %156 : vector<1x4xf32> to vector<6x4xf32>
    %159 = arith.mulf %157, %158 : vector<6x4xf32>
    %160 = vector.broadcast %95 : vector<6x1xf32> to vector<6x4xf32>
    %161 = arith.mulf %150, %160 : vector<6x4xf32>
    %cst_64 = arith.constant dense<0.000000e+00> : vector<4xf32>
    %162 = vector.multi_reduction <add>, %161, %cst_64 [0] : vector<6x4xf32> to vector<4xf32>
    %163 = vector.shape_cast %162 : vector<4xf32> to vector<1x4xf32>
    %cst_65 = arith.constant 0.333333343 : f32
    %164 = vector.broadcast %cst_65 : f32 to vector<1x4xf32>
    %165 = arith.mulf %163, %164 : vector<1x4xf32>
    %166 = vector.broadcast %95 : vector<6x1xf32> to vector<6x4xf32>
    %167 = vector.broadcast %165 : vector<1x4xf32> to vector<6x4xf32>
    %168 = arith.mulf %166, %167 : vector<6x4xf32>
    %169 = arith.addf %159, %168 : vector<6x4xf32>
    %170 = arith.addf %169, %66 : vector<6x4xf32>
    %171 = tpu.concatenate %124, %170 in 1 : vector<6x4xf32>, vector<6x4xf32> -> vector<6x8xf32>
    %172 = arith.truncf %171 : vector<6x8xf32> to vector<6x8xbf16>
    %cst_66 = arith.constant dense<0.000000e+00> : vector<6x4xf32>
    %173 = tpu.matmul %172, %29, %cst_66 {dimension_numbers = #tpu.dot_dimension_numbers<[1], [0], [0], [1], [0, 0, 1, 1], [], []>} : vector<6x8xbf16>, vector<8x4xbf16>, vector<6x4xf32> -> vector<6x4xf32>
    %174 = arith.addf %173, %69 : vector<6x4xf32>
    %cst_67 = arith.constant dense<0xFF800000> : vector<6xf32>
    %175 = vector.multi_reduction <maximumf>, %174, %cst_67 [1] : vector<6x4xf32> to vector<6xf32>
    %176 = vector.shape_cast %175 : vector<6xf32> to vector<6x1xf32>
    %177 = vector.broadcast %176 : vector<6x1xf32> to vector<6x4xf32>
    %178 = arith.subf %174, %177 : vector<6x4xf32>
    %179 = math.exp %178 : vector<6x4xf32>
    %cst_68 = arith.constant dense<0.000000e+00> : vector<6xf32>
    %180 = vector.multi_reduction <add>, %179, %cst_68 [1] : vector<6x4xf32> to vector<6xf32>
    %181 = vector.shape_cast %180 : vector<6xf32> to vector<6x1xf32>
    %182 = tpu.reciprocal %181 {approx = true} : vector<6x1xf32> -> vector<6x1xf32>
    %183 = vector.broadcast %182 : vector<6x1xf32> to vector<6x4xf32>
    %184 = arith.mulf %179, %183 : vector<6x4xf32>
    %185 = arith.mulf %104, %184 : vector<6x4xf32>
    %186 = vector.shape_cast %185 : vector<6x4xf32> to vector<1x6x4xf32>
    %cst_69 = arith.constant dense<0.000000e+00> : vector<1xf32>
    %187 = vector.multi_reduction <add>, %186, %cst_69 [1, 2] : vector<1x6x4xf32> to vector<1xf32>
    %188 = vector.shape_cast %187 : vector<1xf32> to vector<1x1x1xf32>
    %189 = vector.extract %188[0, 0, 0] : f32 from vector<1x1x1xf32>
    %190 = vector.broadcast %189 : f32 to vector<1x1xf32>
    %191 = arith.subf %97, %190 : vector<1x1xf32>
    %192 = vector.extract_strided_slice %108 {offsets = [0, 128], sizes = [6, 32], strides = [1, 1]} : vector<6x208xf32> to vector<6x32xf32>
    %cst_70 = arith.constant 0.000000e+00 : f32
    %193 = vector.broadcast %cst_70 : f32 to vector<6x32xf32>
    %194 = arith.cmpf ogt, %192, %193 : vector<6x32xf32>
    %cst_71 = arith.constant 0.00999999977 : f32
    %195 = vector.broadcast %cst_71 : f32 to vector<6x32xf32>
    %196 = arith.mulf %195, %192 : vector<6x32xf32>
    %197 = arith.select %194, %192, %196 : vector<6x32xi1>, vector<6x32xf32>
    %198 = arith.truncf %197 : vector<6x32xf32> to vector<6x32xbf16>
    %cst_72 = arith.constant dense<0.000000e+00> : vector<6x32xf32>
    %199 = tpu.matmul %198, %3, %cst_72 {dimension_numbers = #tpu.dot_dimension_numbers<[1], [0], [0], [1], [0, 0, 1, 1], [], []>} : vector<6x32xbf16>, vector<32x32xbf16>, vector<6x32xf32> -> vector<6x32xf32>
    %200 = arith.addf %199, %36 : vector<6x32xf32>
    %cst_73 = arith.constant 0.000000e+00 : f32
    %201 = vector.broadcast %cst_73 : f32 to vector<6x32xf32>
    %202 = arith.cmpf ogt, %200, %201 : vector<6x32xf32>
    %cst_74 = arith.constant 0.00999999977 : f32
    %203 = vector.broadcast %cst_74 : f32 to vector<6x32xf32>
    %204 = arith.mulf %203, %200 : vector<6x32xf32>
    %205 = arith.select %202, %200, %204 : vector<6x32xi1>, vector<6x32xf32>
    %206 = arith.truncf %205 : vector<6x32xf32> to vector<6x32xbf16>
    %cst_75 = arith.constant dense<0.000000e+00> : vector<6x80xf32>
    %207 = tpu.matmul %206, %5, %cst_75 {dimension_numbers = #tpu.dot_dimension_numbers<[1], [0], [0], [1], [0, 0, 1, 1], [], []>} : vector<6x32xbf16>, vector<32x80xbf16>, vector<6x80xf32> -> vector<6x80xf32>
    %208 = arith.addf %207, %39 : vector<6x80xf32>
    %209 = vector.extract_strided_slice %108 {offsets = [0, 32], sizes = [6, 32], strides = [1, 1]} : vector<6x208xf32> to vector<6x32xf32>
    %210 = vector.extract_strided_slice %208 {offsets = [0, 0], sizes = [6, 32], strides = [1, 1]} : vector<6x80xf32> to vector<6x32xf32>
    %211 = arith.addf %209, %210 : vector<6x32xf32>
    %cst_76 = arith.constant 0.000000e+00 : f32
    %212 = vector.broadcast %cst_76 : f32 to vector<6x32xf32>
    %213 = arith.cmpf ogt, %211, %212 : vector<6x32xf32>
    %cst_77 = arith.constant 0.00999999977 : f32
    %214 = vector.broadcast %cst_77 : f32 to vector<6x32xf32>
    %215 = arith.mulf %214, %211 : vector<6x32xf32>
    %216 = arith.select %213, %211, %215 : vector<6x32xi1>, vector<6x32xf32>
    %217 = vector.extract_strided_slice %108 {offsets = [0, 64], sizes = [6, 32], strides = [1, 1]} : vector<6x208xf32> to vector<6x32xf32>
    %cst_78 = arith.constant 0.000000e+00 : f32
    %218 = vector.broadcast %cst_78 : f32 to vector<6x32xf32>
    %219 = arith.cmpf ogt, %217, %218 : vector<6x32xf32>
    %cst_79 = arith.constant 0.00999999977 : f32
    %220 = vector.broadcast %cst_79 : f32 to vector<6x32xf32>
    %221 = arith.mulf %220, %217 : vector<6x32xf32>
    %222 = arith.select %219, %217, %221 : vector<6x32xi1>, vector<6x32xf32>
    %223 = tpu.concatenate %216, %222 in 1 : vector<6x32xf32>, vector<6x32xf32> -> vector<6x64xf32>
    %224 = arith.truncf %223 : vector<6x64xf32> to vector<6x64xbf16>
    %cst_80 = arith.constant dense<0.000000e+00> : vector<6x64xf32>
    %225 = tpu.matmul %224, %31, %cst_80 {dimension_numbers = #tpu.dot_dimension_numbers<[1], [0], [0], [1], [0, 0, 1, 1], [], []>} : vector<6x64xbf16>, vector<64x64xbf16>, vector<6x64xf32> -> vector<6x64xf32>
    %226 = arith.addf %225, %48 : vector<6x64xf32>
    %cst_81 = arith.constant 0.000000e+00 : f32
    %227 = vector.broadcast %cst_81 : f32 to vector<6x64xf32>
    %228 = arith.cmpf ogt, %226, %227 : vector<6x64xf32>
    %cst_82 = arith.constant 0.00999999977 : f32
    %229 = vector.broadcast %cst_82 : f32 to vector<6x64xf32>
    %230 = arith.mulf %229, %226 : vector<6x64xf32>
    %231 = arith.select %228, %226, %230 : vector<6x64xi1>, vector<6x64xf32>
    %232 = arith.truncf %231 : vector<6x64xf32> to vector<6x64xbf16>
    %cst_83 = arith.constant dense<0.000000e+00> : vector<6x32xf32>
    %233 = tpu.matmul %232, %33, %cst_83 {dimension_numbers = #tpu.dot_dimension_numbers<[1], [0], [0], [1], [0, 0, 1, 1], [], []>} : vector<6x64xbf16>, vector<64x32xbf16>, vector<6x32xf32> -> vector<6x32xf32>
    %234 = arith.addf %233, %51 : vector<6x32xf32>
    %235 = vector.extract_strided_slice %234 {offsets = [0, 0], sizes = [6, 8], strides = [1, 1]} : vector<6x32xf32> to vector<6x8xf32>
    %236 = vector.extract_strided_slice %234 {offsets = [0, 8], sizes = [6, 8], strides = [1, 1]} : vector<6x32xf32> to vector<6x8xf32>
    %237 = vector.extract_strided_slice %234 {offsets = [0, 16], sizes = [6, 8], strides = [1, 1]} : vector<6x32xf32> to vector<6x8xf32>
    %238 = vector.extract_strided_slice %234 {offsets = [0, 24], sizes = [6, 8], strides = [1, 1]} : vector<6x32xf32> to vector<6x8xf32>
    %cst_84 = arith.constant 5.000000e-01 : f32
    %239 = vector.broadcast %cst_84 : f32 to vector<6x8xf32>
    %240 = arith.mulf %239, %236 : vector<6x8xf32>
    %241 = math.exp %240 : vector<6x8xf32>
    %242 = arith.mulf %103, %241 : vector<6x8xf32>
    %243 = arith.addf %242, %235 : vector<6x8xf32>
    %244 = arith.truncf %243 : vector<6x8xf32> to vector<6x8xbf16>
    %cst_85 = arith.constant dense<0.000000e+00> : vector<6x32xf32>
    %245 = tpu.matmul %244, %19, %cst_85 {dimension_numbers = #tpu.dot_dimension_numbers<[1], [0], [0], [1], [0, 0, 1, 1], [], []>} : vector<6x8xbf16>, vector<8x32xbf16>, vector<6x32xf32> -> vector<6x32xf32>
    %246 = arith.addf %245, %42 : vector<6x32xf32>
    %cst_86 = arith.constant 0.000000e+00 : f32
    %247 = vector.broadcast %cst_86 : f32 to vector<6x32xf32>
    %248 = arith.cmpf ogt, %246, %247 : vector<6x32xf32>
    %cst_87 = arith.constant 0.00999999977 : f32
    %249 = vector.broadcast %cst_87 : f32 to vector<6x32xf32>
    %250 = arith.mulf %249, %246 : vector<6x32xf32>
    %251 = arith.select %248, %246, %250 : vector<6x32xi1>, vector<6x32xf32>
    %252 = arith.truncf %251 : vector<6x32xf32> to vector<6x32xbf16>
    %cst_88 = arith.constant dense<0.000000e+00> : vector<6x32xf32>
    %253 = tpu.matmul %252, %7, %cst_88 {dimension_numbers = #tpu.dot_dimension_numbers<[1], [0], [0], [1], [0, 0, 1, 1], [], []>} : vector<6x32xbf16>, vector<32x32xbf16>, vector<6x32xf32> -> vector<6x32xf32>
    %254 = arith.addf %253, %45 : vector<6x32xf32>
    %cst_89 = arith.constant 0.000000e+00 : f32
    %255 = vector.broadcast %cst_89 : f32 to vector<6x32xf32>
    %256 = arith.cmpf ogt, %254, %255 : vector<6x32xf32>
    %cst_90 = arith.constant 0.00999999977 : f32
    %257 = vector.broadcast %cst_90 : f32 to vector<6x32xf32>
    %258 = arith.mulf %257, %254 : vector<6x32xf32>
    %259 = arith.select %256, %254, %258 : vector<6x32xi1>, vector<6x32xf32>
    %260 = arith.truncf %259 : vector<6x32xf32> to vector<6x32xbf16>
    %cst_91 = arith.constant dense<0.000000e+00> : vector<6x80xf32>
    %261 = tpu.matmul %260, %17, %cst_91 {dimension_numbers = #tpu.dot_dimension_numbers<[1], [0], [0], [1], [0, 0, 1, 1], [], []>} : vector<6x32xbf16>, vector<32x80xbf16>, vector<6x80xf32> -> vector<6x80xf32>
    %262 = vector.extract_strided_slice %108 {offsets = [0, 96], sizes = [6, 32], strides = [1, 1]} : vector<6x208xf32> to vector<6x32xf32>
    %263 = vector.extract_strided_slice %261 {offsets = [0, 0], sizes = [6, 32], strides = [1, 1]} : vector<6x80xf32> to vector<6x32xf32>
    %264 = arith.addf %262, %263 : vector<6x32xf32>
    %cst_92 = arith.constant 0.000000e+00 : f32
    %265 = vector.broadcast %cst_92 : f32 to vector<6x32xf32>
    %266 = arith.cmpf ogt, %264, %265 : vector<6x32xf32>
    %cst_93 = arith.constant 0.00999999977 : f32
    %267 = vector.broadcast %cst_93 : f32 to vector<6x32xf32>
    %268 = arith.mulf %267, %264 : vector<6x32xf32>
    %269 = arith.select %266, %264, %268 : vector<6x32xi1>, vector<6x32xf32>
    %270 = arith.truncf %269 : vector<6x32xf32> to vector<6x32xbf16>
    %cst_94 = arith.constant dense<0.000000e+00> : vector<6x32xf32>
    %271 = tpu.matmul %270, %9, %cst_94 {dimension_numbers = #tpu.dot_dimension_numbers<[1], [0], [0], [1], [0, 0, 1, 1], [], []>} : vector<6x32xbf16>, vector<32x32xbf16>, vector<6x32xf32> -> vector<6x32xf32>
    %272 = arith.addf %271, %54 : vector<6x32xf32>
    %cst_95 = arith.constant 0.000000e+00 : f32
    %273 = vector.broadcast %cst_95 : f32 to vector<6x32xf32>
    %274 = arith.cmpf ogt, %272, %273 : vector<6x32xf32>
    %cst_96 = arith.constant 0.00999999977 : f32
    %275 = vector.broadcast %cst_96 : f32 to vector<6x32xf32>
    %276 = arith.mulf %275, %272 : vector<6x32xf32>
    %277 = arith.select %274, %272, %276 : vector<6x32xi1>, vector<6x32xf32>
    %278 = arith.truncf %277 : vector<6x32xf32> to vector<6x32xbf16>
    %cst_97 = arith.constant dense<0.000000e+00> : vector<6x4xf32>
    %279 = tpu.matmul %278, %15, %cst_97 {dimension_numbers = #tpu.dot_dimension_numbers<[1], [0], [0], [1], [0, 0, 1, 1], [], []>} : vector<6x32xbf16>, vector<32x4xbf16>, vector<6x4xf32> -> vector<6x4xf32>
    %280 = arith.addf %279, %57 : vector<6x4xf32>
    %281 = vector.extract_strided_slice %280 {offsets = [0, 0], sizes = [6, 2], strides = [1, 1]} : vector<6x4xf32> to vector<6x2xf32>
    %282 = vector.extract_strided_slice %280 {offsets = [0, 2], sizes = [6, 2], strides = [1, 1]} : vector<6x4xf32> to vector<6x2xf32>
    %283 = vector.extract_strided_slice %208 {offsets = [0, 32], sizes = [6, 48], strides = [1, 1]} : vector<6x80xf32> to vector<6x48xf32>
    %284 = vector.extract_strided_slice %261 {offsets = [0, 32], sizes = [6, 48], strides = [1, 1]} : vector<6x80xf32> to vector<6x48xf32>
    %285 = arith.addf %283, %284 : vector<6x48xf32>
    %286 = vector.extract_strided_slice %108 {offsets = [0, 160], sizes = [6, 48], strides = [1, 1]} : vector<6x208xf32> to vector<6x48xf32>
    %287 = vector.extract_strided_slice %285 {offsets = [0, 0], sizes = [6, 16], strides = [1, 1]} : vector<6x48xf32> to vector<6x16xf32>
    %288 = vector.extract_strided_slice %286 {offsets = [0, 0], sizes = [6, 16], strides = [1, 1]} : vector<6x48xf32> to vector<6x16xf32>
    %289 = arith.addf %287, %288 : vector<6x16xf32>
    %290 = arith.negf %289 : vector<6x16xf32>
    %291 = math.exp %290 : vector<6x16xf32>
    %cst_98 = arith.constant 1.000000e+00 : f32
    %292 = vector.broadcast %cst_98 : f32 to vector<6x16xf32>
    %293 = arith.addf %292, %291 : vector<6x16xf32>
    %294 = arith.divf %292, %293 : vector<6x16xf32>
    %295 = vector.extract_strided_slice %285 {offsets = [0, 16], sizes = [6, 16], strides = [1, 1]} : vector<6x48xf32> to vector<6x16xf32>
    %296 = vector.extract_strided_slice %286 {offsets = [0, 16], sizes = [6, 16], strides = [1, 1]} : vector<6x48xf32> to vector<6x16xf32>
    %297 = arith.addf %295, %296 : vector<6x16xf32>
    %298 = arith.negf %297 : vector<6x16xf32>
    %299 = math.exp %298 : vector<6x16xf32>
    %cst_99 = arith.constant 1.000000e+00 : f32
    %300 = vector.broadcast %cst_99 : f32 to vector<6x16xf32>
    %301 = arith.addf %300, %299 : vector<6x16xf32>
    %302 = arith.divf %300, %301 : vector<6x16xf32>
    %303 = vector.extract_strided_slice %285 {offsets = [0, 32], sizes = [6, 16], strides = [1, 1]} : vector<6x48xf32> to vector<6x16xf32>
    %304 = vector.extract_strided_slice %286 {offsets = [0, 32], sizes = [6, 16], strides = [1, 1]} : vector<6x48xf32> to vector<6x16xf32>
    %305 = arith.mulf %294, %304 : vector<6x16xf32>
    %306 = arith.addf %303, %305 : vector<6x16xf32>
    %307 = math.tanh %306 : vector<6x16xf32>
    %cst_100 = arith.constant 1.000000e+00 : f32
    %308 = vector.broadcast %cst_100 : f32 to vector<6x16xf32>
    %309 = arith.subf %308, %302 : vector<6x16xf32>
    %310 = arith.mulf %309, %307 : vector<6x16xf32>
    %311 = arith.mulf %302, %96 : vector<6x16xf32>
    %312 = arith.addf %310, %311 : vector<6x16xf32>
    %313 = arith.subf %238, %236 : vector<6x8xf32>
    %cst_101 = arith.constant dense<0.000000e+00> : vector<6xf32>
    %314 = vector.multi_reduction <add>, %313, %cst_101 [1] : vector<6x8xf32> to vector<6xf32>
    %315 = vector.shape_cast %314 : vector<6xf32> to vector<6x1xf32>
    %316 = arith.subf %236, %238 : vector<6x8xf32>
    %317 = math.exp %316 : vector<6x8xf32>
    %cst_102 = arith.constant dense<0.000000e+00> : vector<6xf32>
    %318 = vector.multi_reduction <add>, %317, %cst_102 [1] : vector<6x8xf32> to vector<6xf32>
    %319 = vector.shape_cast %318 : vector<6xf32> to vector<6x1xf32>
    %320 = arith.subf %235, %237 : vector<6x8xf32>
    %321 = arith.mulf %320, %320 : vector<6x8xf32>
    %322 = math.exp %238 : vector<6x8xf32>
    %323 = arith.divf %321, %322 : vector<6x8xf32>
    %cst_103 = arith.constant dense<0.000000e+00> : vector<6xf32>
    %324 = vector.multi_reduction <add>, %323, %cst_103 [1] : vector<6x8xf32> to vector<6xf32>
    %325 = vector.shape_cast %324 : vector<6xf32> to vector<6x1xf32>
    %cst_104 = arith.constant 8.000000e+00 : f32
    %326 = vector.broadcast %cst_104 : f32 to vector<6x1xf32>
    %327 = arith.subf %315, %326 : vector<6x1xf32>
    %328 = arith.addf %327, %319 : vector<6x1xf32>
    %329 = arith.addf %328, %325 : vector<6x1xf32>
    %330 = vector.shape_cast %329 : vector<6x1xf32> to vector<1x6x1xf32>
    %cst_105 = arith.constant dense<0.000000e+00> : vector<1xf32>
    %331 = vector.multi_reduction <add>, %330, %cst_105 [1, 2] : vector<1x6x1xf32> to vector<1xf32>
    %332 = vector.shape_cast %331 : vector<1xf32> to vector<1x1x1xf32>
    %333 = vector.extract %332[0, 0, 0] : f32 from vector<1x1x1xf32>
    %334 = vector.broadcast %333 : f32 to vector<1x1xf32>
    %cst_106 = arith.constant 0.0833333358 : f32
    %335 = vector.broadcast %cst_106 : f32 to vector<1x1xf32>
    %336 = arith.mulf %335, %334 : vector<1x1xf32>
    %337 = arith.addf %97, %336 : vector<1x1xf32>
    %338 = arith.subf %105, %281 : vector<6x2xf32>
    %339 = arith.mulf %338, %338 : vector<6x2xf32>
    %340 = math.exp %282 : vector<6x2xf32>
    %341 = arith.divf %339, %340 : vector<6x2xf32>
    %cst_107 = arith.constant dense<0.000000e+00> : vector<6xf32>
    %342 = vector.multi_reduction <add>, %341, %cst_107 [1] : vector<6x2xf32> to vector<6xf32>
    %343 = vector.shape_cast %342 : vector<6xf32> to vector<6x1xf32>
    %cst_108 = arith.constant dense<0.000000e+00> : vector<6xf32>
    %344 = vector.multi_reduction <add>, %282, %cst_108 [1] : vector<6x2xf32> to vector<6xf32>
    %345 = vector.shape_cast %344 : vector<6xf32> to vector<6x1xf32>
    %cst_109 = arith.constant 3.67575407 : f32
    %346 = vector.broadcast %cst_109 : f32 to vector<6x1xf32>
    %347 = arith.addf %343, %346 : vector<6x1xf32>
    %348 = arith.addf %347, %345 : vector<6x1xf32>
    %349 = vector.shape_cast %348 : vector<6x1xf32> to vector<1x6x1xf32>
    %cst_110 = arith.constant dense<0.000000e+00> : vector<1xf32>
    %350 = vector.multi_reduction <add>, %349, %cst_110 [1, 2] : vector<1x6x1xf32> to vector<1xf32>
    %351 = vector.shape_cast %350 : vector<1xf32> to vector<1x1x1xf32>
    %352 = vector.extract %351[0, 0, 0] : f32 from vector<1x1x1xf32>
    %353 = vector.broadcast %352 : f32 to vector<1x1xf32>
    %cst_111 = arith.constant 0.0833333358 : f32
    %354 = vector.broadcast %cst_111 : f32 to vector<1x1xf32>
    %355 = arith.mulf %354, %353 : vector<1x1xf32>
    %356 = arith.addf %97, %355 : vector<1x1xf32>
    %357 = arith.truncf %312 : vector<6x16xf32> to vector<6x16xbf16>
    %cst_112 = arith.constant dense<0.000000e+00> : vector<6x8xf32>
    %358 = tpu.matmul %357, %21, %cst_112 {dimension_numbers = #tpu.dot_dimension_numbers<[1], [0], [0], [1], [0, 0, 1, 1], [], []>} : vector<6x16xbf16>, vector<16x8xbf16>, vector<6x8xf32> -> vector<6x8xf32>
    %359 = vector.broadcast %87 : vector<6x1xf32> to vector<6x8xf32>
    %360 = arith.mulf %358, %359 : vector<6x8xf32>
    %cst_113 = arith.constant dense<0.000000e+00> : vector<8xf32>
    %361 = vector.multi_reduction <add>, %360, %cst_113 [0] : vector<6x8xf32> to vector<8xf32>
    %362 = vector.shape_cast %361 : vector<8xf32> to vector<1x8xf32>
    %cst_114 = arith.constant 0.333333343 : f32
    %363 = vector.broadcast %cst_114 : f32 to vector<1x8xf32>
    %364 = arith.mulf %362, %363 : vector<1x8xf32>
    %365 = vector.broadcast %87 : vector<6x1xf32> to vector<6x8xf32>
    %366 = vector.broadcast %364 : vector<1x8xf32> to vector<6x8xf32>
    %367 = arith.mulf %365, %366 : vector<6x8xf32>
    %368 = vector.broadcast %95 : vector<6x1xf32> to vector<6x8xf32>
    %369 = arith.mulf %358, %368 : vector<6x8xf32>
    %cst_115 = arith.constant dense<0.000000e+00> : vector<8xf32>
    %370 = vector.multi_reduction <add>, %369, %cst_115 [0] : vector<6x8xf32> to vector<8xf32>
    %371 = vector.shape_cast %370 : vector<8xf32> to vector<1x8xf32>
    %cst_116 = arith.constant 0.333333343 : f32
    %372 = vector.broadcast %cst_116 : f32 to vector<1x8xf32>
    %373 = arith.mulf %371, %372 : vector<1x8xf32>
    %374 = vector.broadcast %95 : vector<6x1xf32> to vector<6x8xf32>
    %375 = vector.broadcast %373 : vector<1x8xf32> to vector<6x8xf32>
    %376 = arith.mulf %374, %375 : vector<6x8xf32>
    %377 = arith.addf %367, %376 : vector<6x8xf32>
    %378 = arith.addf %377, %72 : vector<6x8xf32>
    %cst_117 = arith.constant 0.000000e+00 : f32
    %379 = vector.broadcast %cst_117 : f32 to vector<6x8xf32>
    %380 = arith.maximumf %378, %379 : vector<6x8xf32>
    %381 = arith.truncf %380 : vector<6x8xf32> to vector<6x8xbf16>
    %cst_118 = arith.constant dense<0.000000e+00> : vector<6x16xf32>
    %382 = tpu.matmul %381, %23, %cst_118 {dimension_numbers = #tpu.dot_dimension_numbers<[1], [0], [0], [1], [0, 0, 1, 1], [], []>} : vector<6x8xbf16>, vector<8x16xbf16>, vector<6x16xf32> -> vector<6x16xf32>
    %383 = vector.broadcast %87 : vector<6x1xf32> to vector<6x16xf32>
    %384 = arith.mulf %382, %383 : vector<6x16xf32>
    %cst_119 = arith.constant dense<0.000000e+00> : vector<16xf32>
    %385 = vector.multi_reduction <add>, %384, %cst_119 [0] : vector<6x16xf32> to vector<16xf32>
    %386 = vector.shape_cast %385 : vector<16xf32> to vector<1x16xf32>
    %cst_120 = arith.constant 0.333333343 : f32
    %387 = vector.broadcast %cst_120 : f32 to vector<1x16xf32>
    %388 = arith.mulf %386, %387 : vector<1x16xf32>
    %389 = vector.broadcast %87 : vector<6x1xf32> to vector<6x16xf32>
    %390 = vector.broadcast %388 : vector<1x16xf32> to vector<6x16xf32>
    %391 = arith.mulf %389, %390 : vector<6x16xf32>
    %392 = vector.broadcast %95 : vector<6x1xf32> to vector<6x16xf32>
    %393 = arith.mulf %382, %392 : vector<6x16xf32>
    %cst_121 = arith.constant dense<0.000000e+00> : vector<16xf32>
    %394 = vector.multi_reduction <add>, %393, %cst_121 [0] : vector<6x16xf32> to vector<16xf32>
    %395 = vector.shape_cast %394 : vector<16xf32> to vector<1x16xf32>
    %cst_122 = arith.constant 0.333333343 : f32
    %396 = vector.broadcast %cst_122 : f32 to vector<1x16xf32>
    %397 = arith.mulf %395, %396 : vector<1x16xf32>
    %398 = vector.broadcast %95 : vector<6x1xf32> to vector<6x16xf32>
    %399 = vector.broadcast %397 : vector<1x16xf32> to vector<6x16xf32>
    %400 = arith.mulf %398, %399 : vector<6x16xf32>
    %401 = arith.addf %391, %400 : vector<6x16xf32>
    %402 = arith.addf %401, %75 : vector<6x16xf32>
    %403 = tpu.concatenate %402, %312 in 1 : vector<6x16xf32>, vector<6x16xf32> -> vector<6x32xf32>
    %404 = arith.truncf %403 : vector<6x32xf32> to vector<6x32xbf16>
    %cst_123 = arith.constant dense<0.000000e+00> : vector<6x16xf32>
    %405 = tpu.matmul %404, %11, %cst_123 {dimension_numbers = #tpu.dot_dimension_numbers<[1], [0], [0], [1], [0, 0, 1, 1], [], []>} : vector<6x32xbf16>, vector<32x16xbf16>, vector<6x16xf32> -> vector<6x16xf32>
    %406 = arith.addf %405, %78 : vector<6x16xf32>
    %c1_i32 = arith.constant 1 : i32
    %407 = arith.index_cast %c1_i32 : i32 to index
    %c0_124 = arith.constant 0 : index
    %c0_125 = arith.constant 0 : index
    %408 = vector.load %arg0[%407, %c0_124, %c0_125] : memref<7x6x17xf32, #tpu.memory_space<vmem>>, vector<1x6x17xf32>
    %409 = vector.shape_cast %408 : vector<1x6x17xf32> to vector<6x17xf32>
    %410 = arith.index_cast %c1_i32 : i32 to index
    %c0_126 = arith.constant 0 : index
    %c0_127 = arith.constant 0 : index
    %411 = vector.load %arg1[%410, %c0_126, %c0_127] : memref<7x6x8xf32, #tpu.memory_space<vmem>>, vector<1x6x8xf32>
    %412 = vector.shape_cast %411 : vector<1x6x8xf32> to vector<6x8xf32>
    %413 = vector.extract_strided_slice %409 {offsets = [0, 6], sizes = [6, 4], strides = [1, 1]} : vector<6x17xf32> to vector<6x4xf32>
    %414 = vector.extract_strided_slice %409 {offsets = [0, 14], sizes = [6, 2], strides = [1, 1]} : vector<6x17xf32> to vector<6x2xf32>
    %415 = tpu.concatenate %409, %406 in 1 : vector<6x17xf32>, vector<6x16xf32> -> vector<6x33xf32>
    %416 = arith.truncf %415 : vector<6x33xf32> to vector<6x33xbf16>
    %cst_128 = arith.constant dense<0.000000e+00> : vector<6x208xf32>
    %417 = tpu.matmul %416, %1, %cst_128 {dimension_numbers = #tpu.dot_dimension_numbers<[1], [0], [0], [1], [0, 0, 1, 1], [], []>} : vector<6x33xbf16>, vector<33x208xbf16>, vector<6x208xf32> -> vector<6x208xf32>
    %418 = vector.extract_strided_slice %417 {offsets = [0, 0], sizes = [6, 32], strides = [1, 1]} : vector<6x208xf32> to vector<6x32xf32>
    %cst_129 = arith.constant 0.000000e+00 : f32
    %419 = vector.broadcast %cst_129 : f32 to vector<6x32xf32>
    %420 = arith.maximumf %418, %419 : vector<6x32xf32>
    %421 = arith.truncf %420 : vector<6x32xf32> to vector<6x32xbf16>
    %cst_130 = arith.constant dense<0.000000e+00> : vector<6x4xf32>
    %422 = tpu.matmul %421, %13, %cst_130 {dimension_numbers = #tpu.dot_dimension_numbers<[1], [0], [0], [1], [0, 0, 1, 1], [], []>} : vector<6x32xbf16>, vector<32x4xbf16>, vector<6x4xf32> -> vector<6x4xf32>
    %423 = arith.addf %422, %60 : vector<6x4xf32>
    %cst_131 = arith.constant dense<0xFF800000> : vector<6xf32>
    %424 = vector.multi_reduction <maximumf>, %423, %cst_131 [1] : vector<6x4xf32> to vector<6xf32>
    %425 = vector.shape_cast %424 : vector<6xf32> to vector<6x1xf32>
    %426 = vector.broadcast %425 : vector<6x1xf32> to vector<6x4xf32>
    %427 = arith.subf %423, %426 : vector<6x4xf32>
    %428 = math.exp %427 : vector<6x4xf32>
    %cst_132 = arith.constant dense<0.000000e+00> : vector<6xf32>
    %429 = vector.multi_reduction <add>, %428, %cst_132 [1] : vector<6x4xf32> to vector<6xf32>
    %430 = vector.shape_cast %429 : vector<6xf32> to vector<6x1xf32>
    %431 = tpu.reciprocal %430 {approx = true} : vector<6x1xf32> -> vector<6x1xf32>
    %432 = vector.broadcast %431 : vector<6x1xf32> to vector<6x4xf32>
    %433 = arith.mulf %428, %432 : vector<6x4xf32>
    %434 = arith.truncf %433 : vector<6x4xf32> to vector<6x4xbf16>
    %cst_133 = arith.constant dense<0.000000e+00> : vector<6x8xf32>
    %435 = tpu.matmul %434, %25, %cst_133 {dimension_numbers = #tpu.dot_dimension_numbers<[1], [0], [0], [1], [0, 0, 1, 1], [], []>} : vector<6x4xbf16>, vector<4x8xbf16>, vector<6x8xf32> -> vector<6x8xf32>
    %436 = vector.broadcast %87 : vector<6x1xf32> to vector<6x8xf32>
    %437 = arith.mulf %435, %436 : vector<6x8xf32>
    %cst_134 = arith.constant dense<0.000000e+00> : vector<8xf32>
    %438 = vector.multi_reduction <add>, %437, %cst_134 [0] : vector<6x8xf32> to vector<8xf32>
    %439 = vector.shape_cast %438 : vector<8xf32> to vector<1x8xf32>
    %cst_135 = arith.constant 0.333333343 : f32
    %440 = vector.broadcast %cst_135 : f32 to vector<1x8xf32>
    %441 = arith.mulf %439, %440 : vector<1x8xf32>
    %442 = vector.broadcast %87 : vector<6x1xf32> to vector<6x8xf32>
    %443 = vector.broadcast %441 : vector<1x8xf32> to vector<6x8xf32>
    %444 = arith.mulf %442, %443 : vector<6x8xf32>
    %445 = vector.broadcast %95 : vector<6x1xf32> to vector<6x8xf32>
    %446 = arith.mulf %435, %445 : vector<6x8xf32>
    %cst_136 = arith.constant dense<0.000000e+00> : vector<8xf32>
    %447 = vector.multi_reduction <add>, %446, %cst_136 [0] : vector<6x8xf32> to vector<8xf32>
    %448 = vector.shape_cast %447 : vector<8xf32> to vector<1x8xf32>
    %cst_137 = arith.constant 0.333333343 : f32
    %449 = vector.broadcast %cst_137 : f32 to vector<1x8xf32>
    %450 = arith.mulf %448, %449 : vector<1x8xf32>
    %451 = vector.broadcast %95 : vector<6x1xf32> to vector<6x8xf32>
    %452 = vector.broadcast %450 : vector<1x8xf32> to vector<6x8xf32>
    %453 = arith.mulf %451, %452 : vector<6x8xf32>
    %454 = arith.addf %444, %453 : vector<6x8xf32>
    %455 = arith.addf %454, %63 : vector<6x8xf32>
    %cst_138 = arith.constant 0.000000e+00 : f32
    %456 = vector.broadcast %cst_138 : f32 to vector<6x8xf32>
    %457 = arith.maximumf %455, %456 : vector<6x8xf32>
    %458 = arith.truncf %457 : vector<6x8xf32> to vector<6x8xbf16>
    %cst_139 = arith.constant dense<0.000000e+00> : vector<6x4xf32>
    %459 = tpu.matmul %458, %27, %cst_139 {dimension_numbers = #tpu.dot_dimension_numbers<[1], [0], [0], [1], [0, 0, 1, 1], [], []>} : vector<6x8xbf16>, vector<8x4xbf16>, vector<6x4xf32> -> vector<6x4xf32>
    %460 = vector.broadcast %87 : vector<6x1xf32> to vector<6x4xf32>
    %461 = arith.mulf %459, %460 : vector<6x4xf32>
    %cst_140 = arith.constant dense<0.000000e+00> : vector<4xf32>
    %462 = vector.multi_reduction <add>, %461, %cst_140 [0] : vector<6x4xf32> to vector<4xf32>
    %463 = vector.shape_cast %462 : vector<4xf32> to vector<1x4xf32>
    %cst_141 = arith.constant 0.333333343 : f32
    %464 = vector.broadcast %cst_141 : f32 to vector<1x4xf32>
    %465 = arith.mulf %463, %464 : vector<1x4xf32>
    %466 = vector.broadcast %87 : vector<6x1xf32> to vector<6x4xf32>
    %467 = vector.broadcast %465 : vector<1x4xf32> to vector<6x4xf32>
    %468 = arith.mulf %466, %467 : vector<6x4xf32>
    %469 = vector.broadcast %95 : vector<6x1xf32> to vector<6x4xf32>
    %470 = arith.mulf %459, %469 : vector<6x4xf32>
    %cst_142 = arith.constant dense<0.000000e+00> : vector<4xf32>
    %471 = vector.multi_reduction <add>, %470, %cst_142 [0] : vector<6x4xf32> to vector<4xf32>
    %472 = vector.shape_cast %471 : vector<4xf32> to vector<1x4xf32>
    %cst_143 = arith.constant 0.333333343 : f32
    %473 = vector.broadcast %cst_143 : f32 to vector<1x4xf32>
    %474 = arith.mulf %472, %473 : vector<1x4xf32>
    %475 = vector.broadcast %95 : vector<6x1xf32> to vector<6x4xf32>
    %476 = vector.broadcast %474 : vector<1x4xf32> to vector<6x4xf32>
    %477 = arith.mulf %475, %476 : vector<6x4xf32>
    %478 = arith.addf %468, %477 : vector<6x4xf32>
    %479 = arith.addf %478, %66 : vector<6x4xf32>
    %480 = tpu.concatenate %433, %479 in 1 : vector<6x4xf32>, vector<6x4xf32> -> vector<6x8xf32>
    %481 = arith.truncf %480 : vector<6x8xf32> to vector<6x8xbf16>
    %cst_144 = arith.constant dense<0.000000e+00> : vector<6x4xf32>
    %482 = tpu.matmul %481, %29, %cst_144 {dimension_numbers = #tpu.dot_dimension_numbers<[1], [0], [0], [1], [0, 0, 1, 1], [], []>} : vector<6x8xbf16>, vector<8x4xbf16>, vector<6x4xf32> -> vector<6x4xf32>
    %483 = arith.addf %482, %69 : vector<6x4xf32>
    %cst_145 = arith.constant dense<0xFF800000> : vector<6xf32>
    %484 = vector.multi_reduction <maximumf>, %483, %cst_145 [1] : vector<6x4xf32> to vector<6xf32>
    %485 = vector.shape_cast %484 : vector<6xf32> to vector<6x1xf32>
    %486 = vector.broadcast %485 : vector<6x1xf32> to vector<6x4xf32>
    %487 = arith.subf %483, %486 : vector<6x4xf32>
    %488 = math.exp %487 : vector<6x4xf32>
    %cst_146 = arith.constant dense<0.000000e+00> : vector<6xf32>
    %489 = vector.multi_reduction <add>, %488, %cst_146 [1] : vector<6x4xf32> to vector<6xf32>
    %490 = vector.shape_cast %489 : vector<6xf32> to vector<6x1xf32>
    %491 = tpu.reciprocal %490 {approx = true} : vector<6x1xf32> -> vector<6x1xf32>
    %492 = vector.broadcast %491 : vector<6x1xf32> to vector<6x4xf32>
    %493 = arith.mulf %488, %492 : vector<6x4xf32>
    %494 = arith.mulf %413, %493 : vector<6x4xf32>
    %495 = vector.shape_cast %494 : vector<6x4xf32> to vector<1x6x4xf32>
    %cst_147 = arith.constant dense<0.000000e+00> : vector<1xf32>
    %496 = vector.multi_reduction <add>, %495, %cst_147 [1, 2] : vector<1x6x4xf32> to vector<1xf32>
    %497 = vector.shape_cast %496 : vector<1xf32> to vector<1x1x1xf32>
    %498 = vector.extract %497[0, 0, 0] : f32 from vector<1x1x1xf32>
    %499 = vector.broadcast %498 : f32 to vector<1x1xf32>
    %500 = arith.subf %191, %499 : vector<1x1xf32>
    %501 = vector.extract_strided_slice %417 {offsets = [0, 128], sizes = [6, 32], strides = [1, 1]} : vector<6x208xf32> to vector<6x32xf32>
    %cst_148 = arith.constant 0.000000e+00 : f32
    %502 = vector.broadcast %cst_148 : f32 to vector<6x32xf32>
    %503 = arith.cmpf ogt, %501, %502 : vector<6x32xf32>
    %cst_149 = arith.constant 0.00999999977 : f32
    %504 = vector.broadcast %cst_149 : f32 to vector<6x32xf32>
    %505 = arith.mulf %504, %501 : vector<6x32xf32>
    %506 = arith.select %503, %501, %505 : vector<6x32xi1>, vector<6x32xf32>
    %507 = arith.truncf %506 : vector<6x32xf32> to vector<6x32xbf16>
    %cst_150 = arith.constant dense<0.000000e+00> : vector<6x32xf32>
    %508 = tpu.matmul %507, %3, %cst_150 {dimension_numbers = #tpu.dot_dimension_numbers<[1], [0], [0], [1], [0, 0, 1, 1], [], []>} : vector<6x32xbf16>, vector<32x32xbf16>, vector<6x32xf32> -> vector<6x32xf32>
    %509 = arith.addf %508, %36 : vector<6x32xf32>
    %cst_151 = arith.constant 0.000000e+00 : f32
    %510 = vector.broadcast %cst_151 : f32 to vector<6x32xf32>
    %511 = arith.cmpf ogt, %509, %510 : vector<6x32xf32>
    %cst_152 = arith.constant 0.00999999977 : f32
    %512 = vector.broadcast %cst_152 : f32 to vector<6x32xf32>
    %513 = arith.mulf %512, %509 : vector<6x32xf32>
    %514 = arith.select %511, %509, %513 : vector<6x32xi1>, vector<6x32xf32>
    %515 = arith.truncf %514 : vector<6x32xf32> to vector<6x32xbf16>
    %cst_153 = arith.constant dense<0.000000e+00> : vector<6x80xf32>
    %516 = tpu.matmul %515, %5, %cst_153 {dimension_numbers = #tpu.dot_dimension_numbers<[1], [0], [0], [1], [0, 0, 1, 1], [], []>} : vector<6x32xbf16>, vector<32x80xbf16>, vector<6x80xf32> -> vector<6x80xf32>
    %517 = arith.addf %516, %39 : vector<6x80xf32>
    %518 = vector.extract_strided_slice %417 {offsets = [0, 32], sizes = [6, 32], strides = [1, 1]} : vector<6x208xf32> to vector<6x32xf32>
    %519 = vector.extract_strided_slice %517 {offsets = [0, 0], sizes = [6, 32], strides = [1, 1]} : vector<6x80xf32> to vector<6x32xf32>
    %520 = arith.addf %518, %519 : vector<6x32xf32>
    %cst_154 = arith.constant 0.000000e+00 : f32
    %521 = vector.broadcast %cst_154 : f32 to vector<6x32xf32>
    %522 = arith.cmpf ogt, %520, %521 : vector<6x32xf32>
    %cst_155 = arith.constant 0.00999999977 : f32
    %523 = vector.broadcast %cst_155 : f32 to vector<6x32xf32>
    %524 = arith.mulf %523, %520 : vector<6x32xf32>
    %525 = arith.select %522, %520, %524 : vector<6x32xi1>, vector<6x32xf32>
    %526 = vector.extract_strided_slice %417 {offsets = [0, 64], sizes = [6, 32], strides = [1, 1]} : vector<6x208xf32> to vector<6x32xf32>
    %cst_156 = arith.constant 0.000000e+00 : f32
    %527 = vector.broadcast %cst_156 : f32 to vector<6x32xf32>
    %528 = arith.cmpf ogt, %526, %527 : vector<6x32xf32>
    %cst_157 = arith.constant 0.00999999977 : f32
    %529 = vector.broadcast %cst_157 : f32 to vector<6x32xf32>
    %530 = arith.mulf %529, %526 : vector<6x32xf32>
    %531 = arith.select %528, %526, %530 : vector<6x32xi1>, vector<6x32xf32>
    %532 = tpu.concatenate %525, %531 in 1 : vector<6x32xf32>, vector<6x32xf32> -> vector<6x64xf32>
    %533 = arith.truncf %532 : vector<6x64xf32> to vector<6x64xbf16>
    %cst_158 = arith.constant dense<0.000000e+00> : vector<6x64xf32>
    %534 = tpu.matmul %533, %31, %cst_158 {dimension_numbers = #tpu.dot_dimension_numbers<[1], [0], [0], [1], [0, 0, 1, 1], [], []>} : vector<6x64xbf16>, vector<64x64xbf16>, vector<6x64xf32> -> vector<6x64xf32>
    %535 = arith.addf %534, %48 : vector<6x64xf32>
    %cst_159 = arith.constant 0.000000e+00 : f32
    %536 = vector.broadcast %cst_159 : f32 to vector<6x64xf32>
    %537 = arith.cmpf ogt, %535, %536 : vector<6x64xf32>
    %cst_160 = arith.constant 0.00999999977 : f32
    %538 = vector.broadcast %cst_160 : f32 to vector<6x64xf32>
    %539 = arith.mulf %538, %535 : vector<6x64xf32>
    %540 = arith.select %537, %535, %539 : vector<6x64xi1>, vector<6x64xf32>
    %541 = arith.truncf %540 : vector<6x64xf32> to vector<6x64xbf16>
    %cst_161 = arith.constant dense<0.000000e+00> : vector<6x32xf32>
    %542 = tpu.matmul %541, %33, %cst_161 {dimension_numbers = #tpu.dot_dimension_numbers<[1], [0], [0], [1], [0, 0, 1, 1], [], []>} : vector<6x64xbf16>, vector<64x32xbf16>, vector<6x32xf32> -> vector<6x32xf32>
    %543 = arith.addf %542, %51 : vector<6x32xf32>
    %544 = vector.extract_strided_slice %543 {offsets = [0, 0], sizes = [6, 8], strides = [1, 1]} : vector<6x32xf32> to vector<6x8xf32>
    %545 = vector.extract_strided_slice %543 {offsets = [0, 8], sizes = [6, 8], strides = [1, 1]} : vector<6x32xf32> to vector<6x8xf32>
    %546 = vector.extract_strided_slice %543 {offsets = [0, 16], sizes = [6, 8], strides = [1, 1]} : vector<6x32xf32> to vector<6x8xf32>
    %547 = vector.extract_strided_slice %543 {offsets = [0, 24], sizes = [6, 8], strides = [1, 1]} : vector<6x32xf32> to vector<6x8xf32>
    %cst_162 = arith.constant 5.000000e-01 : f32
    %548 = vector.broadcast %cst_162 : f32 to vector<6x8xf32>
    %549 = arith.mulf %548, %545 : vector<6x8xf32>
    %550 = math.exp %549 : vector<6x8xf32>
    %551 = arith.mulf %412, %550 : vector<6x8xf32>
    %552 = arith.addf %551, %544 : vector<6x8xf32>
    %553 = arith.truncf %552 : vector<6x8xf32> to vector<6x8xbf16>
    %cst_163 = arith.constant dense<0.000000e+00> : vector<6x32xf32>
    %554 = tpu.matmul %553, %19, %cst_163 {dimension_numbers = #tpu.dot_dimension_numbers<[1], [0], [0], [1], [0, 0, 1, 1], [], []>} : vector<6x8xbf16>, vector<8x32xbf16>, vector<6x32xf32> -> vector<6x32xf32>
    %555 = arith.addf %554, %42 : vector<6x32xf32>
    %cst_164 = arith.constant 0.000000e+00 : f32
    %556 = vector.broadcast %cst_164 : f32 to vector<6x32xf32>
    %557 = arith.cmpf ogt, %555, %556 : vector<6x32xf32>
    %cst_165 = arith.constant 0.00999999977 : f32
    %558 = vector.broadcast %cst_165 : f32 to vector<6x32xf32>
    %559 = arith.mulf %558, %555 : vector<6x32xf32>
    %560 = arith.select %557, %555, %559 : vector<6x32xi1>, vector<6x32xf32>
    %561 = arith.truncf %560 : vector<6x32xf32> to vector<6x32xbf16>
    %cst_166 = arith.constant dense<0.000000e+00> : vector<6x32xf32>
    %562 = tpu.matmul %561, %7, %cst_166 {dimension_numbers = #tpu.dot_dimension_numbers<[1], [0], [0], [1], [0, 0, 1, 1], [], []>} : vector<6x32xbf16>, vector<32x32xbf16>, vector<6x32xf32> -> vector<6x32xf32>
    %563 = arith.addf %562, %45 : vector<6x32xf32>
    %cst_167 = arith.constant 0.000000e+00 : f32
    %564 = vector.broadcast %cst_167 : f32 to vector<6x32xf32>
    %565 = arith.cmpf ogt, %563, %564 : vector<6x32xf32>
    %cst_168 = arith.constant 0.00999999977 : f32
    %566 = vector.broadcast %cst_168 : f32 to vector<6x32xf32>
    %567 = arith.mulf %566, %563 : vector<6x32xf32>
    %568 = arith.select %565, %563, %567 : vector<6x32xi1>, vector<6x32xf32>
    %569 = arith.truncf %568 : vector<6x32xf32> to vector<6x32xbf16>
    %cst_169 = arith.constant dense<0.000000e+00> : vector<6x80xf32>
    %570 = tpu.matmul %569, %17, %cst_169 {dimension_numbers = #tpu.dot_dimension_numbers<[1], [0], [0], [1], [0, 0, 1, 1], [], []>} : vector<6x32xbf16>, vector<32x80xbf16>, vector<6x80xf32> -> vector<6x80xf32>
    %571 = vector.extract_strided_slice %417 {offsets = [0, 96], sizes = [6, 32], strides = [1, 1]} : vector<6x208xf32> to vector<6x32xf32>
    %572 = vector.extract_strided_slice %570 {offsets = [0, 0], sizes = [6, 32], strides = [1, 1]} : vector<6x80xf32> to vector<6x32xf32>
    %573 = arith.addf %571, %572 : vector<6x32xf32>
    %cst_170 = arith.constant 0.000000e+00 : f32
    %574 = vector.broadcast %cst_170 : f32 to vector<6x32xf32>
    %575 = arith.cmpf ogt, %573, %574 : vector<6x32xf32>
    %cst_171 = arith.constant 0.00999999977 : f32
    %576 = vector.broadcast %cst_171 : f32 to vector<6x32xf32>
    %577 = arith.mulf %576, %573 : vector<6x32xf32>
    %578 = arith.select %575, %573, %577 : vector<6x32xi1>, vector<6x32xf32>
    %579 = arith.truncf %578 : vector<6x32xf32> to vector<6x32xbf16>
    %cst_172 = arith.constant dense<0.000000e+00> : vector<6x32xf32>
    %580 = tpu.matmul %579, %9, %cst_172 {dimension_numbers = #tpu.dot_dimension_numbers<[1], [0], [0], [1], [0, 0, 1, 1], [], []>} : vector<6x32xbf16>, vector<32x32xbf16>, vector<6x32xf32> -> vector<6x32xf32>
    %581 = arith.addf %580, %54 : vector<6x32xf32>
    %cst_173 = arith.constant 0.000000e+00 : f32
    %582 = vector.broadcast %cst_173 : f32 to vector<6x32xf32>
    %583 = arith.cmpf ogt, %581, %582 : vector<6x32xf32>
    %cst_174 = arith.constant 0.00999999977 : f32
    %584 = vector.broadcast %cst_174 : f32 to vector<6x32xf32>
    %585 = arith.mulf %584, %581 : vector<6x32xf32>
    %586 = arith.select %583, %581, %585 : vector<6x32xi1>, vector<6x32xf32>
    %587 = arith.truncf %586 : vector<6x32xf32> to vector<6x32xbf16>
    %cst_175 = arith.constant dense<0.000000e+00> : vector<6x4xf32>
    %588 = tpu.matmul %587, %15, %cst_175 {dimension_numbers = #tpu.dot_dimension_numbers<[1], [0], [0], [1], [0, 0, 1, 1], [], []>} : vector<6x32xbf16>, vector<32x4xbf16>, vector<6x4xf32> -> vector<6x4xf32>
    %589 = arith.addf %588, %57 : vector<6x4xf32>
    %590 = vector.extract_strided_slice %589 {offsets = [0, 0], sizes = [6, 2], strides = [1, 1]} : vector<6x4xf32> to vector<6x2xf32>
    %591 = vector.extract_strided_slice %589 {offsets = [0, 2], sizes = [6, 2], strides = [1, 1]} : vector<6x4xf32> to vector<6x2xf32>
    %592 = vector.extract_strided_slice %517 {offsets = [0, 32], sizes = [6, 48], strides = [1, 1]} : vector<6x80xf32> to vector<6x48xf32>
    %593 = vector.extract_strided_slice %570 {offsets = [0, 32], sizes = [6, 48], strides = [1, 1]} : vector<6x80xf32> to vector<6x48xf32>
    %594 = arith.addf %592, %593 : vector<6x48xf32>
    %595 = vector.extract_strided_slice %417 {offsets = [0, 160], sizes = [6, 48], strides = [1, 1]} : vector<6x208xf32> to vector<6x48xf32>
    %596 = vector.extract_strided_slice %594 {offsets = [0, 0], sizes = [6, 16], strides = [1, 1]} : vector<6x48xf32> to vector<6x16xf32>
    %597 = vector.extract_strided_slice %595 {offsets = [0, 0], sizes = [6, 16], strides = [1, 1]} : vector<6x48xf32> to vector<6x16xf32>
    %598 = arith.addf %596, %597 : vector<6x16xf32>
    %599 = arith.negf %598 : vector<6x16xf32>
    %600 = math.exp %599 : vector<6x16xf32>
    %cst_176 = arith.constant 1.000000e+00 : f32
    %601 = vector.broadcast %cst_176 : f32 to vector<6x16xf32>
    %602 = arith.addf %601, %600 : vector<6x16xf32>
    %603 = arith.divf %601, %602 : vector<6x16xf32>
    %604 = vector.extract_strided_slice %594 {offsets = [0, 16], sizes = [6, 16], strides = [1, 1]} : vector<6x48xf32> to vector<6x16xf32>
    %605 = vector.extract_strided_slice %595 {offsets = [0, 16], sizes = [6, 16], strides = [1, 1]} : vector<6x48xf32> to vector<6x16xf32>
    %606 = arith.addf %604, %605 : vector<6x16xf32>
    %607 = arith.negf %606 : vector<6x16xf32>
    %608 = math.exp %607 : vector<6x16xf32>
    %cst_177 = arith.constant 1.000000e+00 : f32
    %609 = vector.broadcast %cst_177 : f32 to vector<6x16xf32>
    %610 = arith.addf %609, %608 : vector<6x16xf32>
    %611 = arith.divf %609, %610 : vector<6x16xf32>
    %612 = vector.extract_strided_slice %594 {offsets = [0, 32], sizes = [6, 16], strides = [1, 1]} : vector<6x48xf32> to vector<6x16xf32>
    %613 = vector.extract_strided_slice %595 {offsets = [0, 32], sizes = [6, 16], strides = [1, 1]} : vector<6x48xf32> to vector<6x16xf32>
    %614 = arith.mulf %603, %613 : vector<6x16xf32>
    %615 = arith.addf %612, %614 : vector<6x16xf32>
    %616 = math.tanh %615 : vector<6x16xf32>
    %cst_178 = arith.constant 1.000000e+00 : f32
    %617 = vector.broadcast %cst_178 : f32 to vector<6x16xf32>
    %618 = arith.subf %617, %611 : vector<6x16xf32>
    %619 = arith.mulf %618, %616 : vector<6x16xf32>
    %620 = arith.mulf %611, %406 : vector<6x16xf32>
    %621 = arith.addf %619, %620 : vector<6x16xf32>
    %622 = arith.subf %547, %545 : vector<6x8xf32>
    %cst_179 = arith.constant dense<0.000000e+00> : vector<6xf32>
    %623 = vector.multi_reduction <add>, %622, %cst_179 [1] : vector<6x8xf32> to vector<6xf32>
    %624 = vector.shape_cast %623 : vector<6xf32> to vector<6x1xf32>
    %625 = arith.subf %545, %547 : vector<6x8xf32>
    %626 = math.exp %625 : vector<6x8xf32>
    %cst_180 = arith.constant dense<0.000000e+00> : vector<6xf32>
    %627 = vector.multi_reduction <add>, %626, %cst_180 [1] : vector<6x8xf32> to vector<6xf32>
    %628 = vector.shape_cast %627 : vector<6xf32> to vector<6x1xf32>
    %629 = arith.subf %544, %546 : vector<6x8xf32>
    %630 = arith.mulf %629, %629 : vector<6x8xf32>
    %631 = math.exp %547 : vector<6x8xf32>
    %632 = arith.divf %630, %631 : vector<6x8xf32>
    %cst_181 = arith.constant dense<0.000000e+00> : vector<6xf32>
    %633 = vector.multi_reduction <add>, %632, %cst_181 [1] : vector<6x8xf32> to vector<6xf32>
    %634 = vector.shape_cast %633 : vector<6xf32> to vector<6x1xf32>
    %cst_182 = arith.constant 8.000000e+00 : f32
    %635 = vector.broadcast %cst_182 : f32 to vector<6x1xf32>
    %636 = arith.subf %624, %635 : vector<6x1xf32>
    %637 = arith.addf %636, %628 : vector<6x1xf32>
    %638 = arith.addf %637, %634 : vector<6x1xf32>
    %639 = vector.shape_cast %638 : vector<6x1xf32> to vector<1x6x1xf32>
    %cst_183 = arith.constant dense<0.000000e+00> : vector<1xf32>
    %640 = vector.multi_reduction <add>, %639, %cst_183 [1, 2] : vector<1x6x1xf32> to vector<1xf32>
    %641 = vector.shape_cast %640 : vector<1xf32> to vector<1x1x1xf32>
    %642 = vector.extract %641[0, 0, 0] : f32 from vector<1x1x1xf32>
    %643 = vector.broadcast %642 : f32 to vector<1x1xf32>
    %cst_184 = arith.constant 0.0833333358 : f32
    %644 = vector.broadcast %cst_184 : f32 to vector<1x1xf32>
    %645 = arith.mulf %644, %643 : vector<1x1xf32>
    %646 = arith.addf %337, %645 : vector<1x1xf32>
    %647 = arith.subf %414, %590 : vector<6x2xf32>
    %648 = arith.mulf %647, %647 : vector<6x2xf32>
    %649 = math.exp %591 : vector<6x2xf32>
    %650 = arith.divf %648, %649 : vector<6x2xf32>
    %cst_185 = arith.constant dense<0.000000e+00> : vector<6xf32>
    %651 = vector.multi_reduction <add>, %650, %cst_185 [1] : vector<6x2xf32> to vector<6xf32>
    %652 = vector.shape_cast %651 : vector<6xf32> to vector<6x1xf32>
    %cst_186 = arith.constant dense<0.000000e+00> : vector<6xf32>
    %653 = vector.multi_reduction <add>, %591, %cst_186 [1] : vector<6x2xf32> to vector<6xf32>
    %654 = vector.shape_cast %653 : vector<6xf32> to vector<6x1xf32>
    %cst_187 = arith.constant 3.67575407 : f32
    %655 = vector.broadcast %cst_187 : f32 to vector<6x1xf32>
    %656 = arith.addf %652, %655 : vector<6x1xf32>
    %657 = arith.addf %656, %654 : vector<6x1xf32>
    %658 = vector.shape_cast %657 : vector<6x1xf32> to vector<1x6x1xf32>
    %cst_188 = arith.constant dense<0.000000e+00> : vector<1xf32>
    %659 = vector.multi_reduction <add>, %658, %cst_188 [1, 2] : vector<1x6x1xf32> to vector<1xf32>
    %660 = vector.shape_cast %659 : vector<1xf32> to vector<1x1x1xf32>
    %661 = vector.extract %660[0, 0, 0] : f32 from vector<1x1x1xf32>
    %662 = vector.broadcast %661 : f32 to vector<1x1xf32>
    %cst_189 = arith.constant 0.0833333358 : f32
    %663 = vector.broadcast %cst_189 : f32 to vector<1x1xf32>
    %664 = arith.mulf %663, %662 : vector<1x1xf32>
    %665 = arith.addf %356, %664 : vector<1x1xf32>
    %666 = arith.truncf %621 : vector<6x16xf32> to vector<6x16xbf16>
    %cst_190 = arith.constant dense<0.000000e+00> : vector<6x8xf32>
    %667 = tpu.matmul %666, %21, %cst_190 {dimension_numbers = #tpu.dot_dimension_numbers<[1], [0], [0], [1], [0, 0, 1, 1], [], []>} : vector<6x16xbf16>, vector<16x8xbf16>, vector<6x8xf32> -> vector<6x8xf32>
    %668 = vector.broadcast %87 : vector<6x1xf32> to vector<6x8xf32>
    %669 = arith.mulf %667, %668 : vector<6x8xf32>
    %cst_191 = arith.constant dense<0.000000e+00> : vector<8xf32>
    %670 = vector.multi_reduction <add>, %669, %cst_191 [0] : vector<6x8xf32> to vector<8xf32>
    %671 = vector.shape_cast %670 : vector<8xf32> to vector<1x8xf32>
    %cst_192 = arith.constant 0.333333343 : f32
    %672 = vector.broadcast %cst_192 : f32 to vector<1x8xf32>
    %673 = arith.mulf %671, %672 : vector<1x8xf32>
    %674 = vector.broadcast %87 : vector<6x1xf32> to vector<6x8xf32>
    %675 = vector.broadcast %673 : vector<1x8xf32> to vector<6x8xf32>
    %676 = arith.mulf %674, %675 : vector<6x8xf32>
    %677 = vector.broadcast %95 : vector<6x1xf32> to vector<6x8xf32>
    %678 = arith.mulf %667, %677 : vector<6x8xf32>
    %cst_193 = arith.constant dense<0.000000e+00> : vector<8xf32>
    %679 = vector.multi_reduction <add>, %678, %cst_193 [0] : vector<6x8xf32> to vector<8xf32>
    %680 = vector.shape_cast %679 : vector<8xf32> to vector<1x8xf32>
    %cst_194 = arith.constant 0.333333343 : f32
    %681 = vector.broadcast %cst_194 : f32 to vector<1x8xf32>
    %682 = arith.mulf %680, %681 : vector<1x8xf32>
    %683 = vector.broadcast %95 : vector<6x1xf32> to vector<6x8xf32>
    %684 = vector.broadcast %682 : vector<1x8xf32> to vector<6x8xf32>
    %685 = arith.mulf %683, %684 : vector<6x8xf32>
    %686 = arith.addf %676, %685 : vector<6x8xf32>
    %687 = arith.addf %686, %72 : vector<6x8xf32>
    %cst_195 = arith.constant 0.000000e+00 : f32
    %688 = vector.broadcast %cst_195 : f32 to vector<6x8xf32>
    %689 = arith.maximumf %687, %688 : vector<6x8xf32>
    %690 = arith.truncf %689 : vector<6x8xf32> to vector<6x8xbf16>
    %cst_196 = arith.constant dense<0.000000e+00> : vector<6x16xf32>
    %691 = tpu.matmul %690, %23, %cst_196 {dimension_numbers = #tpu.dot_dimension_numbers<[1], [0], [0], [1], [0, 0, 1, 1], [], []>} : vector<6x8xbf16>, vector<8x16xbf16>, vector<6x16xf32> -> vector<6x16xf32>
    %692 = vector.broadcast %87 : vector<6x1xf32> to vector<6x16xf32>
    %693 = arith.mulf %691, %692 : vector<6x16xf32>
    %cst_197 = arith.constant dense<0.000000e+00> : vector<16xf32>
    %694 = vector.multi_reduction <add>, %693, %cst_197 [0] : vector<6x16xf32> to vector<16xf32>
    %695 = vector.shape_cast %694 : vector<16xf32> to vector<1x16xf32>
    %cst_198 = arith.constant 0.333333343 : f32
    %696 = vector.broadcast %cst_198 : f32 to vector<1x16xf32>
    %697 = arith.mulf %695, %696 : vector<1x16xf32>
    %698 = vector.broadcast %87 : vector<6x1xf32> to vector<6x16xf32>
    %699 = vector.broadcast %697 : vector<1x16xf32> to vector<6x16xf32>
    %700 = arith.mulf %698, %699 : vector<6x16xf32>
    %701 = vector.broadcast %95 : vector<6x1xf32> to vector<6x16xf32>
    %702 = arith.mulf %691, %701 : vector<6x16xf32>
    %cst_199 = arith.constant dense<0.000000e+00> : vector<16xf32>
    %703 = vector.multi_reduction <add>, %702, %cst_199 [0] : vector<6x16xf32> to vector<16xf32>
    %704 = vector.shape_cast %703 : vector<16xf32> to vector<1x16xf32>
    %cst_200 = arith.constant 0.333333343 : f32
    %705 = vector.broadcast %cst_200 : f32 to vector<1x16xf32>
    %706 = arith.mulf %704, %705 : vector<1x16xf32>
    %707 = vector.broadcast %95 : vector<6x1xf32> to vector<6x16xf32>
    %708 = vector.broadcast %706 : vector<1x16xf32> to vector<6x16xf32>
    %709 = arith.mulf %707, %708 : vector<6x16xf32>
    %710 = arith.addf %700, %709 : vector<6x16xf32>
    %711 = arith.addf %710, %75 : vector<6x16xf32>
    %712 = tpu.concatenate %711, %621 in 1 : vector<6x16xf32>, vector<6x16xf32> -> vector<6x32xf32>
    %713 = arith.truncf %712 : vector<6x32xf32> to vector<6x32xbf16>
    %cst_201 = arith.constant dense<0.000000e+00> : vector<6x16xf32>
    %714 = tpu.matmul %713, %11, %cst_201 {dimension_numbers = #tpu.dot_dimension_numbers<[1], [0], [0], [1], [0, 0, 1, 1], [], []>} : vector<6x32xbf16>, vector<32x16xbf16>, vector<6x16xf32> -> vector<6x16xf32>
    %715 = arith.addf %714, %78 : vector<6x16xf32>
    %c2_i32 = arith.constant 2 : i32
    %716 = arith.index_cast %c2_i32 : i32 to index
    %c0_202 = arith.constant 0 : index
    %c0_203 = arith.constant 0 : index
    %717 = vector.load %arg0[%716, %c0_202, %c0_203] : memref<7x6x17xf32, #tpu.memory_space<vmem>>, vector<1x6x17xf32>
    %718 = vector.shape_cast %717 : vector<1x6x17xf32> to vector<6x17xf32>
    %719 = arith.index_cast %c2_i32 : i32 to index
    %c0_204 = arith.constant 0 : index
    %c0_205 = arith.constant 0 : index
    %720 = vector.load %arg1[%719, %c0_204, %c0_205] : memref<7x6x8xf32, #tpu.memory_space<vmem>>, vector<1x6x8xf32>
    %721 = vector.shape_cast %720 : vector<1x6x8xf32> to vector<6x8xf32>
    %722 = vector.extract_strided_slice %718 {offsets = [0, 6], sizes = [6, 4], strides = [1, 1]} : vector<6x17xf32> to vector<6x4xf32>
    %723 = vector.extract_strided_slice %718 {offsets = [0, 14], sizes = [6, 2], strides = [1, 1]} : vector<6x17xf32> to vector<6x2xf32>
    %724 = tpu.concatenate %718, %715 in 1 : vector<6x17xf32>, vector<6x16xf32> -> vector<6x33xf32>
    %725 = arith.truncf %724 : vector<6x33xf32> to vector<6x33xbf16>
    %cst_206 = arith.constant dense<0.000000e+00> : vector<6x208xf32>
    %726 = tpu.matmul %725, %1, %cst_206 {dimension_numbers = #tpu.dot_dimension_numbers<[1], [0], [0], [1], [0, 0, 1, 1], [], []>} : vector<6x33xbf16>, vector<33x208xbf16>, vector<6x208xf32> -> vector<6x208xf32>
    %727 = vector.extract_strided_slice %726 {offsets = [0, 0], sizes = [6, 32], strides = [1, 1]} : vector<6x208xf32> to vector<6x32xf32>
    %cst_207 = arith.constant 0.000000e+00 : f32
    %728 = vector.broadcast %cst_207 : f32 to vector<6x32xf32>
    %729 = arith.maximumf %727, %728 : vector<6x32xf32>
    %730 = arith.truncf %729 : vector<6x32xf32> to vector<6x32xbf16>
    %cst_208 = arith.constant dense<0.000000e+00> : vector<6x4xf32>
    %731 = tpu.matmul %730, %13, %cst_208 {dimension_numbers = #tpu.dot_dimension_numbers<[1], [0], [0], [1], [0, 0, 1, 1], [], []>} : vector<6x32xbf16>, vector<32x4xbf16>, vector<6x4xf32> -> vector<6x4xf32>
    %732 = arith.addf %731, %60 : vector<6x4xf32>
    %cst_209 = arith.constant dense<0xFF800000> : vector<6xf32>
    %733 = vector.multi_reduction <maximumf>, %732, %cst_209 [1] : vector<6x4xf32> to vector<6xf32>
    %734 = vector.shape_cast %733 : vector<6xf32> to vector<6x1xf32>
    %735 = vector.broadcast %734 : vector<6x1xf32> to vector<6x4xf32>
    %736 = arith.subf %732, %735 : vector<6x4xf32>
    %737 = math.exp %736 : vector<6x4xf32>
    %cst_210 = arith.constant dense<0.000000e+00> : vector<6xf32>
    %738 = vector.multi_reduction <add>, %737, %cst_210 [1] : vector<6x4xf32> to vector<6xf32>
    %739 = vector.shape_cast %738 : vector<6xf32> to vector<6x1xf32>
    %740 = tpu.reciprocal %739 {approx = true} : vector<6x1xf32> -> vector<6x1xf32>
    %741 = vector.broadcast %740 : vector<6x1xf32> to vector<6x4xf32>
    %742 = arith.mulf %737, %741 : vector<6x4xf32>
    %743 = arith.truncf %742 : vector<6x4xf32> to vector<6x4xbf16>
    %cst_211 = arith.constant dense<0.000000e+00> : vector<6x8xf32>
    %744 = tpu.matmul %743, %25, %cst_211 {dimension_numbers = #tpu.dot_dimension_numbers<[1], [0], [0], [1], [0, 0, 1, 1], [], []>} : vector<6x4xbf16>, vector<4x8xbf16>, vector<6x8xf32> -> vector<6x8xf32>
    %745 = vector.broadcast %87 : vector<6x1xf32> to vector<6x8xf32>
    %746 = arith.mulf %744, %745 : vector<6x8xf32>
    %cst_212 = arith.constant dense<0.000000e+00> : vector<8xf32>
    %747 = vector.multi_reduction <add>, %746, %cst_212 [0] : vector<6x8xf32> to vector<8xf32>
    %748 = vector.shape_cast %747 : vector<8xf32> to vector<1x8xf32>
    %cst_213 = arith.constant 0.333333343 : f32
    %749 = vector.broadcast %cst_213 : f32 to vector<1x8xf32>
    %750 = arith.mulf %748, %749 : vector<1x8xf32>
    %751 = vector.broadcast %87 : vector<6x1xf32> to vector<6x8xf32>
    %752 = vector.broadcast %750 : vector<1x8xf32> to vector<6x8xf32>
    %753 = arith.mulf %751, %752 : vector<6x8xf32>
    %754 = vector.broadcast %95 : vector<6x1xf32> to vector<6x8xf32>
    %755 = arith.mulf %744, %754 : vector<6x8xf32>
    %cst_214 = arith.constant dense<0.000000e+00> : vector<8xf32>
    %756 = vector.multi_reduction <add>, %755, %cst_214 [0] : vector<6x8xf32> to vector<8xf32>
    %757 = vector.shape_cast %756 : vector<8xf32> to vector<1x8xf32>
    %cst_215 = arith.constant 0.333333343 : f32
    %758 = vector.broadcast %cst_215 : f32 to vector<1x8xf32>
    %759 = arith.mulf %757, %758 : vector<1x8xf32>
    %760 = vector.broadcast %95 : vector<6x1xf32> to vector<6x8xf32>
    %761 = vector.broadcast %759 : vector<1x8xf32> to vector<6x8xf32>
    %762 = arith.mulf %760, %761 : vector<6x8xf32>
    %763 = arith.addf %753, %762 : vector<6x8xf32>
    %764 = arith.addf %763, %63 : vector<6x8xf32>
    %cst_216 = arith.constant 0.000000e+00 : f32
    %765 = vector.broadcast %cst_216 : f32 to vector<6x8xf32>
    %766 = arith.maximumf %764, %765 : vector<6x8xf32>
    %767 = arith.truncf %766 : vector<6x8xf32> to vector<6x8xbf16>
    %cst_217 = arith.constant dense<0.000000e+00> : vector<6x4xf32>
    %768 = tpu.matmul %767, %27, %cst_217 {dimension_numbers = #tpu.dot_dimension_numbers<[1], [0], [0], [1], [0, 0, 1, 1], [], []>} : vector<6x8xbf16>, vector<8x4xbf16>, vector<6x4xf32> -> vector<6x4xf32>
    %769 = vector.broadcast %87 : vector<6x1xf32> to vector<6x4xf32>
    %770 = arith.mulf %768, %769 : vector<6x4xf32>
    %cst_218 = arith.constant dense<0.000000e+00> : vector<4xf32>
    %771 = vector.multi_reduction <add>, %770, %cst_218 [0] : vector<6x4xf32> to vector<4xf32>
    %772 = vector.shape_cast %771 : vector<4xf32> to vector<1x4xf32>
    %cst_219 = arith.constant 0.333333343 : f32
    %773 = vector.broadcast %cst_219 : f32 to vector<1x4xf32>
    %774 = arith.mulf %772, %773 : vector<1x4xf32>
    %775 = vector.broadcast %87 : vector<6x1xf32> to vector<6x4xf32>
    %776 = vector.broadcast %774 : vector<1x4xf32> to vector<6x4xf32>
    %777 = arith.mulf %775, %776 : vector<6x4xf32>
    %778 = vector.broadcast %95 : vector<6x1xf32> to vector<6x4xf32>
    %779 = arith.mulf %768, %778 : vector<6x4xf32>
    %cst_220 = arith.constant dense<0.000000e+00> : vector<4xf32>
    %780 = vector.multi_reduction <add>, %779, %cst_220 [0] : vector<6x4xf32> to vector<4xf32>
    %781 = vector.shape_cast %780 : vector<4xf32> to vector<1x4xf32>
    %cst_221 = arith.constant 0.333333343 : f32
    %782 = vector.broadcast %cst_221 : f32 to vector<1x4xf32>
    %783 = arith.mulf %781, %782 : vector<1x4xf32>
    %784 = vector.broadcast %95 : vector<6x1xf32> to vector<6x4xf32>
    %785 = vector.broadcast %783 : vector<1x4xf32> to vector<6x4xf32>
    %786 = arith.mulf %784, %785 : vector<6x4xf32>
    %787 = arith.addf %777, %786 : vector<6x4xf32>
    %788 = arith.addf %787, %66 : vector<6x4xf32>
    %789 = tpu.concatenate %742, %788 in 1 : vector<6x4xf32>, vector<6x4xf32> -> vector<6x8xf32>
    %790 = arith.truncf %789 : vector<6x8xf32> to vector<6x8xbf16>
    %cst_222 = arith.constant dense<0.000000e+00> : vector<6x4xf32>
    %791 = tpu.matmul %790, %29, %cst_222 {dimension_numbers = #tpu.dot_dimension_numbers<[1], [0], [0], [1], [0, 0, 1, 1], [], []>} : vector<6x8xbf16>, vector<8x4xbf16>, vector<6x4xf32> -> vector<6x4xf32>
    %792 = arith.addf %791, %69 : vector<6x4xf32>
    %cst_223 = arith.constant dense<0xFF800000> : vector<6xf32>
    %793 = vector.multi_reduction <maximumf>, %792, %cst_223 [1] : vector<6x4xf32> to vector<6xf32>
    %794 = vector.shape_cast %793 : vector<6xf32> to vector<6x1xf32>
    %795 = vector.broadcast %794 : vector<6x1xf32> to vector<6x4xf32>
    %796 = arith.subf %792, %795 : vector<6x4xf32>
    %797 = math.exp %796 : vector<6x4xf32>
    %cst_224 = arith.constant dense<0.000000e+00> : vector<6xf32>
    %798 = vector.multi_reduction <add>, %797, %cst_224 [1] : vector<6x4xf32> to vector<6xf32>
    %799 = vector.shape_cast %798 : vector<6xf32> to vector<6x1xf32>
    %800 = tpu.reciprocal %799 {approx = true} : vector<6x1xf32> -> vector<6x1xf32>
    %801 = vector.broadcast %800 : vector<6x1xf32> to vector<6x4xf32>
    %802 = arith.mulf %797, %801 : vector<6x4xf32>
    %803 = arith.mulf %722, %802 : vector<6x4xf32>
    %804 = vector.shape_cast %803 : vector<6x4xf32> to vector<1x6x4xf32>
    %cst_225 = arith.constant dense<0.000000e+00> : vector<1xf32>
    %805 = vector.multi_reduction <add>, %804, %cst_225 [1, 2] : vector<1x6x4xf32> to vector<1xf32>
    %806 = vector.shape_cast %805 : vector<1xf32> to vector<1x1x1xf32>
    %807 = vector.extract %806[0, 0, 0] : f32 from vector<1x1x1xf32>
    %808 = vector.broadcast %807 : f32 to vector<1x1xf32>
    %809 = arith.subf %500, %808 : vector<1x1xf32>
    %810 = vector.extract_strided_slice %726 {offsets = [0, 128], sizes = [6, 32], strides = [1, 1]} : vector<6x208xf32> to vector<6x32xf32>
    %cst_226 = arith.constant 0.000000e+00 : f32
    %811 = vector.broadcast %cst_226 : f32 to vector<6x32xf32>
    %812 = arith.cmpf ogt, %810, %811 : vector<6x32xf32>
    %cst_227 = arith.constant 0.00999999977 : f32
    %813 = vector.broadcast %cst_227 : f32 to vector<6x32xf32>
    %814 = arith.mulf %813, %810 : vector<6x32xf32>
    %815 = arith.select %812, %810, %814 : vector<6x32xi1>, vector<6x32xf32>
    %816 = arith.truncf %815 : vector<6x32xf32> to vector<6x32xbf16>
    %cst_228 = arith.constant dense<0.000000e+00> : vector<6x32xf32>
    %817 = tpu.matmul %816, %3, %cst_228 {dimension_numbers = #tpu.dot_dimension_numbers<[1], [0], [0], [1], [0, 0, 1, 1], [], []>} : vector<6x32xbf16>, vector<32x32xbf16>, vector<6x32xf32> -> vector<6x32xf32>
    %818 = arith.addf %817, %36 : vector<6x32xf32>
    %cst_229 = arith.constant 0.000000e+00 : f32
    %819 = vector.broadcast %cst_229 : f32 to vector<6x32xf32>
    %820 = arith.cmpf ogt, %818, %819 : vector<6x32xf32>
    %cst_230 = arith.constant 0.00999999977 : f32
    %821 = vector.broadcast %cst_230 : f32 to vector<6x32xf32>
    %822 = arith.mulf %821, %818 : vector<6x32xf32>
    %823 = arith.select %820, %818, %822 : vector<6x32xi1>, vector<6x32xf32>
    %824 = arith.truncf %823 : vector<6x32xf32> to vector<6x32xbf16>
    %cst_231 = arith.constant dense<0.000000e+00> : vector<6x80xf32>
    %825 = tpu.matmul %824, %5, %cst_231 {dimension_numbers = #tpu.dot_dimension_numbers<[1], [0], [0], [1], [0, 0, 1, 1], [], []>} : vector<6x32xbf16>, vector<32x80xbf16>, vector<6x80xf32> -> vector<6x80xf32>
    %826 = arith.addf %825, %39 : vector<6x80xf32>
    %827 = vector.extract_strided_slice %726 {offsets = [0, 32], sizes = [6, 32], strides = [1, 1]} : vector<6x208xf32> to vector<6x32xf32>
    %828 = vector.extract_strided_slice %826 {offsets = [0, 0], sizes = [6, 32], strides = [1, 1]} : vector<6x80xf32> to vector<6x32xf32>
    %829 = arith.addf %827, %828 : vector<6x32xf32>
    %cst_232 = arith.constant 0.000000e+00 : f32
    %830 = vector.broadcast %cst_232 : f32 to vector<6x32xf32>
    %831 = arith.cmpf ogt, %829, %830 : vector<6x32xf32>
    %cst_233 = arith.constant 0.00999999977 : f32
    %832 = vector.broadcast %cst_233 : f32 to vector<6x32xf32>
    %833 = arith.mulf %832, %829 : vector<6x32xf32>
    %834 = arith.select %831, %829, %833 : vector<6x32xi1>, vector<6x32xf32>
    %835 = vector.extract_strided_slice %726 {offsets = [0, 64], sizes = [6, 32], strides = [1, 1]} : vector<6x208xf32> to vector<6x32xf32>
    %cst_234 = arith.constant 0.000000e+00 : f32
    %836 = vector.broadcast %cst_234 : f32 to vector<6x32xf32>
    %837 = arith.cmpf ogt, %835, %836 : vector<6x32xf32>
    %cst_235 = arith.constant 0.00999999977 : f32
    %838 = vector.broadcast %cst_235 : f32 to vector<6x32xf32>
    %839 = arith.mulf %838, %835 : vector<6x32xf32>
    %840 = arith.select %837, %835, %839 : vector<6x32xi1>, vector<6x32xf32>
    %841 = tpu.concatenate %834, %840 in 1 : vector<6x32xf32>, vector<6x32xf32> -> vector<6x64xf32>
    %842 = arith.truncf %841 : vector<6x64xf32> to vector<6x64xbf16>
    %cst_236 = arith.constant dense<0.000000e+00> : vector<6x64xf32>
    %843 = tpu.matmul %842, %31, %cst_236 {dimension_numbers = #tpu.dot_dimension_numbers<[1], [0], [0], [1], [0, 0, 1, 1], [], []>} : vector<6x64xbf16>, vector<64x64xbf16>, vector<6x64xf32> -> vector<6x64xf32>
    %844 = arith.addf %843, %48 : vector<6x64xf32>
    %cst_237 = arith.constant 0.000000e+00 : f32
    %845 = vector.broadcast %cst_237 : f32 to vector<6x64xf32>
    %846 = arith.cmpf ogt, %844, %845 : vector<6x64xf32>
    %cst_238 = arith.constant 0.00999999977 : f32
    %847 = vector.broadcast %cst_238 : f32 to vector<6x64xf32>
    %848 = arith.mulf %847, %844 : vector<6x64xf32>
    %849 = arith.select %846, %844, %848 : vector<6x64xi1>, vector<6x64xf32>
    %850 = arith.truncf %849 : vector<6x64xf32> to vector<6x64xbf16>
    %cst_239 = arith.constant dense<0.000000e+00> : vector<6x32xf32>
    %851 = tpu.matmul %850, %33, %cst_239 {dimension_numbers = #tpu.dot_dimension_numbers<[1], [0], [0], [1], [0, 0, 1, 1], [], []>} : vector<6x64xbf16>, vector<64x32xbf16>, vector<6x32xf32> -> vector<6x32xf32>
    %852 = arith.addf %851, %51 : vector<6x32xf32>
    %853 = vector.extract_strided_slice %852 {offsets = [0, 0], sizes = [6, 8], strides = [1, 1]} : vector<6x32xf32> to vector<6x8xf32>
    %854 = vector.extract_strided_slice %852 {offsets = [0, 8], sizes = [6, 8], strides = [1, 1]} : vector<6x32xf32> to vector<6x8xf32>
    %855 = vector.extract_strided_slice %852 {offsets = [0, 16], sizes = [6, 8], strides = [1, 1]} : vector<6x32xf32> to vector<6x8xf32>
    %856 = vector.extract_strided_slice %852 {offsets = [0, 24], sizes = [6, 8], strides = [1, 1]} : vector<6x32xf32> to vector<6x8xf32>
    %cst_240 = arith.constant 5.000000e-01 : f32
    %857 = vector.broadcast %cst_240 : f32 to vector<6x8xf32>
    %858 = arith.mulf %857, %854 : vector<6x8xf32>
    %859 = math.exp %858 : vector<6x8xf32>
    %860 = arith.mulf %721, %859 : vector<6x8xf32>
    %861 = arith.addf %860, %853 : vector<6x8xf32>
    %862 = arith.truncf %861 : vector<6x8xf32> to vector<6x8xbf16>
    %cst_241 = arith.constant dense<0.000000e+00> : vector<6x32xf32>
    %863 = tpu.matmul %862, %19, %cst_241 {dimension_numbers = #tpu.dot_dimension_numbers<[1], [0], [0], [1], [0, 0, 1, 1], [], []>} : vector<6x8xbf16>, vector<8x32xbf16>, vector<6x32xf32> -> vector<6x32xf32>
    %864 = arith.addf %863, %42 : vector<6x32xf32>
    %cst_242 = arith.constant 0.000000e+00 : f32
    %865 = vector.broadcast %cst_242 : f32 to vector<6x32xf32>
    %866 = arith.cmpf ogt, %864, %865 : vector<6x32xf32>
    %cst_243 = arith.constant 0.00999999977 : f32
    %867 = vector.broadcast %cst_243 : f32 to vector<6x32xf32>
    %868 = arith.mulf %867, %864 : vector<6x32xf32>
    %869 = arith.select %866, %864, %868 : vector<6x32xi1>, vector<6x32xf32>
    %870 = arith.truncf %869 : vector<6x32xf32> to vector<6x32xbf16>
    %cst_244 = arith.constant dense<0.000000e+00> : vector<6x32xf32>
    %871 = tpu.matmul %870, %7, %cst_244 {dimension_numbers = #tpu.dot_dimension_numbers<[1], [0], [0], [1], [0, 0, 1, 1], [], []>} : vector<6x32xbf16>, vector<32x32xbf16>, vector<6x32xf32> -> vector<6x32xf32>
    %872 = arith.addf %871, %45 : vector<6x32xf32>
    %cst_245 = arith.constant 0.000000e+00 : f32
    %873 = vector.broadcast %cst_245 : f32 to vector<6x32xf32>
    %874 = arith.cmpf ogt, %872, %873 : vector<6x32xf32>
    %cst_246 = arith.constant 0.00999999977 : f32
    %875 = vector.broadcast %cst_246 : f32 to vector<6x32xf32>
    %876 = arith.mulf %875, %872 : vector<6x32xf32>
    %877 = arith.select %874, %872, %876 : vector<6x32xi1>, vector<6x32xf32>
    %878 = arith.truncf %877 : vector<6x32xf32> to vector<6x32xbf16>
    %cst_247 = arith.constant dense<0.000000e+00> : vector<6x80xf32>
    %879 = tpu.matmul %878, %17, %cst_247 {dimension_numbers = #tpu.dot_dimension_numbers<[1], [0], [0], [1], [0, 0, 1, 1], [], []>} : vector<6x32xbf16>, vector<32x80xbf16>, vector<6x80xf32> -> vector<6x80xf32>
    %880 = vector.extract_strided_slice %726 {offsets = [0, 96], sizes = [6, 32], strides = [1, 1]} : vector<6x208xf32> to vector<6x32xf32>
    %881 = vector.extract_strided_slice %879 {offsets = [0, 0], sizes = [6, 32], strides = [1, 1]} : vector<6x80xf32> to vector<6x32xf32>
    %882 = arith.addf %880, %881 : vector<6x32xf32>
    %cst_248 = arith.constant 0.000000e+00 : f32
    %883 = vector.broadcast %cst_248 : f32 to vector<6x32xf32>
    %884 = arith.cmpf ogt, %882, %883 : vector<6x32xf32>
    %cst_249 = arith.constant 0.00999999977 : f32
    %885 = vector.broadcast %cst_249 : f32 to vector<6x32xf32>
    %886 = arith.mulf %885, %882 : vector<6x32xf32>
    %887 = arith.select %884, %882, %886 : vector<6x32xi1>, vector<6x32xf32>
    %888 = arith.truncf %887 : vector<6x32xf32> to vector<6x32xbf16>
    %cst_250 = arith.constant dense<0.000000e+00> : vector<6x32xf32>
    %889 = tpu.matmul %888, %9, %cst_250 {dimension_numbers = #tpu.dot_dimension_numbers<[1], [0], [0], [1], [0, 0, 1, 1], [], []>} : vector<6x32xbf16>, vector<32x32xbf16>, vector<6x32xf32> -> vector<6x32xf32>
    %890 = arith.addf %889, %54 : vector<6x32xf32>
    %cst_251 = arith.constant 0.000000e+00 : f32
    %891 = vector.broadcast %cst_251 : f32 to vector<6x32xf32>
    %892 = arith.cmpf ogt, %890, %891 : vector<6x32xf32>
    %cst_252 = arith.constant 0.00999999977 : f32
    %893 = vector.broadcast %cst_252 : f32 to vector<6x32xf32>
    %894 = arith.mulf %893, %890 : vector<6x32xf32>
    %895 = arith.select %892, %890, %894 : vector<6x32xi1>, vector<6x32xf32>
    %896 = arith.truncf %895 : vector<6x32xf32> to vector<6x32xbf16>
    %cst_253 = arith.constant dense<0.000000e+00> : vector<6x4xf32>
    %897 = tpu.matmul %896, %15, %cst_253 {dimension_numbers = #tpu.dot_dimension_numbers<[1], [0], [0], [1], [0, 0, 1, 1], [], []>} : vector<6x32xbf16>, vector<32x4xbf16>, vector<6x4xf32> -> vector<6x4xf32>
    %898 = arith.addf %897, %57 : vector<6x4xf32>
    %899 = vector.extract_strided_slice %898 {offsets = [0, 0], sizes = [6, 2], strides = [1, 1]} : vector<6x4xf32> to vector<6x2xf32>
    %900 = vector.extract_strided_slice %898 {offsets = [0, 2], sizes = [6, 2], strides = [1, 1]} : vector<6x4xf32> to vector<6x2xf32>
    %901 = vector.extract_strided_slice %826 {offsets = [0, 32], sizes = [6, 48], strides = [1, 1]} : vector<6x80xf32> to vector<6x48xf32>
    %902 = vector.extract_strided_slice %879 {offsets = [0, 32], sizes = [6, 48], strides = [1, 1]} : vector<6x80xf32> to vector<6x48xf32>
    %903 = arith.addf %901, %902 : vector<6x48xf32>
    %904 = vector.extract_strided_slice %726 {offsets = [0, 160], sizes = [6, 48], strides = [1, 1]} : vector<6x208xf32> to vector<6x48xf32>
    %905 = vector.extract_strided_slice %903 {offsets = [0, 0], sizes = [6, 16], strides = [1, 1]} : vector<6x48xf32> to vector<6x16xf32>
    %906 = vector.extract_strided_slice %904 {offsets = [0, 0], sizes = [6, 16], strides = [1, 1]} : vector<6x48xf32> to vector<6x16xf32>
    %907 = arith.addf %905, %906 : vector<6x16xf32>
    %908 = arith.negf %907 : vector<6x16xf32>
    %909 = math.exp %908 : vector<6x16xf32>
    %cst_254 = arith.constant 1.000000e+00 : f32
    %910 = vector.broadcast %cst_254 : f32 to vector<6x16xf32>
    %911 = arith.addf %910, %909 : vector<6x16xf32>
    %912 = arith.divf %910, %911 : vector<6x16xf32>
    %913 = vector.extract_strided_slice %903 {offsets = [0, 16], sizes = [6, 16], strides = [1, 1]} : vector<6x48xf32> to vector<6x16xf32>
    %914 = vector.extract_strided_slice %904 {offsets = [0, 16], sizes = [6, 16], strides = [1, 1]} : vector<6x48xf32> to vector<6x16xf32>
    %915 = arith.addf %913, %914 : vector<6x16xf32>
    %916 = arith.negf %915 : vector<6x16xf32>
    %917 = math.exp %916 : vector<6x16xf32>
    %cst_255 = arith.constant 1.000000e+00 : f32
    %918 = vector.broadcast %cst_255 : f32 to vector<6x16xf32>
    %919 = arith.addf %918, %917 : vector<6x16xf32>
    %920 = arith.divf %918, %919 : vector<6x16xf32>
    %921 = vector.extract_strided_slice %903 {offsets = [0, 32], sizes = [6, 16], strides = [1, 1]} : vector<6x48xf32> to vector<6x16xf32>
    %922 = vector.extract_strided_slice %904 {offsets = [0, 32], sizes = [6, 16], strides = [1, 1]} : vector<6x48xf32> to vector<6x16xf32>
    %923 = arith.mulf %912, %922 : vector<6x16xf32>
    %924 = arith.addf %921, %923 : vector<6x16xf32>
    %925 = math.tanh %924 : vector<6x16xf32>
    %cst_256 = arith.constant 1.000000e+00 : f32
    %926 = vector.broadcast %cst_256 : f32 to vector<6x16xf32>
    %927 = arith.subf %926, %920 : vector<6x16xf32>
    %928 = arith.mulf %927, %925 : vector<6x16xf32>
    %929 = arith.mulf %920, %715 : vector<6x16xf32>
    %930 = arith.addf %928, %929 : vector<6x16xf32>
    %931 = arith.subf %856, %854 : vector<6x8xf32>
    %cst_257 = arith.constant dense<0.000000e+00> : vector<6xf32>
    %932 = vector.multi_reduction <add>, %931, %cst_257 [1] : vector<6x8xf32> to vector<6xf32>
    %933 = vector.shape_cast %932 : vector<6xf32> to vector<6x1xf32>
    %934 = arith.subf %854, %856 : vector<6x8xf32>
    %935 = math.exp %934 : vector<6x8xf32>
    %cst_258 = arith.constant dense<0.000000e+00> : vector<6xf32>
    %936 = vector.multi_reduction <add>, %935, %cst_258 [1] : vector<6x8xf32> to vector<6xf32>
    %937 = vector.shape_cast %936 : vector<6xf32> to vector<6x1xf32>
    %938 = arith.subf %853, %855 : vector<6x8xf32>
    %939 = arith.mulf %938, %938 : vector<6x8xf32>
    %940 = math.exp %856 : vector<6x8xf32>
    %941 = arith.divf %939, %940 : vector<6x8xf32>
    %cst_259 = arith.constant dense<0.000000e+00> : vector<6xf32>
    %942 = vector.multi_reduction <add>, %941, %cst_259 [1] : vector<6x8xf32> to vector<6xf32>
    %943 = vector.shape_cast %942 : vector<6xf32> to vector<6x1xf32>
    %cst_260 = arith.constant 8.000000e+00 : f32
    %944 = vector.broadcast %cst_260 : f32 to vector<6x1xf32>
    %945 = arith.subf %933, %944 : vector<6x1xf32>
    %946 = arith.addf %945, %937 : vector<6x1xf32>
    %947 = arith.addf %946, %943 : vector<6x1xf32>
    %948 = vector.shape_cast %947 : vector<6x1xf32> to vector<1x6x1xf32>
    %cst_261 = arith.constant dense<0.000000e+00> : vector<1xf32>
    %949 = vector.multi_reduction <add>, %948, %cst_261 [1, 2] : vector<1x6x1xf32> to vector<1xf32>
    %950 = vector.shape_cast %949 : vector<1xf32> to vector<1x1x1xf32>
    %951 = vector.extract %950[0, 0, 0] : f32 from vector<1x1x1xf32>
    %952 = vector.broadcast %951 : f32 to vector<1x1xf32>
    %cst_262 = arith.constant 0.0833333358 : f32
    %953 = vector.broadcast %cst_262 : f32 to vector<1x1xf32>
    %954 = arith.mulf %953, %952 : vector<1x1xf32>
    %955 = arith.addf %646, %954 : vector<1x1xf32>
    %956 = arith.subf %723, %899 : vector<6x2xf32>
    %957 = arith.mulf %956, %956 : vector<6x2xf32>
    %958 = math.exp %900 : vector<6x2xf32>
    %959 = arith.divf %957, %958 : vector<6x2xf32>
    %cst_263 = arith.constant dense<0.000000e+00> : vector<6xf32>
    %960 = vector.multi_reduction <add>, %959, %cst_263 [1] : vector<6x2xf32> to vector<6xf32>
    %961 = vector.shape_cast %960 : vector<6xf32> to vector<6x1xf32>
    %cst_264 = arith.constant dense<0.000000e+00> : vector<6xf32>
    %962 = vector.multi_reduction <add>, %900, %cst_264 [1] : vector<6x2xf32> to vector<6xf32>
    %963 = vector.shape_cast %962 : vector<6xf32> to vector<6x1xf32>
    %cst_265 = arith.constant 3.67575407 : f32
    %964 = vector.broadcast %cst_265 : f32 to vector<6x1xf32>
    %965 = arith.addf %961, %964 : vector<6x1xf32>
    %966 = arith.addf %965, %963 : vector<6x1xf32>
    %967 = vector.shape_cast %966 : vector<6x1xf32> to vector<1x6x1xf32>
    %cst_266 = arith.constant dense<0.000000e+00> : vector<1xf32>
    %968 = vector.multi_reduction <add>, %967, %cst_266 [1, 2] : vector<1x6x1xf32> to vector<1xf32>
    %969 = vector.shape_cast %968 : vector<1xf32> to vector<1x1x1xf32>
    %970 = vector.extract %969[0, 0, 0] : f32 from vector<1x1x1xf32>
    %971 = vector.broadcast %970 : f32 to vector<1x1xf32>
    %cst_267 = arith.constant 0.0833333358 : f32
    %972 = vector.broadcast %cst_267 : f32 to vector<1x1xf32>
    %973 = arith.mulf %972, %971 : vector<1x1xf32>
    %974 = arith.addf %665, %973 : vector<1x1xf32>
    %975 = arith.truncf %930 : vector<6x16xf32> to vector<6x16xbf16>
    %cst_268 = arith.constant dense<0.000000e+00> : vector<6x8xf32>
    %976 = tpu.matmul %975, %21, %cst_268 {dimension_numbers = #tpu.dot_dimension_numbers<[1], [0], [0], [1], [0, 0, 1, 1], [], []>} : vector<6x16xbf16>, vector<16x8xbf16>, vector<6x8xf32> -> vector<6x8xf32>
    %977 = vector.broadcast %87 : vector<6x1xf32> to vector<6x8xf32>
    %978 = arith.mulf %976, %977 : vector<6x8xf32>
    %cst_269 = arith.constant dense<0.000000e+00> : vector<8xf32>
    %979 = vector.multi_reduction <add>, %978, %cst_269 [0] : vector<6x8xf32> to vector<8xf32>
    %980 = vector.shape_cast %979 : vector<8xf32> to vector<1x8xf32>
    %cst_270 = arith.constant 0.333333343 : f32
    %981 = vector.broadcast %cst_270 : f32 to vector<1x8xf32>
    %982 = arith.mulf %980, %981 : vector<1x8xf32>
    %983 = vector.broadcast %87 : vector<6x1xf32> to vector<6x8xf32>
    %984 = vector.broadcast %982 : vector<1x8xf32> to vector<6x8xf32>
    %985 = arith.mulf %983, %984 : vector<6x8xf32>
    %986 = vector.broadcast %95 : vector<6x1xf32> to vector<6x8xf32>
    %987 = arith.mulf %976, %986 : vector<6x8xf32>
    %cst_271 = arith.constant dense<0.000000e+00> : vector<8xf32>
    %988 = vector.multi_reduction <add>, %987, %cst_271 [0] : vector<6x8xf32> to vector<8xf32>
    %989 = vector.shape_cast %988 : vector<8xf32> to vector<1x8xf32>
    %cst_272 = arith.constant 0.333333343 : f32
    %990 = vector.broadcast %cst_272 : f32 to vector<1x8xf32>
    %991 = arith.mulf %989, %990 : vector<1x8xf32>
    %992 = vector.broadcast %95 : vector<6x1xf32> to vector<6x8xf32>
    %993 = vector.broadcast %991 : vector<1x8xf32> to vector<6x8xf32>
    %994 = arith.mulf %992, %993 : vector<6x8xf32>
    %995 = arith.addf %985, %994 : vector<6x8xf32>
    %996 = arith.addf %995, %72 : vector<6x8xf32>
    %cst_273 = arith.constant 0.000000e+00 : f32
    %997 = vector.broadcast %cst_273 : f32 to vector<6x8xf32>
    %998 = arith.maximumf %996, %997 : vector<6x8xf32>
    %999 = arith.truncf %998 : vector<6x8xf32> to vector<6x8xbf16>
    %cst_274 = arith.constant dense<0.000000e+00> : vector<6x16xf32>
    %1000 = tpu.matmul %999, %23, %cst_274 {dimension_numbers = #tpu.dot_dimension_numbers<[1], [0], [0], [1], [0, 0, 1, 1], [], []>} : vector<6x8xbf16>, vector<8x16xbf16>, vector<6x16xf32> -> vector<6x16xf32>
    %1001 = vector.broadcast %87 : vector<6x1xf32> to vector<6x16xf32>
    %1002 = arith.mulf %1000, %1001 : vector<6x16xf32>
    %cst_275 = arith.constant dense<0.000000e+00> : vector<16xf32>
    %1003 = vector.multi_reduction <add>, %1002, %cst_275 [0] : vector<6x16xf32> to vector<16xf32>
    %1004 = vector.shape_cast %1003 : vector<16xf32> to vector<1x16xf32>
    %cst_276 = arith.constant 0.333333343 : f32
    %1005 = vector.broadcast %cst_276 : f32 to vector<1x16xf32>
    %1006 = arith.mulf %1004, %1005 : vector<1x16xf32>
    %1007 = vector.broadcast %87 : vector<6x1xf32> to vector<6x16xf32>
    %1008 = vector.broadcast %1006 : vector<1x16xf32> to vector<6x16xf32>
    %1009 = arith.mulf %1007, %1008 : vector<6x16xf32>
    %1010 = vector.broadcast %95 : vector<6x1xf32> to vector<6x16xf32>
    %1011 = arith.mulf %1000, %1010 : vector<6x16xf32>
    %cst_277 = arith.constant dense<0.000000e+00> : vector<16xf32>
    %1012 = vector.multi_reduction <add>, %1011, %cst_277 [0] : vector<6x16xf32> to vector<16xf32>
    %1013 = vector.shape_cast %1012 : vector<16xf32> to vector<1x16xf32>
    %cst_278 = arith.constant 0.333333343 : f32
    %1014 = vector.broadcast %cst_278 : f32 to vector<1x16xf32>
    %1015 = arith.mulf %1013, %1014 : vector<1x16xf32>
    %1016 = vector.broadcast %95 : vector<6x1xf32> to vector<6x16xf32>
    %1017 = vector.broadcast %1015 : vector<1x16xf32> to vector<6x16xf32>
    %1018 = arith.mulf %1016, %1017 : vector<6x16xf32>
    %1019 = arith.addf %1009, %1018 : vector<6x16xf32>
    %1020 = arith.addf %1019, %75 : vector<6x16xf32>
    %1021 = tpu.concatenate %1020, %930 in 1 : vector<6x16xf32>, vector<6x16xf32> -> vector<6x32xf32>
    %1022 = arith.truncf %1021 : vector<6x32xf32> to vector<6x32xbf16>
    %cst_279 = arith.constant dense<0.000000e+00> : vector<6x16xf32>
    %1023 = tpu.matmul %1022, %11, %cst_279 {dimension_numbers = #tpu.dot_dimension_numbers<[1], [0], [0], [1], [0, 0, 1, 1], [], []>} : vector<6x32xbf16>, vector<32x16xbf16>, vector<6x16xf32> -> vector<6x16xf32>
    %1024 = arith.addf %1023, %78 : vector<6x16xf32>
    %c3_i32_280 = arith.constant 3 : i32
    %1025 = arith.index_cast %c3_i32_280 : i32 to index
    %c0_281 = arith.constant 0 : index
    %c0_282 = arith.constant 0 : index
    %1026 = vector.load %arg0[%1025, %c0_281, %c0_282] : memref<7x6x17xf32, #tpu.memory_space<vmem>>, vector<1x6x17xf32>
    %1027 = vector.shape_cast %1026 : vector<1x6x17xf32> to vector<6x17xf32>
    %1028 = arith.index_cast %c3_i32_280 : i32 to index
    %c0_283 = arith.constant 0 : index
    %c0_284 = arith.constant 0 : index
    %1029 = vector.load %arg1[%1028, %c0_283, %c0_284] : memref<7x6x8xf32, #tpu.memory_space<vmem>>, vector<1x6x8xf32>
    %1030 = vector.shape_cast %1029 : vector<1x6x8xf32> to vector<6x8xf32>
    %1031 = vector.extract_strided_slice %1027 {offsets = [0, 6], sizes = [6, 4], strides = [1, 1]} : vector<6x17xf32> to vector<6x4xf32>
    %1032 = vector.extract_strided_slice %1027 {offsets = [0, 14], sizes = [6, 2], strides = [1, 1]} : vector<6x17xf32> to vector<6x2xf32>
    %1033 = tpu.concatenate %1027, %1024 in 1 : vector<6x17xf32>, vector<6x16xf32> -> vector<6x33xf32>
    %1034 = arith.truncf %1033 : vector<6x33xf32> to vector<6x33xbf16>
    %cst_285 = arith.constant dense<0.000000e+00> : vector<6x208xf32>
    %1035 = tpu.matmul %1034, %1, %cst_285 {dimension_numbers = #tpu.dot_dimension_numbers<[1], [0], [0], [1], [0, 0, 1, 1], [], []>} : vector<6x33xbf16>, vector<33x208xbf16>, vector<6x208xf32> -> vector<6x208xf32>
    %1036 = vector.extract_strided_slice %1035 {offsets = [0, 0], sizes = [6, 32], strides = [1, 1]} : vector<6x208xf32> to vector<6x32xf32>
    %cst_286 = arith.constant 0.000000e+00 : f32
    %1037 = vector.broadcast %cst_286 : f32 to vector<6x32xf32>
    %1038 = arith.maximumf %1036, %1037 : vector<6x32xf32>
    %1039 = arith.truncf %1038 : vector<6x32xf32> to vector<6x32xbf16>
    %cst_287 = arith.constant dense<0.000000e+00> : vector<6x4xf32>
    %1040 = tpu.matmul %1039, %13, %cst_287 {dimension_numbers = #tpu.dot_dimension_numbers<[1], [0], [0], [1], [0, 0, 1, 1], [], []>} : vector<6x32xbf16>, vector<32x4xbf16>, vector<6x4xf32> -> vector<6x4xf32>
    %1041 = arith.addf %1040, %60 : vector<6x4xf32>
    %cst_288 = arith.constant dense<0xFF800000> : vector<6xf32>
    %1042 = vector.multi_reduction <maximumf>, %1041, %cst_288 [1] : vector<6x4xf32> to vector<6xf32>
    %1043 = vector.shape_cast %1042 : vector<6xf32> to vector<6x1xf32>
    %1044 = vector.broadcast %1043 : vector<6x1xf32> to vector<6x4xf32>
    %1045 = arith.subf %1041, %1044 : vector<6x4xf32>
    %1046 = math.exp %1045 : vector<6x4xf32>
    %cst_289 = arith.constant dense<0.000000e+00> : vector<6xf32>
    %1047 = vector.multi_reduction <add>, %1046, %cst_289 [1] : vector<6x4xf32> to vector<6xf32>
    %1048 = vector.shape_cast %1047 : vector<6xf32> to vector<6x1xf32>
    %1049 = tpu.reciprocal %1048 {approx = true} : vector<6x1xf32> -> vector<6x1xf32>
    %1050 = vector.broadcast %1049 : vector<6x1xf32> to vector<6x4xf32>
    %1051 = arith.mulf %1046, %1050 : vector<6x4xf32>
    %1052 = arith.truncf %1051 : vector<6x4xf32> to vector<6x4xbf16>
    %cst_290 = arith.constant dense<0.000000e+00> : vector<6x8xf32>
    %1053 = tpu.matmul %1052, %25, %cst_290 {dimension_numbers = #tpu.dot_dimension_numbers<[1], [0], [0], [1], [0, 0, 1, 1], [], []>} : vector<6x4xbf16>, vector<4x8xbf16>, vector<6x8xf32> -> vector<6x8xf32>
    %1054 = vector.broadcast %87 : vector<6x1xf32> to vector<6x8xf32>
    %1055 = arith.mulf %1053, %1054 : vector<6x8xf32>
    %cst_291 = arith.constant dense<0.000000e+00> : vector<8xf32>
    %1056 = vector.multi_reduction <add>, %1055, %cst_291 [0] : vector<6x8xf32> to vector<8xf32>
    %1057 = vector.shape_cast %1056 : vector<8xf32> to vector<1x8xf32>
    %cst_292 = arith.constant 0.333333343 : f32
    %1058 = vector.broadcast %cst_292 : f32 to vector<1x8xf32>
    %1059 = arith.mulf %1057, %1058 : vector<1x8xf32>
    %1060 = vector.broadcast %87 : vector<6x1xf32> to vector<6x8xf32>
    %1061 = vector.broadcast %1059 : vector<1x8xf32> to vector<6x8xf32>
    %1062 = arith.mulf %1060, %1061 : vector<6x8xf32>
    %1063 = vector.broadcast %95 : vector<6x1xf32> to vector<6x8xf32>
    %1064 = arith.mulf %1053, %1063 : vector<6x8xf32>
    %cst_293 = arith.constant dense<0.000000e+00> : vector<8xf32>
    %1065 = vector.multi_reduction <add>, %1064, %cst_293 [0] : vector<6x8xf32> to vector<8xf32>
    %1066 = vector.shape_cast %1065 : vector<8xf32> to vector<1x8xf32>
    %cst_294 = arith.constant 0.333333343 : f32
    %1067 = vector.broadcast %cst_294 : f32 to vector<1x8xf32>
    %1068 = arith.mulf %1066, %1067 : vector<1x8xf32>
    %1069 = vector.broadcast %95 : vector<6x1xf32> to vector<6x8xf32>
    %1070 = vector.broadcast %1068 : vector<1x8xf32> to vector<6x8xf32>
    %1071 = arith.mulf %1069, %1070 : vector<6x8xf32>
    %1072 = arith.addf %1062, %1071 : vector<6x8xf32>
    %1073 = arith.addf %1072, %63 : vector<6x8xf32>
    %cst_295 = arith.constant 0.000000e+00 : f32
    %1074 = vector.broadcast %cst_295 : f32 to vector<6x8xf32>
    %1075 = arith.maximumf %1073, %1074 : vector<6x8xf32>
    %1076 = arith.truncf %1075 : vector<6x8xf32> to vector<6x8xbf16>
    %cst_296 = arith.constant dense<0.000000e+00> : vector<6x4xf32>
    %1077 = tpu.matmul %1076, %27, %cst_296 {dimension_numbers = #tpu.dot_dimension_numbers<[1], [0], [0], [1], [0, 0, 1, 1], [], []>} : vector<6x8xbf16>, vector<8x4xbf16>, vector<6x4xf32> -> vector<6x4xf32>
    %1078 = vector.broadcast %87 : vector<6x1xf32> to vector<6x4xf32>
    %1079 = arith.mulf %1077, %1078 : vector<6x4xf32>
    %cst_297 = arith.constant dense<0.000000e+00> : vector<4xf32>
    %1080 = vector.multi_reduction <add>, %1079, %cst_297 [0] : vector<6x4xf32> to vector<4xf32>
    %1081 = vector.shape_cast %1080 : vector<4xf32> to vector<1x4xf32>
    %cst_298 = arith.constant 0.333333343 : f32
    %1082 = vector.broadcast %cst_298 : f32 to vector<1x4xf32>
    %1083 = arith.mulf %1081, %1082 : vector<1x4xf32>
    %1084 = vector.broadcast %87 : vector<6x1xf32> to vector<6x4xf32>
    %1085 = vector.broadcast %1083 : vector<1x4xf32> to vector<6x4xf32>
    %1086 = arith.mulf %1084, %1085 : vector<6x4xf32>
    %1087 = vector.broadcast %95 : vector<6x1xf32> to vector<6x4xf32>
    %1088 = arith.mulf %1077, %1087 : vector<6x4xf32>
    %cst_299 = arith.constant dense<0.000000e+00> : vector<4xf32>
    %1089 = vector.multi_reduction <add>, %1088, %cst_299 [0] : vector<6x4xf32> to vector<4xf32>
    %1090 = vector.shape_cast %1089 : vector<4xf32> to vector<1x4xf32>
    %cst_300 = arith.constant 0.333333343 : f32
    %1091 = vector.broadcast %cst_300 : f32 to vector<1x4xf32>
    %1092 = arith.mulf %1090, %1091 : vector<1x4xf32>
    %1093 = vector.broadcast %95 : vector<6x1xf32> to vector<6x4xf32>
    %1094 = vector.broadcast %1092 : vector<1x4xf32> to vector<6x4xf32>
    %1095 = arith.mulf %1093, %1094 : vector<6x4xf32>
    %1096 = arith.addf %1086, %1095 : vector<6x4xf32>
    %1097 = arith.addf %1096, %66 : vector<6x4xf32>
    %1098 = tpu.concatenate %1051, %1097 in 1 : vector<6x4xf32>, vector<6x4xf32> -> vector<6x8xf32>
    %1099 = arith.truncf %1098 : vector<6x8xf32> to vector<6x8xbf16>
    %cst_301 = arith.constant dense<0.000000e+00> : vector<6x4xf32>
    %1100 = tpu.matmul %1099, %29, %cst_301 {dimension_numbers = #tpu.dot_dimension_numbers<[1], [0], [0], [1], [0, 0, 1, 1], [], []>} : vector<6x8xbf16>, vector<8x4xbf16>, vector<6x4xf32> -> vector<6x4xf32>
    %1101 = arith.addf %1100, %69 : vector<6x4xf32>
    %cst_302 = arith.constant dense<0xFF800000> : vector<6xf32>
    %1102 = vector.multi_reduction <maximumf>, %1101, %cst_302 [1] : vector<6x4xf32> to vector<6xf32>
    %1103 = vector.shape_cast %1102 : vector<6xf32> to vector<6x1xf32>
    %1104 = vector.broadcast %1103 : vector<6x1xf32> to vector<6x4xf32>
    %1105 = arith.subf %1101, %1104 : vector<6x4xf32>
    %1106 = math.exp %1105 : vector<6x4xf32>
    %cst_303 = arith.constant dense<0.000000e+00> : vector<6xf32>
    %1107 = vector.multi_reduction <add>, %1106, %cst_303 [1] : vector<6x4xf32> to vector<6xf32>
    %1108 = vector.shape_cast %1107 : vector<6xf32> to vector<6x1xf32>
    %1109 = tpu.reciprocal %1108 {approx = true} : vector<6x1xf32> -> vector<6x1xf32>
    %1110 = vector.broadcast %1109 : vector<6x1xf32> to vector<6x4xf32>
    %1111 = arith.mulf %1106, %1110 : vector<6x4xf32>
    %1112 = arith.mulf %1031, %1111 : vector<6x4xf32>
    %1113 = vector.shape_cast %1112 : vector<6x4xf32> to vector<1x6x4xf32>
    %cst_304 = arith.constant dense<0.000000e+00> : vector<1xf32>
    %1114 = vector.multi_reduction <add>, %1113, %cst_304 [1, 2] : vector<1x6x4xf32> to vector<1xf32>
    %1115 = vector.shape_cast %1114 : vector<1xf32> to vector<1x1x1xf32>
    %1116 = vector.extract %1115[0, 0, 0] : f32 from vector<1x1x1xf32>
    %1117 = vector.broadcast %1116 : f32 to vector<1x1xf32>
    %1118 = arith.subf %809, %1117 : vector<1x1xf32>
    %1119 = vector.extract_strided_slice %1035 {offsets = [0, 128], sizes = [6, 32], strides = [1, 1]} : vector<6x208xf32> to vector<6x32xf32>
    %cst_305 = arith.constant 0.000000e+00 : f32
    %1120 = vector.broadcast %cst_305 : f32 to vector<6x32xf32>
    %1121 = arith.cmpf ogt, %1119, %1120 : vector<6x32xf32>
    %cst_306 = arith.constant 0.00999999977 : f32
    %1122 = vector.broadcast %cst_306 : f32 to vector<6x32xf32>
    %1123 = arith.mulf %1122, %1119 : vector<6x32xf32>
    %1124 = arith.select %1121, %1119, %1123 : vector<6x32xi1>, vector<6x32xf32>
    %1125 = arith.truncf %1124 : vector<6x32xf32> to vector<6x32xbf16>
    %cst_307 = arith.constant dense<0.000000e+00> : vector<6x32xf32>
    %1126 = tpu.matmul %1125, %3, %cst_307 {dimension_numbers = #tpu.dot_dimension_numbers<[1], [0], [0], [1], [0, 0, 1, 1], [], []>} : vector<6x32xbf16>, vector<32x32xbf16>, vector<6x32xf32> -> vector<6x32xf32>
    %1127 = arith.addf %1126, %36 : vector<6x32xf32>
    %cst_308 = arith.constant 0.000000e+00 : f32
    %1128 = vector.broadcast %cst_308 : f32 to vector<6x32xf32>
    %1129 = arith.cmpf ogt, %1127, %1128 : vector<6x32xf32>
    %cst_309 = arith.constant 0.00999999977 : f32
    %1130 = vector.broadcast %cst_309 : f32 to vector<6x32xf32>
    %1131 = arith.mulf %1130, %1127 : vector<6x32xf32>
    %1132 = arith.select %1129, %1127, %1131 : vector<6x32xi1>, vector<6x32xf32>
    %1133 = arith.truncf %1132 : vector<6x32xf32> to vector<6x32xbf16>
    %cst_310 = arith.constant dense<0.000000e+00> : vector<6x80xf32>
    %1134 = tpu.matmul %1133, %5, %cst_310 {dimension_numbers = #tpu.dot_dimension_numbers<[1], [0], [0], [1], [0, 0, 1, 1], [], []>} : vector<6x32xbf16>, vector<32x80xbf16>, vector<6x80xf32> -> vector<6x80xf32>
    %1135 = arith.addf %1134, %39 : vector<6x80xf32>
    %1136 = vector.extract_strided_slice %1035 {offsets = [0, 32], sizes = [6, 32], strides = [1, 1]} : vector<6x208xf32> to vector<6x32xf32>
    %1137 = vector.extract_strided_slice %1135 {offsets = [0, 0], sizes = [6, 32], strides = [1, 1]} : vector<6x80xf32> to vector<6x32xf32>
    %1138 = arith.addf %1136, %1137 : vector<6x32xf32>
    %cst_311 = arith.constant 0.000000e+00 : f32
    %1139 = vector.broadcast %cst_311 : f32 to vector<6x32xf32>
    %1140 = arith.cmpf ogt, %1138, %1139 : vector<6x32xf32>
    %cst_312 = arith.constant 0.00999999977 : f32
    %1141 = vector.broadcast %cst_312 : f32 to vector<6x32xf32>
    %1142 = arith.mulf %1141, %1138 : vector<6x32xf32>
    %1143 = arith.select %1140, %1138, %1142 : vector<6x32xi1>, vector<6x32xf32>
    %1144 = vector.extract_strided_slice %1035 {offsets = [0, 64], sizes = [6, 32], strides = [1, 1]} : vector<6x208xf32> to vector<6x32xf32>
    %cst_313 = arith.constant 0.000000e+00 : f32
    %1145 = vector.broadcast %cst_313 : f32 to vector<6x32xf32>
    %1146 = arith.cmpf ogt, %1144, %1145 : vector<6x32xf32>
    %cst_314 = arith.constant 0.00999999977 : f32
    %1147 = vector.broadcast %cst_314 : f32 to vector<6x32xf32>
    %1148 = arith.mulf %1147, %1144 : vector<6x32xf32>
    %1149 = arith.select %1146, %1144, %1148 : vector<6x32xi1>, vector<6x32xf32>
    %1150 = tpu.concatenate %1143, %1149 in 1 : vector<6x32xf32>, vector<6x32xf32> -> vector<6x64xf32>
    %1151 = arith.truncf %1150 : vector<6x64xf32> to vector<6x64xbf16>
    %cst_315 = arith.constant dense<0.000000e+00> : vector<6x64xf32>
    %1152 = tpu.matmul %1151, %31, %cst_315 {dimension_numbers = #tpu.dot_dimension_numbers<[1], [0], [0], [1], [0, 0, 1, 1], [], []>} : vector<6x64xbf16>, vector<64x64xbf16>, vector<6x64xf32> -> vector<6x64xf32>
    %1153 = arith.addf %1152, %48 : vector<6x64xf32>
    %cst_316 = arith.constant 0.000000e+00 : f32
    %1154 = vector.broadcast %cst_316 : f32 to vector<6x64xf32>
    %1155 = arith.cmpf ogt, %1153, %1154 : vector<6x64xf32>
    %cst_317 = arith.constant 0.00999999977 : f32
    %1156 = vector.broadcast %cst_317 : f32 to vector<6x64xf32>
    %1157 = arith.mulf %1156, %1153 : vector<6x64xf32>
    %1158 = arith.select %1155, %1153, %1157 : vector<6x64xi1>, vector<6x64xf32>
    %1159 = arith.truncf %1158 : vector<6x64xf32> to vector<6x64xbf16>
    %cst_318 = arith.constant dense<0.000000e+00> : vector<6x32xf32>
    %1160 = tpu.matmul %1159, %33, %cst_318 {dimension_numbers = #tpu.dot_dimension_numbers<[1], [0], [0], [1], [0, 0, 1, 1], [], []>} : vector<6x64xbf16>, vector<64x32xbf16>, vector<6x32xf32> -> vector<6x32xf32>
    %1161 = arith.addf %1160, %51 : vector<6x32xf32>
    %1162 = vector.extract_strided_slice %1161 {offsets = [0, 0], sizes = [6, 8], strides = [1, 1]} : vector<6x32xf32> to vector<6x8xf32>
    %1163 = vector.extract_strided_slice %1161 {offsets = [0, 8], sizes = [6, 8], strides = [1, 1]} : vector<6x32xf32> to vector<6x8xf32>
    %1164 = vector.extract_strided_slice %1161 {offsets = [0, 16], sizes = [6, 8], strides = [1, 1]} : vector<6x32xf32> to vector<6x8xf32>
    %1165 = vector.extract_strided_slice %1161 {offsets = [0, 24], sizes = [6, 8], strides = [1, 1]} : vector<6x32xf32> to vector<6x8xf32>
    %cst_319 = arith.constant 5.000000e-01 : f32
    %1166 = vector.broadcast %cst_319 : f32 to vector<6x8xf32>
    %1167 = arith.mulf %1166, %1163 : vector<6x8xf32>
    %1168 = math.exp %1167 : vector<6x8xf32>
    %1169 = arith.mulf %1030, %1168 : vector<6x8xf32>
    %1170 = arith.addf %1169, %1162 : vector<6x8xf32>
    %1171 = arith.truncf %1170 : vector<6x8xf32> to vector<6x8xbf16>
    %cst_320 = arith.constant dense<0.000000e+00> : vector<6x32xf32>
    %1172 = tpu.matmul %1171, %19, %cst_320 {dimension_numbers = #tpu.dot_dimension_numbers<[1], [0], [0], [1], [0, 0, 1, 1], [], []>} : vector<6x8xbf16>, vector<8x32xbf16>, vector<6x32xf32> -> vector<6x32xf32>
    %1173 = arith.addf %1172, %42 : vector<6x32xf32>
    %cst_321 = arith.constant 0.000000e+00 : f32
    %1174 = vector.broadcast %cst_321 : f32 to vector<6x32xf32>
    %1175 = arith.cmpf ogt, %1173, %1174 : vector<6x32xf32>
    %cst_322 = arith.constant 0.00999999977 : f32
    %1176 = vector.broadcast %cst_322 : f32 to vector<6x32xf32>
    %1177 = arith.mulf %1176, %1173 : vector<6x32xf32>
    %1178 = arith.select %1175, %1173, %1177 : vector<6x32xi1>, vector<6x32xf32>
    %1179 = arith.truncf %1178 : vector<6x32xf32> to vector<6x32xbf16>
    %cst_323 = arith.constant dense<0.000000e+00> : vector<6x32xf32>
    %1180 = tpu.matmul %1179, %7, %cst_323 {dimension_numbers = #tpu.dot_dimension_numbers<[1], [0], [0], [1], [0, 0, 1, 1], [], []>} : vector<6x32xbf16>, vector<32x32xbf16>, vector<6x32xf32> -> vector<6x32xf32>
    %1181 = arith.addf %1180, %45 : vector<6x32xf32>
    %cst_324 = arith.constant 0.000000e+00 : f32
    %1182 = vector.broadcast %cst_324 : f32 to vector<6x32xf32>
    %1183 = arith.cmpf ogt, %1181, %1182 : vector<6x32xf32>
    %cst_325 = arith.constant 0.00999999977 : f32
    %1184 = vector.broadcast %cst_325 : f32 to vector<6x32xf32>
    %1185 = arith.mulf %1184, %1181 : vector<6x32xf32>
    %1186 = arith.select %1183, %1181, %1185 : vector<6x32xi1>, vector<6x32xf32>
    %1187 = arith.truncf %1186 : vector<6x32xf32> to vector<6x32xbf16>
    %cst_326 = arith.constant dense<0.000000e+00> : vector<6x80xf32>
    %1188 = tpu.matmul %1187, %17, %cst_326 {dimension_numbers = #tpu.dot_dimension_numbers<[1], [0], [0], [1], [0, 0, 1, 1], [], []>} : vector<6x32xbf16>, vector<32x80xbf16>, vector<6x80xf32> -> vector<6x80xf32>
    %1189 = vector.extract_strided_slice %1035 {offsets = [0, 96], sizes = [6, 32], strides = [1, 1]} : vector<6x208xf32> to vector<6x32xf32>
    %1190 = vector.extract_strided_slice %1188 {offsets = [0, 0], sizes = [6, 32], strides = [1, 1]} : vector<6x80xf32> to vector<6x32xf32>
    %1191 = arith.addf %1189, %1190 : vector<6x32xf32>
    %cst_327 = arith.constant 0.000000e+00 : f32
    %1192 = vector.broadcast %cst_327 : f32 to vector<6x32xf32>
    %1193 = arith.cmpf ogt, %1191, %1192 : vector<6x32xf32>
    %cst_328 = arith.constant 0.00999999977 : f32
    %1194 = vector.broadcast %cst_328 : f32 to vector<6x32xf32>
    %1195 = arith.mulf %1194, %1191 : vector<6x32xf32>
    %1196 = arith.select %1193, %1191, %1195 : vector<6x32xi1>, vector<6x32xf32>
    %1197 = arith.truncf %1196 : vector<6x32xf32> to vector<6x32xbf16>
    %cst_329 = arith.constant dense<0.000000e+00> : vector<6x32xf32>
    %1198 = tpu.matmul %1197, %9, %cst_329 {dimension_numbers = #tpu.dot_dimension_numbers<[1], [0], [0], [1], [0, 0, 1, 1], [], []>} : vector<6x32xbf16>, vector<32x32xbf16>, vector<6x32xf32> -> vector<6x32xf32>
    %1199 = arith.addf %1198, %54 : vector<6x32xf32>
    %cst_330 = arith.constant 0.000000e+00 : f32
    %1200 = vector.broadcast %cst_330 : f32 to vector<6x32xf32>
    %1201 = arith.cmpf ogt, %1199, %1200 : vector<6x32xf32>
    %cst_331 = arith.constant 0.00999999977 : f32
    %1202 = vector.broadcast %cst_331 : f32 to vector<6x32xf32>
    %1203 = arith.mulf %1202, %1199 : vector<6x32xf32>
    %1204 = arith.select %1201, %1199, %1203 : vector<6x32xi1>, vector<6x32xf32>
    %1205 = arith.truncf %1204 : vector<6x32xf32> to vector<6x32xbf16>
    %cst_332 = arith.constant dense<0.000000e+00> : vector<6x4xf32>
    %1206 = tpu.matmul %1205, %15, %cst_332 {dimension_numbers = #tpu.dot_dimension_numbers<[1], [0], [0], [1], [0, 0, 1, 1], [], []>} : vector<6x32xbf16>, vector<32x4xbf16>, vector<6x4xf32> -> vector<6x4xf32>
    %1207 = arith.addf %1206, %57 : vector<6x4xf32>
    %1208 = vector.extract_strided_slice %1207 {offsets = [0, 0], sizes = [6, 2], strides = [1, 1]} : vector<6x4xf32> to vector<6x2xf32>
    %1209 = vector.extract_strided_slice %1207 {offsets = [0, 2], sizes = [6, 2], strides = [1, 1]} : vector<6x4xf32> to vector<6x2xf32>
    %1210 = vector.extract_strided_slice %1135 {offsets = [0, 32], sizes = [6, 48], strides = [1, 1]} : vector<6x80xf32> to vector<6x48xf32>
    %1211 = vector.extract_strided_slice %1188 {offsets = [0, 32], sizes = [6, 48], strides = [1, 1]} : vector<6x80xf32> to vector<6x48xf32>
    %1212 = arith.addf %1210, %1211 : vector<6x48xf32>
    %1213 = vector.extract_strided_slice %1035 {offsets = [0, 160], sizes = [6, 48], strides = [1, 1]} : vector<6x208xf32> to vector<6x48xf32>
    %1214 = vector.extract_strided_slice %1212 {offsets = [0, 0], sizes = [6, 16], strides = [1, 1]} : vector<6x48xf32> to vector<6x16xf32>
    %1215 = vector.extract_strided_slice %1213 {offsets = [0, 0], sizes = [6, 16], strides = [1, 1]} : vector<6x48xf32> to vector<6x16xf32>
    %1216 = arith.addf %1214, %1215 : vector<6x16xf32>
    %1217 = arith.negf %1216 : vector<6x16xf32>
    %1218 = math.exp %1217 : vector<6x16xf32>
    %cst_333 = arith.constant 1.000000e+00 : f32
    %1219 = vector.broadcast %cst_333 : f32 to vector<6x16xf32>
    %1220 = arith.addf %1219, %1218 : vector<6x16xf32>
    %1221 = arith.divf %1219, %1220 : vector<6x16xf32>
    %1222 = vector.extract_strided_slice %1212 {offsets = [0, 16], sizes = [6, 16], strides = [1, 1]} : vector<6x48xf32> to vector<6x16xf32>
    %1223 = vector.extract_strided_slice %1213 {offsets = [0, 16], sizes = [6, 16], strides = [1, 1]} : vector<6x48xf32> to vector<6x16xf32>
    %1224 = arith.addf %1222, %1223 : vector<6x16xf32>
    %1225 = arith.negf %1224 : vector<6x16xf32>
    %1226 = math.exp %1225 : vector<6x16xf32>
    %cst_334 = arith.constant 1.000000e+00 : f32
    %1227 = vector.broadcast %cst_334 : f32 to vector<6x16xf32>
    %1228 = arith.addf %1227, %1226 : vector<6x16xf32>
    %1229 = arith.divf %1227, %1228 : vector<6x16xf32>
    %1230 = vector.extract_strided_slice %1212 {offsets = [0, 32], sizes = [6, 16], strides = [1, 1]} : vector<6x48xf32> to vector<6x16xf32>
    %1231 = vector.extract_strided_slice %1213 {offsets = [0, 32], sizes = [6, 16], strides = [1, 1]} : vector<6x48xf32> to vector<6x16xf32>
    %1232 = arith.mulf %1221, %1231 : vector<6x16xf32>
    %1233 = arith.addf %1230, %1232 : vector<6x16xf32>
    %1234 = math.tanh %1233 : vector<6x16xf32>
    %cst_335 = arith.constant 1.000000e+00 : f32
    %1235 = vector.broadcast %cst_335 : f32 to vector<6x16xf32>
    %1236 = arith.subf %1235, %1229 : vector<6x16xf32>
    %1237 = arith.mulf %1236, %1234 : vector<6x16xf32>
    %1238 = arith.mulf %1229, %1024 : vector<6x16xf32>
    %1239 = arith.addf %1237, %1238 : vector<6x16xf32>
    %1240 = arith.subf %1165, %1163 : vector<6x8xf32>
    %cst_336 = arith.constant dense<0.000000e+00> : vector<6xf32>
    %1241 = vector.multi_reduction <add>, %1240, %cst_336 [1] : vector<6x8xf32> to vector<6xf32>
    %1242 = vector.shape_cast %1241 : vector<6xf32> to vector<6x1xf32>
    %1243 = arith.subf %1163, %1165 : vector<6x8xf32>
    %1244 = math.exp %1243 : vector<6x8xf32>
    %cst_337 = arith.constant dense<0.000000e+00> : vector<6xf32>
    %1245 = vector.multi_reduction <add>, %1244, %cst_337 [1] : vector<6x8xf32> to vector<6xf32>
    %1246 = vector.shape_cast %1245 : vector<6xf32> to vector<6x1xf32>
    %1247 = arith.subf %1162, %1164 : vector<6x8xf32>
    %1248 = arith.mulf %1247, %1247 : vector<6x8xf32>
    %1249 = math.exp %1165 : vector<6x8xf32>
    %1250 = arith.divf %1248, %1249 : vector<6x8xf32>
    %cst_338 = arith.constant dense<0.000000e+00> : vector<6xf32>
    %1251 = vector.multi_reduction <add>, %1250, %cst_338 [1] : vector<6x8xf32> to vector<6xf32>
    %1252 = vector.shape_cast %1251 : vector<6xf32> to vector<6x1xf32>
    %cst_339 = arith.constant 8.000000e+00 : f32
    %1253 = vector.broadcast %cst_339 : f32 to vector<6x1xf32>
    %1254 = arith.subf %1242, %1253 : vector<6x1xf32>
    %1255 = arith.addf %1254, %1246 : vector<6x1xf32>
    %1256 = arith.addf %1255, %1252 : vector<6x1xf32>
    %1257 = vector.shape_cast %1256 : vector<6x1xf32> to vector<1x6x1xf32>
    %cst_340 = arith.constant dense<0.000000e+00> : vector<1xf32>
    %1258 = vector.multi_reduction <add>, %1257, %cst_340 [1, 2] : vector<1x6x1xf32> to vector<1xf32>
    %1259 = vector.shape_cast %1258 : vector<1xf32> to vector<1x1x1xf32>
    %1260 = vector.extract %1259[0, 0, 0] : f32 from vector<1x1x1xf32>
    %1261 = vector.broadcast %1260 : f32 to vector<1x1xf32>
    %cst_341 = arith.constant 0.0833333358 : f32
    %1262 = vector.broadcast %cst_341 : f32 to vector<1x1xf32>
    %1263 = arith.mulf %1262, %1261 : vector<1x1xf32>
    %1264 = arith.addf %955, %1263 : vector<1x1xf32>
    %1265 = arith.subf %1032, %1208 : vector<6x2xf32>
    %1266 = arith.mulf %1265, %1265 : vector<6x2xf32>
    %1267 = math.exp %1209 : vector<6x2xf32>
    %1268 = arith.divf %1266, %1267 : vector<6x2xf32>
    %cst_342 = arith.constant dense<0.000000e+00> : vector<6xf32>
    %1269 = vector.multi_reduction <add>, %1268, %cst_342 [1] : vector<6x2xf32> to vector<6xf32>
    %1270 = vector.shape_cast %1269 : vector<6xf32> to vector<6x1xf32>
    %cst_343 = arith.constant dense<0.000000e+00> : vector<6xf32>
    %1271 = vector.multi_reduction <add>, %1209, %cst_343 [1] : vector<6x2xf32> to vector<6xf32>
    %1272 = vector.shape_cast %1271 : vector<6xf32> to vector<6x1xf32>
    %cst_344 = arith.constant 3.67575407 : f32
    %1273 = vector.broadcast %cst_344 : f32 to vector<6x1xf32>
    %1274 = arith.addf %1270, %1273 : vector<6x1xf32>
    %1275 = arith.addf %1274, %1272 : vector<6x1xf32>
    %1276 = vector.shape_cast %1275 : vector<6x1xf32> to vector<1x6x1xf32>
    %cst_345 = arith.constant dense<0.000000e+00> : vector<1xf32>
    %1277 = vector.multi_reduction <add>, %1276, %cst_345 [1, 2] : vector<1x6x1xf32> to vector<1xf32>
    %1278 = vector.shape_cast %1277 : vector<1xf32> to vector<1x1x1xf32>
    %1279 = vector.extract %1278[0, 0, 0] : f32 from vector<1x1x1xf32>
    %1280 = vector.broadcast %1279 : f32 to vector<1x1xf32>
    %cst_346 = arith.constant 0.0833333358 : f32
    %1281 = vector.broadcast %cst_346 : f32 to vector<1x1xf32>
    %1282 = arith.mulf %1281, %1280 : vector<1x1xf32>
    %1283 = arith.addf %974, %1282 : vector<1x1xf32>
    %1284 = arith.truncf %1239 : vector<6x16xf32> to vector<6x16xbf16>
    %cst_347 = arith.constant dense<0.000000e+00> : vector<6x8xf32>
    %1285 = tpu.matmul %1284, %21, %cst_347 {dimension_numbers = #tpu.dot_dimension_numbers<[1], [0], [0], [1], [0, 0, 1, 1], [], []>} : vector<6x16xbf16>, vector<16x8xbf16>, vector<6x8xf32> -> vector<6x8xf32>
    %1286 = vector.broadcast %87 : vector<6x1xf32> to vector<6x8xf32>
    %1287 = arith.mulf %1285, %1286 : vector<6x8xf32>
    %cst_348 = arith.constant dense<0.000000e+00> : vector<8xf32>
    %1288 = vector.multi_reduction <add>, %1287, %cst_348 [0] : vector<6x8xf32> to vector<8xf32>
    %1289 = vector.shape_cast %1288 : vector<8xf32> to vector<1x8xf32>
    %cst_349 = arith.constant 0.333333343 : f32
    %1290 = vector.broadcast %cst_349 : f32 to vector<1x8xf32>
    %1291 = arith.mulf %1289, %1290 : vector<1x8xf32>
    %1292 = vector.broadcast %87 : vector<6x1xf32> to vector<6x8xf32>
    %1293 = vector.broadcast %1291 : vector<1x8xf32> to vector<6x8xf32>
    %1294 = arith.mulf %1292, %1293 : vector<6x8xf32>
    %1295 = vector.broadcast %95 : vector<6x1xf32> to vector<6x8xf32>
    %1296 = arith.mulf %1285, %1295 : vector<6x8xf32>
    %cst_350 = arith.constant dense<0.000000e+00> : vector<8xf32>
    %1297 = vector.multi_reduction <add>, %1296, %cst_350 [0] : vector<6x8xf32> to vector<8xf32>
    %1298 = vector.shape_cast %1297 : vector<8xf32> to vector<1x8xf32>
    %cst_351 = arith.constant 0.333333343 : f32
    %1299 = vector.broadcast %cst_351 : f32 to vector<1x8xf32>
    %1300 = arith.mulf %1298, %1299 : vector<1x8xf32>
    %1301 = vector.broadcast %95 : vector<6x1xf32> to vector<6x8xf32>
    %1302 = vector.broadcast %1300 : vector<1x8xf32> to vector<6x8xf32>
    %1303 = arith.mulf %1301, %1302 : vector<6x8xf32>
    %1304 = arith.addf %1294, %1303 : vector<6x8xf32>
    %1305 = arith.addf %1304, %72 : vector<6x8xf32>
    %cst_352 = arith.constant 0.000000e+00 : f32
    %1306 = vector.broadcast %cst_352 : f32 to vector<6x8xf32>
    %1307 = arith.maximumf %1305, %1306 : vector<6x8xf32>
    %1308 = arith.truncf %1307 : vector<6x8xf32> to vector<6x8xbf16>
    %cst_353 = arith.constant dense<0.000000e+00> : vector<6x16xf32>
    %1309 = tpu.matmul %1308, %23, %cst_353 {dimension_numbers = #tpu.dot_dimension_numbers<[1], [0], [0], [1], [0, 0, 1, 1], [], []>} : vector<6x8xbf16>, vector<8x16xbf16>, vector<6x16xf32> -> vector<6x16xf32>
    %1310 = vector.broadcast %87 : vector<6x1xf32> to vector<6x16xf32>
    %1311 = arith.mulf %1309, %1310 : vector<6x16xf32>
    %cst_354 = arith.constant dense<0.000000e+00> : vector<16xf32>
    %1312 = vector.multi_reduction <add>, %1311, %cst_354 [0] : vector<6x16xf32> to vector<16xf32>
    %1313 = vector.shape_cast %1312 : vector<16xf32> to vector<1x16xf32>
    %cst_355 = arith.constant 0.333333343 : f32
    %1314 = vector.broadcast %cst_355 : f32 to vector<1x16xf32>
    %1315 = arith.mulf %1313, %1314 : vector<1x16xf32>
    %1316 = vector.broadcast %87 : vector<6x1xf32> to vector<6x16xf32>
    %1317 = vector.broadcast %1315 : vector<1x16xf32> to vector<6x16xf32>
    %1318 = arith.mulf %1316, %1317 : vector<6x16xf32>
    %1319 = vector.broadcast %95 : vector<6x1xf32> to vector<6x16xf32>
    %1320 = arith.mulf %1309, %1319 : vector<6x16xf32>
    %cst_356 = arith.constant dense<0.000000e+00> : vector<16xf32>
    %1321 = vector.multi_reduction <add>, %1320, %cst_356 [0] : vector<6x16xf32> to vector<16xf32>
    %1322 = vector.shape_cast %1321 : vector<16xf32> to vector<1x16xf32>
    %cst_357 = arith.constant 0.333333343 : f32
    %1323 = vector.broadcast %cst_357 : f32 to vector<1x16xf32>
    %1324 = arith.mulf %1322, %1323 : vector<1x16xf32>
    %1325 = vector.broadcast %95 : vector<6x1xf32> to vector<6x16xf32>
    %1326 = vector.broadcast %1324 : vector<1x16xf32> to vector<6x16xf32>
    %1327 = arith.mulf %1325, %1326 : vector<6x16xf32>
    %1328 = arith.addf %1318, %1327 : vector<6x16xf32>
    %1329 = arith.addf %1328, %75 : vector<6x16xf32>
    %1330 = tpu.concatenate %1329, %1239 in 1 : vector<6x16xf32>, vector<6x16xf32> -> vector<6x32xf32>
    %1331 = arith.truncf %1330 : vector<6x32xf32> to vector<6x32xbf16>
    %cst_358 = arith.constant dense<0.000000e+00> : vector<6x16xf32>
    %1332 = tpu.matmul %1331, %11, %cst_358 {dimension_numbers = #tpu.dot_dimension_numbers<[1], [0], [0], [1], [0, 0, 1, 1], [], []>} : vector<6x32xbf16>, vector<32x16xbf16>, vector<6x16xf32> -> vector<6x16xf32>
    %1333 = arith.addf %1332, %78 : vector<6x16xf32>
    %c4_i32 = arith.constant 4 : i32
    %1334 = arith.index_cast %c4_i32 : i32 to index
    %c0_359 = arith.constant 0 : index
    %c0_360 = arith.constant 0 : index
    %1335 = vector.load %arg0[%1334, %c0_359, %c0_360] : memref<7x6x17xf32, #tpu.memory_space<vmem>>, vector<1x6x17xf32>
    %1336 = vector.shape_cast %1335 : vector<1x6x17xf32> to vector<6x17xf32>
    %1337 = arith.index_cast %c4_i32 : i32 to index
    %c0_361 = arith.constant 0 : index
    %c0_362 = arith.constant 0 : index
    %1338 = vector.load %arg1[%1337, %c0_361, %c0_362] : memref<7x6x8xf32, #tpu.memory_space<vmem>>, vector<1x6x8xf32>
    %1339 = vector.shape_cast %1338 : vector<1x6x8xf32> to vector<6x8xf32>
    %1340 = vector.extract_strided_slice %1336 {offsets = [0, 6], sizes = [6, 4], strides = [1, 1]} : vector<6x17xf32> to vector<6x4xf32>
    %1341 = vector.extract_strided_slice %1336 {offsets = [0, 14], sizes = [6, 2], strides = [1, 1]} : vector<6x17xf32> to vector<6x2xf32>
    %1342 = tpu.concatenate %1336, %1333 in 1 : vector<6x17xf32>, vector<6x16xf32> -> vector<6x33xf32>
    %1343 = arith.truncf %1342 : vector<6x33xf32> to vector<6x33xbf16>
    %cst_363 = arith.constant dense<0.000000e+00> : vector<6x208xf32>
    %1344 = tpu.matmul %1343, %1, %cst_363 {dimension_numbers = #tpu.dot_dimension_numbers<[1], [0], [0], [1], [0, 0, 1, 1], [], []>} : vector<6x33xbf16>, vector<33x208xbf16>, vector<6x208xf32> -> vector<6x208xf32>
    %1345 = vector.extract_strided_slice %1344 {offsets = [0, 0], sizes = [6, 32], strides = [1, 1]} : vector<6x208xf32> to vector<6x32xf32>
    %cst_364 = arith.constant 0.000000e+00 : f32
    %1346 = vector.broadcast %cst_364 : f32 to vector<6x32xf32>
    %1347 = arith.maximumf %1345, %1346 : vector<6x32xf32>
    %1348 = arith.truncf %1347 : vector<6x32xf32> to vector<6x32xbf16>
    %cst_365 = arith.constant dense<0.000000e+00> : vector<6x4xf32>
    %1349 = tpu.matmul %1348, %13, %cst_365 {dimension_numbers = #tpu.dot_dimension_numbers<[1], [0], [0], [1], [0, 0, 1, 1], [], []>} : vector<6x32xbf16>, vector<32x4xbf16>, vector<6x4xf32> -> vector<6x4xf32>
    %1350 = arith.addf %1349, %60 : vector<6x4xf32>
    %cst_366 = arith.constant dense<0xFF800000> : vector<6xf32>
    %1351 = vector.multi_reduction <maximumf>, %1350, %cst_366 [1] : vector<6x4xf32> to vector<6xf32>
    %1352 = vector.shape_cast %1351 : vector<6xf32> to vector<6x1xf32>
    %1353 = vector.broadcast %1352 : vector<6x1xf32> to vector<6x4xf32>
    %1354 = arith.subf %1350, %1353 : vector<6x4xf32>
    %1355 = math.exp %1354 : vector<6x4xf32>
    %cst_367 = arith.constant dense<0.000000e+00> : vector<6xf32>
    %1356 = vector.multi_reduction <add>, %1355, %cst_367 [1] : vector<6x4xf32> to vector<6xf32>
    %1357 = vector.shape_cast %1356 : vector<6xf32> to vector<6x1xf32>
    %1358 = tpu.reciprocal %1357 {approx = true} : vector<6x1xf32> -> vector<6x1xf32>
    %1359 = vector.broadcast %1358 : vector<6x1xf32> to vector<6x4xf32>
    %1360 = arith.mulf %1355, %1359 : vector<6x4xf32>
    %1361 = arith.truncf %1360 : vector<6x4xf32> to vector<6x4xbf16>
    %cst_368 = arith.constant dense<0.000000e+00> : vector<6x8xf32>
    %1362 = tpu.matmul %1361, %25, %cst_368 {dimension_numbers = #tpu.dot_dimension_numbers<[1], [0], [0], [1], [0, 0, 1, 1], [], []>} : vector<6x4xbf16>, vector<4x8xbf16>, vector<6x8xf32> -> vector<6x8xf32>
    %1363 = vector.broadcast %87 : vector<6x1xf32> to vector<6x8xf32>
    %1364 = arith.mulf %1362, %1363 : vector<6x8xf32>
    %cst_369 = arith.constant dense<0.000000e+00> : vector<8xf32>
    %1365 = vector.multi_reduction <add>, %1364, %cst_369 [0] : vector<6x8xf32> to vector<8xf32>
    %1366 = vector.shape_cast %1365 : vector<8xf32> to vector<1x8xf32>
    %cst_370 = arith.constant 0.333333343 : f32
    %1367 = vector.broadcast %cst_370 : f32 to vector<1x8xf32>
    %1368 = arith.mulf %1366, %1367 : vector<1x8xf32>
    %1369 = vector.broadcast %87 : vector<6x1xf32> to vector<6x8xf32>
    %1370 = vector.broadcast %1368 : vector<1x8xf32> to vector<6x8xf32>
    %1371 = arith.mulf %1369, %1370 : vector<6x8xf32>
    %1372 = vector.broadcast %95 : vector<6x1xf32> to vector<6x8xf32>
    %1373 = arith.mulf %1362, %1372 : vector<6x8xf32>
    %cst_371 = arith.constant dense<0.000000e+00> : vector<8xf32>
    %1374 = vector.multi_reduction <add>, %1373, %cst_371 [0] : vector<6x8xf32> to vector<8xf32>
    %1375 = vector.shape_cast %1374 : vector<8xf32> to vector<1x8xf32>
    %cst_372 = arith.constant 0.333333343 : f32
    %1376 = vector.broadcast %cst_372 : f32 to vector<1x8xf32>
    %1377 = arith.mulf %1375, %1376 : vector<1x8xf32>
    %1378 = vector.broadcast %95 : vector<6x1xf32> to vector<6x8xf32>
    %1379 = vector.broadcast %1377 : vector<1x8xf32> to vector<6x8xf32>
    %1380 = arith.mulf %1378, %1379 : vector<6x8xf32>
    %1381 = arith.addf %1371, %1380 : vector<6x8xf32>
    %1382 = arith.addf %1381, %63 : vector<6x8xf32>
    %cst_373 = arith.constant 0.000000e+00 : f32
    %1383 = vector.broadcast %cst_373 : f32 to vector<6x8xf32>
    %1384 = arith.maximumf %1382, %1383 : vector<6x8xf32>
    %1385 = arith.truncf %1384 : vector<6x8xf32> to vector<6x8xbf16>
    %cst_374 = arith.constant dense<0.000000e+00> : vector<6x4xf32>
    %1386 = tpu.matmul %1385, %27, %cst_374 {dimension_numbers = #tpu.dot_dimension_numbers<[1], [0], [0], [1], [0, 0, 1, 1], [], []>} : vector<6x8xbf16>, vector<8x4xbf16>, vector<6x4xf32> -> vector<6x4xf32>
    %1387 = vector.broadcast %87 : vector<6x1xf32> to vector<6x4xf32>
    %1388 = arith.mulf %1386, %1387 : vector<6x4xf32>
    %cst_375 = arith.constant dense<0.000000e+00> : vector<4xf32>
    %1389 = vector.multi_reduction <add>, %1388, %cst_375 [0] : vector<6x4xf32> to vector<4xf32>
    %1390 = vector.shape_cast %1389 : vector<4xf32> to vector<1x4xf32>
    %cst_376 = arith.constant 0.333333343 : f32
    %1391 = vector.broadcast %cst_376 : f32 to vector<1x4xf32>
    %1392 = arith.mulf %1390, %1391 : vector<1x4xf32>
    %1393 = vector.broadcast %87 : vector<6x1xf32> to vector<6x4xf32>
    %1394 = vector.broadcast %1392 : vector<1x4xf32> to vector<6x4xf32>
    %1395 = arith.mulf %1393, %1394 : vector<6x4xf32>
    %1396 = vector.broadcast %95 : vector<6x1xf32> to vector<6x4xf32>
    %1397 = arith.mulf %1386, %1396 : vector<6x4xf32>
    %cst_377 = arith.constant dense<0.000000e+00> : vector<4xf32>
    %1398 = vector.multi_reduction <add>, %1397, %cst_377 [0] : vector<6x4xf32> to vector<4xf32>
    %1399 = vector.shape_cast %1398 : vector<4xf32> to vector<1x4xf32>
    %cst_378 = arith.constant 0.333333343 : f32
    %1400 = vector.broadcast %cst_378 : f32 to vector<1x4xf32>
    %1401 = arith.mulf %1399, %1400 : vector<1x4xf32>
    %1402 = vector.broadcast %95 : vector<6x1xf32> to vector<6x4xf32>
    %1403 = vector.broadcast %1401 : vector<1x4xf32> to vector<6x4xf32>
    %1404 = arith.mulf %1402, %1403 : vector<6x4xf32>
    %1405 = arith.addf %1395, %1404 : vector<6x4xf32>
    %1406 = arith.addf %1405, %66 : vector<6x4xf32>
    %1407 = tpu.concatenate %1360, %1406 in 1 : vector<6x4xf32>, vector<6x4xf32> -> vector<6x8xf32>
    %1408 = arith.truncf %1407 : vector<6x8xf32> to vector<6x8xbf16>
    %cst_379 = arith.constant dense<0.000000e+00> : vector<6x4xf32>
    %1409 = tpu.matmul %1408, %29, %cst_379 {dimension_numbers = #tpu.dot_dimension_numbers<[1], [0], [0], [1], [0, 0, 1, 1], [], []>} : vector<6x8xbf16>, vector<8x4xbf16>, vector<6x4xf32> -> vector<6x4xf32>
    %1410 = arith.addf %1409, %69 : vector<6x4xf32>
    %cst_380 = arith.constant dense<0xFF800000> : vector<6xf32>
    %1411 = vector.multi_reduction <maximumf>, %1410, %cst_380 [1] : vector<6x4xf32> to vector<6xf32>
    %1412 = vector.shape_cast %1411 : vector<6xf32> to vector<6x1xf32>
    %1413 = vector.broadcast %1412 : vector<6x1xf32> to vector<6x4xf32>
    %1414 = arith.subf %1410, %1413 : vector<6x4xf32>
    %1415 = math.exp %1414 : vector<6x4xf32>
    %cst_381 = arith.constant dense<0.000000e+00> : vector<6xf32>
    %1416 = vector.multi_reduction <add>, %1415, %cst_381 [1] : vector<6x4xf32> to vector<6xf32>
    %1417 = vector.shape_cast %1416 : vector<6xf32> to vector<6x1xf32>
    %1418 = tpu.reciprocal %1417 {approx = true} : vector<6x1xf32> -> vector<6x1xf32>
    %1419 = vector.broadcast %1418 : vector<6x1xf32> to vector<6x4xf32>
    %1420 = arith.mulf %1415, %1419 : vector<6x4xf32>
    %1421 = arith.mulf %1340, %1420 : vector<6x4xf32>
    %1422 = vector.shape_cast %1421 : vector<6x4xf32> to vector<1x6x4xf32>
    %cst_382 = arith.constant dense<0.000000e+00> : vector<1xf32>
    %1423 = vector.multi_reduction <add>, %1422, %cst_382 [1, 2] : vector<1x6x4xf32> to vector<1xf32>
    %1424 = vector.shape_cast %1423 : vector<1xf32> to vector<1x1x1xf32>
    %1425 = vector.extract %1424[0, 0, 0] : f32 from vector<1x1x1xf32>
    %1426 = vector.broadcast %1425 : f32 to vector<1x1xf32>
    %1427 = arith.subf %1118, %1426 : vector<1x1xf32>
    %1428 = vector.extract_strided_slice %1344 {offsets = [0, 128], sizes = [6, 32], strides = [1, 1]} : vector<6x208xf32> to vector<6x32xf32>
    %cst_383 = arith.constant 0.000000e+00 : f32
    %1429 = vector.broadcast %cst_383 : f32 to vector<6x32xf32>
    %1430 = arith.cmpf ogt, %1428, %1429 : vector<6x32xf32>
    %cst_384 = arith.constant 0.00999999977 : f32
    %1431 = vector.broadcast %cst_384 : f32 to vector<6x32xf32>
    %1432 = arith.mulf %1431, %1428 : vector<6x32xf32>
    %1433 = arith.select %1430, %1428, %1432 : vector<6x32xi1>, vector<6x32xf32>
    %1434 = arith.truncf %1433 : vector<6x32xf32> to vector<6x32xbf16>
    %cst_385 = arith.constant dense<0.000000e+00> : vector<6x32xf32>
    %1435 = tpu.matmul %1434, %3, %cst_385 {dimension_numbers = #tpu.dot_dimension_numbers<[1], [0], [0], [1], [0, 0, 1, 1], [], []>} : vector<6x32xbf16>, vector<32x32xbf16>, vector<6x32xf32> -> vector<6x32xf32>
    %1436 = arith.addf %1435, %36 : vector<6x32xf32>
    %cst_386 = arith.constant 0.000000e+00 : f32
    %1437 = vector.broadcast %cst_386 : f32 to vector<6x32xf32>
    %1438 = arith.cmpf ogt, %1436, %1437 : vector<6x32xf32>
    %cst_387 = arith.constant 0.00999999977 : f32
    %1439 = vector.broadcast %cst_387 : f32 to vector<6x32xf32>
    %1440 = arith.mulf %1439, %1436 : vector<6x32xf32>
    %1441 = arith.select %1438, %1436, %1440 : vector<6x32xi1>, vector<6x32xf32>
    %1442 = arith.truncf %1441 : vector<6x32xf32> to vector<6x32xbf16>
    %cst_388 = arith.constant dense<0.000000e+00> : vector<6x80xf32>
    %1443 = tpu.matmul %1442, %5, %cst_388 {dimension_numbers = #tpu.dot_dimension_numbers<[1], [0], [0], [1], [0, 0, 1, 1], [], []>} : vector<6x32xbf16>, vector<32x80xbf16>, vector<6x80xf32> -> vector<6x80xf32>
    %1444 = arith.addf %1443, %39 : vector<6x80xf32>
    %1445 = vector.extract_strided_slice %1344 {offsets = [0, 32], sizes = [6, 32], strides = [1, 1]} : vector<6x208xf32> to vector<6x32xf32>
    %1446 = vector.extract_strided_slice %1444 {offsets = [0, 0], sizes = [6, 32], strides = [1, 1]} : vector<6x80xf32> to vector<6x32xf32>
    %1447 = arith.addf %1445, %1446 : vector<6x32xf32>
    %cst_389 = arith.constant 0.000000e+00 : f32
    %1448 = vector.broadcast %cst_389 : f32 to vector<6x32xf32>
    %1449 = arith.cmpf ogt, %1447, %1448 : vector<6x32xf32>
    %cst_390 = arith.constant 0.00999999977 : f32
    %1450 = vector.broadcast %cst_390 : f32 to vector<6x32xf32>
    %1451 = arith.mulf %1450, %1447 : vector<6x32xf32>
    %1452 = arith.select %1449, %1447, %1451 : vector<6x32xi1>, vector<6x32xf32>
    %1453 = vector.extract_strided_slice %1344 {offsets = [0, 64], sizes = [6, 32], strides = [1, 1]} : vector<6x208xf32> to vector<6x32xf32>
    %cst_391 = arith.constant 0.000000e+00 : f32
    %1454 = vector.broadcast %cst_391 : f32 to vector<6x32xf32>
    %1455 = arith.cmpf ogt, %1453, %1454 : vector<6x32xf32>
    %cst_392 = arith.constant 0.00999999977 : f32
    %1456 = vector.broadcast %cst_392 : f32 to vector<6x32xf32>
    %1457 = arith.mulf %1456, %1453 : vector<6x32xf32>
    %1458 = arith.select %1455, %1453, %1457 : vector<6x32xi1>, vector<6x32xf32>
    %1459 = tpu.concatenate %1452, %1458 in 1 : vector<6x32xf32>, vector<6x32xf32> -> vector<6x64xf32>
    %1460 = arith.truncf %1459 : vector<6x64xf32> to vector<6x64xbf16>
    %cst_393 = arith.constant dense<0.000000e+00> : vector<6x64xf32>
    %1461 = tpu.matmul %1460, %31, %cst_393 {dimension_numbers = #tpu.dot_dimension_numbers<[1], [0], [0], [1], [0, 0, 1, 1], [], []>} : vector<6x64xbf16>, vector<64x64xbf16>, vector<6x64xf32> -> vector<6x64xf32>
    %1462 = arith.addf %1461, %48 : vector<6x64xf32>
    %cst_394 = arith.constant 0.000000e+00 : f32
    %1463 = vector.broadcast %cst_394 : f32 to vector<6x64xf32>
    %1464 = arith.cmpf ogt, %1462, %1463 : vector<6x64xf32>
    %cst_395 = arith.constant 0.00999999977 : f32
    %1465 = vector.broadcast %cst_395 : f32 to vector<6x64xf32>
    %1466 = arith.mulf %1465, %1462 : vector<6x64xf32>
    %1467 = arith.select %1464, %1462, %1466 : vector<6x64xi1>, vector<6x64xf32>
    %1468 = arith.truncf %1467 : vector<6x64xf32> to vector<6x64xbf16>
    %cst_396 = arith.constant dense<0.000000e+00> : vector<6x32xf32>
    %1469 = tpu.matmul %1468, %33, %cst_396 {dimension_numbers = #tpu.dot_dimension_numbers<[1], [0], [0], [1], [0, 0, 1, 1], [], []>} : vector<6x64xbf16>, vector<64x32xbf16>, vector<6x32xf32> -> vector<6x32xf32>
    %1470 = arith.addf %1469, %51 : vector<6x32xf32>
    %1471 = vector.extract_strided_slice %1470 {offsets = [0, 0], sizes = [6, 8], strides = [1, 1]} : vector<6x32xf32> to vector<6x8xf32>
    %1472 = vector.extract_strided_slice %1470 {offsets = [0, 8], sizes = [6, 8], strides = [1, 1]} : vector<6x32xf32> to vector<6x8xf32>
    %1473 = vector.extract_strided_slice %1470 {offsets = [0, 16], sizes = [6, 8], strides = [1, 1]} : vector<6x32xf32> to vector<6x8xf32>
    %1474 = vector.extract_strided_slice %1470 {offsets = [0, 24], sizes = [6, 8], strides = [1, 1]} : vector<6x32xf32> to vector<6x8xf32>
    %cst_397 = arith.constant 5.000000e-01 : f32
    %1475 = vector.broadcast %cst_397 : f32 to vector<6x8xf32>
    %1476 = arith.mulf %1475, %1472 : vector<6x8xf32>
    %1477 = math.exp %1476 : vector<6x8xf32>
    %1478 = arith.mulf %1339, %1477 : vector<6x8xf32>
    %1479 = arith.addf %1478, %1471 : vector<6x8xf32>
    %1480 = arith.truncf %1479 : vector<6x8xf32> to vector<6x8xbf16>
    %cst_398 = arith.constant dense<0.000000e+00> : vector<6x32xf32>
    %1481 = tpu.matmul %1480, %19, %cst_398 {dimension_numbers = #tpu.dot_dimension_numbers<[1], [0], [0], [1], [0, 0, 1, 1], [], []>} : vector<6x8xbf16>, vector<8x32xbf16>, vector<6x32xf32> -> vector<6x32xf32>
    %1482 = arith.addf %1481, %42 : vector<6x32xf32>
    %cst_399 = arith.constant 0.000000e+00 : f32
    %1483 = vector.broadcast %cst_399 : f32 to vector<6x32xf32>
    %1484 = arith.cmpf ogt, %1482, %1483 : vector<6x32xf32>
    %cst_400 = arith.constant 0.00999999977 : f32
    %1485 = vector.broadcast %cst_400 : f32 to vector<6x32xf32>
    %1486 = arith.mulf %1485, %1482 : vector<6x32xf32>
    %1487 = arith.select %1484, %1482, %1486 : vector<6x32xi1>, vector<6x32xf32>
    %1488 = arith.truncf %1487 : vector<6x32xf32> to vector<6x32xbf16>
    %cst_401 = arith.constant dense<0.000000e+00> : vector<6x32xf32>
    %1489 = tpu.matmul %1488, %7, %cst_401 {dimension_numbers = #tpu.dot_dimension_numbers<[1], [0], [0], [1], [0, 0, 1, 1], [], []>} : vector<6x32xbf16>, vector<32x32xbf16>, vector<6x32xf32> -> vector<6x32xf32>
    %1490 = arith.addf %1489, %45 : vector<6x32xf32>
    %cst_402 = arith.constant 0.000000e+00 : f32
    %1491 = vector.broadcast %cst_402 : f32 to vector<6x32xf32>
    %1492 = arith.cmpf ogt, %1490, %1491 : vector<6x32xf32>
    %cst_403 = arith.constant 0.00999999977 : f32
    %1493 = vector.broadcast %cst_403 : f32 to vector<6x32xf32>
    %1494 = arith.mulf %1493, %1490 : vector<6x32xf32>
    %1495 = arith.select %1492, %1490, %1494 : vector<6x32xi1>, vector<6x32xf32>
    %1496 = arith.truncf %1495 : vector<6x32xf32> to vector<6x32xbf16>
    %cst_404 = arith.constant dense<0.000000e+00> : vector<6x80xf32>
    %1497 = tpu.matmul %1496, %17, %cst_404 {dimension_numbers = #tpu.dot_dimension_numbers<[1], [0], [0], [1], [0, 0, 1, 1], [], []>} : vector<6x32xbf16>, vector<32x80xbf16>, vector<6x80xf32> -> vector<6x80xf32>
    %1498 = vector.extract_strided_slice %1344 {offsets = [0, 96], sizes = [6, 32], strides = [1, 1]} : vector<6x208xf32> to vector<6x32xf32>
    %1499 = vector.extract_strided_slice %1497 {offsets = [0, 0], sizes = [6, 32], strides = [1, 1]} : vector<6x80xf32> to vector<6x32xf32>
    %1500 = arith.addf %1498, %1499 : vector<6x32xf32>
    %cst_405 = arith.constant 0.000000e+00 : f32
    %1501 = vector.broadcast %cst_405 : f32 to vector<6x32xf32>
    %1502 = arith.cmpf ogt, %1500, %1501 : vector<6x32xf32>
    %cst_406 = arith.constant 0.00999999977 : f32
    %1503 = vector.broadcast %cst_406 : f32 to vector<6x32xf32>
    %1504 = arith.mulf %1503, %1500 : vector<6x32xf32>
    %1505 = arith.select %1502, %1500, %1504 : vector<6x32xi1>, vector<6x32xf32>
    %1506 = arith.truncf %1505 : vector<6x32xf32> to vector<6x32xbf16>
    %cst_407 = arith.constant dense<0.000000e+00> : vector<6x32xf32>
    %1507 = tpu.matmul %1506, %9, %cst_407 {dimension_numbers = #tpu.dot_dimension_numbers<[1], [0], [0], [1], [0, 0, 1, 1], [], []>} : vector<6x32xbf16>, vector<32x32xbf16>, vector<6x32xf32> -> vector<6x32xf32>
    %1508 = arith.addf %1507, %54 : vector<6x32xf32>
    %cst_408 = arith.constant 0.000000e+00 : f32
    %1509 = vector.broadcast %cst_408 : f32 to vector<6x32xf32>
    %1510 = arith.cmpf ogt, %1508, %1509 : vector<6x32xf32>
    %cst_409 = arith.constant 0.00999999977 : f32
    %1511 = vector.broadcast %cst_409 : f32 to vector<6x32xf32>
    %1512 = arith.mulf %1511, %1508 : vector<6x32xf32>
    %1513 = arith.select %1510, %1508, %1512 : vector<6x32xi1>, vector<6x32xf32>
    %1514 = arith.truncf %1513 : vector<6x32xf32> to vector<6x32xbf16>
    %cst_410 = arith.constant dense<0.000000e+00> : vector<6x4xf32>
    %1515 = tpu.matmul %1514, %15, %cst_410 {dimension_numbers = #tpu.dot_dimension_numbers<[1], [0], [0], [1], [0, 0, 1, 1], [], []>} : vector<6x32xbf16>, vector<32x4xbf16>, vector<6x4xf32> -> vector<6x4xf32>
    %1516 = arith.addf %1515, %57 : vector<6x4xf32>
    %1517 = vector.extract_strided_slice %1516 {offsets = [0, 0], sizes = [6, 2], strides = [1, 1]} : vector<6x4xf32> to vector<6x2xf32>
    %1518 = vector.extract_strided_slice %1516 {offsets = [0, 2], sizes = [6, 2], strides = [1, 1]} : vector<6x4xf32> to vector<6x2xf32>
    %1519 = vector.extract_strided_slice %1444 {offsets = [0, 32], sizes = [6, 48], strides = [1, 1]} : vector<6x80xf32> to vector<6x48xf32>
    %1520 = vector.extract_strided_slice %1497 {offsets = [0, 32], sizes = [6, 48], strides = [1, 1]} : vector<6x80xf32> to vector<6x48xf32>
    %1521 = arith.addf %1519, %1520 : vector<6x48xf32>
    %1522 = vector.extract_strided_slice %1344 {offsets = [0, 160], sizes = [6, 48], strides = [1, 1]} : vector<6x208xf32> to vector<6x48xf32>
    %1523 = vector.extract_strided_slice %1521 {offsets = [0, 0], sizes = [6, 16], strides = [1, 1]} : vector<6x48xf32> to vector<6x16xf32>
    %1524 = vector.extract_strided_slice %1522 {offsets = [0, 0], sizes = [6, 16], strides = [1, 1]} : vector<6x48xf32> to vector<6x16xf32>
    %1525 = arith.addf %1523, %1524 : vector<6x16xf32>
    %1526 = arith.negf %1525 : vector<6x16xf32>
    %1527 = math.exp %1526 : vector<6x16xf32>
    %cst_411 = arith.constant 1.000000e+00 : f32
    %1528 = vector.broadcast %cst_411 : f32 to vector<6x16xf32>
    %1529 = arith.addf %1528, %1527 : vector<6x16xf32>
    %1530 = arith.divf %1528, %1529 : vector<6x16xf32>
    %1531 = vector.extract_strided_slice %1521 {offsets = [0, 16], sizes = [6, 16], strides = [1, 1]} : vector<6x48xf32> to vector<6x16xf32>
    %1532 = vector.extract_strided_slice %1522 {offsets = [0, 16], sizes = [6, 16], strides = [1, 1]} : vector<6x48xf32> to vector<6x16xf32>
    %1533 = arith.addf %1531, %1532 : vector<6x16xf32>
    %1534 = arith.negf %1533 : vector<6x16xf32>
    %1535 = math.exp %1534 : vector<6x16xf32>
    %cst_412 = arith.constant 1.000000e+00 : f32
    %1536 = vector.broadcast %cst_412 : f32 to vector<6x16xf32>
    %1537 = arith.addf %1536, %1535 : vector<6x16xf32>
    %1538 = arith.divf %1536, %1537 : vector<6x16xf32>
    %1539 = vector.extract_strided_slice %1521 {offsets = [0, 32], sizes = [6, 16], strides = [1, 1]} : vector<6x48xf32> to vector<6x16xf32>
    %1540 = vector.extract_strided_slice %1522 {offsets = [0, 32], sizes = [6, 16], strides = [1, 1]} : vector<6x48xf32> to vector<6x16xf32>
    %1541 = arith.mulf %1530, %1540 : vector<6x16xf32>
    %1542 = arith.addf %1539, %1541 : vector<6x16xf32>
    %1543 = math.tanh %1542 : vector<6x16xf32>
    %cst_413 = arith.constant 1.000000e+00 : f32
    %1544 = vector.broadcast %cst_413 : f32 to vector<6x16xf32>
    %1545 = arith.subf %1544, %1538 : vector<6x16xf32>
    %1546 = arith.mulf %1545, %1543 : vector<6x16xf32>
    %1547 = arith.mulf %1538, %1333 : vector<6x16xf32>
    %1548 = arith.addf %1546, %1547 : vector<6x16xf32>
    %1549 = arith.subf %1474, %1472 : vector<6x8xf32>
    %cst_414 = arith.constant dense<0.000000e+00> : vector<6xf32>
    %1550 = vector.multi_reduction <add>, %1549, %cst_414 [1] : vector<6x8xf32> to vector<6xf32>
    %1551 = vector.shape_cast %1550 : vector<6xf32> to vector<6x1xf32>
    %1552 = arith.subf %1472, %1474 : vector<6x8xf32>
    %1553 = math.exp %1552 : vector<6x8xf32>
    %cst_415 = arith.constant dense<0.000000e+00> : vector<6xf32>
    %1554 = vector.multi_reduction <add>, %1553, %cst_415 [1] : vector<6x8xf32> to vector<6xf32>
    %1555 = vector.shape_cast %1554 : vector<6xf32> to vector<6x1xf32>
    %1556 = arith.subf %1471, %1473 : vector<6x8xf32>
    %1557 = arith.mulf %1556, %1556 : vector<6x8xf32>
    %1558 = math.exp %1474 : vector<6x8xf32>
    %1559 = arith.divf %1557, %1558 : vector<6x8xf32>
    %cst_416 = arith.constant dense<0.000000e+00> : vector<6xf32>
    %1560 = vector.multi_reduction <add>, %1559, %cst_416 [1] : vector<6x8xf32> to vector<6xf32>
    %1561 = vector.shape_cast %1560 : vector<6xf32> to vector<6x1xf32>
    %cst_417 = arith.constant 8.000000e+00 : f32
    %1562 = vector.broadcast %cst_417 : f32 to vector<6x1xf32>
    %1563 = arith.subf %1551, %1562 : vector<6x1xf32>
    %1564 = arith.addf %1563, %1555 : vector<6x1xf32>
    %1565 = arith.addf %1564, %1561 : vector<6x1xf32>
    %1566 = vector.shape_cast %1565 : vector<6x1xf32> to vector<1x6x1xf32>
    %cst_418 = arith.constant dense<0.000000e+00> : vector<1xf32>
    %1567 = vector.multi_reduction <add>, %1566, %cst_418 [1, 2] : vector<1x6x1xf32> to vector<1xf32>
    %1568 = vector.shape_cast %1567 : vector<1xf32> to vector<1x1x1xf32>
    %1569 = vector.extract %1568[0, 0, 0] : f32 from vector<1x1x1xf32>
    %1570 = vector.broadcast %1569 : f32 to vector<1x1xf32>
    %cst_419 = arith.constant 0.0833333358 : f32
    %1571 = vector.broadcast %cst_419 : f32 to vector<1x1xf32>
    %1572 = arith.mulf %1571, %1570 : vector<1x1xf32>
    %1573 = arith.addf %1264, %1572 : vector<1x1xf32>
    %1574 = arith.subf %1341, %1517 : vector<6x2xf32>
    %1575 = arith.mulf %1574, %1574 : vector<6x2xf32>
    %1576 = math.exp %1518 : vector<6x2xf32>
    %1577 = arith.divf %1575, %1576 : vector<6x2xf32>
    %cst_420 = arith.constant dense<0.000000e+00> : vector<6xf32>
    %1578 = vector.multi_reduction <add>, %1577, %cst_420 [1] : vector<6x2xf32> to vector<6xf32>
    %1579 = vector.shape_cast %1578 : vector<6xf32> to vector<6x1xf32>
    %cst_421 = arith.constant dense<0.000000e+00> : vector<6xf32>
    %1580 = vector.multi_reduction <add>, %1518, %cst_421 [1] : vector<6x2xf32> to vector<6xf32>
    %1581 = vector.shape_cast %1580 : vector<6xf32> to vector<6x1xf32>
    %cst_422 = arith.constant 3.67575407 : f32
    %1582 = vector.broadcast %cst_422 : f32 to vector<6x1xf32>
    %1583 = arith.addf %1579, %1582 : vector<6x1xf32>
    %1584 = arith.addf %1583, %1581 : vector<6x1xf32>
    %1585 = vector.shape_cast %1584 : vector<6x1xf32> to vector<1x6x1xf32>
    %cst_423 = arith.constant dense<0.000000e+00> : vector<1xf32>
    %1586 = vector.multi_reduction <add>, %1585, %cst_423 [1, 2] : vector<1x6x1xf32> to vector<1xf32>
    %1587 = vector.shape_cast %1586 : vector<1xf32> to vector<1x1x1xf32>
    %1588 = vector.extract %1587[0, 0, 0] : f32 from vector<1x1x1xf32>
    %1589 = vector.broadcast %1588 : f32 to vector<1x1xf32>
    %cst_424 = arith.constant 0.0833333358 : f32
    %1590 = vector.broadcast %cst_424 : f32 to vector<1x1xf32>
    %1591 = arith.mulf %1590, %1589 : vector<1x1xf32>
    %1592 = arith.addf %1283, %1591 : vector<1x1xf32>
    %1593 = arith.truncf %1548 : vector<6x16xf32> to vector<6x16xbf16>
    %cst_425 = arith.constant dense<0.000000e+00> : vector<6x8xf32>
    %1594 = tpu.matmul %1593, %21, %cst_425 {dimension_numbers = #tpu.dot_dimension_numbers<[1], [0], [0], [1], [0, 0, 1, 1], [], []>} : vector<6x16xbf16>, vector<16x8xbf16>, vector<6x8xf32> -> vector<6x8xf32>
    %1595 = vector.broadcast %87 : vector<6x1xf32> to vector<6x8xf32>
    %1596 = arith.mulf %1594, %1595 : vector<6x8xf32>
    %cst_426 = arith.constant dense<0.000000e+00> : vector<8xf32>
    %1597 = vector.multi_reduction <add>, %1596, %cst_426 [0] : vector<6x8xf32> to vector<8xf32>
    %1598 = vector.shape_cast %1597 : vector<8xf32> to vector<1x8xf32>
    %cst_427 = arith.constant 0.333333343 : f32
    %1599 = vector.broadcast %cst_427 : f32 to vector<1x8xf32>
    %1600 = arith.mulf %1598, %1599 : vector<1x8xf32>
    %1601 = vector.broadcast %87 : vector<6x1xf32> to vector<6x8xf32>
    %1602 = vector.broadcast %1600 : vector<1x8xf32> to vector<6x8xf32>
    %1603 = arith.mulf %1601, %1602 : vector<6x8xf32>
    %1604 = vector.broadcast %95 : vector<6x1xf32> to vector<6x8xf32>
    %1605 = arith.mulf %1594, %1604 : vector<6x8xf32>
    %cst_428 = arith.constant dense<0.000000e+00> : vector<8xf32>
    %1606 = vector.multi_reduction <add>, %1605, %cst_428 [0] : vector<6x8xf32> to vector<8xf32>
    %1607 = vector.shape_cast %1606 : vector<8xf32> to vector<1x8xf32>
    %cst_429 = arith.constant 0.333333343 : f32
    %1608 = vector.broadcast %cst_429 : f32 to vector<1x8xf32>
    %1609 = arith.mulf %1607, %1608 : vector<1x8xf32>
    %1610 = vector.broadcast %95 : vector<6x1xf32> to vector<6x8xf32>
    %1611 = vector.broadcast %1609 : vector<1x8xf32> to vector<6x8xf32>
    %1612 = arith.mulf %1610, %1611 : vector<6x8xf32>
    %1613 = arith.addf %1603, %1612 : vector<6x8xf32>
    %1614 = arith.addf %1613, %72 : vector<6x8xf32>
    %cst_430 = arith.constant 0.000000e+00 : f32
    %1615 = vector.broadcast %cst_430 : f32 to vector<6x8xf32>
    %1616 = arith.maximumf %1614, %1615 : vector<6x8xf32>
    %1617 = arith.truncf %1616 : vector<6x8xf32> to vector<6x8xbf16>
    %cst_431 = arith.constant dense<0.000000e+00> : vector<6x16xf32>
    %1618 = tpu.matmul %1617, %23, %cst_431 {dimension_numbers = #tpu.dot_dimension_numbers<[1], [0], [0], [1], [0, 0, 1, 1], [], []>} : vector<6x8xbf16>, vector<8x16xbf16>, vector<6x16xf32> -> vector<6x16xf32>
    %1619 = vector.broadcast %87 : vector<6x1xf32> to vector<6x16xf32>
    %1620 = arith.mulf %1618, %1619 : vector<6x16xf32>
    %cst_432 = arith.constant dense<0.000000e+00> : vector<16xf32>
    %1621 = vector.multi_reduction <add>, %1620, %cst_432 [0] : vector<6x16xf32> to vector<16xf32>
    %1622 = vector.shape_cast %1621 : vector<16xf32> to vector<1x16xf32>
    %cst_433 = arith.constant 0.333333343 : f32
    %1623 = vector.broadcast %cst_433 : f32 to vector<1x16xf32>
    %1624 = arith.mulf %1622, %1623 : vector<1x16xf32>
    %1625 = vector.broadcast %87 : vector<6x1xf32> to vector<6x16xf32>
    %1626 = vector.broadcast %1624 : vector<1x16xf32> to vector<6x16xf32>
    %1627 = arith.mulf %1625, %1626 : vector<6x16xf32>
    %1628 = vector.broadcast %95 : vector<6x1xf32> to vector<6x16xf32>
    %1629 = arith.mulf %1618, %1628 : vector<6x16xf32>
    %cst_434 = arith.constant dense<0.000000e+00> : vector<16xf32>
    %1630 = vector.multi_reduction <add>, %1629, %cst_434 [0] : vector<6x16xf32> to vector<16xf32>
    %1631 = vector.shape_cast %1630 : vector<16xf32> to vector<1x16xf32>
    %cst_435 = arith.constant 0.333333343 : f32
    %1632 = vector.broadcast %cst_435 : f32 to vector<1x16xf32>
    %1633 = arith.mulf %1631, %1632 : vector<1x16xf32>
    %1634 = vector.broadcast %95 : vector<6x1xf32> to vector<6x16xf32>
    %1635 = vector.broadcast %1633 : vector<1x16xf32> to vector<6x16xf32>
    %1636 = arith.mulf %1634, %1635 : vector<6x16xf32>
    %1637 = arith.addf %1627, %1636 : vector<6x16xf32>
    %1638 = arith.addf %1637, %75 : vector<6x16xf32>
    %1639 = tpu.concatenate %1638, %1548 in 1 : vector<6x16xf32>, vector<6x16xf32> -> vector<6x32xf32>
    %1640 = arith.truncf %1639 : vector<6x32xf32> to vector<6x32xbf16>
    %cst_436 = arith.constant dense<0.000000e+00> : vector<6x16xf32>
    %1641 = tpu.matmul %1640, %11, %cst_436 {dimension_numbers = #tpu.dot_dimension_numbers<[1], [0], [0], [1], [0, 0, 1, 1], [], []>} : vector<6x32xbf16>, vector<32x16xbf16>, vector<6x16xf32> -> vector<6x16xf32>
    %1642 = arith.addf %1641, %78 : vector<6x16xf32>
    %c5_i32 = arith.constant 5 : i32
    %1643 = arith.index_cast %c5_i32 : i32 to index
    %c0_437 = arith.constant 0 : index
    %c0_438 = arith.constant 0 : index
    %1644 = vector.load %arg0[%1643, %c0_437, %c0_438] : memref<7x6x17xf32, #tpu.memory_space<vmem>>, vector<1x6x17xf32>
    %1645 = vector.shape_cast %1644 : vector<1x6x17xf32> to vector<6x17xf32>
    %1646 = arith.index_cast %c5_i32 : i32 to index
    %c0_439 = arith.constant 0 : index
    %c0_440 = arith.constant 0 : index
    %1647 = vector.load %arg1[%1646, %c0_439, %c0_440] : memref<7x6x8xf32, #tpu.memory_space<vmem>>, vector<1x6x8xf32>
    %1648 = vector.shape_cast %1647 : vector<1x6x8xf32> to vector<6x8xf32>
    %1649 = vector.extract_strided_slice %1645 {offsets = [0, 6], sizes = [6, 4], strides = [1, 1]} : vector<6x17xf32> to vector<6x4xf32>
    %1650 = vector.extract_strided_slice %1645 {offsets = [0, 14], sizes = [6, 2], strides = [1, 1]} : vector<6x17xf32> to vector<6x2xf32>
    %1651 = tpu.concatenate %1645, %1642 in 1 : vector<6x17xf32>, vector<6x16xf32> -> vector<6x33xf32>
    %1652 = arith.truncf %1651 : vector<6x33xf32> to vector<6x33xbf16>
    %cst_441 = arith.constant dense<0.000000e+00> : vector<6x208xf32>
    %1653 = tpu.matmul %1652, %1, %cst_441 {dimension_numbers = #tpu.dot_dimension_numbers<[1], [0], [0], [1], [0, 0, 1, 1], [], []>} : vector<6x33xbf16>, vector<33x208xbf16>, vector<6x208xf32> -> vector<6x208xf32>
    %1654 = vector.extract_strided_slice %1653 {offsets = [0, 0], sizes = [6, 32], strides = [1, 1]} : vector<6x208xf32> to vector<6x32xf32>
    %cst_442 = arith.constant 0.000000e+00 : f32
    %1655 = vector.broadcast %cst_442 : f32 to vector<6x32xf32>
    %1656 = arith.maximumf %1654, %1655 : vector<6x32xf32>
    %1657 = arith.truncf %1656 : vector<6x32xf32> to vector<6x32xbf16>
    %cst_443 = arith.constant dense<0.000000e+00> : vector<6x4xf32>
    %1658 = tpu.matmul %1657, %13, %cst_443 {dimension_numbers = #tpu.dot_dimension_numbers<[1], [0], [0], [1], [0, 0, 1, 1], [], []>} : vector<6x32xbf16>, vector<32x4xbf16>, vector<6x4xf32> -> vector<6x4xf32>
    %1659 = arith.addf %1658, %60 : vector<6x4xf32>
    %cst_444 = arith.constant dense<0xFF800000> : vector<6xf32>
    %1660 = vector.multi_reduction <maximumf>, %1659, %cst_444 [1] : vector<6x4xf32> to vector<6xf32>
    %1661 = vector.shape_cast %1660 : vector<6xf32> to vector<6x1xf32>
    %1662 = vector.broadcast %1661 : vector<6x1xf32> to vector<6x4xf32>
    %1663 = arith.subf %1659, %1662 : vector<6x4xf32>
    %1664 = math.exp %1663 : vector<6x4xf32>
    %cst_445 = arith.constant dense<0.000000e+00> : vector<6xf32>
    %1665 = vector.multi_reduction <add>, %1664, %cst_445 [1] : vector<6x4xf32> to vector<6xf32>
    %1666 = vector.shape_cast %1665 : vector<6xf32> to vector<6x1xf32>
    %1667 = tpu.reciprocal %1666 {approx = true} : vector<6x1xf32> -> vector<6x1xf32>
    %1668 = vector.broadcast %1667 : vector<6x1xf32> to vector<6x4xf32>
    %1669 = arith.mulf %1664, %1668 : vector<6x4xf32>
    %1670 = arith.truncf %1669 : vector<6x4xf32> to vector<6x4xbf16>
    %cst_446 = arith.constant dense<0.000000e+00> : vector<6x8xf32>
    %1671 = tpu.matmul %1670, %25, %cst_446 {dimension_numbers = #tpu.dot_dimension_numbers<[1], [0], [0], [1], [0, 0, 1, 1], [], []>} : vector<6x4xbf16>, vector<4x8xbf16>, vector<6x8xf32> -> vector<6x8xf32>
    %1672 = vector.broadcast %87 : vector<6x1xf32> to vector<6x8xf32>
    %1673 = arith.mulf %1671, %1672 : vector<6x8xf32>
    %cst_447 = arith.constant dense<0.000000e+00> : vector<8xf32>
    %1674 = vector.multi_reduction <add>, %1673, %cst_447 [0] : vector<6x8xf32> to vector<8xf32>
    %1675 = vector.shape_cast %1674 : vector<8xf32> to vector<1x8xf32>
    %cst_448 = arith.constant 0.333333343 : f32
    %1676 = vector.broadcast %cst_448 : f32 to vector<1x8xf32>
    %1677 = arith.mulf %1675, %1676 : vector<1x8xf32>
    %1678 = vector.broadcast %87 : vector<6x1xf32> to vector<6x8xf32>
    %1679 = vector.broadcast %1677 : vector<1x8xf32> to vector<6x8xf32>
    %1680 = arith.mulf %1678, %1679 : vector<6x8xf32>
    %1681 = vector.broadcast %95 : vector<6x1xf32> to vector<6x8xf32>
    %1682 = arith.mulf %1671, %1681 : vector<6x8xf32>
    %cst_449 = arith.constant dense<0.000000e+00> : vector<8xf32>
    %1683 = vector.multi_reduction <add>, %1682, %cst_449 [0] : vector<6x8xf32> to vector<8xf32>
    %1684 = vector.shape_cast %1683 : vector<8xf32> to vector<1x8xf32>
    %cst_450 = arith.constant 0.333333343 : f32
    %1685 = vector.broadcast %cst_450 : f32 to vector<1x8xf32>
    %1686 = arith.mulf %1684, %1685 : vector<1x8xf32>
    %1687 = vector.broadcast %95 : vector<6x1xf32> to vector<6x8xf32>
    %1688 = vector.broadcast %1686 : vector<1x8xf32> to vector<6x8xf32>
    %1689 = arith.mulf %1687, %1688 : vector<6x8xf32>
    %1690 = arith.addf %1680, %1689 : vector<6x8xf32>
    %1691 = arith.addf %1690, %63 : vector<6x8xf32>
    %cst_451 = arith.constant 0.000000e+00 : f32
    %1692 = vector.broadcast %cst_451 : f32 to vector<6x8xf32>
    %1693 = arith.maximumf %1691, %1692 : vector<6x8xf32>
    %1694 = arith.truncf %1693 : vector<6x8xf32> to vector<6x8xbf16>
    %cst_452 = arith.constant dense<0.000000e+00> : vector<6x4xf32>
    %1695 = tpu.matmul %1694, %27, %cst_452 {dimension_numbers = #tpu.dot_dimension_numbers<[1], [0], [0], [1], [0, 0, 1, 1], [], []>} : vector<6x8xbf16>, vector<8x4xbf16>, vector<6x4xf32> -> vector<6x4xf32>
    %1696 = vector.broadcast %87 : vector<6x1xf32> to vector<6x4xf32>
    %1697 = arith.mulf %1695, %1696 : vector<6x4xf32>
    %cst_453 = arith.constant dense<0.000000e+00> : vector<4xf32>
    %1698 = vector.multi_reduction <add>, %1697, %cst_453 [0] : vector<6x4xf32> to vector<4xf32>
    %1699 = vector.shape_cast %1698 : vector<4xf32> to vector<1x4xf32>
    %cst_454 = arith.constant 0.333333343 : f32
    %1700 = vector.broadcast %cst_454 : f32 to vector<1x4xf32>
    %1701 = arith.mulf %1699, %1700 : vector<1x4xf32>
    %1702 = vector.broadcast %87 : vector<6x1xf32> to vector<6x4xf32>
    %1703 = vector.broadcast %1701 : vector<1x4xf32> to vector<6x4xf32>
    %1704 = arith.mulf %1702, %1703 : vector<6x4xf32>
    %1705 = vector.broadcast %95 : vector<6x1xf32> to vector<6x4xf32>
    %1706 = arith.mulf %1695, %1705 : vector<6x4xf32>
    %cst_455 = arith.constant dense<0.000000e+00> : vector<4xf32>
    %1707 = vector.multi_reduction <add>, %1706, %cst_455 [0] : vector<6x4xf32> to vector<4xf32>
    %1708 = vector.shape_cast %1707 : vector<4xf32> to vector<1x4xf32>
    %cst_456 = arith.constant 0.333333343 : f32
    %1709 = vector.broadcast %cst_456 : f32 to vector<1x4xf32>
    %1710 = arith.mulf %1708, %1709 : vector<1x4xf32>
    %1711 = vector.broadcast %95 : vector<6x1xf32> to vector<6x4xf32>
    %1712 = vector.broadcast %1710 : vector<1x4xf32> to vector<6x4xf32>
    %1713 = arith.mulf %1711, %1712 : vector<6x4xf32>
    %1714 = arith.addf %1704, %1713 : vector<6x4xf32>
    %1715 = arith.addf %1714, %66 : vector<6x4xf32>
    %1716 = tpu.concatenate %1669, %1715 in 1 : vector<6x4xf32>, vector<6x4xf32> -> vector<6x8xf32>
    %1717 = arith.truncf %1716 : vector<6x8xf32> to vector<6x8xbf16>
    %cst_457 = arith.constant dense<0.000000e+00> : vector<6x4xf32>
    %1718 = tpu.matmul %1717, %29, %cst_457 {dimension_numbers = #tpu.dot_dimension_numbers<[1], [0], [0], [1], [0, 0, 1, 1], [], []>} : vector<6x8xbf16>, vector<8x4xbf16>, vector<6x4xf32> -> vector<6x4xf32>
    %1719 = arith.addf %1718, %69 : vector<6x4xf32>
    %cst_458 = arith.constant dense<0xFF800000> : vector<6xf32>
    %1720 = vector.multi_reduction <maximumf>, %1719, %cst_458 [1] : vector<6x4xf32> to vector<6xf32>
    %1721 = vector.shape_cast %1720 : vector<6xf32> to vector<6x1xf32>
    %1722 = vector.broadcast %1721 : vector<6x1xf32> to vector<6x4xf32>
    %1723 = arith.subf %1719, %1722 : vector<6x4xf32>
    %1724 = math.exp %1723 : vector<6x4xf32>
    %cst_459 = arith.constant dense<0.000000e+00> : vector<6xf32>
    %1725 = vector.multi_reduction <add>, %1724, %cst_459 [1] : vector<6x4xf32> to vector<6xf32>
    %1726 = vector.shape_cast %1725 : vector<6xf32> to vector<6x1xf32>
    %1727 = tpu.reciprocal %1726 {approx = true} : vector<6x1xf32> -> vector<6x1xf32>
    %1728 = vector.broadcast %1727 : vector<6x1xf32> to vector<6x4xf32>
    %1729 = arith.mulf %1724, %1728 : vector<6x4xf32>
    %1730 = arith.mulf %1649, %1729 : vector<6x4xf32>
    %1731 = vector.shape_cast %1730 : vector<6x4xf32> to vector<1x6x4xf32>
    %cst_460 = arith.constant dense<0.000000e+00> : vector<1xf32>
    %1732 = vector.multi_reduction <add>, %1731, %cst_460 [1, 2] : vector<1x6x4xf32> to vector<1xf32>
    %1733 = vector.shape_cast %1732 : vector<1xf32> to vector<1x1x1xf32>
    %1734 = vector.extract %1733[0, 0, 0] : f32 from vector<1x1x1xf32>
    %1735 = vector.broadcast %1734 : f32 to vector<1x1xf32>
    %1736 = arith.subf %1427, %1735 : vector<1x1xf32>
    %1737 = vector.extract_strided_slice %1653 {offsets = [0, 128], sizes = [6, 32], strides = [1, 1]} : vector<6x208xf32> to vector<6x32xf32>
    %cst_461 = arith.constant 0.000000e+00 : f32
    %1738 = vector.broadcast %cst_461 : f32 to vector<6x32xf32>
    %1739 = arith.cmpf ogt, %1737, %1738 : vector<6x32xf32>
    %cst_462 = arith.constant 0.00999999977 : f32
    %1740 = vector.broadcast %cst_462 : f32 to vector<6x32xf32>
    %1741 = arith.mulf %1740, %1737 : vector<6x32xf32>
    %1742 = arith.select %1739, %1737, %1741 : vector<6x32xi1>, vector<6x32xf32>
    %1743 = arith.truncf %1742 : vector<6x32xf32> to vector<6x32xbf16>
    %cst_463 = arith.constant dense<0.000000e+00> : vector<6x32xf32>
    %1744 = tpu.matmul %1743, %3, %cst_463 {dimension_numbers = #tpu.dot_dimension_numbers<[1], [0], [0], [1], [0, 0, 1, 1], [], []>} : vector<6x32xbf16>, vector<32x32xbf16>, vector<6x32xf32> -> vector<6x32xf32>
    %1745 = arith.addf %1744, %36 : vector<6x32xf32>
    %cst_464 = arith.constant 0.000000e+00 : f32
    %1746 = vector.broadcast %cst_464 : f32 to vector<6x32xf32>
    %1747 = arith.cmpf ogt, %1745, %1746 : vector<6x32xf32>
    %cst_465 = arith.constant 0.00999999977 : f32
    %1748 = vector.broadcast %cst_465 : f32 to vector<6x32xf32>
    %1749 = arith.mulf %1748, %1745 : vector<6x32xf32>
    %1750 = arith.select %1747, %1745, %1749 : vector<6x32xi1>, vector<6x32xf32>
    %1751 = arith.truncf %1750 : vector<6x32xf32> to vector<6x32xbf16>
    %cst_466 = arith.constant dense<0.000000e+00> : vector<6x80xf32>
    %1752 = tpu.matmul %1751, %5, %cst_466 {dimension_numbers = #tpu.dot_dimension_numbers<[1], [0], [0], [1], [0, 0, 1, 1], [], []>} : vector<6x32xbf16>, vector<32x80xbf16>, vector<6x80xf32> -> vector<6x80xf32>
    %1753 = arith.addf %1752, %39 : vector<6x80xf32>
    %1754 = vector.extract_strided_slice %1653 {offsets = [0, 32], sizes = [6, 32], strides = [1, 1]} : vector<6x208xf32> to vector<6x32xf32>
    %1755 = vector.extract_strided_slice %1753 {offsets = [0, 0], sizes = [6, 32], strides = [1, 1]} : vector<6x80xf32> to vector<6x32xf32>
    %1756 = arith.addf %1754, %1755 : vector<6x32xf32>
    %cst_467 = arith.constant 0.000000e+00 : f32
    %1757 = vector.broadcast %cst_467 : f32 to vector<6x32xf32>
    %1758 = arith.cmpf ogt, %1756, %1757 : vector<6x32xf32>
    %cst_468 = arith.constant 0.00999999977 : f32
    %1759 = vector.broadcast %cst_468 : f32 to vector<6x32xf32>
    %1760 = arith.mulf %1759, %1756 : vector<6x32xf32>
    %1761 = arith.select %1758, %1756, %1760 : vector<6x32xi1>, vector<6x32xf32>
    %1762 = vector.extract_strided_slice %1653 {offsets = [0, 64], sizes = [6, 32], strides = [1, 1]} : vector<6x208xf32> to vector<6x32xf32>
    %cst_469 = arith.constant 0.000000e+00 : f32
    %1763 = vector.broadcast %cst_469 : f32 to vector<6x32xf32>
    %1764 = arith.cmpf ogt, %1762, %1763 : vector<6x32xf32>
    %cst_470 = arith.constant 0.00999999977 : f32
    %1765 = vector.broadcast %cst_470 : f32 to vector<6x32xf32>
    %1766 = arith.mulf %1765, %1762 : vector<6x32xf32>
    %1767 = arith.select %1764, %1762, %1766 : vector<6x32xi1>, vector<6x32xf32>
    %1768 = tpu.concatenate %1761, %1767 in 1 : vector<6x32xf32>, vector<6x32xf32> -> vector<6x64xf32>
    %1769 = arith.truncf %1768 : vector<6x64xf32> to vector<6x64xbf16>
    %cst_471 = arith.constant dense<0.000000e+00> : vector<6x64xf32>
    %1770 = tpu.matmul %1769, %31, %cst_471 {dimension_numbers = #tpu.dot_dimension_numbers<[1], [0], [0], [1], [0, 0, 1, 1], [], []>} : vector<6x64xbf16>, vector<64x64xbf16>, vector<6x64xf32> -> vector<6x64xf32>
    %1771 = arith.addf %1770, %48 : vector<6x64xf32>
    %cst_472 = arith.constant 0.000000e+00 : f32
    %1772 = vector.broadcast %cst_472 : f32 to vector<6x64xf32>
    %1773 = arith.cmpf ogt, %1771, %1772 : vector<6x64xf32>
    %cst_473 = arith.constant 0.00999999977 : f32
    %1774 = vector.broadcast %cst_473 : f32 to vector<6x64xf32>
    %1775 = arith.mulf %1774, %1771 : vector<6x64xf32>
    %1776 = arith.select %1773, %1771, %1775 : vector<6x64xi1>, vector<6x64xf32>
    %1777 = arith.truncf %1776 : vector<6x64xf32> to vector<6x64xbf16>
    %cst_474 = arith.constant dense<0.000000e+00> : vector<6x32xf32>
    %1778 = tpu.matmul %1777, %33, %cst_474 {dimension_numbers = #tpu.dot_dimension_numbers<[1], [0], [0], [1], [0, 0, 1, 1], [], []>} : vector<6x64xbf16>, vector<64x32xbf16>, vector<6x32xf32> -> vector<6x32xf32>
    %1779 = arith.addf %1778, %51 : vector<6x32xf32>
    %1780 = vector.extract_strided_slice %1779 {offsets = [0, 0], sizes = [6, 8], strides = [1, 1]} : vector<6x32xf32> to vector<6x8xf32>
    %1781 = vector.extract_strided_slice %1779 {offsets = [0, 8], sizes = [6, 8], strides = [1, 1]} : vector<6x32xf32> to vector<6x8xf32>
    %1782 = vector.extract_strided_slice %1779 {offsets = [0, 16], sizes = [6, 8], strides = [1, 1]} : vector<6x32xf32> to vector<6x8xf32>
    %1783 = vector.extract_strided_slice %1779 {offsets = [0, 24], sizes = [6, 8], strides = [1, 1]} : vector<6x32xf32> to vector<6x8xf32>
    %cst_475 = arith.constant 5.000000e-01 : f32
    %1784 = vector.broadcast %cst_475 : f32 to vector<6x8xf32>
    %1785 = arith.mulf %1784, %1781 : vector<6x8xf32>
    %1786 = math.exp %1785 : vector<6x8xf32>
    %1787 = arith.mulf %1648, %1786 : vector<6x8xf32>
    %1788 = arith.addf %1787, %1780 : vector<6x8xf32>
    %1789 = arith.truncf %1788 : vector<6x8xf32> to vector<6x8xbf16>
    %cst_476 = arith.constant dense<0.000000e+00> : vector<6x32xf32>
    %1790 = tpu.matmul %1789, %19, %cst_476 {dimension_numbers = #tpu.dot_dimension_numbers<[1], [0], [0], [1], [0, 0, 1, 1], [], []>} : vector<6x8xbf16>, vector<8x32xbf16>, vector<6x32xf32> -> vector<6x32xf32>
    %1791 = arith.addf %1790, %42 : vector<6x32xf32>
    %cst_477 = arith.constant 0.000000e+00 : f32
    %1792 = vector.broadcast %cst_477 : f32 to vector<6x32xf32>
    %1793 = arith.cmpf ogt, %1791, %1792 : vector<6x32xf32>
    %cst_478 = arith.constant 0.00999999977 : f32
    %1794 = vector.broadcast %cst_478 : f32 to vector<6x32xf32>
    %1795 = arith.mulf %1794, %1791 : vector<6x32xf32>
    %1796 = arith.select %1793, %1791, %1795 : vector<6x32xi1>, vector<6x32xf32>
    %1797 = arith.truncf %1796 : vector<6x32xf32> to vector<6x32xbf16>
    %cst_479 = arith.constant dense<0.000000e+00> : vector<6x32xf32>
    %1798 = tpu.matmul %1797, %7, %cst_479 {dimension_numbers = #tpu.dot_dimension_numbers<[1], [0], [0], [1], [0, 0, 1, 1], [], []>} : vector<6x32xbf16>, vector<32x32xbf16>, vector<6x32xf32> -> vector<6x32xf32>
    %1799 = arith.addf %1798, %45 : vector<6x32xf32>
    %cst_480 = arith.constant 0.000000e+00 : f32
    %1800 = vector.broadcast %cst_480 : f32 to vector<6x32xf32>
    %1801 = arith.cmpf ogt, %1799, %1800 : vector<6x32xf32>
    %cst_481 = arith.constant 0.00999999977 : f32
    %1802 = vector.broadcast %cst_481 : f32 to vector<6x32xf32>
    %1803 = arith.mulf %1802, %1799 : vector<6x32xf32>
    %1804 = arith.select %1801, %1799, %1803 : vector<6x32xi1>, vector<6x32xf32>
    %1805 = arith.truncf %1804 : vector<6x32xf32> to vector<6x32xbf16>
    %cst_482 = arith.constant dense<0.000000e+00> : vector<6x80xf32>
    %1806 = tpu.matmul %1805, %17, %cst_482 {dimension_numbers = #tpu.dot_dimension_numbers<[1], [0], [0], [1], [0, 0, 1, 1], [], []>} : vector<6x32xbf16>, vector<32x80xbf16>, vector<6x80xf32> -> vector<6x80xf32>
    %1807 = vector.extract_strided_slice %1653 {offsets = [0, 96], sizes = [6, 32], strides = [1, 1]} : vector<6x208xf32> to vector<6x32xf32>
    %1808 = vector.extract_strided_slice %1806 {offsets = [0, 0], sizes = [6, 32], strides = [1, 1]} : vector<6x80xf32> to vector<6x32xf32>
    %1809 = arith.addf %1807, %1808 : vector<6x32xf32>
    %cst_483 = arith.constant 0.000000e+00 : f32
    %1810 = vector.broadcast %cst_483 : f32 to vector<6x32xf32>
    %1811 = arith.cmpf ogt, %1809, %1810 : vector<6x32xf32>
    %cst_484 = arith.constant 0.00999999977 : f32
    %1812 = vector.broadcast %cst_484 : f32 to vector<6x32xf32>
    %1813 = arith.mulf %1812, %1809 : vector<6x32xf32>
    %1814 = arith.select %1811, %1809, %1813 : vector<6x32xi1>, vector<6x32xf32>
    %1815 = arith.truncf %1814 : vector<6x32xf32> to vector<6x32xbf16>
    %cst_485 = arith.constant dense<0.000000e+00> : vector<6x32xf32>
    %1816 = tpu.matmul %1815, %9, %cst_485 {dimension_numbers = #tpu.dot_dimension_numbers<[1], [0], [0], [1], [0, 0, 1, 1], [], []>} : vector<6x32xbf16>, vector<32x32xbf16>, vector<6x32xf32> -> vector<6x32xf32>
    %1817 = arith.addf %1816, %54 : vector<6x32xf32>
    %cst_486 = arith.constant 0.000000e+00 : f32
    %1818 = vector.broadcast %cst_486 : f32 to vector<6x32xf32>
    %1819 = arith.cmpf ogt, %1817, %1818 : vector<6x32xf32>
    %cst_487 = arith.constant 0.00999999977 : f32
    %1820 = vector.broadcast %cst_487 : f32 to vector<6x32xf32>
    %1821 = arith.mulf %1820, %1817 : vector<6x32xf32>
    %1822 = arith.select %1819, %1817, %1821 : vector<6x32xi1>, vector<6x32xf32>
    %1823 = arith.truncf %1822 : vector<6x32xf32> to vector<6x32xbf16>
    %cst_488 = arith.constant dense<0.000000e+00> : vector<6x4xf32>
    %1824 = tpu.matmul %1823, %15, %cst_488 {dimension_numbers = #tpu.dot_dimension_numbers<[1], [0], [0], [1], [0, 0, 1, 1], [], []>} : vector<6x32xbf16>, vector<32x4xbf16>, vector<6x4xf32> -> vector<6x4xf32>
    %1825 = arith.addf %1824, %57 : vector<6x4xf32>
    %1826 = vector.extract_strided_slice %1825 {offsets = [0, 0], sizes = [6, 2], strides = [1, 1]} : vector<6x4xf32> to vector<6x2xf32>
    %1827 = vector.extract_strided_slice %1825 {offsets = [0, 2], sizes = [6, 2], strides = [1, 1]} : vector<6x4xf32> to vector<6x2xf32>
    %1828 = vector.extract_strided_slice %1753 {offsets = [0, 32], sizes = [6, 48], strides = [1, 1]} : vector<6x80xf32> to vector<6x48xf32>
    %1829 = vector.extract_strided_slice %1806 {offsets = [0, 32], sizes = [6, 48], strides = [1, 1]} : vector<6x80xf32> to vector<6x48xf32>
    %1830 = arith.addf %1828, %1829 : vector<6x48xf32>
    %1831 = vector.extract_strided_slice %1653 {offsets = [0, 160], sizes = [6, 48], strides = [1, 1]} : vector<6x208xf32> to vector<6x48xf32>
    %1832 = vector.extract_strided_slice %1830 {offsets = [0, 0], sizes = [6, 16], strides = [1, 1]} : vector<6x48xf32> to vector<6x16xf32>
    %1833 = vector.extract_strided_slice %1831 {offsets = [0, 0], sizes = [6, 16], strides = [1, 1]} : vector<6x48xf32> to vector<6x16xf32>
    %1834 = arith.addf %1832, %1833 : vector<6x16xf32>
    %1835 = arith.negf %1834 : vector<6x16xf32>
    %1836 = math.exp %1835 : vector<6x16xf32>
    %cst_489 = arith.constant 1.000000e+00 : f32
    %1837 = vector.broadcast %cst_489 : f32 to vector<6x16xf32>
    %1838 = arith.addf %1837, %1836 : vector<6x16xf32>
    %1839 = arith.divf %1837, %1838 : vector<6x16xf32>
    %1840 = vector.extract_strided_slice %1830 {offsets = [0, 16], sizes = [6, 16], strides = [1, 1]} : vector<6x48xf32> to vector<6x16xf32>
    %1841 = vector.extract_strided_slice %1831 {offsets = [0, 16], sizes = [6, 16], strides = [1, 1]} : vector<6x48xf32> to vector<6x16xf32>
    %1842 = arith.addf %1840, %1841 : vector<6x16xf32>
    %1843 = arith.negf %1842 : vector<6x16xf32>
    %1844 = math.exp %1843 : vector<6x16xf32>
    %cst_490 = arith.constant 1.000000e+00 : f32
    %1845 = vector.broadcast %cst_490 : f32 to vector<6x16xf32>
    %1846 = arith.addf %1845, %1844 : vector<6x16xf32>
    %1847 = arith.divf %1845, %1846 : vector<6x16xf32>
    %1848 = vector.extract_strided_slice %1830 {offsets = [0, 32], sizes = [6, 16], strides = [1, 1]} : vector<6x48xf32> to vector<6x16xf32>
    %1849 = vector.extract_strided_slice %1831 {offsets = [0, 32], sizes = [6, 16], strides = [1, 1]} : vector<6x48xf32> to vector<6x16xf32>
    %1850 = arith.mulf %1839, %1849 : vector<6x16xf32>
    %1851 = arith.addf %1848, %1850 : vector<6x16xf32>
    %1852 = math.tanh %1851 : vector<6x16xf32>
    %cst_491 = arith.constant 1.000000e+00 : f32
    %1853 = vector.broadcast %cst_491 : f32 to vector<6x16xf32>
    %1854 = arith.subf %1853, %1847 : vector<6x16xf32>
    %1855 = arith.mulf %1854, %1852 : vector<6x16xf32>
    %1856 = arith.mulf %1847, %1642 : vector<6x16xf32>
    %1857 = arith.addf %1855, %1856 : vector<6x16xf32>
    %1858 = arith.subf %1783, %1781 : vector<6x8xf32>
    %cst_492 = arith.constant dense<0.000000e+00> : vector<6xf32>
    %1859 = vector.multi_reduction <add>, %1858, %cst_492 [1] : vector<6x8xf32> to vector<6xf32>
    %1860 = vector.shape_cast %1859 : vector<6xf32> to vector<6x1xf32>
    %1861 = arith.subf %1781, %1783 : vector<6x8xf32>
    %1862 = math.exp %1861 : vector<6x8xf32>
    %cst_493 = arith.constant dense<0.000000e+00> : vector<6xf32>
    %1863 = vector.multi_reduction <add>, %1862, %cst_493 [1] : vector<6x8xf32> to vector<6xf32>
    %1864 = vector.shape_cast %1863 : vector<6xf32> to vector<6x1xf32>
    %1865 = arith.subf %1780, %1782 : vector<6x8xf32>
    %1866 = arith.mulf %1865, %1865 : vector<6x8xf32>
    %1867 = math.exp %1783 : vector<6x8xf32>
    %1868 = arith.divf %1866, %1867 : vector<6x8xf32>
    %cst_494 = arith.constant dense<0.000000e+00> : vector<6xf32>
    %1869 = vector.multi_reduction <add>, %1868, %cst_494 [1] : vector<6x8xf32> to vector<6xf32>
    %1870 = vector.shape_cast %1869 : vector<6xf32> to vector<6x1xf32>
    %cst_495 = arith.constant 8.000000e+00 : f32
    %1871 = vector.broadcast %cst_495 : f32 to vector<6x1xf32>
    %1872 = arith.subf %1860, %1871 : vector<6x1xf32>
    %1873 = arith.addf %1872, %1864 : vector<6x1xf32>
    %1874 = arith.addf %1873, %1870 : vector<6x1xf32>
    %1875 = vector.shape_cast %1874 : vector<6x1xf32> to vector<1x6x1xf32>
    %cst_496 = arith.constant dense<0.000000e+00> : vector<1xf32>
    %1876 = vector.multi_reduction <add>, %1875, %cst_496 [1, 2] : vector<1x6x1xf32> to vector<1xf32>
    %1877 = vector.shape_cast %1876 : vector<1xf32> to vector<1x1x1xf32>
    %1878 = vector.extract %1877[0, 0, 0] : f32 from vector<1x1x1xf32>
    %1879 = vector.broadcast %1878 : f32 to vector<1x1xf32>
    %cst_497 = arith.constant 0.0833333358 : f32
    %1880 = vector.broadcast %cst_497 : f32 to vector<1x1xf32>
    %1881 = arith.mulf %1880, %1879 : vector<1x1xf32>
    %1882 = arith.addf %1573, %1881 : vector<1x1xf32>
    %1883 = arith.subf %1650, %1826 : vector<6x2xf32>
    %1884 = arith.mulf %1883, %1883 : vector<6x2xf32>
    %1885 = math.exp %1827 : vector<6x2xf32>
    %1886 = arith.divf %1884, %1885 : vector<6x2xf32>
    %cst_498 = arith.constant dense<0.000000e+00> : vector<6xf32>
    %1887 = vector.multi_reduction <add>, %1886, %cst_498 [1] : vector<6x2xf32> to vector<6xf32>
    %1888 = vector.shape_cast %1887 : vector<6xf32> to vector<6x1xf32>
    %cst_499 = arith.constant dense<0.000000e+00> : vector<6xf32>
    %1889 = vector.multi_reduction <add>, %1827, %cst_499 [1] : vector<6x2xf32> to vector<6xf32>
    %1890 = vector.shape_cast %1889 : vector<6xf32> to vector<6x1xf32>
    %cst_500 = arith.constant 3.67575407 : f32
    %1891 = vector.broadcast %cst_500 : f32 to vector<6x1xf32>
    %1892 = arith.addf %1888, %1891 : vector<6x1xf32>
    %1893 = arith.addf %1892, %1890 : vector<6x1xf32>
    %1894 = vector.shape_cast %1893 : vector<6x1xf32> to vector<1x6x1xf32>
    %cst_501 = arith.constant dense<0.000000e+00> : vector<1xf32>
    %1895 = vector.multi_reduction <add>, %1894, %cst_501 [1, 2] : vector<1x6x1xf32> to vector<1xf32>
    %1896 = vector.shape_cast %1895 : vector<1xf32> to vector<1x1x1xf32>
    %1897 = vector.extract %1896[0, 0, 0] : f32 from vector<1x1x1xf32>
    %1898 = vector.broadcast %1897 : f32 to vector<1x1xf32>
    %cst_502 = arith.constant 0.0833333358 : f32
    %1899 = vector.broadcast %cst_502 : f32 to vector<1x1xf32>
    %1900 = arith.mulf %1899, %1898 : vector<1x1xf32>
    %1901 = arith.addf %1592, %1900 : vector<1x1xf32>
    %1902 = arith.truncf %1857 : vector<6x16xf32> to vector<6x16xbf16>
    %cst_503 = arith.constant dense<0.000000e+00> : vector<6x8xf32>
    %1903 = tpu.matmul %1902, %21, %cst_503 {dimension_numbers = #tpu.dot_dimension_numbers<[1], [0], [0], [1], [0, 0, 1, 1], [], []>} : vector<6x16xbf16>, vector<16x8xbf16>, vector<6x8xf32> -> vector<6x8xf32>
    %1904 = vector.broadcast %87 : vector<6x1xf32> to vector<6x8xf32>
    %1905 = arith.mulf %1903, %1904 : vector<6x8xf32>
    %cst_504 = arith.constant dense<0.000000e+00> : vector<8xf32>
    %1906 = vector.multi_reduction <add>, %1905, %cst_504 [0] : vector<6x8xf32> to vector<8xf32>
    %1907 = vector.shape_cast %1906 : vector<8xf32> to vector<1x8xf32>
    %cst_505 = arith.constant 0.333333343 : f32
    %1908 = vector.broadcast %cst_505 : f32 to vector<1x8xf32>
    %1909 = arith.mulf %1907, %1908 : vector<1x8xf32>
    %1910 = vector.broadcast %87 : vector<6x1xf32> to vector<6x8xf32>
    %1911 = vector.broadcast %1909 : vector<1x8xf32> to vector<6x8xf32>
    %1912 = arith.mulf %1910, %1911 : vector<6x8xf32>
    %1913 = vector.broadcast %95 : vector<6x1xf32> to vector<6x8xf32>
    %1914 = arith.mulf %1903, %1913 : vector<6x8xf32>
    %cst_506 = arith.constant dense<0.000000e+00> : vector<8xf32>
    %1915 = vector.multi_reduction <add>, %1914, %cst_506 [0] : vector<6x8xf32> to vector<8xf32>
    %1916 = vector.shape_cast %1915 : vector<8xf32> to vector<1x8xf32>
    %cst_507 = arith.constant 0.333333343 : f32
    %1917 = vector.broadcast %cst_507 : f32 to vector<1x8xf32>
    %1918 = arith.mulf %1916, %1917 : vector<1x8xf32>
    %1919 = vector.broadcast %95 : vector<6x1xf32> to vector<6x8xf32>
    %1920 = vector.broadcast %1918 : vector<1x8xf32> to vector<6x8xf32>
    %1921 = arith.mulf %1919, %1920 : vector<6x8xf32>
    %1922 = arith.addf %1912, %1921 : vector<6x8xf32>
    %1923 = arith.addf %1922, %72 : vector<6x8xf32>
    %cst_508 = arith.constant 0.000000e+00 : f32
    %1924 = vector.broadcast %cst_508 : f32 to vector<6x8xf32>
    %1925 = arith.maximumf %1923, %1924 : vector<6x8xf32>
    %1926 = arith.truncf %1925 : vector<6x8xf32> to vector<6x8xbf16>
    %cst_509 = arith.constant dense<0.000000e+00> : vector<6x16xf32>
    %1927 = tpu.matmul %1926, %23, %cst_509 {dimension_numbers = #tpu.dot_dimension_numbers<[1], [0], [0], [1], [0, 0, 1, 1], [], []>} : vector<6x8xbf16>, vector<8x16xbf16>, vector<6x16xf32> -> vector<6x16xf32>
    %1928 = vector.broadcast %87 : vector<6x1xf32> to vector<6x16xf32>
    %1929 = arith.mulf %1927, %1928 : vector<6x16xf32>
    %cst_510 = arith.constant dense<0.000000e+00> : vector<16xf32>
    %1930 = vector.multi_reduction <add>, %1929, %cst_510 [0] : vector<6x16xf32> to vector<16xf32>
    %1931 = vector.shape_cast %1930 : vector<16xf32> to vector<1x16xf32>
    %cst_511 = arith.constant 0.333333343 : f32
    %1932 = vector.broadcast %cst_511 : f32 to vector<1x16xf32>
    %1933 = arith.mulf %1931, %1932 : vector<1x16xf32>
    %1934 = vector.broadcast %87 : vector<6x1xf32> to vector<6x16xf32>
    %1935 = vector.broadcast %1933 : vector<1x16xf32> to vector<6x16xf32>
    %1936 = arith.mulf %1934, %1935 : vector<6x16xf32>
    %1937 = vector.broadcast %95 : vector<6x1xf32> to vector<6x16xf32>
    %1938 = arith.mulf %1927, %1937 : vector<6x16xf32>
    %cst_512 = arith.constant dense<0.000000e+00> : vector<16xf32>
    %1939 = vector.multi_reduction <add>, %1938, %cst_512 [0] : vector<6x16xf32> to vector<16xf32>
    %1940 = vector.shape_cast %1939 : vector<16xf32> to vector<1x16xf32>
    %cst_513 = arith.constant 0.333333343 : f32
    %1941 = vector.broadcast %cst_513 : f32 to vector<1x16xf32>
    %1942 = arith.mulf %1940, %1941 : vector<1x16xf32>
    %1943 = vector.broadcast %95 : vector<6x1xf32> to vector<6x16xf32>
    %1944 = vector.broadcast %1942 : vector<1x16xf32> to vector<6x16xf32>
    %1945 = arith.mulf %1943, %1944 : vector<6x16xf32>
    %1946 = arith.addf %1936, %1945 : vector<6x16xf32>
    %1947 = arith.addf %1946, %75 : vector<6x16xf32>
    %1948 = tpu.concatenate %1947, %1857 in 1 : vector<6x16xf32>, vector<6x16xf32> -> vector<6x32xf32>
    %1949 = arith.truncf %1948 : vector<6x32xf32> to vector<6x32xbf16>
    %cst_514 = arith.constant dense<0.000000e+00> : vector<6x16xf32>
    %1950 = tpu.matmul %1949, %11, %cst_514 {dimension_numbers = #tpu.dot_dimension_numbers<[1], [0], [0], [1], [0, 0, 1, 1], [], []>} : vector<6x32xbf16>, vector<32x16xbf16>, vector<6x16xf32> -> vector<6x16xf32>
    %1951 = arith.addf %1950, %78 : vector<6x16xf32>
    %c6_i32_515 = arith.constant 6 : i32
    %1952 = arith.index_cast %c6_i32_515 : i32 to index
    %c0_516 = arith.constant 0 : index
    %c0_517 = arith.constant 0 : index
    %1953 = vector.load %arg0[%1952, %c0_516, %c0_517] : memref<7x6x17xf32, #tpu.memory_space<vmem>>, vector<1x6x17xf32>
    %1954 = vector.shape_cast %1953 : vector<1x6x17xf32> to vector<6x17xf32>
    %1955 = arith.index_cast %c6_i32_515 : i32 to index
    %c0_518 = arith.constant 0 : index
    %c0_519 = arith.constant 0 : index
    %1956 = vector.load %arg1[%1955, %c0_518, %c0_519] : memref<7x6x8xf32, #tpu.memory_space<vmem>>, vector<1x6x8xf32>
    %1957 = vector.shape_cast %1956 : vector<1x6x8xf32> to vector<6x8xf32>
    %1958 = vector.extract_strided_slice %1954 {offsets = [0, 6], sizes = [6, 4], strides = [1, 1]} : vector<6x17xf32> to vector<6x4xf32>
    %1959 = vector.extract_strided_slice %1954 {offsets = [0, 14], sizes = [6, 2], strides = [1, 1]} : vector<6x17xf32> to vector<6x2xf32>
    %1960 = tpu.concatenate %1954, %1951 in 1 : vector<6x17xf32>, vector<6x16xf32> -> vector<6x33xf32>
    %1961 = arith.truncf %1960 : vector<6x33xf32> to vector<6x33xbf16>
    %cst_520 = arith.constant dense<0.000000e+00> : vector<6x208xf32>
    %1962 = tpu.matmul %1961, %1, %cst_520 {dimension_numbers = #tpu.dot_dimension_numbers<[1], [0], [0], [1], [0, 0, 1, 1], [], []>} : vector<6x33xbf16>, vector<33x208xbf16>, vector<6x208xf32> -> vector<6x208xf32>
    %1963 = vector.extract_strided_slice %1962 {offsets = [0, 0], sizes = [6, 32], strides = [1, 1]} : vector<6x208xf32> to vector<6x32xf32>
    %cst_521 = arith.constant 0.000000e+00 : f32
    %1964 = vector.broadcast %cst_521 : f32 to vector<6x32xf32>
    %1965 = arith.maximumf %1963, %1964 : vector<6x32xf32>
    %1966 = arith.truncf %1965 : vector<6x32xf32> to vector<6x32xbf16>
    %cst_522 = arith.constant dense<0.000000e+00> : vector<6x4xf32>
    %1967 = tpu.matmul %1966, %13, %cst_522 {dimension_numbers = #tpu.dot_dimension_numbers<[1], [0], [0], [1], [0, 0, 1, 1], [], []>} : vector<6x32xbf16>, vector<32x4xbf16>, vector<6x4xf32> -> vector<6x4xf32>
    %1968 = arith.addf %1967, %60 : vector<6x4xf32>
    %cst_523 = arith.constant dense<0xFF800000> : vector<6xf32>
    %1969 = vector.multi_reduction <maximumf>, %1968, %cst_523 [1] : vector<6x4xf32> to vector<6xf32>
    %1970 = vector.shape_cast %1969 : vector<6xf32> to vector<6x1xf32>
    %1971 = vector.broadcast %1970 : vector<6x1xf32> to vector<6x4xf32>
    %1972 = arith.subf %1968, %1971 : vector<6x4xf32>
    %1973 = math.exp %1972 : vector<6x4xf32>
    %cst_524 = arith.constant dense<0.000000e+00> : vector<6xf32>
    %1974 = vector.multi_reduction <add>, %1973, %cst_524 [1] : vector<6x4xf32> to vector<6xf32>
    %1975 = vector.shape_cast %1974 : vector<6xf32> to vector<6x1xf32>
    %1976 = tpu.reciprocal %1975 {approx = true} : vector<6x1xf32> -> vector<6x1xf32>
    %1977 = vector.broadcast %1976 : vector<6x1xf32> to vector<6x4xf32>
    %1978 = arith.mulf %1973, %1977 : vector<6x4xf32>
    %1979 = arith.truncf %1978 : vector<6x4xf32> to vector<6x4xbf16>
    %cst_525 = arith.constant dense<0.000000e+00> : vector<6x8xf32>
    %1980 = tpu.matmul %1979, %25, %cst_525 {dimension_numbers = #tpu.dot_dimension_numbers<[1], [0], [0], [1], [0, 0, 1, 1], [], []>} : vector<6x4xbf16>, vector<4x8xbf16>, vector<6x8xf32> -> vector<6x8xf32>
    %1981 = vector.broadcast %87 : vector<6x1xf32> to vector<6x8xf32>
    %1982 = arith.mulf %1980, %1981 : vector<6x8xf32>
    %cst_526 = arith.constant dense<0.000000e+00> : vector<8xf32>
    %1983 = vector.multi_reduction <add>, %1982, %cst_526 [0] : vector<6x8xf32> to vector<8xf32>
    %1984 = vector.shape_cast %1983 : vector<8xf32> to vector<1x8xf32>
    %cst_527 = arith.constant 0.333333343 : f32
    %1985 = vector.broadcast %cst_527 : f32 to vector<1x8xf32>
    %1986 = arith.mulf %1984, %1985 : vector<1x8xf32>
    %1987 = vector.broadcast %87 : vector<6x1xf32> to vector<6x8xf32>
    %1988 = vector.broadcast %1986 : vector<1x8xf32> to vector<6x8xf32>
    %1989 = arith.mulf %1987, %1988 : vector<6x8xf32>
    %1990 = vector.broadcast %95 : vector<6x1xf32> to vector<6x8xf32>
    %1991 = arith.mulf %1980, %1990 : vector<6x8xf32>
    %cst_528 = arith.constant dense<0.000000e+00> : vector<8xf32>
    %1992 = vector.multi_reduction <add>, %1991, %cst_528 [0] : vector<6x8xf32> to vector<8xf32>
    %1993 = vector.shape_cast %1992 : vector<8xf32> to vector<1x8xf32>
    %cst_529 = arith.constant 0.333333343 : f32
    %1994 = vector.broadcast %cst_529 : f32 to vector<1x8xf32>
    %1995 = arith.mulf %1993, %1994 : vector<1x8xf32>
    %1996 = vector.broadcast %95 : vector<6x1xf32> to vector<6x8xf32>
    %1997 = vector.broadcast %1995 : vector<1x8xf32> to vector<6x8xf32>
    %1998 = arith.mulf %1996, %1997 : vector<6x8xf32>
    %1999 = arith.addf %1989, %1998 : vector<6x8xf32>
    %2000 = arith.addf %1999, %63 : vector<6x8xf32>
    %cst_530 = arith.constant 0.000000e+00 : f32
    %2001 = vector.broadcast %cst_530 : f32 to vector<6x8xf32>
    %2002 = arith.maximumf %2000, %2001 : vector<6x8xf32>
    %2003 = arith.truncf %2002 : vector<6x8xf32> to vector<6x8xbf16>
    %cst_531 = arith.constant dense<0.000000e+00> : vector<6x4xf32>
    %2004 = tpu.matmul %2003, %27, %cst_531 {dimension_numbers = #tpu.dot_dimension_numbers<[1], [0], [0], [1], [0, 0, 1, 1], [], []>} : vector<6x8xbf16>, vector<8x4xbf16>, vector<6x4xf32> -> vector<6x4xf32>
    %2005 = vector.broadcast %87 : vector<6x1xf32> to vector<6x4xf32>
    %2006 = arith.mulf %2004, %2005 : vector<6x4xf32>
    %cst_532 = arith.constant dense<0.000000e+00> : vector<4xf32>
    %2007 = vector.multi_reduction <add>, %2006, %cst_532 [0] : vector<6x4xf32> to vector<4xf32>
    %2008 = vector.shape_cast %2007 : vector<4xf32> to vector<1x4xf32>
    %cst_533 = arith.constant 0.333333343 : f32
    %2009 = vector.broadcast %cst_533 : f32 to vector<1x4xf32>
    %2010 = arith.mulf %2008, %2009 : vector<1x4xf32>
    %2011 = vector.broadcast %87 : vector<6x1xf32> to vector<6x4xf32>
    %2012 = vector.broadcast %2010 : vector<1x4xf32> to vector<6x4xf32>
    %2013 = arith.mulf %2011, %2012 : vector<6x4xf32>
    %2014 = vector.broadcast %95 : vector<6x1xf32> to vector<6x4xf32>
    %2015 = arith.mulf %2004, %2014 : vector<6x4xf32>
    %cst_534 = arith.constant dense<0.000000e+00> : vector<4xf32>
    %2016 = vector.multi_reduction <add>, %2015, %cst_534 [0] : vector<6x4xf32> to vector<4xf32>
    %2017 = vector.shape_cast %2016 : vector<4xf32> to vector<1x4xf32>
    %cst_535 = arith.constant 0.333333343 : f32
    %2018 = vector.broadcast %cst_535 : f32 to vector<1x4xf32>
    %2019 = arith.mulf %2017, %2018 : vector<1x4xf32>
    %2020 = vector.broadcast %95 : vector<6x1xf32> to vector<6x4xf32>
    %2021 = vector.broadcast %2019 : vector<1x4xf32> to vector<6x4xf32>
    %2022 = arith.mulf %2020, %2021 : vector<6x4xf32>
    %2023 = arith.addf %2013, %2022 : vector<6x4xf32>
    %2024 = arith.addf %2023, %66 : vector<6x4xf32>
    %2025 = tpu.concatenate %1978, %2024 in 1 : vector<6x4xf32>, vector<6x4xf32> -> vector<6x8xf32>
    %2026 = arith.truncf %2025 : vector<6x8xf32> to vector<6x8xbf16>
    %cst_536 = arith.constant dense<0.000000e+00> : vector<6x4xf32>
    %2027 = tpu.matmul %2026, %29, %cst_536 {dimension_numbers = #tpu.dot_dimension_numbers<[1], [0], [0], [1], [0, 0, 1, 1], [], []>} : vector<6x8xbf16>, vector<8x4xbf16>, vector<6x4xf32> -> vector<6x4xf32>
    %2028 = arith.addf %2027, %69 : vector<6x4xf32>
    %cst_537 = arith.constant dense<0xFF800000> : vector<6xf32>
    %2029 = vector.multi_reduction <maximumf>, %2028, %cst_537 [1] : vector<6x4xf32> to vector<6xf32>
    %2030 = vector.shape_cast %2029 : vector<6xf32> to vector<6x1xf32>
    %2031 = vector.broadcast %2030 : vector<6x1xf32> to vector<6x4xf32>
    %2032 = arith.subf %2028, %2031 : vector<6x4xf32>
    %2033 = math.exp %2032 : vector<6x4xf32>
    %cst_538 = arith.constant dense<0.000000e+00> : vector<6xf32>
    %2034 = vector.multi_reduction <add>, %2033, %cst_538 [1] : vector<6x4xf32> to vector<6xf32>
    %2035 = vector.shape_cast %2034 : vector<6xf32> to vector<6x1xf32>
    %2036 = tpu.reciprocal %2035 {approx = true} : vector<6x1xf32> -> vector<6x1xf32>
    %2037 = vector.broadcast %2036 : vector<6x1xf32> to vector<6x4xf32>
    %2038 = arith.mulf %2033, %2037 : vector<6x4xf32>
    %2039 = arith.mulf %1958, %2038 : vector<6x4xf32>
    %2040 = vector.shape_cast %2039 : vector<6x4xf32> to vector<1x6x4xf32>
    %cst_539 = arith.constant dense<0.000000e+00> : vector<1xf32>
    %2041 = vector.multi_reduction <add>, %2040, %cst_539 [1, 2] : vector<1x6x4xf32> to vector<1xf32>
    %2042 = vector.shape_cast %2041 : vector<1xf32> to vector<1x1x1xf32>
    %2043 = vector.extract %2042[0, 0, 0] : f32 from vector<1x1x1xf32>
    %2044 = vector.broadcast %2043 : f32 to vector<1x1xf32>
    %2045 = arith.subf %1736, %2044 : vector<1x1xf32>
    %2046 = vector.extract_strided_slice %1962 {offsets = [0, 128], sizes = [6, 32], strides = [1, 1]} : vector<6x208xf32> to vector<6x32xf32>
    %cst_540 = arith.constant 0.000000e+00 : f32
    %2047 = vector.broadcast %cst_540 : f32 to vector<6x32xf32>
    %2048 = arith.cmpf ogt, %2046, %2047 : vector<6x32xf32>
    %cst_541 = arith.constant 0.00999999977 : f32
    %2049 = vector.broadcast %cst_541 : f32 to vector<6x32xf32>
    %2050 = arith.mulf %2049, %2046 : vector<6x32xf32>
    %2051 = arith.select %2048, %2046, %2050 : vector<6x32xi1>, vector<6x32xf32>
    %2052 = arith.truncf %2051 : vector<6x32xf32> to vector<6x32xbf16>
    %cst_542 = arith.constant dense<0.000000e+00> : vector<6x32xf32>
    %2053 = tpu.matmul %2052, %3, %cst_542 {dimension_numbers = #tpu.dot_dimension_numbers<[1], [0], [0], [1], [0, 0, 1, 1], [], []>} : vector<6x32xbf16>, vector<32x32xbf16>, vector<6x32xf32> -> vector<6x32xf32>
    %2054 = arith.addf %2053, %36 : vector<6x32xf32>
    %cst_543 = arith.constant 0.000000e+00 : f32
    %2055 = vector.broadcast %cst_543 : f32 to vector<6x32xf32>
    %2056 = arith.cmpf ogt, %2054, %2055 : vector<6x32xf32>
    %cst_544 = arith.constant 0.00999999977 : f32
    %2057 = vector.broadcast %cst_544 : f32 to vector<6x32xf32>
    %2058 = arith.mulf %2057, %2054 : vector<6x32xf32>
    %2059 = arith.select %2056, %2054, %2058 : vector<6x32xi1>, vector<6x32xf32>
    %2060 = arith.truncf %2059 : vector<6x32xf32> to vector<6x32xbf16>
    %cst_545 = arith.constant dense<0.000000e+00> : vector<6x80xf32>
    %2061 = tpu.matmul %2060, %5, %cst_545 {dimension_numbers = #tpu.dot_dimension_numbers<[1], [0], [0], [1], [0, 0, 1, 1], [], []>} : vector<6x32xbf16>, vector<32x80xbf16>, vector<6x80xf32> -> vector<6x80xf32>
    %2062 = arith.addf %2061, %39 : vector<6x80xf32>
    %2063 = vector.extract_strided_slice %1962 {offsets = [0, 32], sizes = [6, 32], strides = [1, 1]} : vector<6x208xf32> to vector<6x32xf32>
    %2064 = vector.extract_strided_slice %2062 {offsets = [0, 0], sizes = [6, 32], strides = [1, 1]} : vector<6x80xf32> to vector<6x32xf32>
    %2065 = arith.addf %2063, %2064 : vector<6x32xf32>
    %cst_546 = arith.constant 0.000000e+00 : f32
    %2066 = vector.broadcast %cst_546 : f32 to vector<6x32xf32>
    %2067 = arith.cmpf ogt, %2065, %2066 : vector<6x32xf32>
    %cst_547 = arith.constant 0.00999999977 : f32
    %2068 = vector.broadcast %cst_547 : f32 to vector<6x32xf32>
    %2069 = arith.mulf %2068, %2065 : vector<6x32xf32>
    %2070 = arith.select %2067, %2065, %2069 : vector<6x32xi1>, vector<6x32xf32>
    %2071 = vector.extract_strided_slice %1962 {offsets = [0, 64], sizes = [6, 32], strides = [1, 1]} : vector<6x208xf32> to vector<6x32xf32>
    %cst_548 = arith.constant 0.000000e+00 : f32
    %2072 = vector.broadcast %cst_548 : f32 to vector<6x32xf32>
    %2073 = arith.cmpf ogt, %2071, %2072 : vector<6x32xf32>
    %cst_549 = arith.constant 0.00999999977 : f32
    %2074 = vector.broadcast %cst_549 : f32 to vector<6x32xf32>
    %2075 = arith.mulf %2074, %2071 : vector<6x32xf32>
    %2076 = arith.select %2073, %2071, %2075 : vector<6x32xi1>, vector<6x32xf32>
    %2077 = tpu.concatenate %2070, %2076 in 1 : vector<6x32xf32>, vector<6x32xf32> -> vector<6x64xf32>
    %2078 = arith.truncf %2077 : vector<6x64xf32> to vector<6x64xbf16>
    %cst_550 = arith.constant dense<0.000000e+00> : vector<6x64xf32>
    %2079 = tpu.matmul %2078, %31, %cst_550 {dimension_numbers = #tpu.dot_dimension_numbers<[1], [0], [0], [1], [0, 0, 1, 1], [], []>} : vector<6x64xbf16>, vector<64x64xbf16>, vector<6x64xf32> -> vector<6x64xf32>
    %2080 = arith.addf %2079, %48 : vector<6x64xf32>
    %cst_551 = arith.constant 0.000000e+00 : f32
    %2081 = vector.broadcast %cst_551 : f32 to vector<6x64xf32>
    %2082 = arith.cmpf ogt, %2080, %2081 : vector<6x64xf32>
    %cst_552 = arith.constant 0.00999999977 : f32
    %2083 = vector.broadcast %cst_552 : f32 to vector<6x64xf32>
    %2084 = arith.mulf %2083, %2080 : vector<6x64xf32>
    %2085 = arith.select %2082, %2080, %2084 : vector<6x64xi1>, vector<6x64xf32>
    %2086 = arith.truncf %2085 : vector<6x64xf32> to vector<6x64xbf16>
    %cst_553 = arith.constant dense<0.000000e+00> : vector<6x32xf32>
    %2087 = tpu.matmul %2086, %33, %cst_553 {dimension_numbers = #tpu.dot_dimension_numbers<[1], [0], [0], [1], [0, 0, 1, 1], [], []>} : vector<6x64xbf16>, vector<64x32xbf16>, vector<6x32xf32> -> vector<6x32xf32>
    %2088 = arith.addf %2087, %51 : vector<6x32xf32>
    %2089 = vector.extract_strided_slice %2088 {offsets = [0, 0], sizes = [6, 8], strides = [1, 1]} : vector<6x32xf32> to vector<6x8xf32>
    %2090 = vector.extract_strided_slice %2088 {offsets = [0, 8], sizes = [6, 8], strides = [1, 1]} : vector<6x32xf32> to vector<6x8xf32>
    %2091 = vector.extract_strided_slice %2088 {offsets = [0, 16], sizes = [6, 8], strides = [1, 1]} : vector<6x32xf32> to vector<6x8xf32>
    %2092 = vector.extract_strided_slice %2088 {offsets = [0, 24], sizes = [6, 8], strides = [1, 1]} : vector<6x32xf32> to vector<6x8xf32>
    %cst_554 = arith.constant 5.000000e-01 : f32
    %2093 = vector.broadcast %cst_554 : f32 to vector<6x8xf32>
    %2094 = arith.mulf %2093, %2090 : vector<6x8xf32>
    %2095 = math.exp %2094 : vector<6x8xf32>
    %2096 = arith.mulf %1957, %2095 : vector<6x8xf32>
    %2097 = arith.addf %2096, %2089 : vector<6x8xf32>
    %2098 = arith.truncf %2097 : vector<6x8xf32> to vector<6x8xbf16>
    %cst_555 = arith.constant dense<0.000000e+00> : vector<6x32xf32>
    %2099 = tpu.matmul %2098, %19, %cst_555 {dimension_numbers = #tpu.dot_dimension_numbers<[1], [0], [0], [1], [0, 0, 1, 1], [], []>} : vector<6x8xbf16>, vector<8x32xbf16>, vector<6x32xf32> -> vector<6x32xf32>
    %2100 = arith.addf %2099, %42 : vector<6x32xf32>
    %cst_556 = arith.constant 0.000000e+00 : f32
    %2101 = vector.broadcast %cst_556 : f32 to vector<6x32xf32>
    %2102 = arith.cmpf ogt, %2100, %2101 : vector<6x32xf32>
    %cst_557 = arith.constant 0.00999999977 : f32
    %2103 = vector.broadcast %cst_557 : f32 to vector<6x32xf32>
    %2104 = arith.mulf %2103, %2100 : vector<6x32xf32>
    %2105 = arith.select %2102, %2100, %2104 : vector<6x32xi1>, vector<6x32xf32>
    %2106 = arith.truncf %2105 : vector<6x32xf32> to vector<6x32xbf16>
    %cst_558 = arith.constant dense<0.000000e+00> : vector<6x32xf32>
    %2107 = tpu.matmul %2106, %7, %cst_558 {dimension_numbers = #tpu.dot_dimension_numbers<[1], [0], [0], [1], [0, 0, 1, 1], [], []>} : vector<6x32xbf16>, vector<32x32xbf16>, vector<6x32xf32> -> vector<6x32xf32>
    %2108 = arith.addf %2107, %45 : vector<6x32xf32>
    %cst_559 = arith.constant 0.000000e+00 : f32
    %2109 = vector.broadcast %cst_559 : f32 to vector<6x32xf32>
    %2110 = arith.cmpf ogt, %2108, %2109 : vector<6x32xf32>
    %cst_560 = arith.constant 0.00999999977 : f32
    %2111 = vector.broadcast %cst_560 : f32 to vector<6x32xf32>
    %2112 = arith.mulf %2111, %2108 : vector<6x32xf32>
    %2113 = arith.select %2110, %2108, %2112 : vector<6x32xi1>, vector<6x32xf32>
    %2114 = arith.truncf %2113 : vector<6x32xf32> to vector<6x32xbf16>
    %cst_561 = arith.constant dense<0.000000e+00> : vector<6x80xf32>
    %2115 = tpu.matmul %2114, %17, %cst_561 {dimension_numbers = #tpu.dot_dimension_numbers<[1], [0], [0], [1], [0, 0, 1, 1], [], []>} : vector<6x32xbf16>, vector<32x80xbf16>, vector<6x80xf32> -> vector<6x80xf32>
    %2116 = vector.extract_strided_slice %1962 {offsets = [0, 96], sizes = [6, 32], strides = [1, 1]} : vector<6x208xf32> to vector<6x32xf32>
    %2117 = vector.extract_strided_slice %2115 {offsets = [0, 0], sizes = [6, 32], strides = [1, 1]} : vector<6x80xf32> to vector<6x32xf32>
    %2118 = arith.addf %2116, %2117 : vector<6x32xf32>
    %cst_562 = arith.constant 0.000000e+00 : f32
    %2119 = vector.broadcast %cst_562 : f32 to vector<6x32xf32>
    %2120 = arith.cmpf ogt, %2118, %2119 : vector<6x32xf32>
    %cst_563 = arith.constant 0.00999999977 : f32
    %2121 = vector.broadcast %cst_563 : f32 to vector<6x32xf32>
    %2122 = arith.mulf %2121, %2118 : vector<6x32xf32>
    %2123 = arith.select %2120, %2118, %2122 : vector<6x32xi1>, vector<6x32xf32>
    %2124 = arith.truncf %2123 : vector<6x32xf32> to vector<6x32xbf16>
    %cst_564 = arith.constant dense<0.000000e+00> : vector<6x32xf32>
    %2125 = tpu.matmul %2124, %9, %cst_564 {dimension_numbers = #tpu.dot_dimension_numbers<[1], [0], [0], [1], [0, 0, 1, 1], [], []>} : vector<6x32xbf16>, vector<32x32xbf16>, vector<6x32xf32> -> vector<6x32xf32>
    %2126 = arith.addf %2125, %54 : vector<6x32xf32>
    %cst_565 = arith.constant 0.000000e+00 : f32
    %2127 = vector.broadcast %cst_565 : f32 to vector<6x32xf32>
    %2128 = arith.cmpf ogt, %2126, %2127 : vector<6x32xf32>
    %cst_566 = arith.constant 0.00999999977 : f32
    %2129 = vector.broadcast %cst_566 : f32 to vector<6x32xf32>
    %2130 = arith.mulf %2129, %2126 : vector<6x32xf32>
    %2131 = arith.select %2128, %2126, %2130 : vector<6x32xi1>, vector<6x32xf32>
    %2132 = arith.truncf %2131 : vector<6x32xf32> to vector<6x32xbf16>
    %cst_567 = arith.constant dense<0.000000e+00> : vector<6x4xf32>
    %2133 = tpu.matmul %2132, %15, %cst_567 {dimension_numbers = #tpu.dot_dimension_numbers<[1], [0], [0], [1], [0, 0, 1, 1], [], []>} : vector<6x32xbf16>, vector<32x4xbf16>, vector<6x4xf32> -> vector<6x4xf32>
    %2134 = arith.addf %2133, %57 : vector<6x4xf32>
    %2135 = vector.extract_strided_slice %2134 {offsets = [0, 0], sizes = [6, 2], strides = [1, 1]} : vector<6x4xf32> to vector<6x2xf32>
    %2136 = vector.extract_strided_slice %2134 {offsets = [0, 2], sizes = [6, 2], strides = [1, 1]} : vector<6x4xf32> to vector<6x2xf32>
    %2137 = vector.extract_strided_slice %2062 {offsets = [0, 32], sizes = [6, 48], strides = [1, 1]} : vector<6x80xf32> to vector<6x48xf32>
    %2138 = vector.extract_strided_slice %2115 {offsets = [0, 32], sizes = [6, 48], strides = [1, 1]} : vector<6x80xf32> to vector<6x48xf32>
    %2139 = arith.addf %2137, %2138 : vector<6x48xf32>
    %2140 = vector.extract_strided_slice %1962 {offsets = [0, 160], sizes = [6, 48], strides = [1, 1]} : vector<6x208xf32> to vector<6x48xf32>
    %2141 = vector.extract_strided_slice %2139 {offsets = [0, 0], sizes = [6, 16], strides = [1, 1]} : vector<6x48xf32> to vector<6x16xf32>
    %2142 = vector.extract_strided_slice %2140 {offsets = [0, 0], sizes = [6, 16], strides = [1, 1]} : vector<6x48xf32> to vector<6x16xf32>
    %2143 = arith.addf %2141, %2142 : vector<6x16xf32>
    %2144 = arith.negf %2143 : vector<6x16xf32>
    %2145 = math.exp %2144 : vector<6x16xf32>
    %cst_568 = arith.constant 1.000000e+00 : f32
    %2146 = vector.broadcast %cst_568 : f32 to vector<6x16xf32>
    %2147 = arith.addf %2146, %2145 : vector<6x16xf32>
    %2148 = arith.divf %2146, %2147 : vector<6x16xf32>
    %2149 = vector.extract_strided_slice %2139 {offsets = [0, 16], sizes = [6, 16], strides = [1, 1]} : vector<6x48xf32> to vector<6x16xf32>
    %2150 = vector.extract_strided_slice %2140 {offsets = [0, 16], sizes = [6, 16], strides = [1, 1]} : vector<6x48xf32> to vector<6x16xf32>
    %2151 = arith.addf %2149, %2150 : vector<6x16xf32>
    %2152 = arith.negf %2151 : vector<6x16xf32>
    %2153 = math.exp %2152 : vector<6x16xf32>
    %cst_569 = arith.constant 1.000000e+00 : f32
    %2154 = vector.broadcast %cst_569 : f32 to vector<6x16xf32>
    %2155 = arith.addf %2154, %2153 : vector<6x16xf32>
    %2156 = arith.divf %2154, %2155 : vector<6x16xf32>
    %2157 = vector.extract_strided_slice %2139 {offsets = [0, 32], sizes = [6, 16], strides = [1, 1]} : vector<6x48xf32> to vector<6x16xf32>
    %2158 = vector.extract_strided_slice %2140 {offsets = [0, 32], sizes = [6, 16], strides = [1, 1]} : vector<6x48xf32> to vector<6x16xf32>
    %2159 = arith.mulf %2148, %2158 : vector<6x16xf32>
    %2160 = arith.addf %2157, %2159 : vector<6x16xf32>
    %2161 = math.tanh %2160 : vector<6x16xf32>
    %cst_570 = arith.constant 1.000000e+00 : f32
    %2162 = vector.broadcast %cst_570 : f32 to vector<6x16xf32>
    %2163 = arith.subf %2162, %2156 : vector<6x16xf32>
    %2164 = arith.mulf %2163, %2161 : vector<6x16xf32>
    %2165 = arith.mulf %2156, %1951 : vector<6x16xf32>
    %2166 = arith.addf %2164, %2165 : vector<6x16xf32>
    %2167 = arith.subf %2092, %2090 : vector<6x8xf32>
    %cst_571 = arith.constant dense<0.000000e+00> : vector<6xf32>
    %2168 = vector.multi_reduction <add>, %2167, %cst_571 [1] : vector<6x8xf32> to vector<6xf32>
    %2169 = vector.shape_cast %2168 : vector<6xf32> to vector<6x1xf32>
    %2170 = arith.subf %2090, %2092 : vector<6x8xf32>
    %2171 = math.exp %2170 : vector<6x8xf32>
    %cst_572 = arith.constant dense<0.000000e+00> : vector<6xf32>
    %2172 = vector.multi_reduction <add>, %2171, %cst_572 [1] : vector<6x8xf32> to vector<6xf32>
    %2173 = vector.shape_cast %2172 : vector<6xf32> to vector<6x1xf32>
    %2174 = arith.subf %2089, %2091 : vector<6x8xf32>
    %2175 = arith.mulf %2174, %2174 : vector<6x8xf32>
    %2176 = math.exp %2092 : vector<6x8xf32>
    %2177 = arith.divf %2175, %2176 : vector<6x8xf32>
    %cst_573 = arith.constant dense<0.000000e+00> : vector<6xf32>
    %2178 = vector.multi_reduction <add>, %2177, %cst_573 [1] : vector<6x8xf32> to vector<6xf32>
    %2179 = vector.shape_cast %2178 : vector<6xf32> to vector<6x1xf32>
    %cst_574 = arith.constant 8.000000e+00 : f32
    %2180 = vector.broadcast %cst_574 : f32 to vector<6x1xf32>
    %2181 = arith.subf %2169, %2180 : vector<6x1xf32>
    %2182 = arith.addf %2181, %2173 : vector<6x1xf32>
    %2183 = arith.addf %2182, %2179 : vector<6x1xf32>
    %2184 = vector.shape_cast %2183 : vector<6x1xf32> to vector<1x6x1xf32>
    %cst_575 = arith.constant dense<0.000000e+00> : vector<1xf32>
    %2185 = vector.multi_reduction <add>, %2184, %cst_575 [1, 2] : vector<1x6x1xf32> to vector<1xf32>
    %2186 = vector.shape_cast %2185 : vector<1xf32> to vector<1x1x1xf32>
    %2187 = vector.extract %2186[0, 0, 0] : f32 from vector<1x1x1xf32>
    %2188 = vector.broadcast %2187 : f32 to vector<1x1xf32>
    %cst_576 = arith.constant 0.0833333358 : f32
    %2189 = vector.broadcast %cst_576 : f32 to vector<1x1xf32>
    %2190 = arith.mulf %2189, %2188 : vector<1x1xf32>
    %2191 = arith.addf %1882, %2190 : vector<1x1xf32>
    %2192 = arith.subf %1959, %2135 : vector<6x2xf32>
    %2193 = arith.mulf %2192, %2192 : vector<6x2xf32>
    %2194 = math.exp %2136 : vector<6x2xf32>
    %2195 = arith.divf %2193, %2194 : vector<6x2xf32>
    %cst_577 = arith.constant dense<0.000000e+00> : vector<6xf32>
    %2196 = vector.multi_reduction <add>, %2195, %cst_577 [1] : vector<6x2xf32> to vector<6xf32>
    %2197 = vector.shape_cast %2196 : vector<6xf32> to vector<6x1xf32>
    %cst_578 = arith.constant dense<0.000000e+00> : vector<6xf32>
    %2198 = vector.multi_reduction <add>, %2136, %cst_578 [1] : vector<6x2xf32> to vector<6xf32>
    %2199 = vector.shape_cast %2198 : vector<6xf32> to vector<6x1xf32>
    %cst_579 = arith.constant 3.67575407 : f32
    %2200 = vector.broadcast %cst_579 : f32 to vector<6x1xf32>
    %2201 = arith.addf %2197, %2200 : vector<6x1xf32>
    %2202 = arith.addf %2201, %2199 : vector<6x1xf32>
    %2203 = vector.shape_cast %2202 : vector<6x1xf32> to vector<1x6x1xf32>
    %cst_580 = arith.constant dense<0.000000e+00> : vector<1xf32>
    %2204 = vector.multi_reduction <add>, %2203, %cst_580 [1, 2] : vector<1x6x1xf32> to vector<1xf32>
    %2205 = vector.shape_cast %2204 : vector<1xf32> to vector<1x1x1xf32>
    %2206 = vector.extract %2205[0, 0, 0] : f32 from vector<1x1x1xf32>
    %2207 = vector.broadcast %2206 : f32 to vector<1x1xf32>
    %cst_581 = arith.constant 0.0833333358 : f32
    %2208 = vector.broadcast %cst_581 : f32 to vector<1x1xf32>
    %2209 = arith.mulf %2208, %2207 : vector<1x1xf32>
    %2210 = arith.addf %1901, %2209 : vector<1x1xf32>
    %2211 = arith.truncf %2166 : vector<6x16xf32> to vector<6x16xbf16>
    %cst_582 = arith.constant dense<0.000000e+00> : vector<6x8xf32>
    %2212 = tpu.matmul %2211, %21, %cst_582 {dimension_numbers = #tpu.dot_dimension_numbers<[1], [0], [0], [1], [0, 0, 1, 1], [], []>} : vector<6x16xbf16>, vector<16x8xbf16>, vector<6x8xf32> -> vector<6x8xf32>
    %2213 = vector.broadcast %87 : vector<6x1xf32> to vector<6x8xf32>
    %2214 = arith.mulf %2212, %2213 : vector<6x8xf32>
    %cst_583 = arith.constant dense<0.000000e+00> : vector<8xf32>
    %2215 = vector.multi_reduction <add>, %2214, %cst_583 [0] : vector<6x8xf32> to vector<8xf32>
    %2216 = vector.shape_cast %2215 : vector<8xf32> to vector<1x8xf32>
    %cst_584 = arith.constant 0.333333343 : f32
    %2217 = vector.broadcast %cst_584 : f32 to vector<1x8xf32>
    %2218 = arith.mulf %2216, %2217 : vector<1x8xf32>
    %2219 = vector.broadcast %87 : vector<6x1xf32> to vector<6x8xf32>
    %2220 = vector.broadcast %2218 : vector<1x8xf32> to vector<6x8xf32>
    %2221 = arith.mulf %2219, %2220 : vector<6x8xf32>
    %2222 = vector.broadcast %95 : vector<6x1xf32> to vector<6x8xf32>
    %2223 = arith.mulf %2212, %2222 : vector<6x8xf32>
    %cst_585 = arith.constant dense<0.000000e+00> : vector<8xf32>
    %2224 = vector.multi_reduction <add>, %2223, %cst_585 [0] : vector<6x8xf32> to vector<8xf32>
    %2225 = vector.shape_cast %2224 : vector<8xf32> to vector<1x8xf32>
    %cst_586 = arith.constant 0.333333343 : f32
    %2226 = vector.broadcast %cst_586 : f32 to vector<1x8xf32>
    %2227 = arith.mulf %2225, %2226 : vector<1x8xf32>
    %2228 = vector.broadcast %95 : vector<6x1xf32> to vector<6x8xf32>
    %2229 = vector.broadcast %2227 : vector<1x8xf32> to vector<6x8xf32>
    %2230 = arith.mulf %2228, %2229 : vector<6x8xf32>
    %2231 = arith.addf %2221, %2230 : vector<6x8xf32>
    %2232 = arith.addf %2231, %72 : vector<6x8xf32>
    %cst_587 = arith.constant 0.000000e+00 : f32
    %2233 = vector.broadcast %cst_587 : f32 to vector<6x8xf32>
    %2234 = arith.maximumf %2232, %2233 : vector<6x8xf32>
    %2235 = arith.truncf %2234 : vector<6x8xf32> to vector<6x8xbf16>
    %cst_588 = arith.constant dense<0.000000e+00> : vector<6x16xf32>
    %2236 = tpu.matmul %2235, %23, %cst_588 {dimension_numbers = #tpu.dot_dimension_numbers<[1], [0], [0], [1], [0, 0, 1, 1], [], []>} : vector<6x8xbf16>, vector<8x16xbf16>, vector<6x16xf32> -> vector<6x16xf32>
    %2237 = vector.broadcast %87 : vector<6x1xf32> to vector<6x16xf32>
    %2238 = arith.mulf %2236, %2237 : vector<6x16xf32>
    %cst_589 = arith.constant dense<0.000000e+00> : vector<16xf32>
    %2239 = vector.multi_reduction <add>, %2238, %cst_589 [0] : vector<6x16xf32> to vector<16xf32>
    %2240 = vector.shape_cast %2239 : vector<16xf32> to vector<1x16xf32>
    %cst_590 = arith.constant 0.333333343 : f32
    %2241 = vector.broadcast %cst_590 : f32 to vector<1x16xf32>
    %2242 = arith.mulf %2240, %2241 : vector<1x16xf32>
    %2243 = vector.broadcast %87 : vector<6x1xf32> to vector<6x16xf32>
    %2244 = vector.broadcast %2242 : vector<1x16xf32> to vector<6x16xf32>
    %2245 = arith.mulf %2243, %2244 : vector<6x16xf32>
    %2246 = vector.broadcast %95 : vector<6x1xf32> to vector<6x16xf32>
    %2247 = arith.mulf %2236, %2246 : vector<6x16xf32>
    %cst_591 = arith.constant dense<0.000000e+00> : vector<16xf32>
    %2248 = vector.multi_reduction <add>, %2247, %cst_591 [0] : vector<6x16xf32> to vector<16xf32>
    %2249 = vector.shape_cast %2248 : vector<16xf32> to vector<1x16xf32>
    %cst_592 = arith.constant 0.333333343 : f32
    %2250 = vector.broadcast %cst_592 : f32 to vector<1x16xf32>
    %2251 = arith.mulf %2249, %2250 : vector<1x16xf32>
    %2252 = vector.broadcast %95 : vector<6x1xf32> to vector<6x16xf32>
    %2253 = vector.broadcast %2251 : vector<1x16xf32> to vector<6x16xf32>
    %2254 = arith.mulf %2252, %2253 : vector<6x16xf32>
    %2255 = arith.addf %2245, %2254 : vector<6x16xf32>
    %2256 = arith.addf %2255, %75 : vector<6x16xf32>
    %2257 = tpu.concatenate %2256, %2166 in 1 : vector<6x16xf32>, vector<6x16xf32> -> vector<6x32xf32>
    %2258 = arith.truncf %2257 : vector<6x32xf32> to vector<6x32xbf16>
    %cst_593 = arith.constant dense<0.000000e+00> : vector<6x16xf32>
    %2259 = tpu.matmul %2258, %11, %cst_593 {dimension_numbers = #tpu.dot_dimension_numbers<[1], [0], [0], [1], [0, 0, 1, 1], [], []>} : vector<6x32xbf16>, vector<32x16xbf16>, vector<6x16xf32> -> vector<6x16xf32>
    %2260 = arith.addf %2259, %78 : vector<6x16xf32>
    %c7_i32 = arith.constant 7 : i32
    %2261 = tpu.concatenate %2191, %2210, %2045, %97 in 1 : vector<1x1xf32>, vector<1x1xf32>, vector<1x1xf32>, vector<1x1xf32> -> vector<1x4xf32>
    %c0_594 = arith.constant 0 : index
    %c0_595 = arith.constant 0 : index
    %2262 = vector.load %arg4[%c0_594, %c0_595] : memref<1x4xf32, #tpu.memory_space<vmem>>, vector<1x4xf32>
    tpu.vector_store %arg4[%c0_594, %c0_595], %2261 {strides = array<i32>} : memref<1x4xf32, #tpu.memory_space<vmem>>, vector<1x4xf32>,
    %c0_596 = arith.constant 0 : index
    %c0_597 = arith.constant 0 : index
    %c0_598 = arith.constant 0 : index
    %2263 = vector.load %arg5[%c0_596, %c0_597, %c0_598] : memref<1x6x16xf32, #tpu.memory_space<vmem>>, vector<1x6x16xf32>
    %2264 = vector.shape_cast %2263 : vector<1x6x16xf32> to vector<6x16xf32>
    %2265 = vector.shape_cast %2260 : vector<6x16xf32> to vector<1x6x16xf32>
    tpu.vector_store %arg5[%c0_596, %c0_597, %c0_598], %2265 {strides = array<i32>} : memref<1x6x16xf32, #tpu.memory_space<vmem>>, vector<1x6x16xf32>,
    return
  }
}

</mosaic_0001>

<llo_original>
// kernel: tpu_custom_call.1
$region0: #{tpu_custom_call.1}
  #allocation0 [shape = 'u32[]', space=smem, size = 0x4, offset = 0x4, fixed_abs, tag = 'smem constant byte address 0x4 - core index']
  #allocation1 [shape = 'u32[72,128]{1,0:T(1,128)}', space=vmem, size = 0x9000, scoped, tag = 'internal scratch']
  %s0 = inlined_call_operand.vmem [shape: f32[7,6,17], index: 0, kind: input, shape index: {}]
  %s1 = inlined_call_operand.vmem [shape: f32[7,6,8], index: 1, kind: input, shape index: {}]
  %s2 = inlined_call_operand.hbm [shape: f32[168,208], index: 2, kind: input, shape index: {}]
  %s3 = inlined_call_operand.vmem [shape: f32[1,368], index: 3, kind: input, shape index: {}]
  %s4 = inlined_call_operand.hbm [shape: f32[1,4], index: 4, kind: output, shape index: {0}]
  %s5 = inlined_call_operand.vmem [shape: f32[1,6,16], index: 5, kind: output, shape index: {1}]
  %6 = xla_tuple %s4, %s5
  %s7 = sld [smem:[#allocation0]]
  $region38: #{tpu_custom_call.1} parent=0
    _
  %s9 = ssub.s32 1, %s7
  %s10 = scalar_select 0, %s9, %s7
  $region1: #{tpu_custom_call.1} parent=0
    #allocation2 [shape = 'u8[172032]{0}', space=vmem, size = 0x2a000, scoped, tag = 'input window, operand 2, single buffered']
    #allocation3 [shape = 's32[1]{0}', space=sflag, size = 0x4, scoped, tag = 'scoped memory for tpu_custom_call.1']
    #allocation4 [shape = 's32[1]{0}', space=sflag, size = 0x4, scoped, tag = 'scoped memory for tpu_custom_call.1']
    #allocation5 [shape = 'u8[512]{0}', space=vmem, size = 0x400, scoped, tag = 'output window, operand 0, single buffered']
    %11 = vsyncpa [#allocation3], 0
    %12 = vsyncpa [#allocation4], 0
    // Predicated region
    $region2: #{tpu_custom_call.1} parent=1 // pred_check
      _
    $region3: #{tpu_custom_call.1} parent=1 // pred_check_branch
      %14 = sbr.rel (0) target = $region5
    $region4: #{tpu_custom_call.1} parent=1 // pred_region
      _
    $region5: #{tpu_custom_call.1} parent=1 // pred_fallthru
      _
    // Predicated region
    $region6: #{tpu_custom_call.1} parent=1 // pred_check
      _
    $region7: #{tpu_custom_call.1} parent=1 // pred_check_branch
      %16 = sbr.rel (0) target = $region9
    $region8: #{tpu_custom_call.1} parent=1 // pred_region
      _
    $region9: #{tpu_custom_call.1} parent=1 // pred_fallthru
      _
    // Predicated region
    $region10: #{tpu_custom_call.1} parent=1 // pred_check
      _
    $region11: #{tpu_custom_call.1} parent=1 // pred_check_branch
      %18 = sbr.rel (0) target = $region13
    $region12: #{tpu_custom_call.1} parent=1 // pred_region
      %20 = vsyncadd [#allocation3], 0
      %s21 = sshll.u32 %s2, 4
      %s22 = int_to_ptr.hbm [resolvable:$true] %s21
      %s23 = sshll.u32 [#allocation2], 4
      %s24 = int_to_ptr.vmem [resolvable:$true] %s23
      %29 = dma.hbm_to_vmem [thread:$0]  %s22, 5376, %s24, [#allocation3], 256, 256, 16
    $region13: #{tpu_custom_call.1} parent=1 // pred_fallthru
      _
    // Predicated region
    $region14: #{tpu_custom_call.1} parent=1 // pred_check
      _
    $region15: #{tpu_custom_call.1} parent=1 // pred_check_branch
      %31 = sbr.rel (0) target = $region17
    $region16: #{tpu_custom_call.1} parent=1 // pred_region
      _
    $region17: #{tpu_custom_call.1} parent=1 // pred_fallthru
      _
    // Predicated region
    $region18: #{tpu_custom_call.1} parent=1 // pred_check
      _
    $region19: #{tpu_custom_call.1} parent=1 // pred_check_branch
      %33 = sbr.rel (0) target = $region21
    $region20: #{tpu_custom_call.1} parent=1 // pred_region
      %35 = dma.done [#allocation3], 5376
    $region21: #{tpu_custom_call.1} parent=1 // pred_fallthru
      _
    %v37 = vld [vmem:[#allocation2] sm:$0xff]
    %v38 = vld [vmem:[#allocation2 + $0x8] sm:$0xff]
    %v39 = vld [vmem:[#allocation2 + $0x10] sm:$0xff]
    %v40 = vld [vmem:[#allocation2 + $0x18] sm:$0xff]
    %v41 = vld [vmem:[#allocation2 + $0x20] sm:$0xff]
    %v42 = vld [vmem:[#allocation2 + $0x28] sm:$0xff]
    %v43 = vld [vmem:[#allocation2 + $0x30] sm:$0xff]
    %v44 = vld [vmem:[#allocation2 + $0x38] sm:$0xff]
    %v45 = vld [vmem:[#allocation2 + $0x40] sm:$0x1]
    %v46 = vld [vmem:[#allocation2 + $0x48] sm:$0x1]
    %v47 = vpack.c.bf16 %v39, %v37
    %v48 = vpack.c.bf16 %v40, %v38
    %v49 = vpack.c.bf16 %v43, %v41
    %v50 = vpack.c.bf16 %v44, %v42
    %v51 = vpack.c.bf16 %v45, %v45
    %v52 = vpack.c.bf16 %v46, %v46
    %v53 = vld [vmem:[#allocation2 + $0x50] sm:$0xff]
    %v54 = vld [vmem:[#allocation2 + $0x60] sm:$0xff]
    %v55 = vld [vmem:[#allocation2 + $0x70] sm:$0xff]
    %v56 = vld [vmem:[#allocation2 + $0x80] sm:$0xff]
    %v57 = vpack.c.bf16 %v54, %v53
    %v58 = vpack.c.bf16 %v56, %v55
    %v59 = vld [vmem:[#allocation2 + $0x58] sm:$0xff]
    %v60 = vld [vmem:[#allocation2 + $0x68] sm:$0xff]
    %v61 = vld [vmem:[#allocation2 + $0x78] sm:$0xff]
    %v62 = vld [vmem:[#allocation2 + $0x88] sm:$0xff]
    %v63 = vpack.c.bf16 %v60, %v59
    %v64 = vpack.c.bf16 %v62, %v61
    %v65 = vld [vmem:[#allocation2 + $0x90] sm:$0xff]
    %v66 = vld [vmem:[#allocation2 + $0xa0] sm:$0xff]
    %v67 = vld [vmem:[#allocation2 + $0xb0] sm:$0xff]
    %v68 = vld [vmem:[#allocation2 + $0xc0] sm:$0xff]
    %v69 = vpack.c.bf16 %v66, %v65
    %v70 = vpack.c.bf16 %v68, %v67
    %v71 = vpack.c.bf16 %v65, %v65
    %v72 = vld [vmem:[#allocation2 + $0x98] sm:$0xff]
    %v73 = vpack.c.bf16 %v72, %v72
    %v74 = vld [vmem:[#allocation2 + $0x98] sm:$0xf]
    %v75 = vpack.c.bf16 %v74, %v74
    %v76 = vld [vmem:[#allocation2 + $0xd0] sm:$0xff]
    %v77 = vld [vmem:[#allocation2 + $0xe0] sm:$0xff]
    %v78 = vld [vmem:[#allocation2 + $0xf0] sm:$0xff]
    %v79 = vld [vmem:[#allocation2 + $0x100] sm:$0xff]
    %v80 = vld [vmem:[#allocation2 + $0x110] sm:$0xff]
    %v81 = vld [vmem:[#allocation2 + $0x120] sm:$0xff]
    %v82 = vld [vmem:[#allocation2 + $0x130] sm:$0xff]
    %v83 = vld [vmem:[#allocation2 + $0x140] sm:$0xff]
    %v84 = vpack.c.bf16 %v77, %v76
    %v85 = vpack.c.bf16 %v79, %v78
    %v86 = vpack.c.bf16 %v81, %v80
    %v87 = vpack.c.bf16 %v83, %v82
    %v88 = vld [vmem:[%s3] sm:$0x1]
    %v90 = vperm.slane %v88, 0
    %v92 = vld [vmem:[%s3] sm:$0x3]
    %v94 = vperm.slane %v92, 0
    %v95 = vperm.slane %v92, 1
    %v96 = vld [vmem:[%s3 + $0x1] sm:$0x1]
    %v98 = vperm.slane %v96, 0
    %v99 = vld [vmem:[%s3 + $0x1] sm:$0x3]
    %v101 = vperm.slane %v99, 0
    %v102 = vperm.slane %v99, 1
    %v103 = vld [vmem:[%s3 + $0x2] sm:$0x1]
    %v105 = vperm.slane %v103, 0
    %v106 = vlaneseq
    %v107 = vshrl.u32 %v106, 7
    %vm108 = vcmp.ge.s32.totalorder %v107, 0
    %vm109 = vcmp.lt.s32.totalorder %v107, 3
    %vm110 = vmand %vm108, %vm109
    %v111 = vsel %vm110, 1.0, 0.0
    %vm112 = vcmp.ge.s32.totalorder %v107, 3
    %vm113 = vcmp.lt.s32.totalorder %v107, 6
    %vm114 = vmand %vm112, %vm113
    %v115 = vsel %vm114, 1.0, 0.0
    %v116 = vld [vmem:[%s0] sm:$0x3f]
    %v117 = vld [vmem:[%s1] sm:$0x3f]
    %vm118 = vcmask 138240
    %v119 = vsel %vm118, %v116, 0.0
    %v120 = vpack.c.bf16 %v119, %v119
    %vm121 = vcmask 269312
    %v123 = vsel %vm121, %v120, 0
    %vm125 = vcmask 1040384
    %v126 = vsel 0, 4294967295, 65535
    %v127 = vsel %vm125, %v126, 0
    %v129 = vand.u32 %v51, %v127
    %v132 = vand.u32 %v52, %v127
    %134 = vmatpush.bf16.msra.mxu0 0
    %135 = vmatpush.bf16.msra.mxu0 0
    %136 = vmatpush.bf16.msra.mxu0 0
    %137 = vmatpush.bf16.msra.mxu0 0
    %138 = vmatpush.bf16.msra.mxu0 0
    %139 = vmatpush.bf16.msra.mxu0 %v129
    %140 = vmatpush.bf16.msra.mxu0 %v49
    %141 = vmatpush.bf16.msra.mxu0 %v47
    %142 = vmatmul.bf16.gmra.mxu0 %v123
    %v143 = vpop.f32.mrf.mxu0
    %v144 = vadd.f32 0.0, %v143
    %v145 = vpop.f32.mrf.mxu0
    %146 = vdwg.mxu0
    %147 = vmatpush.bf16.msra.mxu0 0
    %148 = vmatpush.bf16.msra.mxu0 0
    %149 = vmatpush.bf16.msra.mxu0 0
    %150 = vmatpush.bf16.msra.mxu0 0
    %151 = vmatpush.bf16.msra.mxu0 0
    %152 = vmatpush.bf16.msra.mxu0 %v132
    %153 = vmatpush.bf16.msra.mxu0 %v50
    %154 = vmatpush.bf16.msra.mxu0 %v48
    %155 = vmatmul.bf16.gmra.mxu0 %v123
    %v156 = vpop.f32.mrf.mxu0
    %v157 = vadd.f32 0.0, %v156
    %v158 = vpop.f32.mrf.mxu0
    %159 = vdwg.mxu0
    %v160 = vmax.f32 %v144, 0.0
    %v161 = vpack.c.bf16 %v160, %v160
    %164 = vrot.lane.b32.xlu0 %v63, 64
    %v165 = vpop.permute.xlu0 %164
    %166 = vrot.lane.b32.xlu0 %v64, 64
    %v167 = vpop.permute.xlu0 %166
    %170 = vrot.lane.b32.xlu0 %v105, 76
    %v171 = vpop.permute.xlu0 %170
    %vm173 = vcmask 261120
    %v175 = vsel %vm173, %v161, 0
    %177 = vmatpush.bf16.msra.mxu0 0
    %178 = vmatpush.bf16.msra.mxu0 0
    %179 = vmatpush.bf16.msra.mxu0 0
    %180 = vmatpush.bf16.msra.mxu0 0
    %181 = vmatpush.bf16.msra.mxu0 0
    %182 = vmatpush.bf16.msra.mxu0 0
    %183 = vmatpush.bf16.msra.mxu0 %v167
    %184 = vmatpush.bf16.msra.mxu0 %v165
    %185 = vmatmul.bf16.gmra.mxu0 %v175
    %v186 = vpop.f32.mrf.mxu0
    %v187 = vadd.f32 %v171, %v186
    %v188 = vpop.f32.mrf.mxu0
    %189 = vdwg.mxu0
    %vm190 = vcmask 29696
    %v191 = vsel %vm190, %v187, -inf
    %192 = vmax.xlane.f32.xlu0 %v191
    %v193 = vpop.xlane.xlu0 %192
    %v194 = vsub.f32 %v187, %v193
    %v195 = vmul.f32 %v194, 1.442695
    %v196 = vpow.pop %v195
    %v197 = vsel %vm190, %v196, 0.0
    %198 = vadd.xlane.f32.xlu0 %v197
    %v199 = vpop.xlane.xlu0 %198
    %v200 = vrcp.pop %v199
    %v201 = vmul.f32 %v196, %v200
    %v202 = vpack.c.bf16 %v201, %v201
    %204 = vrot.lane.b32.xlu0 %v75, 120
    %v205 = vpop.permute.xlu0 %204
    %vm206 = vcmask 31744
    %v208 = vsel %vm206, %v202, 0
    %vm210 = vcmask 1041408
    %v212 = vsel %vm210, %v205, 0
    %214 = vmatpush.bf16.msra.mxu0 0
    %215 = vmatpush.bf16.msra.mxu0 0
    %216 = vmatpush.bf16.msra.mxu0 0
    %217 = vmatpush.bf16.msra.mxu0 0
    %218 = vmatpush.bf16.msra.mxu0 0
    %219 = vmatpush.bf16.msra.mxu0 0
    %220 = vmatpush.bf16.msra.mxu0 0
    %221 = vmatpush.bf16.msra.mxu0 %v212
    %222 = vmatmul.bf16.gmra.mxu0 %v208
    %v223 = vpop.f32.mrf.mxu0
    %v224 = vadd.f32 0.0, %v223
    %v225 = vpop.f32.mrf.mxu0
    %226 = vdwg.mxu0
    %v227 = vmul.f32 %v224, %v111
    %vm228 = vcmask 62464
    %v229 = vsel %vm228, %v227, 0.0
    %v230 = vrot.slane %v229, 4
    %v231 = vadd.f32 %v229, %v230
    %v232 = vrot.slane %v231, 2
    %v233 = vadd.f32 %v231, %v232
    %v234 = vrot.slane %v233, 1
    %v235 = vadd.f32 %v233, %v234
    %v236 = vmul.f32 %v235, 0.33333334
    %v237 = vmul.f32 %v111, %v236
    %v238 = vmul.f32 %v224, %v115
    %v239 = vsel %vm228, %v238, 0.0
    %v240 = vrot.slane %v239, 4
    %v241 = vadd.f32 %v239, %v240
    %v242 = vrot.slane %v241, 2
    %v243 = vadd.f32 %v241, %v242
    %v244 = vrot.slane %v243, 1
    %v245 = vadd.f32 %v243, %v244
    %v246 = vmul.f32 %v245, 0.33333334
    %v247 = vmul.f32 %v115, %v246
    %v248 = vadd.f32 %v237, %v247
    %249 = vrot.lane.b32.xlu0 %v105, 72
    %v250 = vpop.permute.xlu0 %249
    %v252 = vadd.f32 %v248, %v250
    %v253 = vmax.f32 %v252, 0.0
    %v254 = vpack.c.bf16 %v253, %v253
    %256 = vrot.lane.b32.xlu0 %v73, 112
    %v257 = vpop.permute.xlu0 %256
    %vm258 = vcmask 64512
    %v260 = vsel %vm258, %v254, 0
    %vm262 = vcmask 1043456
    %v264 = vsel %vm262, %v257, 0
    %266 = vmatpush.bf16.msra.mxu0 0
    %267 = vmatpush.bf16.msra.mxu0 0
    %268 = vmatpush.bf16.msra.mxu0 0
    %269 = vmatpush.bf16.msra.mxu0 0
    %270 = vmatpush.bf16.msra.mxu0 0
    %271 = vmatpush.bf16.msra.mxu0 0
    %272 = vmatpush.bf16.msra.mxu0 0
    %273 = vmatpush.bf16.msra.mxu0 %v264
    %274 = vmatmul.bf16.gmra.mxu0 %v260
    %v275 = vpop.f32.mrf.mxu0
    %v276 = vadd.f32 0.0, %v275
    %v277 = vpop.f32.mrf.mxu0
    %278 = vdwg.mxu0
    %v279 = vmul.f32 %v276, %v111
    %v280 = vsel %vm190, %v279, 0.0
    %v281 = vrot.slane %v280, 4
    %v282 = vadd.f32 %v280, %v281
    %v283 = vrot.slane %v282, 2
    %v284 = vadd.f32 %v282, %v283
    %v285 = vrot.slane %v284, 1
    %v286 = vadd.f32 %v284, %v285
    %v287 = vmul.f32 %v286, 0.33333334
    %v288 = vmul.f32 %v111, %v287
    %v289 = vmul.f32 %v276, %v115
    %v290 = vsel %vm190, %v289, 0.0
    %v291 = vrot.slane %v290, 4
    %v292 = vadd.f32 %v290, %v291
    %v293 = vrot.slane %v292, 2
    %v294 = vadd.f32 %v292, %v293
    %v295 = vrot.slane %v294, 1
    %v296 = vadd.f32 %v294, %v295
    %v297 = vmul.f32 %v296, 0.33333334
    %v298 = vmul.f32 %v115, %v297
    %v299 = vadd.f32 %v288, %v298
    %300 = vrot.lane.b32.xlu0 %v105, 64
    %v301 = vpop.permute.xlu0 %300
    %v303 = vadd.f32 %v299, %v301
    %305 = vrot.lane.b32.xlu0 %v303, 4
    %v306 = vpop.permute.xlu0 %305
    %v308 = vsel %vm206, %v201, %v306
    %v309 = vpack.c.bf16 %v308, %v308
    %310 = vrot.lane.b32.xlu0 %v73, 108
    %v311 = vpop.permute.xlu0 %310
    %312 = vrot.lane.b32.xlu0 %v105, 60
    %v313 = vpop.permute.xlu0 %312
    %v316 = vsel %vm258, %v309, 0
    %v319 = vsel %vm262, %v311, 0
    %321 = vmatpush.bf16.msra.mxu0 0
    %322 = vmatpush.bf16.msra.mxu0 0
    %323 = vmatpush.bf16.msra.mxu0 0
    %324 = vmatpush.bf16.msra.mxu0 0
    %325 = vmatpush.bf16.msra.mxu0 0
    %326 = vmatpush.bf16.msra.mxu0 0
    %327 = vmatpush.bf16.msra.mxu0 0
    %328 = vmatpush.bf16.msra.mxu0 %v319
    %329 = vmatmul.bf16.gmra.mxu0 %v316
    %v330 = vpop.f32.mrf.mxu0
    %v331 = vadd.f32 %v313, %v330
    %v332 = vpop.f32.mrf.mxu0
    %333 = vdwg.mxu0
    %v334 = vsel %vm190, %v331, -inf
    %335 = vmax.xlane.f32.xlu0 %v334
    %v336 = vpop.xlane.xlu0 %335
    %v337 = vsub.f32 %v331, %v336
    %v338 = vmul.f32 %v337, 1.442695
    %v339 = vpow.pop %v338
    %v340 = vsel %vm190, %v339, 0.0
    %341 = vadd.xlane.f32.xlu0 %v340
    %v342 = vpop.xlane.xlu0 %341
    %v343 = vrcp.pop %v342
    %v344 = vmul.f32 %v339, %v343
    %346 = vrot.lane.b32.xlu0 %v344, 6
    %v347 = vpop.permute.xlu0 %346
    %v349 = vmul.f32 %v116, %v347
    %351 = vrot.lane.b32.xlu0 %v349, 122
    %v352 = vpop.permute.xlu0 %351
    %v354 = vsel %vm190, %v352, 0.0
    %355 = vadd.xlane.f32.xlu0 %v354
    %v356 = vpop.xlane.xlu0 %355
    %v357 = vrot.slane %v356, 4
    %v358 = vadd.f32 %v356, %v357
    %v359 = vrot.slane %v358, 2
    %v360 = vadd.f32 %v358, %v359
    %v361 = vrot.slane %v360, 1
    %v362 = vadd.f32 %v360, %v361
    %s363 = vtos %v362
    %v364 = vstv %s363
    %v365 = vsub.f32 0.0, %v364
    %vm366 = vcmp.gt.f32.partialorder %v157, 0.0
    %v367 = vmul.f32 %v157, 0.01
    %v368 = vsel %vm366, %v157, %v367
    %v369 = vpack.c.bf16 %v368, %v368
    %v371 = vsel %vm173, %v369, 0
    %373 = vmatpush.bf16.msra.mxu0 0
    %374 = vmatpush.bf16.msra.mxu0 0
    %375 = vmatpush.bf16.msra.mxu0 0
    %376 = vmatpush.bf16.msra.mxu0 0
    %377 = vmatpush.bf16.msra.mxu0 0
    %378 = vmatpush.bf16.msra.mxu0 0
    %379 = vmatpush.bf16.msra.mxu0 %v58
    %380 = vmatpush.bf16.msra.mxu0 %v57
    %381 = vmatmul.bf16.gmra.mxu0 %v371
    %v382 = vpop.f32.mrf.mxu0
    %v383 = vadd.f32 %v90, %v382
    %v384 = vpop.f32.mrf.mxu0
    %385 = vdwg.mxu0
    %vm386 = vcmp.gt.f32.partialorder %v383, 0.0
    %v387 = vmul.f32 %v383, 0.01
    %v388 = vsel %vm386, %v383, %v387
    %v389 = vpack.c.bf16 %v388, %v388
    %392 = vrot.lane.b32.xlu0 %v57, 96
    %v393 = vpop.permute.xlu0 %392
    %394 = vrot.lane.b32.xlu0 %v58, 96
    %v395 = vpop.permute.xlu0 %394
    %398 = vrot.lane.b32.xlu0 %v90, 96
    %v399 = vpop.permute.xlu0 %398
    %v402 = vsel %vm173, %v389, 0
    %404 = vmatpush.bf16.msra.mxu0 0
    %405 = vmatpush.bf16.msra.mxu0 0
    %406 = vmatpush.bf16.msra.mxu0 0
    %407 = vmatpush.bf16.msra.mxu0 0
    %408 = vmatpush.bf16.msra.mxu0 0
    %409 = vmatpush.bf16.msra.mxu0 0
    %410 = vmatpush.bf16.msra.mxu0 %v395
    %411 = vmatpush.bf16.msra.mxu0 %v393
    %412 = vmatmul.bf16.gmra.mxu0 %v402
    %v413 = vpop.f32.mrf.mxu0
    %v414 = vadd.f32 %v399, %v413
    %v415 = vpop.f32.mrf.mxu0
    %416 = vdwg.mxu0
    %418 = vrot.lane.b32.xlu0 %v414, 32
    %v419 = vpop.permute.xlu0 %418
    %v421 = vadd.f32 %v144, %v419
    %vm422 = vcmp.gt.f32.partialorder %v421, 0.0
    %v423 = vmul.f32 %v421, 0.01
    %v424 = vsel %vm422, %v421, %v423
    %vm425 = vcmp.gt.f32.partialorder %v144, 0.0
    %v426 = vmul.f32 %v144, 0.01
    %v427 = vsel %vm425, %v144, %v426
    %429 = vrot.lane.b32.xlu0 %v424, 96
    %v430 = vpop.permute.xlu0 %429
    %433 = vrot.lane.b32.xlu0 %v427, 96
    %v434 = vpop.permute.xlu0 %433
    %v436 = vsel %vm173, %v430, %v434
    %v437 = vpack.c.bf16 %v436, %v436
    %438 = vrot.lane.b32.xlu0 %v98, 80
    %v439 = vpop.permute.xlu0 %438
    %vm441 = vcmask 523264
    %v443 = vsel %vm441, %v437, 0
    %445 = vmatpush.bf16.msra.mxu0 0
    %446 = vmatpush.bf16.msra.mxu0 0
    %447 = vmatpush.bf16.msra.mxu0 0
    %448 = vmatpush.bf16.msra.mxu0 0
    %449 = vmatpush.bf16.msra.mxu0 %v87
    %450 = vmatpush.bf16.msra.mxu0 %v86
    %451 = vmatpush.bf16.msra.mxu0 %v85
    %452 = vmatpush.bf16.msra.mxu0 %v84
    %453 = vmatmul.bf16.gmra.mxu0 %v443
    %v454 = vpop.f32.mrf.mxu0
    %v455 = vadd.f32 %v439, %v454
    %v456 = vpop.f32.mrf.mxu0
    %457 = vdwg.mxu0
    %vm458 = vcmp.gt.f32.partialorder %v455, 0.0
    %v459 = vmul.f32 %v455, 0.01
    %v460 = vsel %vm458, %v455, %v459
    %v461 = vpack.c.bf16 %v460, %v460
    %466 = vrot.lane.b32.xlu0 %v84, 64
    %v467 = vpop.permute.xlu0 %466
    %468 = vrot.lane.b32.xlu0 %v85, 64
    %v469 = vpop.permute.xlu0 %468
    %470 = vrot.lane.b32.xlu0 %v86, 64
    %v471 = vpop.permute.xlu0 %470
    %472 = vrot.lane.b32.xlu0 %v87, 64
    %v473 = vpop.permute.xlu0 %472
    %478 = vrot.lane.b32.xlu0 %v101, 16
    %v479 = vpop.permute.xlu0 %478
    %480 = vrot.lane.b32.xlu0 %v102, 16
    %v481 = vpop.permute.xlu0 %480
    %vm482 = vcmask 130048
    %v483 = vsel %vm482, %v479, %v481
    %v486 = vsel %vm441, %v461, 0
    %488 = vmatpush.bf16.msra.mxu0 0
    %489 = vmatpush.bf16.msra.mxu0 0
    %490 = vmatpush.bf16.msra.mxu0 0
    %491 = vmatpush.bf16.msra.mxu0 0
    %492 = vmatpush.bf16.msra.mxu0 %v473
    %493 = vmatpush.bf16.msra.mxu0 %v471
    %494 = vmatpush.bf16.msra.mxu0 %v469
    %495 = vmatpush.bf16.msra.mxu0 %v467
    %496 = vmatmul.bf16.gmra.mxu0 %v486
    %v497 = vpop.f32.mrf.mxu0
    %v498 = vadd.f32 %v483, %v497
    %v499 = vpop.f32.mrf.mxu0
    %500 = vdwg.mxu0
    %v501 = vmul.f32 %v498, 0.5
    %v502 = vmul.f32 %v501, 1.442695
    %v503 = vpow.pop %v502
    %505 = vrot.lane.b32.xlu0 %v503, 120
    %v506 = vpop.permute.xlu0 %505
    %v508 = vmul.f32 %v117, %v506
    %v509 = vadd.f32 %v508, %v498
    %v510 = vpack.c.bf16 %v509, %v509
    %512 = vrot.lane.b32.xlu0 %v71, 48
    %v513 = vpop.permute.xlu0 %512
    %514 = vrot.lane.b32.xlu0 %v94, 16
    %v515 = vpop.permute.xlu0 %514
    %516 = vrot.lane.b32.xlu0 %v95, 16
    %v517 = vpop.permute.xlu0 %516
    %v518 = vsel %vm482, %v515, %v517
    %v521 = vsel %vm258, %v510, 0
    %v524 = vsel %vm262, %v513, 0
    %526 = vmatpush.bf16.msra.mxu0 0
    %527 = vmatpush.bf16.msra.mxu0 0
    %528 = vmatpush.bf16.msra.mxu0 0
    %529 = vmatpush.bf16.msra.mxu0 0
    %530 = vmatpush.bf16.msra.mxu0 0
    %531 = vmatpush.bf16.msra.mxu0 0
    %532 = vmatpush.bf16.msra.mxu0 0
    %533 = vmatpush.bf16.msra.mxu0 %v524
    %534 = vmatmul.bf16.gmra.mxu0 %v521
    %v535 = vpop.f32.mrf.mxu0
    %v536 = vadd.f32 %v518, %v535
    %v537 = vpop.f32.mrf.mxu0
    %538 = vdwg.mxu0
    %vm539 = vcmp.gt.f32.partialorder %v536, 0.0
    %v540 = vmul.f32 %v536, 0.01
    %v541 = vsel %vm539, %v536, %v540
    %v542 = vpack.c.bf16 %v541, %v541
    %543 = vrot.lane.b32.xlu0 %v57, 16
    %v544 = vpop.permute.xlu0 %543
    %545 = vrot.lane.b32.xlu0 %v63, 16
    %v546 = vpop.permute.xlu0 %545
    %547 = vrot.lane.b32.xlu0 %v58, 16
    %v548 = vpop.permute.xlu0 %547
    %549 = vrot.lane.b32.xlu0 %v64, 16
    %v550 = vpop.permute.xlu0 %549
    %vm551 = vcmask 130048
    %v552 = vsel %vm551, %v544, %v546
    %v553 = vsel %vm551, %v548, %v550
    %556 = vrot.lane.b32.xlu0 %v98, 112
    %v557 = vpop.permute.xlu0 %556
    %v560 = vsel %vm173, %v542, 0
    %562 = vmatpush.bf16.msra.mxu0 0
    %563 = vmatpush.bf16.msra.mxu0 0
    %564 = vmatpush.bf16.msra.mxu0 0
    %565 = vmatpush.bf16.msra.mxu0 0
    %566 = vmatpush.bf16.msra.mxu0 0
    %567 = vmatpush.bf16.msra.mxu0 0
    %568 = vmatpush.bf16.msra.mxu0 %v553
    %569 = vmatpush.bf16.msra.mxu0 %v552
    %570 = vmatmul.bf16.gmra.mxu0 %v560
    %v571 = vpop.f32.mrf.mxu0
    %v572 = vadd.f32 %v557, %v571
    %v573 = vpop.f32.mrf.mxu0
    %574 = vdwg.mxu0
    %vm575 = vcmp.gt.f32.partialorder %v572, 0.0
    %v576 = vmul.f32 %v572, 0.01
    %v577 = vsel %vm575, %v572, %v576
    %v578 = vpack.c.bf16 %v577, %v577
    %v580 = vsel %vm173, %v578, 0
    %582 = vmatpush.bf16.msra.mxu0 0
    %583 = vmatpush.bf16.msra.mxu0 0
    %584 = vmatpush.bf16.msra.mxu0 0
    %585 = vmatpush.bf16.msra.mxu0 0
    %586 = vmatpush.bf16.msra.mxu0 0
    %587 = vmatpush.bf16.msra.mxu0 0
    %588 = vmatpush.bf16.msra.mxu0 %v70
    %589 = vmatpush.bf16.msra.mxu0 %v69
    %590 = vmatmul.bf16.gmra.mxu0 %v580
    %v591 = vpop.f32.mrf.mxu0
    %v592 = vadd.f32 0.0, %v591
    %v593 = vpop.f32.mrf.mxu0
    %594 = vdwg.mxu0
    %596 = vrot.lane.b32.xlu0 %v592, 96
    %v597 = vpop.permute.xlu0 %596
    %v599 = vadd.f32 %v144, %v597
    %vm600 = vcmp.gt.f32.partialorder %v599, 0.0
    %v601 = vmul.f32 %v599, 0.01
    %v602 = vsel %vm600, %v599, %v601
    %v603 = vpack.c.bf16 %v602, %v602
    %605 = vrot.lane.b32.xlu0 %v603, 32
    %v606 = vpop.permute.xlu0 %605
    %607 = vrot.lane.b32.xlu0 %v63, 112
    %v608 = vpop.permute.xlu0 %607
    %609 = vrot.lane.b32.xlu0 %v64, 112
    %v610 = vpop.permute.xlu0 %609
    %613 = vrot.lane.b32.xlu0 %v105, 112
    %v614 = vpop.permute.xlu0 %613
    %v617 = vsel %vm173, %v606, 0
    %619 = vmatpush.bf16.msra.mxu0 0
    %620 = vmatpush.bf16.msra.mxu0 0
    %621 = vmatpush.bf16.msra.mxu0 0
    %622 = vmatpush.bf16.msra.mxu0 0
    %623 = vmatpush.bf16.msra.mxu0 0
    %624 = vmatpush.bf16.msra.mxu0 0
    %625 = vmatpush.bf16.msra.mxu0 %v610
    %626 = vmatpush.bf16.msra.mxu0 %v608
    %627 = vmatmul.bf16.gmra.mxu0 %v617
    %v628 = vpop.f32.mrf.mxu0
    %v629 = vadd.f32 %v614, %v628
    %v630 = vpop.f32.mrf.mxu0
    %631 = vdwg.mxu0
    %vm632 = vcmp.gt.f32.partialorder %v629, 0.0
    %v633 = vmul.f32 %v629, 0.01
    %v634 = vsel %vm632, %v629, %v633
    %v635 = vpack.c.bf16 %v634, %v634
    %636 = vrot.lane.b32.xlu0 %v63, 60
    %v637 = vpop.permute.xlu0 %636
    %638 = vrot.lane.b32.xlu0 %v64, 60
    %v639 = vpop.permute.xlu0 %638
    %642 = vrot.lane.b32.xlu0 %v105, 80
    %v643 = vpop.permute.xlu0 %642
    %v646 = vsel %vm173, %v635, 0
    %648 = vmatpush.bf16.msra.mxu0 0
    %649 = vmatpush.bf16.msra.mxu0 0
    %650 = vmatpush.bf16.msra.mxu0 0
    %651 = vmatpush.bf16.msra.mxu0 0
    %652 = vmatpush.bf16.msra.mxu0 0
    %653 = vmatpush.bf16.msra.mxu0 0
    %654 = vmatpush.bf16.msra.mxu0 %v639
    %655 = vmatpush.bf16.msra.mxu0 %v637
    %656 = vmatmul.bf16.gmra.mxu0 %v646
    %v657 = vpop.f32.mrf.mxu0
    %v658 = vadd.f32 %v643, %v657
    %v659 = vpop.f32.mrf.mxu0
    %660 = vdwg.mxu0
    %v661 = vadd.f32 %v414, %v592
    %v662 = vadd.f32 %v661, %v157
    %v663 = vxor.u32 %v662, 2147483648
    %v664 = vmul.f32 %v663, 1.442695
    %v665 = vpow.pop %v664
    %v666 = vadd.f32 %v665, 1.0
    %v667 = vrcp.pop %v666
    %v668 = vmul.f32 %v666, %v667
    %v669 = vsub.f32 1.0, %v668
    %v670 = vmul.f32 %v667, %v669
    %v671 = vadd.f32 %v667, %v670
    %vm672 = vweird.f32 %v666
    %vm673 = vweird.f32 %v667
    %vm674 = vmor %vm672, %vm673
    %v675 = vsel %vm674, %v667, %v671
    %v676 = vand.u32 2147483647, %v666
    %vm677 = vcmp.eq.f32.partialorder %v676, 8.507059e+37
    %v678 = vand.u32 %v666, 2147483648
    %v679 = vor.u32 1.1754944e-38, %v678
    %v680 = vsel %vm677, %v679, %v675
    %v681 = vmul.f32 1.0, %v680
    %683 = vrot.lane.b32.xlu0 %v157, 96
    %v684 = vpop.permute.xlu0 %683
    %v686 = vmul.f32 %v681, %v684
    %688 = vrot.lane.b32.xlu0 %v686, 32
    %v689 = vpop.permute.xlu0 %688
    %v691 = vadd.f32 %v661, %v689
    %v692 = vtanh.pop %v691
    %v693 = vsub.f32 1.0, %v681
    %695 = vrot.lane.b32.xlu0 %v692, 112
    %v696 = vpop.permute.xlu0 %695
    %v698 = vmul.f32 %v693, %v696
    %v699 = vmul.f32 %v681, 0.0
    %v700 = vadd.f32 %v698, %v699
    %702 = vrot.lane.b32.xlu0 %v498, 16
    %v703 = vpop.permute.xlu0 %702
    %v705 = vsub.f32 %v498, %v703
    %707 = vrot.lane.b32.xlu0 %v705, 104
    %v708 = vpop.permute.xlu0 %707
    %v710 = vsel %vm228, %v708, 0.0
    %711 = vadd.xlane.f32.xlu0 %v710
    %v712 = vpop.xlane.xlu0 %711
    %713 = vrot.lane.b32.xlu0 %v498, 112
    %v714 = vpop.permute.xlu0 %713
    %v716 = vsub.f32 %v498, %v714
    %v717 = vmul.f32 %v716, 1.442695
    %v718 = vpow.pop %v717
    %720 = vrot.lane.b32.xlu0 %v718, 120
    %v721 = vpop.permute.xlu0 %720
    %v723 = vsel %vm228, %v721, 0.0
    %724 = vadd.xlane.f32.xlu0 %v723
    %v725 = vpop.xlane.xlu0 %724
    %v726 = vmul.f32 %v716, %v716
    %v727 = vmul.f32 %v498, 1.442695
    %v728 = vpow.pop %v727
    %730 = vrot.lane.b32.xlu0 %v728, 104
    %v731 = vpop.permute.xlu0 %730
    %v733 = vrcp.pop %v731
    %v734 = vmul.f32 %v731, %v733
    %v735 = vsub.f32 1.0, %v734
    %v736 = vmul.f32 %v733, %v735
    %v737 = vadd.f32 %v733, %v736
    %vm738 = vweird.f32 %v731
    %vm739 = vweird.f32 %v733
    %vm740 = vmor %vm738, %vm739
    %v741 = vsel %vm740, %v733, %v737
    %v742 = vand.u32 2147483647, %v731
    %vm743 = vcmp.eq.f32.partialorder %v742, 8.507059e+37
    %v744 = vand.u32 %v731, 2147483648
    %v745 = vor.u32 1.1754944e-38, %v744
    %v746 = vsel %vm743, %v745, %v741
    %v747 = vmul.f32 %v726, %v746
    %v748 = vsel %vm228, %v747, 0.0
    %749 = vadd.xlane.f32.xlu0 %v748
    %v750 = vpop.xlane.xlu0 %749
    %v751 = vsub.f32 %v712, 8.0
    %v752 = vadd.f32 %v751, %v725
    %v753 = vadd.f32 %v752, %v750
    %vm754 = vcmask 5120
    %v755 = vsel %vm754, %v753, 0.0
    %756 = vadd.xlane.f32.xlu0 %v755
    %v757 = vpop.xlane.xlu0 %756
    %v758 = vrot.slane %v757, 4
    %v759 = vadd.f32 %v757, %v758
    %v760 = vrot.slane %v759, 2
    %v761 = vadd.f32 %v759, %v760
    %v762 = vrot.slane %v761, 1
    %v763 = vadd.f32 %v761, %v762
    %s764 = vtos %v763
    %v765 = vstv %s764
    %v766 = vmul.f32 %v765, 0.083333336
    %v767 = vadd.f32 %v766, 0.0
    %769 = vrot.lane.b32.xlu0 %v658, 14
    %v770 = vpop.permute.xlu0 %769
    %v772 = vsub.f32 %v116, %v770
    %v773 = vmul.f32 %v772, %v772
    %v774 = vmul.f32 %v658, 1.442695
    %v775 = vpow.pop %v774
    %777 = vrot.lane.b32.xlu0 %v775, 12
    %v778 = vpop.permute.xlu0 %777
    %v780 = vrcp.pop %v778
    %v781 = vmul.f32 %v778, %v780
    %v782 = vsub.f32 1.0, %v781
    %v783 = vmul.f32 %v780, %v782
    %v784 = vadd.f32 %v780, %v783
    %vm785 = vweird.f32 %v778
    %vm786 = vweird.f32 %v780
    %vm787 = vmor %vm785, %vm786
    %v788 = vsel %vm787, %v780, %v784
    %v789 = vand.u32 2147483647, %v778
    %vm790 = vcmp.eq.f32.partialorder %v789, 8.507059e+37
    %v791 = vand.u32 %v778, 2147483648
    %v792 = vor.u32 1.1754944e-38, %v791
    %v793 = vsel %vm790, %v792, %v788
    %v794 = vmul.f32 %v773, %v793
    %796 = vrot.lane.b32.xlu0 %v794, 114
    %v797 = vpop.permute.xlu0 %796
    %vm799 = vcmask 13312
    %v800 = vsel %vm799, %v797, 0.0
    %801 = vadd.xlane.f32.xlu0 %v800
    %v802 = vpop.xlane.xlu0 %801
    %803 = vrot.lane.b32.xlu0 %v658, 126
    %v804 = vpop.permute.xlu0 %803
    %v806 = vsel %vm799, %v804, 0.0
    %807 = vadd.xlane.f32.xlu0 %v806
    %v808 = vpop.xlane.xlu0 %807
    %v809 = vadd.f32 %v802, 3.675754
    %v810 = vadd.f32 %v809, %v808
    %v811 = vsel %vm754, %v810, 0.0
    %812 = vadd.xlane.f32.xlu0 %v811
    %v813 = vpop.xlane.xlu0 %812
    %v814 = vrot.slane %v813, 4
    %v815 = vadd.f32 %v813, %v814
    %v816 = vrot.slane %v815, 2
    %v817 = vadd.f32 %v815, %v816
    %v818 = vrot.slane %v817, 1
    %v819 = vadd.f32 %v817, %v818
    %s820 = vtos %v819
    %v821 = vstv %s820
    %v822 = vmul.f32 %v821, 0.083333336
    %v823 = vadd.f32 %v822, 0.0
    %v824 = vpack.c.bf16 %v700, %v700
    %826 = vrot.lane.b32.xlu0 %v824, 80
    %v827 = vpop.permute.xlu0 %826
    %829 = vrot.lane.b32.xlu0 %v69, 16
    %v830 = vpop.permute.xlu0 %829
    %v833 = vsel %vm482, %v827, 0
    %835 = vmatpush.bf16.msra.mxu0 0
    %836 = vmatpush.bf16.msra.mxu0 0
    %837 = vmatpush.bf16.msra.mxu0 0
    %838 = vmatpush.bf16.msra.mxu0 0
    %839 = vmatpush.bf16.msra.mxu0 0
    %840 = vmatpush.bf16.msra.mxu0 0
    %841 = vmatpush.bf16.msra.mxu0 0
    %842 = vmatpush.bf16.msra.mxu0 %v830
    %843 = vmatmul.bf16.gmra.mxu0 %v833
    %v844 = vpop.f32.mrf.mxu0
    %v845 = vadd.f32 0.0, %v844
    %v846 = vpop.f32.mrf.mxu0
    %847 = vdwg.mxu0
    %v848 = vmul.f32 %v845, %v111
    %v849 = vsel %vm228, %v848, 0.0
    %v850 = vrot.slane %v849, 4
    %v851 = vadd.f32 %v849, %v850
    %v852 = vrot.slane %v851, 2
    %v853 = vadd.f32 %v851, %v852
    %v854 = vrot.slane %v853, 1
    %v855 = vadd.f32 %v853, %v854
    %v856 = vmul.f32 %v855, 0.33333334
    %v857 = vmul.f32 %v111, %v856
    %v858 = vmul.f32 %v845, %v115
    %v859 = vsel %vm228, %v858, 0.0
    %v860 = vrot.slane %v859, 4
    %v861 = vadd.f32 %v859, %v860
    %v862 = vrot.slane %v861, 2
    %v863 = vadd.f32 %v861, %v862
    %v864 = vrot.slane %v863, 1
    %v865 = vadd.f32 %v863, %v864
    %v866 = vmul.f32 %v865, 0.33333334
    %v867 = vmul.f32 %v115, %v866
    %v868 = vadd.f32 %v857, %v867
    %869 = vrot.lane.b32.xlu0 %v105, 56
    %v870 = vpop.permute.xlu0 %869
    %v872 = vadd.f32 %v868, %v870
    %v873 = vmax.f32 %v872, 0.0
    %v874 = vpack.c.bf16 %v873, %v873
    %875 = vrot.lane.b32.xlu0 %v71, 8
    %v876 = vpop.permute.xlu0 %875
    %877 = vrot.lane.b32.xlu0 %v73, 8
    %v878 = vpop.permute.xlu0 %877
    %vm879 = vcmask 64512
    %v880 = vsel %vm879, %v876, %v878
    %v882 = vsel %vm258, %v874, 0
    %v885 = vsel %vm262, %v880, 0
    %887 = vmatpush.bf16.msra.mxu0 0
    %888 = vmatpush.bf16.msra.mxu0 0
    %889 = vmatpush.bf16.msra.mxu0 0
    %890 = vmatpush.bf16.msra.mxu0 0
    %891 = vmatpush.bf16.msra.mxu0 0
    %892 = vmatpush.bf16.msra.mxu0 0
    %893 = vmatpush.bf16.msra.mxu0 0
    %894 = vmatpush.bf16.msra.mxu0 %v885
    %895 = vmatmul.bf16.gmra.mxu0 %v882
    %v896 = vpop.f32.mrf.mxu0
    %v897 = vadd.f32 0.0, %v896
    %v898 = vpop.f32.mrf.mxu0
    %899 = vdwg.mxu0
    %v900 = vmul.f32 %v897, %v111
    %vm901 = vcmask 128000
    %v902 = vsel %vm901, %v900, 0.0
    %v903 = vrot.slane %v902, 4
    %v904 = vadd.f32 %v902, %v903
    %v905 = vrot.slane %v904, 2
    %v906 = vadd.f32 %v904, %v905
    %v907 = vrot.slane %v906, 1
    %v908 = vadd.f32 %v906, %v907
    %v909 = vmul.f32 %v908, 0.33333334
    %v910 = vmul.f32 %v111, %v909
    %v911 = vmul.f32 %v897, %v115
    %v912 = vsel %vm901, %v911, 0.0
    %v913 = vrot.slane %v912, 4
    %v914 = vadd.f32 %v912, %v913
    %v915 = vrot.slane %v914, 2
    %v916 = vadd.f32 %v914, %v915
    %v917 = vrot.slane %v916, 1
    %v918 = vadd.f32 %v916, %v917
    %v919 = vmul.f32 %v918, 0.33333334
    %v920 = vmul.f32 %v115, %v919
    %v921 = vadd.f32 %v910, %v920
    %922 = vrot.lane.b32.xlu0 %v105, 48
    %v923 = vpop.permute.xlu0 %922
    %v925 = vadd.f32 %v921, %v923
    %927 = vrot.lane.b32.xlu0 %v700, 96
    %v928 = vpop.permute.xlu0 %927
    %v930 = vsel %vm482, %v925, %v928
    %v931 = vpack.c.bf16 %v930, %v930
    %932 = vrot.lane.b32.xlu0 %v63, 80
    %v933 = vpop.permute.xlu0 %932
    %934 = vrot.lane.b32.xlu0 %v64, 80
    %v935 = vpop.permute.xlu0 %934
    %938 = vrot.lane.b32.xlu0 %v105, 32
    %v939 = vpop.permute.xlu0 %938
    %v942 = vsel %vm173, %v931, 0
    %944 = vmatpush.bf16.msra.mxu0 0
    %945 = vmatpush.bf16.msra.mxu0 0
    %946 = vmatpush.bf16.msra.mxu0 0
    %947 = vmatpush.bf16.msra.mxu0 0
    %948 = vmatpush.bf16.msra.mxu0 0
    %949 = vmatpush.bf16.msra.mxu0 0
    %950 = vmatpush.bf16.msra.mxu0 %v935
    %951 = vmatpush.bf16.msra.mxu0 %v933
    %952 = vmatmul.bf16.gmra.mxu0 %v942
    %v953 = vpop.f32.mrf.mxu0
    %v954 = vadd.f32 %v939, %v953
    %v955 = vpop.f32.mrf.mxu0
    %956 = vdwg.mxu0
    %s957 = scalar_lea.vmem %s0, 8
    %v958 = vld [vmem:[%s957] sm:$0x3f]
    %s959 = scalar_lea.vmem %s1, 8
    %v960 = vld [vmem:[%s959] sm:$0x3f]
    %962 = vrot.lane.b32.xlu0 %v954, 17
    %v963 = vpop.permute.xlu0 %962
    %v965 = vsel %vm118, %v958, %v963
    %v966 = vpack.c.bf16 %v965, %v965
    %v968 = vsel %vm121, %v966, 0
    %970 = vmatpush.bf16.msra.mxu0 0
    %971 = vmatpush.bf16.msra.mxu0 0
    %972 = vmatpush.bf16.msra.mxu0 0
    %973 = vmatpush.bf16.msra.mxu0 0
    %974 = vmatpush.bf16.msra.mxu0 0
    %975 = vmatpush.bf16.msra.mxu0 %v129
    %976 = vmatpush.bf16.msra.mxu0 %v49
    %977 = vmatpush.bf16.msra.mxu0 %v47
    %978 = vmatmul.bf16.gmra.mxu0 %v968
    %v979 = vpop.f32.mrf.mxu0
    %v980 = vadd.f32 0.0, %v979
    %v981 = vpop.f32.mrf.mxu0
    %982 = vdwg.mxu0
    %983 = vmatpush.bf16.msra.mxu0 0
    %984 = vmatpush.bf16.msra.mxu0 0
    %985 = vmatpush.bf16.msra.mxu0 0
    %986 = vmatpush.bf16.msra.mxu0 0
    %987 = vmatpush.bf16.msra.mxu0 0
    %988 = vmatpush.bf16.msra.mxu0 %v132
    %989 = vmatpush.bf16.msra.mxu0 %v50
    %990 = vmatpush.bf16.msra.mxu0 %v48
    %991 = vmatmul.bf16.gmra.mxu0 %v968
    %v992 = vpop.f32.mrf.mxu0
    %v993 = vadd.f32 0.0, %v992
    %v994 = vpop.f32.mrf.mxu0
    %995 = vdwg.mxu0
    %v996 = vmax.f32 %v980, 0.0
    %v997 = vpack.c.bf16 %v996, %v996
    %v999 = vsel %vm173, %v997, 0
    %1001 = vmatpush.bf16.msra.mxu0 0
    %1002 = vmatpush.bf16.msra.mxu0 0
    %1003 = vmatpush.bf16.msra.mxu0 0
    %1004 = vmatpush.bf16.msra.mxu0 0
    %1005 = vmatpush.bf16.msra.mxu0 0
    %1006 = vmatpush.bf16.msra.mxu0 0
    %1007 = vmatpush.bf16.msra.mxu0 %v167
    %1008 = vmatpush.bf16.msra.mxu0 %v165
    %1009 = vmatmul.bf16.gmra.mxu0 %v999
    %v1010 = vpop.f32.mrf.mxu0
    %v1011 = vadd.f32 %v171, %v1010
    %v1012 = vpop.f32.mrf.mxu0
    %1013 = vdwg.mxu0
    %v1014 = vsel %vm190, %v1011, -inf
    %1015 = vmax.xlane.f32.xlu0 %v1014
    %v1016 = vpop.xlane.xlu0 %1015
    %v1017 = vsub.f32 %v1011, %v1016
    %v1018 = vmul.f32 %v1017, 1.442695
    %v1019 = vpow.pop %v1018
    %v1020 = vsel %vm190, %v1019, 0.0
    %1021 = vadd.xlane.f32.xlu0 %v1020
    %v1022 = vpop.xlane.xlu0 %1021
    %v1023 = vrcp.pop %v1022
    %v1024 = vmul.f32 %v1019, %v1023
    %v1025 = vpack.c.bf16 %v1024, %v1024
    %v1027 = vsel %vm206, %v1025, 0
    %1029 = vmatpush.bf16.msra.mxu0 0
    %1030 = vmatpush.bf16.msra.mxu0 0
    %1031 = vmatpush.bf16.msra.mxu0 0
    %1032 = vmatpush.bf16.msra.mxu0 0
    %1033 = vmatpush.bf16.msra.mxu0 0
    %1034 = vmatpush.bf16.msra.mxu0 0
    %1035 = vmatpush.bf16.msra.mxu0 0
    %1036 = vmatpush.bf16.msra.mxu0 %v212
    %1037 = vmatmul.bf16.gmra.mxu0 %v1027
    %v1038 = vpop.f32.mrf.mxu0
    %v1039 = vadd.f32 0.0, %v1038
    %v1040 = vpop.f32.mrf.mxu0
    %1041 = vdwg.mxu0
    %v1042 = vmul.f32 %v1039, %v111
    %v1043 = vsel %vm228, %v1042, 0.0
    %v1044 = vrot.slane %v1043, 4
    %v1045 = vadd.f32 %v1043, %v1044
    %v1046 = vrot.slane %v1045, 2
    %v1047 = vadd.f32 %v1045, %v1046
    %v1048 = vrot.slane %v1047, 1
    %v1049 = vadd.f32 %v1047, %v1048
    %v1050 = vmul.f32 %v1049, 0.33333334
    %v1051 = vmul.f32 %v111, %v1050
    %v1052 = vmul.f32 %v1039, %v115
    %v1053 = vsel %vm228, %v1052, 0.0
    %v1054 = vrot.slane %v1053, 4
    %v1055 = vadd.f32 %v1053, %v1054
    %v1056 = vrot.slane %v1055, 2
    %v1057 = vadd.f32 %v1055, %v1056
    %v1058 = vrot.slane %v1057, 1
    %v1059 = vadd.f32 %v1057, %v1058
    %v1060 = vmul.f32 %v1059, 0.33333334
    %v1061 = vmul.f32 %v115, %v1060
    %v1062 = vadd.f32 %v1051, %v1061
    %v1063 = vadd.f32 %v1062, %v250
    %v1064 = vmax.f32 %v1063, 0.0
    %v1065 = vpack.c.bf16 %v1064, %v1064
    %v1067 = vsel %vm258, %v1065, 0
    %1069 = vmatpush.bf16.msra.mxu0 0
    %1070 = vmatpush.bf16.msra.mxu0 0
    %1071 = vmatpush.bf16.msra.mxu0 0
    %1072 = vmatpush.bf16.msra.mxu0 0
    %1073 = vmatpush.bf16.msra.mxu0 0
    %1074 = vmatpush.bf16.msra.mxu0 0
    %1075 = vmatpush.bf16.msra.mxu0 0
    %1076 = vmatpush.bf16.msra.mxu0 %v264
    %1077 = vmatmul.bf16.gmra.mxu0 %v1067
    %v1078 = vpop.f32.mrf.mxu0
    %v1079 = vadd.f32 0.0, %v1078
    %v1080 = vpop.f32.mrf.mxu0
    %1081 = vdwg.mxu0
    %v1082 = vmul.f32 %v1079, %v111
    %v1083 = vsel %vm190, %v1082, 0.0
    %v1084 = vrot.slane %v1083, 4
    %v1085 = vadd.f32 %v1083, %v1084
    %v1086 = vrot.slane %v1085, 2
    %v1087 = vadd.f32 %v1085, %v1086
    %v1088 = vrot.slane %v1087, 1
    %v1089 = vadd.f32 %v1087, %v1088
    %v1090 = vmul.f32 %v1089, 0.33333334
    %v1091 = vmul.f32 %v111, %v1090
    %v1092 = vmul.f32 %v1079, %v115
    %v1093 = vsel %vm190, %v1092, 0.0
    %v1094 = vrot.slane %v1093, 4
    %v1095 = vadd.f32 %v1093, %v1094
    %v1096 = vrot.slane %v1095, 2
    %v1097 = vadd.f32 %v1095, %v1096
    %v1098 = vrot.slane %v1097, 1
    %v1099 = vadd.f32 %v1097, %v1098
    %v1100 = vmul.f32 %v1099, 0.33333334
    %v1101 = vmul.f32 %v115, %v1100
    %v1102 = vadd.f32 %v1091, %v1101
    %v1103 = vadd.f32 %v1102, %v301
    %1105 = vrot.lane.b32.xlu0 %v1103, 4
    %v1106 = vpop.permute.xlu0 %1105
    %v1108 = vsel %vm206, %v1024, %v1106
    %v1109 = vpack.c.bf16 %v1108, %v1108
    %v1111 = vsel %vm258, %v1109, 0
    %1113 = vmatpush.bf16.msra.mxu0 0
    %1114 = vmatpush.bf16.msra.mxu0 0
    %1115 = vmatpush.bf16.msra.mxu0 0
    %1116 = vmatpush.bf16.msra.mxu0 0
    %1117 = vmatpush.bf16.msra.mxu0 0
    %1118 = vmatpush.bf16.msra.mxu0 0
    %1119 = vmatpush.bf16.msra.mxu0 0
    %1120 = vmatpush.bf16.msra.mxu0 %v319
    %1121 = vmatmul.bf16.gmra.mxu0 %v1111
    %v1122 = vpop.f32.mrf.mxu0
    %v1123 = vadd.f32 %v313, %v1122
    %v1124 = vpop.f32.mrf.mxu0
    %1125 = vdwg.mxu0
    %v1126 = vsel %vm190, %v1123, -inf
    %1127 = vmax.xlane.f32.xlu0 %v1126
    %v1128 = vpop.xlane.xlu0 %1127
    %v1129 = vsub.f32 %v1123, %v1128
    %v1130 = vmul.f32 %v1129, 1.442695
    %v1131 = vpow.pop %v1130
    %v1132 = vsel %vm190, %v1131, 0.0
    %1133 = vadd.xlane.f32.xlu0 %v1132
    %v1134 = vpop.xlane.xlu0 %1133
    %v1135 = vrcp.pop %v1134
    %v1136 = vmul.f32 %v1131, %v1135
    %1138 = vrot.lane.b32.xlu0 %v1136, 6
    %v1139 = vpop.permute.xlu0 %1138
    %v1141 = vmul.f32 %v958, %v1139
    %1143 = vrot.lane.b32.xlu0 %v1141, 122
    %v1144 = vpop.permute.xlu0 %1143
    %v1146 = vsel %vm190, %v1144, 0.0
    %1147 = vadd.xlane.f32.xlu0 %v1146
    %v1148 = vpop.xlane.xlu0 %1147
    %v1149 = vrot.slane %v1148, 4
    %v1150 = vadd.f32 %v1148, %v1149
    %v1151 = vrot.slane %v1150, 2
    %v1152 = vadd.f32 %v1150, %v1151
    %v1153 = vrot.slane %v1152, 1
    %v1154 = vadd.f32 %v1152, %v1153
    %s1155 = vtos %v1154
    %v1156 = vstv %s1155
    %v1157 = vsub.f32 %v365, %v1156
    %vm1158 = vcmp.gt.f32.partialorder %v993, 0.0
    %v1159 = vmul.f32 %v993, 0.01
    %v1160 = vsel %vm1158, %v993, %v1159
    %v1161 = vpack.c.bf16 %v1160, %v1160
    %v1163 = vsel %vm173, %v1161, 0
    %1165 = vmatpush.bf16.msra.mxu0 0
    %1166 = vmatpush.bf16.msra.mxu0 0
    %1167 = vmatpush.bf16.msra.mxu0 0
    %1168 = vmatpush.bf16.msra.mxu0 0
    %1169 = vmatpush.bf16.msra.mxu0 0
    %1170 = vmatpush.bf16.msra.mxu0 0
    %1171 = vmatpush.bf16.msra.mxu0 %v58
    %1172 = vmatpush.bf16.msra.mxu0 %v57
    %1173 = vmatmul.bf16.gmra.mxu0 %v1163
    %v1174 = vpop.f32.mrf.mxu0
    %v1175 = vadd.f32 %v90, %v1174
    %v1176 = vpop.f32.mrf.mxu0
    %1177 = vdwg.mxu0
    %vm1178 = vcmp.gt.f32.partialorder %v1175, 0.0
    %v1179 = vmul.f32 %v1175, 0.01
    %v1180 = vsel %vm1178, %v1175, %v1179
    %v1181 = vpack.c.bf16 %v1180, %v1180
    %v1183 = vsel %vm173, %v1181, 0
    %1185 = vmatpush.bf16.msra.mxu0 0
    %1186 = vmatpush.bf16.msra.mxu0 0
    %1187 = vmatpush.bf16.msra.mxu0 0
    %1188 = vmatpush.bf16.msra.mxu0 0
    %1189 = vmatpush.bf16.msra.mxu0 0
    %1190 = vmatpush.bf16.msra.mxu0 0
    %1191 = vmatpush.bf16.msra.mxu0 %v395
    %1192 = vmatpush.bf16.msra.mxu0 %v393
    %1193 = vmatmul.bf16.gmra.mxu0 %v1183
    %v1194 = vpop.f32.mrf.mxu0
    %v1195 = vadd.f32 %v399, %v1194
    %v1196 = vpop.f32.mrf.mxu0
    %1197 = vdwg.mxu0
    %1199 = vrot.lane.b32.xlu0 %v1195, 32
    %v1200 = vpop.permute.xlu0 %1199
    %v1202 = vadd.f32 %v980, %v1200
    %vm1203 = vcmp.gt.f32.partialorder %v1202, 0.0
    %v1204 = vmul.f32 %v1202, 0.01
    %v1205 = vsel %vm1203, %v1202, %v1204
    %vm1206 = vcmp.gt.f32.partialorder %v980, 0.0
    %v1207 = vmul.f32 %v980, 0.01
    %v1208 = vsel %vm1206, %v980, %v1207
    %1210 = vrot.lane.b32.xlu0 %v1205, 96
    %v1211 = vpop.permute.xlu0 %1210
    %1214 = vrot.lane.b32.xlu0 %v1208, 96
    %v1215 = vpop.permute.xlu0 %1214
    %v1217 = vsel %vm173, %v1211, %v1215
    %v1218 = vpack.c.bf16 %v1217, %v1217
    %v1220 = vsel %vm441, %v1218, 0
    %1222 = vmatpush.bf16.msra.mxu0 0
    %1223 = vmatpush.bf16.msra.mxu0 0
    %1224 = vmatpush.bf16.msra.mxu0 0
    %1225 = vmatpush.bf16.msra.mxu0 0
    %1226 = vmatpush.bf16.msra.mxu0 %v87
    %1227 = vmatpush.bf16.msra.mxu0 %v86
    %1228 = vmatpush.bf16.msra.mxu0 %v85
    %1229 = vmatpush.bf16.msra.mxu0 %v84
    %1230 = vmatmul.bf16.gmra.mxu0 %v1220
    %v1231 = vpop.f32.mrf.mxu0
    %v1232 = vadd.f32 %v439, %v1231
    %v1233 = vpop.f32.mrf.mxu0
    %1234 = vdwg.mxu0
    %vm1235 = vcmp.gt.f32.partialorder %v1232, 0.0
    %v1236 = vmul.f32 %v1232, 0.01
    %v1237 = vsel %vm1235, %v1232, %v1236
    %v1238 = vpack.c.bf16 %v1237, %v1237
    %v1240 = vsel %vm441, %v1238, 0
    %1242 = vmatpush.bf16.msra.mxu0 0
    %1243 = vmatpush.bf16.msra.mxu0 0
    %1244 = vmatpush.bf16.msra.mxu0 0
    %1245 = vmatpush.bf16.msra.mxu0 0
    %1246 = vmatpush.bf16.msra.mxu0 %v473
    %1247 = vmatpush.bf16.msra.mxu0 %v471
    %1248 = vmatpush.bf16.msra.mxu0 %v469
    %1249 = vmatpush.bf16.msra.mxu0 %v467
    %1250 = vmatmul.bf16.gmra.mxu0 %v1240
    %v1251 = vpop.f32.mrf.mxu0
    %v1252 = vadd.f32 %v483, %v1251
    %v1253 = vpop.f32.mrf.mxu0
    %1254 = vdwg.mxu0
    %v1255 = vmul.f32 %v1252, 0.5
    %v1256 = vmul.f32 %v1255, 1.442695
    %v1257 = vpow.pop %v1256
    %1259 = vrot.lane.b32.xlu0 %v1257, 120
    %v1260 = vpop.permute.xlu0 %1259
    %v1262 = vmul.f32 %v960, %v1260
    %v1263 = vadd.f32 %v1262, %v1252
    %v1264 = vpack.c.bf16 %v1263, %v1263
    %v1266 = vsel %vm258, %v1264, 0
    %1268 = vmatpush.bf16.msra.mxu0 0
    %1269 = vmatpush.bf16.msra.mxu0 0
    %1270 = vmatpush.bf16.msra.mxu0 0
    %1271 = vmatpush.bf16.msra.mxu0 0
    %1272 = vmatpush.bf16.msra.mxu0 0
    %1273 = vmatpush.bf16.msra.mxu0 0
    %1274 = vmatpush.bf16.msra.mxu0 0
    %1275 = vmatpush.bf16.msra.mxu0 %v524
    %1276 = vmatmul.bf16.gmra.mxu0 %v1266
    %v1277 = vpop.f32.mrf.mxu0
    %v1278 = vadd.f32 %v518, %v1277
    %v1279 = vpop.f32.mrf.mxu0
    %1280 = vdwg.mxu0
    %vm1281 = vcmp.gt.f32.partialorder %v1278, 0.0
    %v1282 = vmul.f32 %v1278, 0.01
    %v1283 = vsel %vm1281, %v1278, %v1282
    %v1284 = vpack.c.bf16 %v1283, %v1283
    %v1286 = vsel %vm173, %v1284, 0
    %1288 = vmatpush.bf16.msra.mxu0 0
    %1289 = vmatpush.bf16.msra.mxu0 0
    %1290 = vmatpush.bf16.msra.mxu0 0
    %1291 = vmatpush.bf16.msra.mxu0 0
    %1292 = vmatpush.bf16.msra.mxu0 0
    %1293 = vmatpush.bf16.msra.mxu0 0
    %1294 = vmatpush.bf16.msra.mxu0 %v553
    %1295 = vmatpush.bf16.msra.mxu0 %v552
    %1296 = vmatmul.bf16.gmra.mxu0 %v1286
    %v1297 = vpop.f32.mrf.mxu0
    %v1298 = vadd.f32 %v557, %v1297
    %v1299 = vpop.f32.mrf.mxu0
    %1300 = vdwg.mxu0
    %vm1301 = vcmp.gt.f32.partialorder %v1298, 0.0
    %v1302 = vmul.f32 %v1298, 0.01
    %v1303 = vsel %vm1301, %v1298, %v1302
    %v1304 = vpack.c.bf16 %v1303, %v1303
    %v1306 = vsel %vm173, %v1304, 0
    %1308 = vmatpush.bf16.msra.mxu0 0
    %1309 = vmatpush.bf16.msra.mxu0 0
    %1310 = vmatpush.bf16.msra.mxu0 0
    %1311 = vmatpush.bf16.msra.mxu0 0
    %1312 = vmatpush.bf16.msra.mxu0 0
    %1313 = vmatpush.bf16.msra.mxu0 0
    %1314 = vmatpush.bf16.msra.mxu0 %v70
    %1315 = vmatpush.bf16.msra.mxu0 %v69
    %1316 = vmatmul.bf16.gmra.mxu0 %v1306
    %v1317 = vpop.f32.mrf.mxu0
    %v1318 = vadd.f32 0.0, %v1317
    %v1319 = vpop.f32.mrf.mxu0
    %1320 = vdwg.mxu0
    %1322 = vrot.lane.b32.xlu0 %v1318, 96
    %v1323 = vpop.permute.xlu0 %1322
    %v1325 = vadd.f32 %v980, %v1323
    %vm1326 = vcmp.gt.f32.partialorder %v1325, 0.0
    %v1327 = vmul.f32 %v1325, 0.01
    %v1328 = vsel %vm1326, %v1325, %v1327
    %v1329 = vpack.c.bf16 %v1328, %v1328
    %1331 = vrot.lane.b32.xlu0 %v1329, 32
    %v1332 = vpop.permute.xlu0 %1331
    %v1334 = vsel %vm173, %v1332, 0
    %1336 = vmatpush.bf16.msra.mxu0 0
    %1337 = vmatpush.bf16.msra.mxu0 0
    %1338 = vmatpush.bf16.msra.mxu0 0
    %1339 = vmatpush.bf16.msra.mxu0 0
    %1340 = vmatpush.bf16.msra.mxu0 0
    %1341 = vmatpush.bf16.msra.mxu0 0
    %1342 = vmatpush.bf16.msra.mxu0 %v610
    %1343 = vmatpush.bf16.msra.mxu0 %v608
    %1344 = vmatmul.bf16.gmra.mxu0 %v1334
    %v1345 = vpop.f32.mrf.mxu0
    %v1346 = vadd.f32 %v614, %v1345
    %v1347 = vpop.f32.mrf.mxu0
    %1348 = vdwg.mxu0
    %vm1349 = vcmp.gt.f32.partialorder %v1346, 0.0
    %v1350 = vmul.f32 %v1346, 0.01
    %v1351 = vsel %vm1349, %v1346, %v1350
    %v1352 = vpack.c.bf16 %v1351, %v1351
    %v1354 = vsel %vm173, %v1352, 0
    %1356 = vmatpush.bf16.msra.mxu0 0
    %1357 = vmatpush.bf16.msra.mxu0 0
    %1358 = vmatpush.bf16.msra.mxu0 0
    %1359 = vmatpush.bf16.msra.mxu0 0
    %1360 = vmatpush.bf16.msra.mxu0 0
    %1361 = vmatpush.bf16.msra.mxu0 0
    %1362 = vmatpush.bf16.msra.mxu0 %v639
    %1363 = vmatpush.bf16.msra.mxu0 %v637
    %1364 = vmatmul.bf16.gmra.mxu0 %v1354
    %v1365 = vpop.f32.mrf.mxu0
    %v1366 = vadd.f32 %v643, %v1365
    %v1367 = vpop.f32.mrf.mxu0
    %1368 = vdwg.mxu0
    %v1369 = vadd.f32 %v1195, %v1318
    %v1370 = vadd.f32 %v1369, %v993
    %v1371 = vxor.u32 %v1370, 2147483648
    %v1372 = vmul.f32 %v1371, 1.442695
    %v1373 = vpow.pop %v1372
    %v1374 = vadd.f32 %v1373, 1.0
    %v1375 = vrcp.pop %v1374
    %v1376 = vmul.f32 %v1374, %v1375
    %v1377 = vsub.f32 1.0, %v1376
    %v1378 = vmul.f32 %v1375, %v1377
    %v1379 = vadd.f32 %v1375, %v1378
    %vm1380 = vweird.f32 %v1374
    %vm1381 = vweird.f32 %v1375
    %vm1382 = vmor %vm1380, %vm1381
    %v1383 = vsel %vm1382, %v1375, %v1379
    %v1384 = vand.u32 2147483647, %v1374
    %vm1385 = vcmp.eq.f32.partialorder %v1384, 8.507059e+37
    %v1386 = vand.u32 %v1374, 2147483648
    %v1387 = vor.u32 1.1754944e-38, %v1386
    %v1388 = vsel %vm1385, %v1387, %v1383
    %v1389 = vmul.f32 1.0, %v1388
    %1391 = vrot.lane.b32.xlu0 %v993, 96
    %v1392 = vpop.permute.xlu0 %1391
    %v1394 = vmul.f32 %v1389, %v1392
    %1396 = vrot.lane.b32.xlu0 %v1394, 32
    %v1397 = vpop.permute.xlu0 %1396
    %v1399 = vadd.f32 %v1369, %v1397
    %v1400 = vtanh.pop %v1399
    %v1401 = vsub.f32 1.0, %v1389
    %1403 = vrot.lane.b32.xlu0 %v1400, 112
    %v1404 = vpop.permute.xlu0 %1403
    %v1406 = vmul.f32 %v1401, %v1404
    %1407 = vrot.lane.b32.xlu0 %v954, 48
    %v1408 = vpop.permute.xlu0 %1407
    %v1410 = vmul.f32 %v1389, %v1408
    %v1411 = vadd.f32 %v1406, %v1410
    %1413 = vrot.lane.b32.xlu0 %v1252, 16
    %v1414 = vpop.permute.xlu0 %1413
    %v1416 = vsub.f32 %v1252, %v1414
    %1418 = vrot.lane.b32.xlu0 %v1416, 104
    %v1419 = vpop.permute.xlu0 %1418
    %v1421 = vsel %vm228, %v1419, 0.0
    %1422 = vadd.xlane.f32.xlu0 %v1421
    %v1423 = vpop.xlane.xlu0 %1422
    %1424 = vrot.lane.b32.xlu0 %v1252, 112
    %v1425 = vpop.permute.xlu0 %1424
    %v1427 = vsub.f32 %v1252, %v1425
    %v1428 = vmul.f32 %v1427, 1.442695
    %v1429 = vpow.pop %v1428
    %1431 = vrot.lane.b32.xlu0 %v1429, 120
    %v1432 = vpop.permute.xlu0 %1431
    %v1434 = vsel %vm228, %v1432, 0.0
    %1435 = vadd.xlane.f32.xlu0 %v1434
    %v1436 = vpop.xlane.xlu0 %1435
    %v1437 = vmul.f32 %v1427, %v1427
    %v1438 = vmul.f32 %v1252, 1.442695
    %v1439 = vpow.pop %v1438
    %1441 = vrot.lane.b32.xlu0 %v1439, 104
    %v1442 = vpop.permute.xlu0 %1441
    %v1444 = vrcp.pop %v1442
    %v1445 = vmul.f32 %v1442, %v1444
    %v1446 = vsub.f32 1.0, %v1445
    %v1447 = vmul.f32 %v1444, %v1446
    %v1448 = vadd.f32 %v1444, %v1447
    %vm1449 = vweird.f32 %v1442
    %vm1450 = vweird.f32 %v1444
    %vm1451 = vmor %vm1449, %vm1450
    %v1452 = vsel %vm1451, %v1444, %v1448
    %v1453 = vand.u32 2147483647, %v1442
    %vm1454 = vcmp.eq.f32.partialorder %v1453, 8.507059e+37
    %v1455 = vand.u32 %v1442, 2147483648
    %v1456 = vor.u32 1.1754944e-38, %v1455
    %v1457 = vsel %vm1454, %v1456, %v1452
    %v1458 = vmul.f32 %v1437, %v1457
    %v1459 = vsel %vm228, %v1458, 0.0
    %1460 = vadd.xlane.f32.xlu0 %v1459
    %v1461 = vpop.xlane.xlu0 %1460
    %v1462 = vsub.f32 %v1423, 8.0
    %v1463 = vadd.f32 %v1462, %v1436
    %v1464 = vadd.f32 %v1463, %v1461
    %v1465 = vsel %vm754, %v1464, 0.0
    %1466 = vadd.xlane.f32.xlu0 %v1465
    %v1467 = vpop.xlane.xlu0 %1466
    %v1468 = vrot.slane %v1467, 4
    %v1469 = vadd.f32 %v1467, %v1468
    %v1470 = vrot.slane %v1469, 2
    %v1471 = vadd.f32 %v1469, %v1470
    %v1472 = vrot.slane %v1471, 1
    %v1473 = vadd.f32 %v1471, %v1472
    %s1474 = vtos %v1473
    %v1475 = vstv %s1474
    %v1476 = vmul.f32 %v1475, 0.083333336
    %v1477 = vadd.f32 %v767, %v1476
    %1479 = vrot.lane.b32.xlu0 %v1366, 14
    %v1480 = vpop.permute.xlu0 %1479
    %v1482 = vsub.f32 %v958, %v1480
    %v1483 = vmul.f32 %v1482, %v1482
    %v1484 = vmul.f32 %v1366, 1.442695
    %v1485 = vpow.pop %v1484
    %1487 = vrot.lane.b32.xlu0 %v1485, 12
    %v1488 = vpop.permute.xlu0 %1487
    %v1490 = vrcp.pop %v1488
    %v1491 = vmul.f32 %v1488, %v1490
    %v1492 = vsub.f32 1.0, %v1491
    %v1493 = vmul.f32 %v1490, %v1492
    %v1494 = vadd.f32 %v1490, %v1493
    %vm1495 = vweird.f32 %v1488
    %vm1496 = vweird.f32 %v1490
    %vm1497 = vmor %vm1495, %vm1496
    %v1498 = vsel %vm1497, %v1490, %v1494
    %v1499 = vand.u32 2147483647, %v1488
    %vm1500 = vcmp.eq.f32.partialorder %v1499, 8.507059e+37
    %v1501 = vand.u32 %v1488, 2147483648
    %v1502 = vor.u32 1.1754944e-38, %v1501
    %v1503 = vsel %vm1500, %v1502, %v1498
    %v1504 = vmul.f32 %v1483, %v1503
    %1506 = vrot.lane.b32.xlu0 %v1504, 114
    %v1507 = vpop.permute.xlu0 %1506
    %v1509 = vsel %vm799, %v1507, 0.0
    %1510 = vadd.xlane.f32.xlu0 %v1509
    %v1511 = vpop.xlane.xlu0 %1510
    %1512 = vrot.lane.b32.xlu0 %v1366, 126
    %v1513 = vpop.permute.xlu0 %1512
    %v1515 = vsel %vm799, %v1513, 0.0
    %1516 = vadd.xlane.f32.xlu0 %v1515
    %v1517 = vpop.xlane.xlu0 %1516
    %v1518 = vadd.f32 %v1511, 3.675754
    %v1519 = vadd.f32 %v1518, %v1517
    %v1520 = vsel %vm754, %v1519, 0.0
    %1521 = vadd.xlane.f32.xlu0 %v1520
    %v1522 = vpop.xlane.xlu0 %1521
    %v1523 = vrot.slane %v1522, 4
    %v1524 = vadd.f32 %v1522, %v1523
    %v1525 = vrot.slane %v1524, 2
    %v1526 = vadd.f32 %v1524, %v1525
    %v1527 = vrot.slane %v1526, 1
    %v1528 = vadd.f32 %v1526, %v1527
    %s1529 = vtos %v1528
    %v1530 = vstv %s1529
    %v1531 = vmul.f32 %v1530, 0.083333336
    %v1532 = vadd.f32 %v823, %v1531
    %v1533 = vpack.c.bf16 %v1411, %v1411
    %1535 = vrot.lane.b32.xlu0 %v1533, 80
    %v1536 = vpop.permute.xlu0 %1535
    %v1538 = vsel %vm482, %v1536, 0
    %1540 = vmatpush.bf16.msra.mxu0 0
    %1541 = vmatpush.bf16.msra.mxu0 0
    %1542 = vmatpush.bf16.msra.mxu0 0
    %1543 = vmatpush.bf16.msra.mxu0 0
    %1544 = vmatpush.bf16.msra.mxu0 0
    %1545 = vmatpush.bf16.msra.mxu0 0
    %1546 = vmatpush.bf16.msra.mxu0 0
    %1547 = vmatpush.bf16.msra.mxu0 %v830
    %1548 = vmatmul.bf16.gmra.mxu0 %v1538
    %v1549 = vpop.f32.mrf.mxu0
    %v1550 = vadd.f32 0.0, %v1549
    %v1551 = vpop.f32.mrf.mxu0
    %1552 = vdwg.mxu0
    %v1553 = vmul.f32 %v1550, %v111
    %v1554 = vsel %vm228, %v1553, 0.0
    %v1555 = vrot.slane %v1554, 4
    %v1556 = vadd.f32 %v1554, %v1555
    %v1557 = vrot.slane %v1556, 2
    %v1558 = vadd.f32 %v1556, %v1557
    %v1559 = vrot.slane %v1558, 1
    %v1560 = vadd.f32 %v1558, %v1559
    %v1561 = vmul.f32 %v1560, 0.33333334
    %v1562 = vmul.f32 %v111, %v1561
    %v1563 = vmul.f32 %v1550, %v115
    %v1564 = vsel %vm228, %v1563, 0.0
    %v1565 = vrot.slane %v1564, 4
    %v1566 = vadd.f32 %v1564, %v1565
    %v1567 = vrot.slane %v1566, 2
    %v1568 = vadd.f32 %v1566, %v1567
    %v1569 = vrot.slane %v1568, 1
    %v1570 = vadd.f32 %v1568, %v1569
    %v1571 = vmul.f32 %v1570, 0.33333334
    %v1572 = vmul.f32 %v115, %v1571
    %v1573 = vadd.f32 %v1562, %v1572
    %v1574 = vadd.f32 %v1573, %v870
    %v1575 = vmax.f32 %v1574, 0.0
    %v1576 = vpack.c.bf16 %v1575, %v1575
    %v1578 = vsel %vm258, %v1576, 0
    %1580 = vmatpush.bf16.msra.mxu0 0
    %1581 = vmatpush.bf16.msra.mxu0 0
    %1582 = vmatpush.bf16.msra.mxu0 0
    %1583 = vmatpush.bf16.msra.mxu0 0
    %1584 = vmatpush.bf16.msra.mxu0 0
    %1585 = vmatpush.bf16.msra.mxu0 0
    %1586 = vmatpush.bf16.msra.mxu0 0
    %1587 = vmatpush.bf16.msra.mxu0 %v885
    %1588 = vmatmul.bf16.gmra.mxu0 %v1578
    %v1589 = vpop.f32.mrf.mxu0
    %v1590 = vadd.f32 0.0, %v1589
    %v1591 = vpop.f32.mrf.mxu0
    %1592 = vdwg.mxu0
    %v1593 = vmul.f32 %v1590, %v111
    %v1594 = vsel %vm901, %v1593, 0.0
    %v1595 = vrot.slane %v1594, 4
    %v1596 = vadd.f32 %v1594, %v1595
    %v1597 = vrot.slane %v1596, 2
    %v1598 = vadd.f32 %v1596, %v1597
    %v1599 = vrot.slane %v1598, 1
    %v1600 = vadd.f32 %v1598, %v1599
    %v1601 = vmul.f32 %v1600, 0.33333334
    %v1602 = vmul.f32 %v111, %v1601
    %v1603 = vmul.f32 %v1590, %v115
    %v1604 = vsel %vm901, %v1603, 0.0
    %v1605 = vrot.slane %v1604, 4
    %v1606 = vadd.f32 %v1604, %v1605
    %v1607 = vrot.slane %v1606, 2
    %v1608 = vadd.f32 %v1606, %v1607
    %v1609 = vrot.slane %v1608, 1
    %v1610 = vadd.f32 %v1608, %v1609
    %v1611 = vmul.f32 %v1610, 0.33333334
    %v1612 = vmul.f32 %v115, %v1611
    %v1613 = vadd.f32 %v1602, %v1612
    %v1614 = vadd.f32 %v1613, %v923
    %1616 = vrot.lane.b32.xlu0 %v1411, 96
    %v1617 = vpop.permute.xlu0 %1616
    %v1619 = vsel %vm482, %v1614, %v1617
    %v1620 = vpack.c.bf16 %v1619, %v1619
    %v1622 = vsel %vm173, %v1620, 0
    %1624 = vmatpush.bf16.msra.mxu0 0
    %1625 = vmatpush.bf16.msra.mxu0 0
    %1626 = vmatpush.bf16.msra.mxu0 0
    %1627 = vmatpush.bf16.msra.mxu0 0
    %1628 = vmatpush.bf16.msra.mxu0 0
    %1629 = vmatpush.bf16.msra.mxu0 0
    %1630 = vmatpush.bf16.msra.mxu0 %v935
    %1631 = vmatpush.bf16.msra.mxu0 %v933
    %1632 = vmatmul.bf16.gmra.mxu0 %v1622
    %v1633 = vpop.f32.mrf.mxu0
    %v1634 = vadd.f32 %v939, %v1633
    %v1635 = vpop.f32.mrf.mxu0
    %1636 = vdwg.mxu0
    %s1637 = scalar_lea.vmem %s0, 16
    %v1638 = vld [vmem:[%s1637] sm:$0x3f]
    %s1639 = scalar_lea.vmem %s1, 16
    %v1640 = vld [vmem:[%s1639] sm:$0x3f]
    %1642 = vrot.lane.b32.xlu0 %v1634, 17
    %v1643 = vpop.permute.xlu0 %1642
    %v1645 = vsel %vm118, %v1638, %v1643
    %v1646 = vpack.c.bf16 %v1645, %v1645
    %v1648 = vsel %vm121, %v1646, 0
    %1650 = vmatpush.bf16.msra.mxu0 0
    %1651 = vmatpush.bf16.msra.mxu0 0
    %1652 = vmatpush.bf16.msra.mxu0 0
    %1653 = vmatpush.bf16.msra.mxu0 0
    %1654 = vmatpush.bf16.msra.mxu0 0
    %1655 = vmatpush.bf16.msra.mxu0 %v129
    %1656 = vmatpush.bf16.msra.mxu0 %v49
    %1657 = vmatpush.bf16.msra.mxu0 %v47
    %1658 = vmatmul.bf16.gmra.mxu0 %v1648
    %v1659 = vpop.f32.mrf.mxu0
    %v1660 = vadd.f32 0.0, %v1659
    %v1661 = vpop.f32.mrf.mxu0
    %1662 = vdwg.mxu0
    %1663 = vmatpush.bf16.msra.mxu0 0
    %1664 = vmatpush.bf16.msra.mxu0 0
    %1665 = vmatpush.bf16.msra.mxu0 0
    %1666 = vmatpush.bf16.msra.mxu0 0
    %1667 = vmatpush.bf16.msra.mxu0 0
    %1668 = vmatpush.bf16.msra.mxu0 %v132
    %1669 = vmatpush.bf16.msra.mxu0 %v50
    %1670 = vmatpush.bf16.msra.mxu0 %v48
    %1671 = vmatmul.bf16.gmra.mxu0 %v1648
    %v1672 = vpop.f32.mrf.mxu0
    %v1673 = vadd.f32 0.0, %v1672
    %v1674 = vpop.f32.mrf.mxu0
    %1675 = vdwg.mxu0
    %v1676 = vmax.f32 %v1660, 0.0
    %v1677 = vpack.c.bf16 %v1676, %v1676
    %v1679 = vsel %vm173, %v1677, 0
    %1681 = vmatpush.bf16.msra.mxu0 0
    %1682 = vmatpush.bf16.msra.mxu0 0
    %1683 = vmatpush.bf16.msra.mxu0 0
    %1684 = vmatpush.bf16.msra.mxu0 0
    %1685 = vmatpush.bf16.msra.mxu0 0
    %1686 = vmatpush.bf16.msra.mxu0 0
    %1687 = vmatpush.bf16.msra.mxu0 %v167
    %1688 = vmatpush.bf16.msra.mxu0 %v165
    %1689 = vmatmul.bf16.gmra.mxu0 %v1679
    %v1690 = vpop.f32.mrf.mxu0
    %v1691 = vadd.f32 %v171, %v1690
    %v1692 = vpop.f32.mrf.mxu0
    %1693 = vdwg.mxu0
    %v1694 = vsel %vm190, %v1691, -inf
    %1695 = vmax.xlane.f32.xlu0 %v1694
    %v1696 = vpop.xlane.xlu0 %1695
    %v1697 = vsub.f32 %v1691, %v1696
    %v1698 = vmul.f32 %v1697, 1.442695
    %v1699 = vpow.pop %v1698
    %v1700 = vsel %vm190, %v1699, 0.0
    %1701 = vadd.xlane.f32.xlu0 %v1700
    %v1702 = vpop.xlane.xlu0 %1701
    %v1703 = vrcp.pop %v1702
    %v1704 = vmul.f32 %v1699, %v1703
    %v1705 = vpack.c.bf16 %v1704, %v1704
    %v1707 = vsel %vm206, %v1705, 0
    %1709 = vmatpush.bf16.msra.mxu0 0
    %1710 = vmatpush.bf16.msra.mxu0 0
    %1711 = vmatpush.bf16.msra.mxu0 0
    %1712 = vmatpush.bf16.msra.mxu0 0
    %1713 = vmatpush.bf16.msra.mxu0 0
    %1714 = vmatpush.bf16.msra.mxu0 0
    %1715 = vmatpush.bf16.msra.mxu0 0
    %1716 = vmatpush.bf16.msra.mxu0 %v212
    %1717 = vmatmul.bf16.gmra.mxu0 %v1707
    %v1718 = vpop.f32.mrf.mxu0
    %v1719 = vadd.f32 0.0, %v1718
    %v1720 = vpop.f32.mrf.mxu0
    %1721 = vdwg.mxu0
    %v1722 = vmul.f32 %v1719, %v111
    %v1723 = vsel %vm228, %v1722, 0.0
    %v1724 = vrot.slane %v1723, 4
    %v1725 = vadd.f32 %v1723, %v1724
    %v1726 = vrot.slane %v1725, 2
    %v1727 = vadd.f32 %v1725, %v1726
    %v1728 = vrot.slane %v1727, 1
    %v1729 = vadd.f32 %v1727, %v1728
    %v1730 = vmul.f32 %v1729, 0.33333334
    %v1731 = vmul.f32 %v111, %v1730
    %v1732 = vmul.f32 %v1719, %v115
    %v1733 = vsel %vm228, %v1732, 0.0
    %v1734 = vrot.slane %v1733, 4
    %v1735 = vadd.f32 %v1733, %v1734
    %v1736 = vrot.slane %v1735, 2
    %v1737 = vadd.f32 %v1735, %v1736
    %v1738 = vrot.slane %v1737, 1
    %v1739 = vadd.f32 %v1737, %v1738
    %v1740 = vmul.f32 %v1739, 0.33333334
    %v1741 = vmul.f32 %v115, %v1740
    %v1742 = vadd.f32 %v1731, %v1741
    %v1743 = vadd.f32 %v1742, %v250
    %v1744 = vmax.f32 %v1743, 0.0
    %v1745 = vpack.c.bf16 %v1744, %v1744
    %v1747 = vsel %vm258, %v1745, 0
    %1749 = vmatpush.bf16.msra.mxu0 0
    %1750 = vmatpush.bf16.msra.mxu0 0
    %1751 = vmatpush.bf16.msra.mxu0 0
    %1752 = vmatpush.bf16.msra.mxu0 0
    %1753 = vmatpush.bf16.msra.mxu0 0
    %1754 = vmatpush.bf16.msra.mxu0 0
    %1755 = vmatpush.bf16.msra.mxu0 0
    %1756 = vmatpush.bf16.msra.mxu0 %v264
    %1757 = vmatmul.bf16.gmra.mxu0 %v1747
    %v1758 = vpop.f32.mrf.mxu0
    %v1759 = vadd.f32 0.0, %v1758
    %v1760 = vpop.f32.mrf.mxu0
    %1761 = vdwg.mxu0
    %v1762 = vmul.f32 %v1759, %v111
    %v1763 = vsel %vm190, %v1762, 0.0
    %v1764 = vrot.slane %v1763, 4
    %v1765 = vadd.f32 %v1763, %v1764
    %v1766 = vrot.slane %v1765, 2
    %v1767 = vadd.f32 %v1765, %v1766
    %v1768 = vrot.slane %v1767, 1
    %v1769 = vadd.f32 %v1767, %v1768
    %v1770 = vmul.f32 %v1769, 0.33333334
    %v1771 = vmul.f32 %v111, %v1770
    %v1772 = vmul.f32 %v1759, %v115
    %v1773 = vsel %vm190, %v1772, 0.0
    %v1774 = vrot.slane %v1773, 4
    %v1775 = vadd.f32 %v1773, %v1774
    %v1776 = vrot.slane %v1775, 2
    %v1777 = vadd.f32 %v1775, %v1776
    %v1778 = vrot.slane %v1777, 1
    %v1779 = vadd.f32 %v1777, %v1778
    %v1780 = vmul.f32 %v1779, 0.33333334
    %v1781 = vmul.f32 %v115, %v1780
    %v1782 = vadd.f32 %v1771, %v1781
    %v1783 = vadd.f32 %v1782, %v301
    %1785 = vrot.lane.b32.xlu0 %v1783, 4
    %v1786 = vpop.permute.xlu0 %1785
    %v1788 = vsel %vm206, %v1704, %v1786
    %v1789 = vpack.c.bf16 %v1788, %v1788
    %v1791 = vsel %vm258, %v1789, 0
    %1793 = vmatpush.bf16.msra.mxu0 0
    %1794 = vmatpush.bf16.msra.mxu0 0
    %1795 = vmatpush.bf16.msra.mxu0 0
    %1796 = vmatpush.bf16.msra.mxu0 0
    %1797 = vmatpush.bf16.msra.mxu0 0
    %1798 = vmatpush.bf16.msra.mxu0 0
    %1799 = vmatpush.bf16.msra.mxu0 0
    %1800 = vmatpush.bf16.msra.mxu0 %v319
    %1801 = vmatmul.bf16.gmra.mxu0 %v1791
    %v1802 = vpop.f32.mrf.mxu0
    %v1803 = vadd.f32 %v313, %v1802
    %v1804 = vpop.f32.mrf.mxu0
    %1805 = vdwg.mxu0
    %v1806 = vsel %vm190, %v1803, -inf
    %1807 = vmax.xlane.f32.xlu0 %v1806
    %v1808 = vpop.xlane.xlu0 %1807
    %v1809 = vsub.f32 %v1803, %v1808
    %v1810 = vmul.f32 %v1809, 1.442695
    %v1811 = vpow.pop %v1810
    %v1812 = vsel %vm190, %v1811, 0.0
    %1813 = vadd.xlane.f32.xlu0 %v1812
    %v1814 = vpop.xlane.xlu0 %1813
    %v1815 = vrcp.pop %v1814
    %v1816 = vmul.f32 %v1811, %v1815
    %1818 = vrot.lane.b32.xlu0 %v1816, 6
    %v1819 = vpop.permute.xlu0 %1818
    %v1821 = vmul.f32 %v1638, %v1819
    %1823 = vrot.lane.b32.xlu0 %v1821, 122
    %v1824 = vpop.permute.xlu0 %1823
    %v1826 = vsel %vm190, %v1824, 0.0
    %1827 = vadd.xlane.f32.xlu0 %v1826
    %v1828 = vpop.xlane.xlu0 %1827
    %v1829 = vrot.slane %v1828, 4
    %v1830 = vadd.f32 %v1828, %v1829
    %v1831 = vrot.slane %v1830, 2
    %v1832 = vadd.f32 %v1830, %v1831
    %v1833 = vrot.slane %v1832, 1
    %v1834 = vadd.f32 %v1832, %v1833
    %s1835 = vtos %v1834
    %v1836 = vstv %s1835
    %v1837 = vsub.f32 %v1157, %v1836
    %vm1838 = vcmp.gt.f32.partialorder %v1673, 0.0
    %v1839 = vmul.f32 %v1673, 0.01
    %v1840 = vsel %vm1838, %v1673, %v1839
    %v1841 = vpack.c.bf16 %v1840, %v1840
    %v1843 = vsel %vm173, %v1841, 0
    %1845 = vmatpush.bf16.msra.mxu0 0
    %1846 = vmatpush.bf16.msra.mxu0 0
    %1847 = vmatpush.bf16.msra.mxu0 0
    %1848 = vmatpush.bf16.msra.mxu0 0
    %1849 = vmatpush.bf16.msra.mxu0 0
    %1850 = vmatpush.bf16.msra.mxu0 0
    %1851 = vmatpush.bf16.msra.mxu0 %v58
    %1852 = vmatpush.bf16.msra.mxu0 %v57
    %1853 = vmatmul.bf16.gmra.mxu0 %v1843
    %v1854 = vpop.f32.mrf.mxu0
    %v1855 = vadd.f32 %v90, %v1854
    %v1856 = vpop.f32.mrf.mxu0
    %1857 = vdwg.mxu0
    %vm1858 = vcmp.gt.f32.partialorder %v1855, 0.0
    %v1859 = vmul.f32 %v1855, 0.01
    %v1860 = vsel %vm1858, %v1855, %v1859
    %v1861 = vpack.c.bf16 %v1860, %v1860
    %v1863 = vsel %vm173, %v1861, 0
    %1865 = vmatpush.bf16.msra.mxu0 0
    %1866 = vmatpush.bf16.msra.mxu0 0
    %1867 = vmatpush.bf16.msra.mxu0 0
    %1868 = vmatpush.bf16.msra.mxu0 0
    %1869 = vmatpush.bf16.msra.mxu0 0
    %1870 = vmatpush.bf16.msra.mxu0 0
    %1871 = vmatpush.bf16.msra.mxu0 %v395
    %1872 = vmatpush.bf16.msra.mxu0 %v393
    %1873 = vmatmul.bf16.gmra.mxu0 %v1863
    %v1874 = vpop.f32.mrf.mxu0
    %v1875 = vadd.f32 %v399, %v1874
    %v1876 = vpop.f32.mrf.mxu0
    %1877 = vdwg.mxu0
    %1879 = vrot.lane.b32.xlu0 %v1875, 32
    %v1880 = vpop.permute.xlu0 %1879
    %v1882 = vadd.f32 %v1660, %v1880
    %vm1883 = vcmp.gt.f32.partialorder %v1882, 0.0
    %v1884 = vmul.f32 %v1882, 0.01
    %v1885 = vsel %vm1883, %v1882, %v1884
    %vm1886 = vcmp.gt.f32.partialorder %v1660, 0.0
    %v1887 = vmul.f32 %v1660, 0.01
    %v1888 = vsel %vm1886, %v1660, %v1887
    %1890 = vrot.lane.b32.xlu0 %v1885, 96
    %v1891 = vpop.permute.xlu0 %1890
    %1894 = vrot.lane.b32.xlu0 %v1888, 96
    %v1895 = vpop.permute.xlu0 %1894
    %v1897 = vsel %vm173, %v1891, %v1895
    %v1898 = vpack.c.bf16 %v1897, %v1897
    %v1900 = vsel %vm441, %v1898, 0
    %1902 = vmatpush.bf16.msra.mxu0 0
    %1903 = vmatpush.bf16.msra.mxu0 0
    %1904 = vmatpush.bf16.msra.mxu0 0
    %1905 = vmatpush.bf16.msra.mxu0 0
    %1906 = vmatpush.bf16.msra.mxu0 %v87
    %1907 = vmatpush.bf16.msra.mxu0 %v86
    %1908 = vmatpush.bf16.msra.mxu0 %v85
    %1909 = vmatpush.bf16.msra.mxu0 %v84
    %1910 = vmatmul.bf16.gmra.mxu0 %v1900
    %v1911 = vpop.f32.mrf.mxu0
    %v1912 = vadd.f32 %v439, %v1911
    %v1913 = vpop.f32.mrf.mxu0
    %1914 = vdwg.mxu0
    %vm1915 = vcmp.gt.f32.partialorder %v1912, 0.0
    %v1916 = vmul.f32 %v1912, 0.01
    %v1917 = vsel %vm1915, %v1912, %v1916
    %v1918 = vpack.c.bf16 %v1917, %v1917
    %v1920 = vsel %vm441, %v1918, 0
    %1922 = vmatpush.bf16.msra.mxu0 0
    %1923 = vmatpush.bf16.msra.mxu0 0
    %1924 = vmatpush.bf16.msra.mxu0 0
    %1925 = vmatpush.bf16.msra.mxu0 0
    %1926 = vmatpush.bf16.msra.mxu0 %v473
    %1927 = vmatpush.bf16.msra.mxu0 %v471
    %1928 = vmatpush.bf16.msra.mxu0 %v469
    %1929 = vmatpush.bf16.msra.mxu0 %v467
    %1930 = vmatmul.bf16.gmra.mxu0 %v1920
    %v1931 = vpop.f32.mrf.mxu0
    %v1932 = vadd.f32 %v483, %v1931
    %v1933 = vpop.f32.mrf.mxu0
    %1934 = vdwg.mxu0
    %v1935 = vmul.f32 %v1932, 0.5
    %v1936 = vmul.f32 %v1935, 1.442695
    %v1937 = vpow.pop %v1936
    %1939 = vrot.lane.b32.xlu0 %v1937, 120
    %v1940 = vpop.permute.xlu0 %1939
    %v1942 = vmul.f32 %v1640, %v1940
    %v1943 = vadd.f32 %v1942, %v1932
    %v1944 = vpack.c.bf16 %v1943, %v1943
    %v1946 = vsel %vm258, %v1944, 0
    %1948 = vmatpush.bf16.msra.mxu0 0
    %1949 = vmatpush.bf16.msra.mxu0 0
    %1950 = vmatpush.bf16.msra.mxu0 0
    %1951 = vmatpush.bf16.msra.mxu0 0
    %1952 = vmatpush.bf16.msra.mxu0 0
    %1953 = vmatpush.bf16.msra.mxu0 0
    %1954 = vmatpush.bf16.msra.mxu0 0
    %1955 = vmatpush.bf16.msra.mxu0 %v524
    %1956 = vmatmul.bf16.gmra.mxu0 %v1946
    %v1957 = vpop.f32.mrf.mxu0
    %v1958 = vadd.f32 %v518, %v1957
    %v1959 = vpop.f32.mrf.mxu0
    %1960 = vdwg.mxu0
    %vm1961 = vcmp.gt.f32.partialorder %v1958, 0.0
    %v1962 = vmul.f32 %v1958, 0.01
    %v1963 = vsel %vm1961, %v1958, %v1962
    %v1964 = vpack.c.bf16 %v1963, %v1963
    %v1966 = vsel %vm173, %v1964, 0
    %1968 = vmatpush.bf16.msra.mxu0 0
    %1969 = vmatpush.bf16.msra.mxu0 0
    %1970 = vmatpush.bf16.msra.mxu0 0
    %1971 = vmatpush.bf16.msra.mxu0 0
    %1972 = vmatpush.bf16.msra.mxu0 0
    %1973 = vmatpush.bf16.msra.mxu0 0
    %1974 = vmatpush.bf16.msra.mxu0 %v553
    %1975 = vmatpush.bf16.msra.mxu0 %v552
    %1976 = vmatmul.bf16.gmra.mxu0 %v1966
    %v1977 = vpop.f32.mrf.mxu0
    %v1978 = vadd.f32 %v557, %v1977
    %v1979 = vpop.f32.mrf.mxu0
    %1980 = vdwg.mxu0
    %vm1981 = vcmp.gt.f32.partialorder %v1978, 0.0
    %v1982 = vmul.f32 %v1978, 0.01
    %v1983 = vsel %vm1981, %v1978, %v1982
    %v1984 = vpack.c.bf16 %v1983, %v1983
    %v1986 = vsel %vm173, %v1984, 0
    %1988 = vmatpush.bf16.msra.mxu0 0
    %1989 = vmatpush.bf16.msra.mxu0 0
    %1990 = vmatpush.bf16.msra.mxu0 0
    %1991 = vmatpush.bf16.msra.mxu0 0
    %1992 = vmatpush.bf16.msra.mxu0 0
    %1993 = vmatpush.bf16.msra.mxu0 0
    %1994 = vmatpush.bf16.msra.mxu0 %v70
    %1995 = vmatpush.bf16.msra.mxu0 %v69
    %1996 = vmatmul.bf16.gmra.mxu0 %v1986
    %v1997 = vpop.f32.mrf.mxu0
    %v1998 = vadd.f32 0.0, %v1997
    %v1999 = vpop.f32.mrf.mxu0
    %2000 = vdwg.mxu0
    %2002 = vrot.lane.b32.xlu0 %v1998, 96
    %v2003 = vpop.permute.xlu0 %2002
    %v2005 = vadd.f32 %v1660, %v2003
    %vm2006 = vcmp.gt.f32.partialorder %v2005, 0.0
    %v2007 = vmul.f32 %v2005, 0.01
    %v2008 = vsel %vm2006, %v2005, %v2007
    %v2009 = vpack.c.bf16 %v2008, %v2008
    %2011 = vrot.lane.b32.xlu0 %v2009, 32
    %v2012 = vpop.permute.xlu0 %2011
    %v2014 = vsel %vm173, %v2012, 0
    %2016 = vmatpush.bf16.msra.mxu0 0
    %2017 = vmatpush.bf16.msra.mxu0 0
    %2018 = vmatpush.bf16.msra.mxu0 0
    %2019 = vmatpush.bf16.msra.mxu0 0
    %2020 = vmatpush.bf16.msra.mxu0 0
    %2021 = vmatpush.bf16.msra.mxu0 0
    %2022 = vmatpush.bf16.msra.mxu0 %v610
    %2023 = vmatpush.bf16.msra.mxu0 %v608
    %2024 = vmatmul.bf16.gmra.mxu0 %v2014
    %v2025 = vpop.f32.mrf.mxu0
    %v2026 = vadd.f32 %v614, %v2025
    %v2027 = vpop.f32.mrf.mxu0
    %2028 = vdwg.mxu0
    %vm2029 = vcmp.gt.f32.partialorder %v2026, 0.0
    %v2030 = vmul.f32 %v2026, 0.01
    %v2031 = vsel %vm2029, %v2026, %v2030
    %v2032 = vpack.c.bf16 %v2031, %v2031
    %v2034 = vsel %vm173, %v2032, 0
    %2036 = vmatpush.bf16.msra.mxu0 0
    %2037 = vmatpush.bf16.msra.mxu0 0
    %2038 = vmatpush.bf16.msra.mxu0 0
    %2039 = vmatpush.bf16.msra.mxu0 0
    %2040 = vmatpush.bf16.msra.mxu0 0
    %2041 = vmatpush.bf16.msra.mxu0 0
    %2042 = vmatpush.bf16.msra.mxu0 %v639
    %2043 = vmatpush.bf16.msra.mxu0 %v637
    %2044 = vmatmul.bf16.gmra.mxu0 %v2034
    %v2045 = vpop.f32.mrf.mxu0
    %v2046 = vadd.f32 %v643, %v2045
    %v2047 = vpop.f32.mrf.mxu0
    %2048 = vdwg.mxu0
    %v2049 = vadd.f32 %v1875, %v1998
    %v2050 = vadd.f32 %v2049, %v1673
    %v2051 = vxor.u32 %v2050, 2147483648
    %v2052 = vmul.f32 %v2051, 1.442695
    %v2053 = vpow.pop %v2052
    %v2054 = vadd.f32 %v2053, 1.0
    %v2055 = vrcp.pop %v2054
    %v2056 = vmul.f32 %v2054, %v2055
    %v2057 = vsub.f32 1.0, %v2056
    %v2058 = vmul.f32 %v2055, %v2057
    %v2059 = vadd.f32 %v2055, %v2058
    %vm2060 = vweird.f32 %v2054
    %vm2061 = vweird.f32 %v2055
    %vm2062 = vmor %vm2060, %vm2061
    %v2063 = vsel %vm2062, %v2055, %v2059
    %v2064 = vand.u32 2147483647, %v2054
    %vm2065 = vcmp.eq.f32.partialorder %v2064, 8.507059e+37
    %v2066 = vand.u32 %v2054, 2147483648
    %v2067 = vor.u32 1.1754944e-38, %v2066
    %v2068 = vsel %vm2065, %v2067, %v2063
    %v2069 = vmul.f32 1.0, %v2068
    %2071 = vrot.lane.b32.xlu0 %v1673, 96
    %v2072 = vpop.permute.xlu0 %2071
    %v2074 = vmul.f32 %v2069, %v2072
    %2076 = vrot.lane.b32.xlu0 %v2074, 32
    %v2077 = vpop.permute.xlu0 %2076
    %v2079 = vadd.f32 %v2049, %v2077
    %v2080 = vtanh.pop %v2079
    %v2081 = vsub.f32 1.0, %v2069
    %2083 = vrot.lane.b32.xlu0 %v2080, 112
    %v2084 = vpop.permute.xlu0 %2083
    %v2086 = vmul.f32 %v2081, %v2084
    %2087 = vrot.lane.b32.xlu0 %v1634, 48
    %v2088 = vpop.permute.xlu0 %2087
    %v2090 = vmul.f32 %v2069, %v2088
    %v2091 = vadd.f32 %v2086, %v2090
    %2093 = vrot.lane.b32.xlu0 %v1932, 16
    %v2094 = vpop.permute.xlu0 %2093
    %v2096 = vsub.f32 %v1932, %v2094
    %2098 = vrot.lane.b32.xlu0 %v2096, 104
    %v2099 = vpop.permute.xlu0 %2098
    %v2101 = vsel %vm228, %v2099, 0.0
    %2102 = vadd.xlane.f32.xlu0 %v2101
    %v2103 = vpop.xlane.xlu0 %2102
    %2104 = vrot.lane.b32.xlu0 %v1932, 112
    %v2105 = vpop.permute.xlu0 %2104
    %v2107 = vsub.f32 %v1932, %v2105
    %v2108 = vmul.f32 %v2107, 1.442695
    %v2109 = vpow.pop %v2108
    %2111 = vrot.lane.b32.xlu0 %v2109, 120
    %v2112 = vpop.permute.xlu0 %2111
    %v2114 = vsel %vm228, %v2112, 0.0
    %2115 = vadd.xlane.f32.xlu0 %v2114
    %v2116 = vpop.xlane.xlu0 %2115
    %v2117 = vmul.f32 %v2107, %v2107
    %v2118 = vmul.f32 %v1932, 1.442695
    %v2119 = vpow.pop %v2118
    %2121 = vrot.lane.b32.xlu0 %v2119, 104
    %v2122 = vpop.permute.xlu0 %2121
    %v2124 = vrcp.pop %v2122
    %v2125 = vmul.f32 %v2122, %v2124
    %v2126 = vsub.f32 1.0, %v2125
    %v2127 = vmul.f32 %v2124, %v2126
    %v2128 = vadd.f32 %v2124, %v2127
    %vm2129 = vweird.f32 %v2122
    %vm2130 = vweird.f32 %v2124
    %vm2131 = vmor %vm2129, %vm2130
    %v2132 = vsel %vm2131, %v2124, %v2128
    %v2133 = vand.u32 2147483647, %v2122
    %vm2134 = vcmp.eq.f32.partialorder %v2133, 8.507059e+37
    %v2135 = vand.u32 %v2122, 2147483648
    %v2136 = vor.u32 1.1754944e-38, %v2135
    %v2137 = vsel %vm2134, %v2136, %v2132
    %v2138 = vmul.f32 %v2117, %v2137
    %v2139 = vsel %vm228, %v2138, 0.0
    %2140 = vadd.xlane.f32.xlu0 %v2139
    %v2141 = vpop.xlane.xlu0 %2140
    %v2142 = vsub.f32 %v2103, 8.0
    %v2143 = vadd.f32 %v2142, %v2116
    %v2144 = vadd.f32 %v2143, %v2141
    %v2145 = vsel %vm754, %v2144, 0.0
    %2146 = vadd.xlane.f32.xlu0 %v2145
    %v2147 = vpop.xlane.xlu0 %2146
    %v2148 = vrot.slane %v2147, 4
    %v2149 = vadd.f32 %v2147, %v2148
    %v2150 = vrot.slane %v2149, 2
    %v2151 = vadd.f32 %v2149, %v2150
    %v2152 = vrot.slane %v2151, 1
    %v2153 = vadd.f32 %v2151, %v2152
    %s2154 = vtos %v2153
    %v2155 = vstv %s2154
    %v2156 = vmul.f32 %v2155, 0.083333336
    %v2157 = vadd.f32 %v1477, %v2156
    %2159 = vrot.lane.b32.xlu0 %v2046, 14
    %v2160 = vpop.permute.xlu0 %2159
    %v2162 = vsub.f32 %v1638, %v2160
    %v2163 = vmul.f32 %v2162, %v2162
    %v2164 = vmul.f32 %v2046, 1.442695
    %v2165 = vpow.pop %v2164
    %2167 = vrot.lane.b32.xlu0 %v2165, 12
    %v2168 = vpop.permute.xlu0 %2167
    %v2170 = vrcp.pop %v2168
    %v2171 = vmul.f32 %v2168, %v2170
    %v2172 = vsub.f32 1.0, %v2171
    %v2173 = vmul.f32 %v2170, %v2172
    %v2174 = vadd.f32 %v2170, %v2173
    %vm2175 = vweird.f32 %v2168
    %vm2176 = vweird.f32 %v2170
    %vm2177 = vmor %vm2175, %vm2176
    %v2178 = vsel %vm2177, %v2170, %v2174
    %v2179 = vand.u32 2147483647, %v2168
    %vm2180 = vcmp.eq.f32.partialorder %v2179, 8.507059e+37
    %v2181 = vand.u32 %v2168, 2147483648
    %v2182 = vor.u32 1.1754944e-38, %v2181
    %v2183 = vsel %vm2180, %v2182, %v2178
    %v2184 = vmul.f32 %v2163, %v2183
    %2186 = vrot.lane.b32.xlu0 %v2184, 114
    %v2187 = vpop.permute.xlu0 %2186
    %v2189 = vsel %vm799, %v2187, 0.0
    %2190 = vadd.xlane.f32.xlu0 %v2189
    %v2191 = vpop.xlane.xlu0 %2190
    %2192 = vrot.lane.b32.xlu0 %v2046, 126
    %v2193 = vpop.permute.xlu0 %2192
    %v2195 = vsel %vm799, %v2193, 0.0
    %2196 = vadd.xlane.f32.xlu0 %v2195
    %v2197 = vpop.xlane.xlu0 %2196
    %v2198 = vadd.f32 %v2191, 3.675754
    %v2199 = vadd.f32 %v2198, %v2197
    %v2200 = vsel %vm754, %v2199, 0.0
    %2201 = vadd.xlane.f32.xlu0 %v2200
    %v2202 = vpop.xlane.xlu0 %2201
    %v2203 = vrot.slane %v2202, 4
    %v2204 = vadd.f32 %v2202, %v2203
    %v2205 = vrot.slane %v2204, 2
    %v2206 = vadd.f32 %v2204, %v2205
    %v2207 = vrot.slane %v2206, 1
    %v2208 = vadd.f32 %v2206, %v2207
    %s2209 = vtos %v2208
    %v2210 = vstv %s2209
    %v2211 = vmul.f32 %v2210, 0.083333336
    %v2212 = vadd.f32 %v1532, %v2211
    %v2213 = vpack.c.bf16 %v2091, %v2091
    %2215 = vrot.lane.b32.xlu0 %v2213, 80
    %v2216 = vpop.permute.xlu0 %2215
    %v2218 = vsel %vm482, %v2216, 0
    %2220 = vmatpush.bf16.msra.mxu0 0
    %2221 = vmatpush.bf16.msra.mxu0 0
    %2222 = vmatpush.bf16.msra.mxu0 0
    %2223 = vmatpush.bf16.msra.mxu0 0
    %2224 = vmatpush.bf16.msra.mxu0 0
    %2225 = vmatpush.bf16.msra.mxu0 0
    %2226 = vmatpush.bf16.msra.mxu0 0
    %2227 = vmatpush.bf16.msra.mxu0 %v830
    %2228 = vmatmul.bf16.gmra.mxu0 %v2218
    %v2229 = vpop.f32.mrf.mxu0
    %v2230 = vadd.f32 0.0, %v2229
    %v2231 = vpop.f32.mrf.mxu0
    %2232 = vdwg.mxu0
    %v2233 = vmul.f32 %v2230, %v111
    %v2234 = vsel %vm228, %v2233, 0.0
    %v2235 = vrot.slane %v2234, 4
    %v2236 = vadd.f32 %v2234, %v2235
    %v2237 = vrot.slane %v2236, 2
    %v2238 = vadd.f32 %v2236, %v2237
    %v2239 = vrot.slane %v2238, 1
    %v2240 = vadd.f32 %v2238, %v2239
    %v2241 = vmul.f32 %v2240, 0.33333334
    %v2242 = vmul.f32 %v111, %v2241
    %v2243 = vmul.f32 %v2230, %v115
    %v2244 = vsel %vm228, %v2243, 0.0
    %v2245 = vrot.slane %v2244, 4
    %v2246 = vadd.f32 %v2244, %v2245
    %v2247 = vrot.slane %v2246, 2
    %v2248 = vadd.f32 %v2246, %v2247
    %v2249 = vrot.slane %v2248, 1
    %v2250 = vadd.f32 %v2248, %v2249
    %v2251 = vmul.f32 %v2250, 0.33333334
    %v2252 = vmul.f32 %v115, %v2251
    %v2253 = vadd.f32 %v2242, %v2252
    %v2254 = vadd.f32 %v2253, %v870
    %v2255 = vmax.f32 %v2254, 0.0
    %v2256 = vpack.c.bf16 %v2255, %v2255
    %v2258 = vsel %vm258, %v2256, 0
    %2260 = vmatpush.bf16.msra.mxu0 0
    %2261 = vmatpush.bf16.msra.mxu0 0
    %2262 = vmatpush.bf16.msra.mxu0 0
    %2263 = vmatpush.bf16.msra.mxu0 0
    %2264 = vmatpush.bf16.msra.mxu0 0
    %2265 = vmatpush.bf16.msra.mxu0 0
    %2266 = vmatpush.bf16.msra.mxu0 0
    %2267 = vmatpush.bf16.msra.mxu0 %v885
    %2268 = vmatmul.bf16.gmra.mxu0 %v2258
    %v2269 = vpop.f32.mrf.mxu0
    %v2270 = vadd.f32 0.0, %v2269
    %v2271 = vpop.f32.mrf.mxu0
    %2272 = vdwg.mxu0
    %v2273 = vmul.f32 %v2270, %v111
    %v2274 = vsel %vm901, %v2273, 0.0
    %v2275 = vrot.slane %v2274, 4
    %v2276 = vadd.f32 %v2274, %v2275
    %v2277 = vrot.slane %v2276, 2
    %v2278 = vadd.f32 %v2276, %v2277
    %v2279 = vrot.slane %v2278, 1
    %v2280 = vadd.f32 %v2278, %v2279
    %v2281 = vmul.f32 %v2280, 0.33333334
    %v2282 = vmul.f32 %v111, %v2281
    %v2283 = vmul.f32 %v2270, %v115
    %v2284 = vsel %vm901, %v2283, 0.0
    %v2285 = vrot.slane %v2284, 4
    %v2286 = vadd.f32 %v2284, %v2285
    %v2287 = vrot.slane %v2286, 2
    %v2288 = vadd.f32 %v2286, %v2287
    %v2289 = vrot.slane %v2288, 1
    %v2290 = vadd.f32 %v2288, %v2289
    %v2291 = vmul.f32 %v2290, 0.33333334
    %v2292 = vmul.f32 %v115, %v2291
    %v2293 = vadd.f32 %v2282, %v2292
    %v2294 = vadd.f32 %v2293, %v923
    %2296 = vrot.lane.b32.xlu0 %v2091, 96
    %v2297 = vpop.permute.xlu0 %2296
    %v2299 = vsel %vm482, %v2294, %v2297
    %v2300 = vpack.c.bf16 %v2299, %v2299
    %v2302 = vsel %vm173, %v2300, 0
    %2304 = vmatpush.bf16.msra.mxu0 0
    %2305 = vmatpush.bf16.msra.mxu0 0
    %2306 = vmatpush.bf16.msra.mxu0 0
    %2307 = vmatpush.bf16.msra.mxu0 0
    %2308 = vmatpush.bf16.msra.mxu0 0
    %2309 = vmatpush.bf16.msra.mxu0 0
    %2310 = vmatpush.bf16.msra.mxu0 %v935
    %2311 = vmatpush.bf16.msra.mxu0 %v933
    %2312 = vmatmul.bf16.gmra.mxu0 %v2302
    %v2313 = vpop.f32.mrf.mxu0
    %v2314 = vadd.f32 %v939, %v2313
    %v2315 = vpop.f32.mrf.mxu0
    %2316 = vdwg.mxu0
    %s2317 = scalar_lea.vmem %s0, 24
    %v2318 = vld [vmem:[%s2317] sm:$0x3f]
    %s2319 = scalar_lea.vmem %s1, 24
    %v2320 = vld [vmem:[%s2319] sm:$0x3f]
    %2322 = vrot.lane.b32.xlu0 %v2314, 17
    %v2323 = vpop.permute.xlu0 %2322
    %v2325 = vsel %vm118, %v2318, %v2323
    %v2326 = vpack.c.bf16 %v2325, %v2325
    %v2328 = vsel %vm121, %v2326, 0
    %2330 = vmatpush.bf16.msra.mxu0 0
    %2331 = vmatpush.bf16.msra.mxu0 0
    %2332 = vmatpush.bf16.msra.mxu0 0
    %2333 = vmatpush.bf16.msra.mxu0 0
    %2334 = vmatpush.bf16.msra.mxu0 0
    %2335 = vmatpush.bf16.msra.mxu0 %v129
    %2336 = vmatpush.bf16.msra.mxu0 %v49
    %2337 = vmatpush.bf16.msra.mxu0 %v47
    %2338 = vmatmul.bf16.gmra.mxu0 %v2328
    %v2339 = vpop.f32.mrf.mxu0
    %v2340 = vadd.f32 0.0, %v2339
    %v2341 = vpop.f32.mrf.mxu0
    %2342 = vdwg.mxu0
    %2343 = vmatpush.bf16.msra.mxu0 0
    %2344 = vmatpush.bf16.msra.mxu0 0
    %2345 = vmatpush.bf16.msra.mxu0 0
    %2346 = vmatpush.bf16.msra.mxu0 0
    %2347 = vmatpush.bf16.msra.mxu0 0
    %2348 = vmatpush.bf16.msra.mxu0 %v132
    %2349 = vmatpush.bf16.msra.mxu0 %v50
    %2350 = vmatpush.bf16.msra.mxu0 %v48
    %2351 = vmatmul.bf16.gmra.mxu0 %v2328
    %v2352 = vpop.f32.mrf.mxu0
    %v2353 = vadd.f32 0.0, %v2352
    %v2354 = vpop.f32.mrf.mxu0
    %2355 = vdwg.mxu0
    %v2356 = vmax.f32 %v2340, 0.0
    %v2357 = vpack.c.bf16 %v2356, %v2356
    %v2359 = vsel %vm173, %v2357, 0
    %2361 = vmatpush.bf16.msra.mxu0 0
    %2362 = vmatpush.bf16.msra.mxu0 0
    %2363 = vmatpush.bf16.msra.mxu0 0
    %2364 = vmatpush.bf16.msra.mxu0 0
    %2365 = vmatpush.bf16.msra.mxu0 0
    %2366 = vmatpush.bf16.msra.mxu0 0
    %2367 = vmatpush.bf16.msra.mxu0 %v167
    %2368 = vmatpush.bf16.msra.mxu0 %v165
    %2369 = vmatmul.bf16.gmra.mxu0 %v2359
    %v2370 = vpop.f32.mrf.mxu0
    %v2371 = vadd.f32 %v171, %v2370
    %v2372 = vpop.f32.mrf.mxu0
    %2373 = vdwg.mxu0
    %v2374 = vsel %vm190, %v2371, -inf
    %2375 = vmax.xlane.f32.xlu0 %v2374
    %v2376 = vpop.xlane.xlu0 %2375
    %v2377 = vsub.f32 %v2371, %v2376
    %v2378 = vmul.f32 %v2377, 1.442695
    %v2379 = vpow.pop %v2378
    %v2380 = vsel %vm190, %v2379, 0.0
    %2381 = vadd.xlane.f32.xlu0 %v2380
    %v2382 = vpop.xlane.xlu0 %2381
    %v2383 = vrcp.pop %v2382
    %v2384 = vmul.f32 %v2379, %v2383
    %v2385 = vpack.c.bf16 %v2384, %v2384
    %v2387 = vsel %vm206, %v2385, 0
    %2389 = vmatpush.bf16.msra.mxu0 0
    %2390 = vmatpush.bf16.msra.mxu0 0
    %2391 = vmatpush.bf16.msra.mxu0 0
    %2392 = vmatpush.bf16.msra.mxu0 0
    %2393 = vmatpush.bf16.msra.mxu0 0
    %2394 = vmatpush.bf16.msra.mxu0 0
    %2395 = vmatpush.bf16.msra.mxu0 0
    %2396 = vmatpush.bf16.msra.mxu0 %v212
    %2397 = vmatmul.bf16.gmra.mxu0 %v2387
    %v2398 = vpop.f32.mrf.mxu0
    %v2399 = vadd.f32 0.0, %v2398
    %v2400 = vpop.f32.mrf.mxu0
    %2401 = vdwg.mxu0
    %v2402 = vmul.f32 %v2399, %v111
    %v2403 = vsel %vm228, %v2402, 0.0
    %v2404 = vrot.slane %v2403, 4
    %v2405 = vadd.f32 %v2403, %v2404
    %v2406 = vrot.slane %v2405, 2
    %v2407 = vadd.f32 %v2405, %v2406
    %v2408 = vrot.slane %v2407, 1
    %v2409 = vadd.f32 %v2407, %v2408
    %v2410 = vmul.f32 %v2409, 0.33333334
    %v2411 = vmul.f32 %v111, %v2410
    %v2412 = vmul.f32 %v2399, %v115
    %v2413 = vsel %vm228, %v2412, 0.0
    %v2414 = vrot.slane %v2413, 4
    %v2415 = vadd.f32 %v2413, %v2414
    %v2416 = vrot.slane %v2415, 2
    %v2417 = vadd.f32 %v2415, %v2416
    %v2418 = vrot.slane %v2417, 1
    %v2419 = vadd.f32 %v2417, %v2418
    %v2420 = vmul.f32 %v2419, 0.33333334
    %v2421 = vmul.f32 %v115, %v2420
    %v2422 = vadd.f32 %v2411, %v2421
    %v2423 = vadd.f32 %v2422, %v250
    %v2424 = vmax.f32 %v2423, 0.0
    %v2425 = vpack.c.bf16 %v2424, %v2424
    %v2427 = vsel %vm258, %v2425, 0
    %2429 = vmatpush.bf16.msra.mxu0 0
    %2430 = vmatpush.bf16.msra.mxu0 0
    %2431 = vmatpush.bf16.msra.mxu0 0
    %2432 = vmatpush.bf16.msra.mxu0 0
    %2433 = vmatpush.bf16.msra.mxu0 0
    %2434 = vmatpush.bf16.msra.mxu0 0
    %2435 = vmatpush.bf16.msra.mxu0 0
    %2436 = vmatpush.bf16.msra.mxu0 %v264
    %2437 = vmatmul.bf16.gmra.mxu0 %v2427
    %v2438 = vpop.f32.mrf.mxu0
    %v2439 = vadd.f32 0.0, %v2438
    %v2440 = vpop.f32.mrf.mxu0
    %2441 = vdwg.mxu0
    %v2442 = vmul.f32 %v2439, %v111
    %v2443 = vsel %vm190, %v2442, 0.0
    %v2444 = vrot.slane %v2443, 4
    %v2445 = vadd.f32 %v2443, %v2444
    %v2446 = vrot.slane %v2445, 2
    %v2447 = vadd.f32 %v2445, %v2446
    %v2448 = vrot.slane %v2447, 1
    %v2449 = vadd.f32 %v2447, %v2448
    %v2450 = vmul.f32 %v2449, 0.33333334
    %v2451 = vmul.f32 %v111, %v2450
    %v2452 = vmul.f32 %v2439, %v115
    %v2453 = vsel %vm190, %v2452, 0.0
    %v2454 = vrot.slane %v2453, 4
    %v2455 = vadd.f32 %v2453, %v2454
    %v2456 = vrot.slane %v2455, 2
    %v2457 = vadd.f32 %v2455, %v2456
    %v2458 = vrot.slane %v2457, 1
    %v2459 = vadd.f32 %v2457, %v2458
    %v2460 = vmul.f32 %v2459, 0.33333334
    %v2461 = vmul.f32 %v115, %v2460
    %v2462 = vadd.f32 %v2451, %v2461
    %v2463 = vadd.f32 %v2462, %v301
    %2465 = vrot.lane.b32.xlu0 %v2463, 4
    %v2466 = vpop.permute.xlu0 %2465
    %v2468 = vsel %vm206, %v2384, %v2466
    %v2469 = vpack.c.bf16 %v2468, %v2468
    %v2471 = vsel %vm258, %v2469, 0
    %2473 = vmatpush.bf16.msra.mxu0 0
    %2474 = vmatpush.bf16.msra.mxu0 0
    %2475 = vmatpush.bf16.msra.mxu0 0
    %2476 = vmatpush.bf16.msra.mxu0 0
    %2477 = vmatpush.bf16.msra.mxu0 0
    %2478 = vmatpush.bf16.msra.mxu0 0
    %2479 = vmatpush.bf16.msra.mxu0 0
    %2480 = vmatpush.bf16.msra.mxu0 %v319
    %2481 = vmatmul.bf16.gmra.mxu0 %v2471
    %v2482 = vpop.f32.mrf.mxu0
    %v2483 = vadd.f32 %v313, %v2482
    %v2484 = vpop.f32.mrf.mxu0
    %2485 = vdwg.mxu0
    %v2486 = vsel %vm190, %v2483, -inf
    %2487 = vmax.xlane.f32.xlu0 %v2486
    %v2488 = vpop.xlane.xlu0 %2487
    %v2489 = vsub.f32 %v2483, %v2488
    %v2490 = vmul.f32 %v2489, 1.442695
    %v2491 = vpow.pop %v2490
    %v2492 = vsel %vm190, %v2491, 0.0
    %2493 = vadd.xlane.f32.xlu0 %v2492
    %v2494 = vpop.xlane.xlu0 %2493
    %v2495 = vrcp.pop %v2494
    %v2496 = vmul.f32 %v2491, %v2495
    %2498 = vrot.lane.b32.xlu0 %v2496, 6
    %v2499 = vpop.permute.xlu0 %2498
    %v2501 = vmul.f32 %v2318, %v2499
    %2503 = vrot.lane.b32.xlu0 %v2501, 122
    %v2504 = vpop.permute.xlu0 %2503
    %v2506 = vsel %vm190, %v2504, 0.0
    %2507 = vadd.xlane.f32.xlu0 %v2506
    %v2508 = vpop.xlane.xlu0 %2507
    %v2509 = vrot.slane %v2508, 4
    %v2510 = vadd.f32 %v2508, %v2509
    %v2511 = vrot.slane %v2510, 2
    %v2512 = vadd.f32 %v2510, %v2511
    %v2513 = vrot.slane %v2512, 1
    %v2514 = vadd.f32 %v2512, %v2513
    %s2515 = vtos %v2514
    %v2516 = vstv %s2515
    %v2517 = vsub.f32 %v1837, %v2516
    %vm2518 = vcmp.gt.f32.partialorder %v2353, 0.0
    %v2519 = vmul.f32 %v2353, 0.01
    %v2520 = vsel %vm2518, %v2353, %v2519
    %v2521 = vpack.c.bf16 %v2520, %v2520
    %v2523 = vsel %vm173, %v2521, 0
    %2525 = vmatpush.bf16.msra.mxu0 0
    %2526 = vmatpush.bf16.msra.mxu0 0
    %2527 = vmatpush.bf16.msra.mxu0 0
    %2528 = vmatpush.bf16.msra.mxu0 0
    %2529 = vmatpush.bf16.msra.mxu0 0
    %2530 = vmatpush.bf16.msra.mxu0 0
    %2531 = vmatpush.bf16.msra.mxu0 %v58
    %2532 = vmatpush.bf16.msra.mxu0 %v57
    %2533 = vmatmul.bf16.gmra.mxu0 %v2523
    %v2534 = vpop.f32.mrf.mxu0
    %v2535 = vadd.f32 %v90, %v2534
    %v2536 = vpop.f32.mrf.mxu0
    %2537 = vdwg.mxu0
    %vm2538 = vcmp.gt.f32.partialorder %v2535, 0.0
    %v2539 = vmul.f32 %v2535, 0.01
    %v2540 = vsel %vm2538, %v2535, %v2539
    %v2541 = vpack.c.bf16 %v2540, %v2540
    %v2543 = vsel %vm173, %v2541, 0
    %2545 = vmatpush.bf16.msra.mxu0 0
    %2546 = vmatpush.bf16.msra.mxu0 0
    %2547 = vmatpush.bf16.msra.mxu0 0
    %2548 = vmatpush.bf16.msra.mxu0 0
    %2549 = vmatpush.bf16.msra.mxu0 0
    %2550 = vmatpush.bf16.msra.mxu0 0
    %2551 = vmatpush.bf16.msra.mxu0 %v395
    %2552 = vmatpush.bf16.msra.mxu0 %v393
    %2553 = vmatmul.bf16.gmra.mxu0 %v2543
    %v2554 = vpop.f32.mrf.mxu0
    %v2555 = vadd.f32 %v399, %v2554
    %v2556 = vpop.f32.mrf.mxu0
    %2557 = vdwg.mxu0
    %2559 = vrot.lane.b32.xlu0 %v2555, 32
    %v2560 = vpop.permute.xlu0 %2559
    %v2562 = vadd.f32 %v2340, %v2560
    %vm2563 = vcmp.gt.f32.partialorder %v2562, 0.0
    %v2564 = vmul.f32 %v2562, 0.01
    %v2565 = vsel %vm2563, %v2562, %v2564
    %vm2566 = vcmp.gt.f32.partialorder %v2340, 0.0
    %v2567 = vmul.f32 %v2340, 0.01
    %v2568 = vsel %vm2566, %v2340, %v2567
    %2570 = vrot.lane.b32.xlu0 %v2565, 96
    %v2571 = vpop.permute.xlu0 %2570
    %2574 = vrot.lane.b32.xlu0 %v2568, 96
    %v2575 = vpop.permute.xlu0 %2574
    %v2577 = vsel %vm173, %v2571, %v2575
    %v2578 = vpack.c.bf16 %v2577, %v2577
    %v2580 = vsel %vm441, %v2578, 0
    %2582 = vmatpush.bf16.msra.mxu0 0
    %2583 = vmatpush.bf16.msra.mxu0 0
    %2584 = vmatpush.bf16.msra.mxu0 0
    %2585 = vmatpush.bf16.msra.mxu0 0
    %2586 = vmatpush.bf16.msra.mxu0 %v87
    %2587 = vmatpush.bf16.msra.mxu0 %v86
    %2588 = vmatpush.bf16.msra.mxu0 %v85
    %2589 = vmatpush.bf16.msra.mxu0 %v84
    %2590 = vmatmul.bf16.gmra.mxu0 %v2580
    %v2591 = vpop.f32.mrf.mxu0
    %v2592 = vadd.f32 %v439, %v2591
    %v2593 = vpop.f32.mrf.mxu0
    %2594 = vdwg.mxu0
    %vm2595 = vcmp.gt.f32.partialorder %v2592, 0.0
    %v2596 = vmul.f32 %v2592, 0.01
    %v2597 = vsel %vm2595, %v2592, %v2596
    %v2598 = vpack.c.bf16 %v2597, %v2597
    %v2600 = vsel %vm441, %v2598, 0
    %2602 = vmatpush.bf16.msra.mxu0 0
    %2603 = vmatpush.bf16.msra.mxu0 0
    %2604 = vmatpush.bf16.msra.mxu0 0
    %2605 = vmatpush.bf16.msra.mxu0 0
    %2606 = vmatpush.bf16.msra.mxu0 %v473
    %2607 = vmatpush.bf16.msra.mxu0 %v471
    %2608 = vmatpush.bf16.msra.mxu0 %v469
    %2609 = vmatpush.bf16.msra.mxu0 %v467
    %2610 = vmatmul.bf16.gmra.mxu0 %v2600
    %v2611 = vpop.f32.mrf.mxu0
    %v2612 = vadd.f32 %v483, %v2611
    %v2613 = vpop.f32.mrf.mxu0
    %2614 = vdwg.mxu0
    %v2615 = vmul.f32 %v2612, 0.5
    %v2616 = vmul.f32 %v2615, 1.442695
    %v2617 = vpow.pop %v2616
    %2619 = vrot.lane.b32.xlu0 %v2617, 120
    %v2620 = vpop.permute.xlu0 %2619
    %v2622 = vmul.f32 %v2320, %v2620
    %v2623 = vadd.f32 %v2622, %v2612
    %v2624 = vpack.c.bf16 %v2623, %v2623
    %v2626 = vsel %vm258, %v2624, 0
    %2628 = vmatpush.bf16.msra.mxu0 0
    %2629 = vmatpush.bf16.msra.mxu0 0
    %2630 = vmatpush.bf16.msra.mxu0 0
    %2631 = vmatpush.bf16.msra.mxu0 0
    %2632 = vmatpush.bf16.msra.mxu0 0
    %2633 = vmatpush.bf16.msra.mxu0 0
    %2634 = vmatpush.bf16.msra.mxu0 0
    %2635 = vmatpush.bf16.msra.mxu0 %v524
    %2636 = vmatmul.bf16.gmra.mxu0 %v2626
    %v2637 = vpop.f32.mrf.mxu0
    %v2638 = vadd.f32 %v518, %v2637
    %v2639 = vpop.f32.mrf.mxu0
    %2640 = vdwg.mxu0
    %vm2641 = vcmp.gt.f32.partialorder %v2638, 0.0
    %v2642 = vmul.f32 %v2638, 0.01
    %v2643 = vsel %vm2641, %v2638, %v2642
    %v2644 = vpack.c.bf16 %v2643, %v2643
    %v2646 = vsel %vm173, %v2644, 0
    %2648 = vmatpush.bf16.msra.mxu0 0
    %2649 = vmatpush.bf16.msra.mxu0 0
    %2650 = vmatpush.bf16.msra.mxu0 0
    %2651 = vmatpush.bf16.msra.mxu0 0
    %2652 = vmatpush.bf16.msra.mxu0 0
    %2653 = vmatpush.bf16.msra.mxu0 0
    %2654 = vmatpush.bf16.msra.mxu0 %v553
    %2655 = vmatpush.bf16.msra.mxu0 %v552
    %2656 = vmatmul.bf16.gmra.mxu0 %v2646
    %v2657 = vpop.f32.mrf.mxu0
    %v2658 = vadd.f32 %v557, %v2657
    %v2659 = vpop.f32.mrf.mxu0
    %2660 = vdwg.mxu0
    %vm2661 = vcmp.gt.f32.partialorder %v2658, 0.0
    %v2662 = vmul.f32 %v2658, 0.01
    %v2663 = vsel %vm2661, %v2658, %v2662
    %v2664 = vpack.c.bf16 %v2663, %v2663
    %v2666 = vsel %vm173, %v2664, 0
    %2668 = vmatpush.bf16.msra.mxu0 0
    %2669 = vmatpush.bf16.msra.mxu0 0
    %2670 = vmatpush.bf16.msra.mxu0 0
    %2671 = vmatpush.bf16.msra.mxu0 0
    %2672 = vmatpush.bf16.msra.mxu0 0
    %2673 = vmatpush.bf16.msra.mxu0 0
    %2674 = vmatpush.bf16.msra.mxu0 %v70
    %2675 = vmatpush.bf16.msra.mxu0 %v69
    %2676 = vmatmul.bf16.gmra.mxu0 %v2666
    %v2677 = vpop.f32.mrf.mxu0
    %v2678 = vadd.f32 0.0, %v2677
    %v2679 = vpop.f32.mrf.mxu0
    %2680 = vdwg.mxu0
    %2682 = vrot.lane.b32.xlu0 %v2678, 96
    %v2683 = vpop.permute.xlu0 %2682
    %v2685 = vadd.f32 %v2340, %v2683
    %vm2686 = vcmp.gt.f32.partialorder %v2685, 0.0
    %v2687 = vmul.f32 %v2685, 0.01
    %v2688 = vsel %vm2686, %v2685, %v2687
    %v2689 = vpack.c.bf16 %v2688, %v2688
    %2691 = vrot.lane.b32.xlu0 %v2689, 32
    %v2692 = vpop.permute.xlu0 %2691
    %v2694 = vsel %vm173, %v2692, 0
    %2696 = vmatpush.bf16.msra.mxu0 0
    %2697 = vmatpush.bf16.msra.mxu0 0
    %2698 = vmatpush.bf16.msra.mxu0 0
    %2699 = vmatpush.bf16.msra.mxu0 0
    %2700 = vmatpush.bf16.msra.mxu0 0
    %2701 = vmatpush.bf16.msra.mxu0 0
    %2702 = vmatpush.bf16.msra.mxu0 %v610
    %2703 = vmatpush.bf16.msra.mxu0 %v608
    %2704 = vmatmul.bf16.gmra.mxu0 %v2694
    %v2705 = vpop.f32.mrf.mxu0
    %v2706 = vadd.f32 %v614, %v2705
    %v2707 = vpop.f32.mrf.mxu0
    %2708 = vdwg.mxu0
    %vm2709 = vcmp.gt.f32.partialorder %v2706, 0.0
    %v2710 = vmul.f32 %v2706, 0.01
    %v2711 = vsel %vm2709, %v2706, %v2710
    %v2712 = vpack.c.bf16 %v2711, %v2711
    %v2714 = vsel %vm173, %v2712, 0
    %2716 = vmatpush.bf16.msra.mxu0 0
    %2717 = vmatpush.bf16.msra.mxu0 0
    %2718 = vmatpush.bf16.msra.mxu0 0
    %2719 = vmatpush.bf16.msra.mxu0 0
    %2720 = vmatpush.bf16.msra.mxu0 0
    %2721 = vmatpush.bf16.msra.mxu0 0
    %2722 = vmatpush.bf16.msra.mxu0 %v639
    %2723 = vmatpush.bf16.msra.mxu0 %v637
    %2724 = vmatmul.bf16.gmra.mxu0 %v2714
    %v2725 = vpop.f32.mrf.mxu0
    %v2726 = vadd.f32 %v643, %v2725
    %v2727 = vpop.f32.mrf.mxu0
    %2728 = vdwg.mxu0
    %v2729 = vadd.f32 %v2555, %v2678
    %v2730 = vadd.f32 %v2729, %v2353
    %v2731 = vxor.u32 %v2730, 2147483648
    %v2732 = vmul.f32 %v2731, 1.442695
    %v2733 = vpow.pop %v2732
    %v2734 = vadd.f32 %v2733, 1.0
    %v2735 = vrcp.pop %v2734
    %v2736 = vmul.f32 %v2734, %v2735
    %v2737 = vsub.f32 1.0, %v2736
    %v2738 = vmul.f32 %v2735, %v2737
    %v2739 = vadd.f32 %v2735, %v2738
    %vm2740 = vweird.f32 %v2734
    %vm2741 = vweird.f32 %v2735
    %vm2742 = vmor %vm2740, %vm2741
    %v2743 = vsel %vm2742, %v2735, %v2739
    %v2744 = vand.u32 2147483647, %v2734
    %vm2745 = vcmp.eq.f32.partialorder %v2744, 8.507059e+37
    %v2746 = vand.u32 %v2734, 2147483648
    %v2747 = vor.u32 1.1754944e-38, %v2746
    %v2748 = vsel %vm2745, %v2747, %v2743
    %v2749 = vmul.f32 1.0, %v2748
    %2751 = vrot.lane.b32.xlu0 %v2353, 96
    %v2752 = vpop.permute.xlu0 %2751
    %v2754 = vmul.f32 %v2749, %v2752
    %2756 = vrot.lane.b32.xlu0 %v2754, 32
    %v2757 = vpop.permute.xlu0 %2756
    %v2759 = vadd.f32 %v2729, %v2757
    %v2760 = vtanh.pop %v2759
    %v2761 = vsub.f32 1.0, %v2749
    %2763 = vrot.lane.b32.xlu0 %v2760, 112
    %v2764 = vpop.permute.xlu0 %2763
    %v2766 = vmul.f32 %v2761, %v2764
    %2767 = vrot.lane.b32.xlu0 %v2314, 48
    %v2768 = vpop.permute.xlu0 %2767
    %v2770 = vmul.f32 %v2749, %v2768
    %v2771 = vadd.f32 %v2766, %v2770
    %2773 = vrot.lane.b32.xlu0 %v2612, 16
    %v2774 = vpop.permute.xlu0 %2773
    %v2776 = vsub.f32 %v2612, %v2774
    %2778 = vrot.lane.b32.xlu0 %v2776, 104
    %v2779 = vpop.permute.xlu0 %2778
    %v2781 = vsel %vm228, %v2779, 0.0
    %2782 = vadd.xlane.f32.xlu0 %v2781
    %v2783 = vpop.xlane.xlu0 %2782
    %2784 = vrot.lane.b32.xlu0 %v2612, 112
    %v2785 = vpop.permute.xlu0 %2784
    %v2787 = vsub.f32 %v2612, %v2785
    %v2788 = vmul.f32 %v2787, 1.442695
    %v2789 = vpow.pop %v2788
    %2791 = vrot.lane.b32.xlu0 %v2789, 120
    %v2792 = vpop.permute.xlu0 %2791
    %v2794 = vsel %vm228, %v2792, 0.0
    %2795 = vadd.xlane.f32.xlu0 %v2794
    %v2796 = vpop.xlane.xlu0 %2795
    %v2797 = vmul.f32 %v2787, %v2787
    %v2798 = vmul.f32 %v2612, 1.442695
    %v2799 = vpow.pop %v2798
    %2801 = vrot.lane.b32.xlu0 %v2799, 104
    %v2802 = vpop.permute.xlu0 %2801
    %v2804 = vrcp.pop %v2802
    %v2805 = vmul.f32 %v2802, %v2804
    %v2806 = vsub.f32 1.0, %v2805
    %v2807 = vmul.f32 %v2804, %v2806
    %v2808 = vadd.f32 %v2804, %v2807
    %vm2809 = vweird.f32 %v2802
    %vm2810 = vweird.f32 %v2804
    %vm2811 = vmor %vm2809, %vm2810
    %v2812 = vsel %vm2811, %v2804, %v2808
    %v2813 = vand.u32 2147483647, %v2802
    %vm2814 = vcmp.eq.f32.partialorder %v2813, 8.507059e+37
    %v2815 = vand.u32 %v2802, 2147483648
    %v2816 = vor.u32 1.1754944e-38, %v2815
    %v2817 = vsel %vm2814, %v2816, %v2812
    %v2818 = vmul.f32 %v2797, %v2817
    %v2819 = vsel %vm228, %v2818, 0.0
    %2820 = vadd.xlane.f32.xlu0 %v2819
    %v2821 = vpop.xlane.xlu0 %2820
    %v2822 = vsub.f32 %v2783, 8.0
    %v2823 = vadd.f32 %v2822, %v2796
    %v2824 = vadd.f32 %v2823, %v2821
    %v2825 = vsel %vm754, %v2824, 0.0
    %2826 = vadd.xlane.f32.xlu0 %v2825
    %v2827 = vpop.xlane.xlu0 %2826
    %v2828 = vrot.slane %v2827, 4
    %v2829 = vadd.f32 %v2827, %v2828
    %v2830 = vrot.slane %v2829, 2
    %v2831 = vadd.f32 %v2829, %v2830
    %v2832 = vrot.slane %v2831, 1
    %v2833 = vadd.f32 %v2831, %v2832
    %s2834 = vtos %v2833
    %v2835 = vstv %s2834
    %v2836 = vmul.f32 %v2835, 0.083333336
    %v2837 = vadd.f32 %v2157, %v2836
    %2839 = vrot.lane.b32.xlu0 %v2726, 14
    %v2840 = vpop.permute.xlu0 %2839
    %v2842 = vsub.f32 %v2318, %v2840
    %v2843 = vmul.f32 %v2842, %v2842
    %v2844 = vmul.f32 %v2726, 1.442695
    %v2845 = vpow.pop %v2844
    %2847 = vrot.lane.b32.xlu0 %v2845, 12
    %v2848 = vpop.permute.xlu0 %2847
    %v2850 = vrcp.pop %v2848
    %v2851 = vmul.f32 %v2848, %v2850
    %v2852 = vsub.f32 1.0, %v2851
    %v2853 = vmul.f32 %v2850, %v2852
    %v2854 = vadd.f32 %v2850, %v2853
    %vm2855 = vweird.f32 %v2848
    %vm2856 = vweird.f32 %v2850
    %vm2857 = vmor %vm2855, %vm2856
    %v2858 = vsel %vm2857, %v2850, %v2854
    %v2859 = vand.u32 2147483647, %v2848
    %vm2860 = vcmp.eq.f32.partialorder %v2859, 8.507059e+37
    %v2861 = vand.u32 %v2848, 2147483648
    %v2862 = vor.u32 1.1754944e-38, %v2861
    %v2863 = vsel %vm2860, %v2862, %v2858
    %v2864 = vmul.f32 %v2843, %v2863
    %2866 = vrot.lane.b32.xlu0 %v2864, 114
    %v2867 = vpop.permute.xlu0 %2866
    %v2869 = vsel %vm799, %v2867, 0.0
    %2870 = vadd.xlane.f32.xlu0 %v2869
    %v2871 = vpop.xlane.xlu0 %2870
    %2872 = vrot.lane.b32.xlu0 %v2726, 126
    %v2873 = vpop.permute.xlu0 %2872
    %v2875 = vsel %vm799, %v2873, 0.0
    %2876 = vadd.xlane.f32.xlu0 %v2875
    %v2877 = vpop.xlane.xlu0 %2876
    %v2878 = vadd.f32 %v2871, 3.675754
    %v2879 = vadd.f32 %v2878, %v2877
    %v2880 = vsel %vm754, %v2879, 0.0
    %2881 = vadd.xlane.f32.xlu0 %v2880
    %v2882 = vpop.xlane.xlu0 %2881
    %v2883 = vrot.slane %v2882, 4
    %v2884 = vadd.f32 %v2882, %v2883
    %v2885 = vrot.slane %v2884, 2
    %v2886 = vadd.f32 %v2884, %v2885
    %v2887 = vrot.slane %v2886, 1
    %v2888 = vadd.f32 %v2886, %v2887
    %s2889 = vtos %v2888
    %v2890 = vstv %s2889
    %v2891 = vmul.f32 %v2890, 0.083333336
    %v2892 = vadd.f32 %v2212, %v2891
    %v2893 = vpack.c.bf16 %v2771, %v2771
    %2895 = vrot.lane.b32.xlu0 %v2893, 80
    %v2896 = vpop.permute.xlu0 %2895
    %v2898 = vsel %vm482, %v2896, 0
    %2900 = vmatpush.bf16.msra.mxu0 0
    %2901 = vmatpush.bf16.msra.mxu0 0
    %2902 = vmatpush.bf16.msra.mxu0 0
    %2903 = vmatpush.bf16.msra.mxu0 0
    %2904 = vmatpush.bf16.msra.mxu0 0
    %2905 = vmatpush.bf16.msra.mxu0 0
    %2906 = vmatpush.bf16.msra.mxu0 0
    %2907 = vmatpush.bf16.msra.mxu0 %v830
    %2908 = vmatmul.bf16.gmra.mxu0 %v2898
    %v2909 = vpop.f32.mrf.mxu0
    %v2910 = vadd.f32 0.0, %v2909
    %v2911 = vpop.f32.mrf.mxu0
    %2912 = vdwg.mxu0
    %v2913 = vmul.f32 %v2910, %v111
    %v2914 = vsel %vm228, %v2913, 0.0
    %v2915 = vrot.slane %v2914, 4
    %v2916 = vadd.f32 %v2914, %v2915
    %v2917 = vrot.slane %v2916, 2
    %v2918 = vadd.f32 %v2916, %v2917
    %v2919 = vrot.slane %v2918, 1
    %v2920 = vadd.f32 %v2918, %v2919
    %v2921 = vmul.f32 %v2920, 0.33333334
    %v2922 = vmul.f32 %v111, %v2921
    %v2923 = vmul.f32 %v2910, %v115
    %v2924 = vsel %vm228, %v2923, 0.0
    %v2925 = vrot.slane %v2924, 4
    %v2926 = vadd.f32 %v2924, %v2925
    %v2927 = vrot.slane %v2926, 2
    %v2928 = vadd.f32 %v2926, %v2927
    %v2929 = vrot.slane %v2928, 1
    %v2930 = vadd.f32 %v2928, %v2929
    %v2931 = vmul.f32 %v2930, 0.33333334
    %v2932 = vmul.f32 %v115, %v2931
    %v2933 = vadd.f32 %v2922, %v2932
    %v2934 = vadd.f32 %v2933, %v870
    %v2935 = vmax.f32 %v2934, 0.0
    %v2936 = vpack.c.bf16 %v2935, %v2935
    %v2938 = vsel %vm258, %v2936, 0
    %2940 = vmatpush.bf16.msra.mxu0 0
    %2941 = vmatpush.bf16.msra.mxu0 0
    %2942 = vmatpush.bf16.msra.mxu0 0
    %2943 = vmatpush.bf16.msra.mxu0 0
    %2944 = vmatpush.bf16.msra.mxu0 0
    %2945 = vmatpush.bf16.msra.mxu0 0
    %2946 = vmatpush.bf16.msra.mxu0 0
    %2947 = vmatpush.bf16.msra.mxu0 %v885
    %2948 = vmatmul.bf16.gmra.mxu0 %v2938
    %v2949 = vpop.f32.mrf.mxu0
    %v2950 = vadd.f32 0.0, %v2949
    %v2951 = vpop.f32.mrf.mxu0
    %2952 = vdwg.mxu0
    %v2953 = vmul.f32 %v2950, %v111
    %v2954 = vsel %vm901, %v2953, 0.0
    %v2955 = vrot.slane %v2954, 4
    %v2956 = vadd.f32 %v2954, %v2955
    %v2957 = vrot.slane %v2956, 2
    %v2958 = vadd.f32 %v2956, %v2957
    %v2959 = vrot.slane %v2958, 1
    %v2960 = vadd.f32 %v2958, %v2959
    %v2961 = vmul.f32 %v2960, 0.33333334
    %v2962 = vmul.f32 %v111, %v2961
    %v2963 = vmul.f32 %v2950, %v115
    %v2964 = vsel %vm901, %v2963, 0.0
    %v2965 = vrot.slane %v2964, 4
    %v2966 = vadd.f32 %v2964, %v2965
    %v2967 = vrot.slane %v2966, 2
    %v2968 = vadd.f32 %v2966, %v2967
    %v2969 = vrot.slane %v2968, 1
    %v2970 = vadd.f32 %v2968, %v2969
    %v2971 = vmul.f32 %v2970, 0.33333334
    %v2972 = vmul.f32 %v115, %v2971
    %v2973 = vadd.f32 %v2962, %v2972
    %v2974 = vadd.f32 %v2973, %v923
    %2976 = vrot.lane.b32.xlu0 %v2771, 96
    %v2977 = vpop.permute.xlu0 %2976
    %v2979 = vsel %vm482, %v2974, %v2977
    %v2980 = vpack.c.bf16 %v2979, %v2979
    %v2982 = vsel %vm173, %v2980, 0
    %2984 = vmatpush.bf16.msra.mxu0 0
    %2985 = vmatpush.bf16.msra.mxu0 0
    %2986 = vmatpush.bf16.msra.mxu0 0
    %2987 = vmatpush.bf16.msra.mxu0 0
    %2988 = vmatpush.bf16.msra.mxu0 0
    %2989 = vmatpush.bf16.msra.mxu0 0
    %2990 = vmatpush.bf16.msra.mxu0 %v935
    %2991 = vmatpush.bf16.msra.mxu0 %v933
    %2992 = vmatmul.bf16.gmra.mxu0 %v2982
    %v2993 = vpop.f32.mrf.mxu0
    %v2994 = vadd.f32 %v939, %v2993
    %v2995 = vpop.f32.mrf.mxu0
    %2996 = vdwg.mxu0
    %s2997 = scalar_lea.vmem %s0, 32
    %v2998 = vld [vmem:[%s2997] sm:$0x3f]
    %s2999 = scalar_lea.vmem %s1, 32
    %v3000 = vld [vmem:[%s2999] sm:$0x3f]
    %3002 = vrot.lane.b32.xlu0 %v2994, 17
    %v3003 = vpop.permute.xlu0 %3002
    %v3005 = vsel %vm118, %v2998, %v3003
    %v3006 = vpack.c.bf16 %v3005, %v3005
    %v3008 = vsel %vm121, %v3006, 0
    %3010 = vmatpush.bf16.msra.mxu0 0
    %3011 = vmatpush.bf16.msra.mxu0 0
    %3012 = vmatpush.bf16.msra.mxu0 0
    %3013 = vmatpush.bf16.msra.mxu0 0
    %3014 = vmatpush.bf16.msra.mxu0 0
    %3015 = vmatpush.bf16.msra.mxu0 %v129
    %3016 = vmatpush.bf16.msra.mxu0 %v49
    %3017 = vmatpush.bf16.msra.mxu0 %v47
    %3018 = vmatmul.bf16.gmra.mxu0 %v3008
    %v3019 = vpop.f32.mrf.mxu0
    %v3020 = vadd.f32 0.0, %v3019
    %v3021 = vpop.f32.mrf.mxu0
    %3022 = vdwg.mxu0
    %3023 = vmatpush.bf16.msra.mxu0 0
    %3024 = vmatpush.bf16.msra.mxu0 0
    %3025 = vmatpush.bf16.msra.mxu0 0
    %3026 = vmatpush.bf16.msra.mxu0 0
    %3027 = vmatpush.bf16.msra.mxu0 0
    %3028 = vmatpush.bf16.msra.mxu0 %v132
    %3029 = vmatpush.bf16.msra.mxu0 %v50
    %3030 = vmatpush.bf16.msra.mxu0 %v48
    %3031 = vmatmul.bf16.gmra.mxu0 %v3008
    %v3032 = vpop.f32.mrf.mxu0
    %v3033 = vadd.f32 0.0, %v3032
    %v3034 = vpop.f32.mrf.mxu0
    %3035 = vdwg.mxu0
    %v3036 = vmax.f32 %v3020, 0.0
    %v3037 = vpack.c.bf16 %v3036, %v3036
    %v3039 = vsel %vm173, %v3037, 0
    %3041 = vmatpush.bf16.msra.mxu0 0
    %3042 = vmatpush.bf16.msra.mxu0 0
    %3043 = vmatpush.bf16.msra.mxu0 0
    %3044 = vmatpush.bf16.msra.mxu0 0
    %3045 = vmatpush.bf16.msra.mxu0 0
    %3046 = vmatpush.bf16.msra.mxu0 0
    %3047 = vmatpush.bf16.msra.mxu0 %v167
    %3048 = vmatpush.bf16.msra.mxu0 %v165
    %3049 = vmatmul.bf16.gmra.mxu0 %v3039
    %v3050 = vpop.f32.mrf.mxu0
    %v3051 = vadd.f32 %v171, %v3050
    %v3052 = vpop.f32.mrf.mxu0
    %3053 = vdwg.mxu0
    %v3054 = vsel %vm190, %v3051, -inf
    %3055 = vmax.xlane.f32.xlu0 %v3054
    %v3056 = vpop.xlane.xlu0 %3055
    %v3057 = vsub.f32 %v3051, %v3056
    %v3058 = vmul.f32 %v3057, 1.442695
    %v3059 = vpow.pop %v3058
    %v3060 = vsel %vm190, %v3059, 0.0
    %3061 = vadd.xlane.f32.xlu0 %v3060
    %v3062 = vpop.xlane.xlu0 %3061
    %v3063 = vrcp.pop %v3062
    %v3064 = vmul.f32 %v3059, %v3063
    %v3065 = vpack.c.bf16 %v3064, %v3064
    %v3067 = vsel %vm206, %v3065, 0
    %3069 = vmatpush.bf16.msra.mxu0 0
    %3070 = vmatpush.bf16.msra.mxu0 0
    %3071 = vmatpush.bf16.msra.mxu0 0
    %3072 = vmatpush.bf16.msra.mxu0 0
    %3073 = vmatpush.bf16.msra.mxu0 0
    %3074 = vmatpush.bf16.msra.mxu0 0
    %3075 = vmatpush.bf16.msra.mxu0 0
    %3076 = vmatpush.bf16.msra.mxu0 %v212
    %3077 = vmatmul.bf16.gmra.mxu0 %v3067
    %v3078 = vpop.f32.mrf.mxu0
    %v3079 = vadd.f32 0.0, %v3078
    %v3080 = vpop.f32.mrf.mxu0
    %3081 = vdwg.mxu0
    %v3082 = vmul.f32 %v3079, %v111
    %v3083 = vsel %vm228, %v3082, 0.0
    %v3084 = vrot.slane %v3083, 4
    %v3085 = vadd.f32 %v3083, %v3084
    %v3086 = vrot.slane %v3085, 2
    %v3087 = vadd.f32 %v3085, %v3086
    %v3088 = vrot.slane %v3087, 1
    %v3089 = vadd.f32 %v3087, %v3088
    %v3090 = vmul.f32 %v3089, 0.33333334
    %v3091 = vmul.f32 %v111, %v3090
    %v3092 = vmul.f32 %v3079, %v115
    %v3093 = vsel %vm228, %v3092, 0.0
    %v3094 = vrot.slane %v3093, 4
    %v3095 = vadd.f32 %v3093, %v3094
    %v3096 = vrot.slane %v3095, 2
    %v3097 = vadd.f32 %v3095, %v3096
    %v3098 = vrot.slane %v3097, 1
    %v3099 = vadd.f32 %v3097, %v3098
    %v3100 = vmul.f32 %v3099, 0.33333334
    %v3101 = vmul.f32 %v115, %v3100
    %v3102 = vadd.f32 %v3091, %v3101
    %v3103 = vadd.f32 %v3102, %v250
    %v3104 = vmax.f32 %v3103, 0.0
    %v3105 = vpack.c.bf16 %v3104, %v3104
    %v3107 = vsel %vm258, %v3105, 0
    %3109 = vmatpush.bf16.msra.mxu0 0
    %3110 = vmatpush.bf16.msra.mxu0 0
    %3111 = vmatpush.bf16.msra.mxu0 0
    %3112 = vmatpush.bf16.msra.mxu0 0
    %3113 = vmatpush.bf16.msra.mxu0 0
    %3114 = vmatpush.bf16.msra.mxu0 0
    %3115 = vmatpush.bf16.msra.mxu0 0
    %3116 = vmatpush.bf16.msra.mxu0 %v264
    %3117 = vmatmul.bf16.gmra.mxu0 %v3107
    %v3118 = vpop.f32.mrf.mxu0
    %v3119 = vadd.f32 0.0, %v3118
    %v3120 = vpop.f32.mrf.mxu0
    %3121 = vdwg.mxu0
    %v3122 = vmul.f32 %v3119, %v111
    %v3123 = vsel %vm190, %v3122, 0.0
    %v3124 = vrot.slane %v3123, 4
    %v3125 = vadd.f32 %v3123, %v3124
    %v3126 = vrot.slane %v3125, 2
    %v3127 = vadd.f32 %v3125, %v3126
    %v3128 = vrot.slane %v3127, 1
    %v3129 = vadd.f32 %v3127, %v3128
    %v3130 = vmul.f32 %v3129, 0.33333334
    %v3131 = vmul.f32 %v111, %v3130
    %v3132 = vmul.f32 %v3119, %v115
    %v3133 = vsel %vm190, %v3132, 0.0
    %v3134 = vrot.slane %v3133, 4
    %v3135 = vadd.f32 %v3133, %v3134
    %v3136 = vrot.slane %v3135, 2
    %v3137 = vadd.f32 %v3135, %v3136
    %v3138 = vrot.slane %v3137, 1
    %v3139 = vadd.f32 %v3137, %v3138
    %v3140 = vmul.f32 %v3139, 0.33333334
    %v3141 = vmul.f32 %v115, %v3140
    %v3142 = vadd.f32 %v3131, %v3141
    %v3143 = vadd.f32 %v3142, %v301
    %3145 = vrot.lane.b32.xlu0 %v3143, 4
    %v3146 = vpop.permute.xlu0 %3145
    %v3148 = vsel %vm206, %v3064, %v3146
    %v3149 = vpack.c.bf16 %v3148, %v3148
    %v3151 = vsel %vm258, %v3149, 0
    %3153 = vmatpush.bf16.msra.mxu0 0
    %3154 = vmatpush.bf16.msra.mxu0 0
    %3155 = vmatpush.bf16.msra.mxu0 0
    %3156 = vmatpush.bf16.msra.mxu0 0
    %3157 = vmatpush.bf16.msra.mxu0 0
    %3158 = vmatpush.bf16.msra.mxu0 0
    %3159 = vmatpush.bf16.msra.mxu0 0
    %3160 = vmatpush.bf16.msra.mxu0 %v319
    %3161 = vmatmul.bf16.gmra.mxu0 %v3151
    %v3162 = vpop.f32.mrf.mxu0
    %v3163 = vadd.f32 %v313, %v3162
    %v3164 = vpop.f32.mrf.mxu0
    %3165 = vdwg.mxu0
    %v3166 = vsel %vm190, %v3163, -inf
    %3167 = vmax.xlane.f32.xlu0 %v3166
    %v3168 = vpop.xlane.xlu0 %3167
    %v3169 = vsub.f32 %v3163, %v3168
    %v3170 = vmul.f32 %v3169, 1.442695
    %v3171 = vpow.pop %v3170
    %v3172 = vsel %vm190, %v3171, 0.0
    %3173 = vadd.xlane.f32.xlu0 %v3172
    %v3174 = vpop.xlane.xlu0 %3173
    %v3175 = vrcp.pop %v3174
    %v3176 = vmul.f32 %v3171, %v3175
    %3178 = vrot.lane.b32.xlu0 %v3176, 6
    %v3179 = vpop.permute.xlu0 %3178
    %v3181 = vmul.f32 %v2998, %v3179
    %3183 = vrot.lane.b32.xlu0 %v3181, 122
    %v3184 = vpop.permute.xlu0 %3183
    %v3186 = vsel %vm190, %v3184, 0.0
    %3187 = vadd.xlane.f32.xlu0 %v3186
    %v3188 = vpop.xlane.xlu0 %3187
    %v3189 = vrot.slane %v3188, 4
    %v3190 = vadd.f32 %v3188, %v3189
    %v3191 = vrot.slane %v3190, 2
    %v3192 = vadd.f32 %v3190, %v3191
    %v3193 = vrot.slane %v3192, 1
    %v3194 = vadd.f32 %v3192, %v3193
    %s3195 = vtos %v3194
    %v3196 = vstv %s3195
    %v3197 = vsub.f32 %v2517, %v3196
    %vm3198 = vcmp.gt.f32.partialorder %v3033, 0.0
    %v3199 = vmul.f32 %v3033, 0.01
    %v3200 = vsel %vm3198, %v3033, %v3199
    %v3201 = vpack.c.bf16 %v3200, %v3200
    %v3203 = vsel %vm173, %v3201, 0
    %3205 = vmatpush.bf16.msra.mxu0 0
    %3206 = vmatpush.bf16.msra.mxu0 0
    %3207 = vmatpush.bf16.msra.mxu0 0
    %3208 = vmatpush.bf16.msra.mxu0 0
    %3209 = vmatpush.bf16.msra.mxu0 0
    %3210 = vmatpush.bf16.msra.mxu0 0
    %3211 = vmatpush.bf16.msra.mxu0 %v58
    %3212 = vmatpush.bf16.msra.mxu0 %v57
    %3213 = vmatmul.bf16.gmra.mxu0 %v3203
    %v3214 = vpop.f32.mrf.mxu0
    %v3215 = vadd.f32 %v90, %v3214
    %v3216 = vpop.f32.mrf.mxu0
    %3217 = vdwg.mxu0
    %vm3218 = vcmp.gt.f32.partialorder %v3215, 0.0
    %v3219 = vmul.f32 %v3215, 0.01
    %v3220 = vsel %vm3218, %v3215, %v3219
    %v3221 = vpack.c.bf16 %v3220, %v3220
    %v3223 = vsel %vm173, %v3221, 0
    %3225 = vmatpush.bf16.msra.mxu0 0
    %3226 = vmatpush.bf16.msra.mxu0 0
    %3227 = vmatpush.bf16.msra.mxu0 0
    %3228 = vmatpush.bf16.msra.mxu0 0
    %3229 = vmatpush.bf16.msra.mxu0 0
    %3230 = vmatpush.bf16.msra.mxu0 0
    %3231 = vmatpush.bf16.msra.mxu0 %v395
    %3232 = vmatpush.bf16.msra.mxu0 %v393
    %3233 = vmatmul.bf16.gmra.mxu0 %v3223
    %v3234 = vpop.f32.mrf.mxu0
    %v3235 = vadd.f32 %v399, %v3234
    %v3236 = vpop.f32.mrf.mxu0
    %3237 = vdwg.mxu0
    %3239 = vrot.lane.b32.xlu0 %v3235, 32
    %v3240 = vpop.permute.xlu0 %3239
    %v3242 = vadd.f32 %v3020, %v3240
    %vm3243 = vcmp.gt.f32.partialorder %v3242, 0.0
    %v3244 = vmul.f32 %v3242, 0.01
    %v3245 = vsel %vm3243, %v3242, %v3244
    %vm3246 = vcmp.gt.f32.partialorder %v3020, 0.0
    %v3247 = vmul.f32 %v3020, 0.01
    %v3248 = vsel %vm3246, %v3020, %v3247
    %3250 = vrot.lane.b32.xlu0 %v3245, 96
    %v3251 = vpop.permute.xlu0 %3250
    %3254 = vrot.lane.b32.xlu0 %v3248, 96
    %v3255 = vpop.permute.xlu0 %3254
    %v3257 = vsel %vm173, %v3251, %v3255
    %v3258 = vpack.c.bf16 %v3257, %v3257
    %v3260 = vsel %vm441, %v3258, 0
    %3262 = vmatpush.bf16.msra.mxu0 0
    %3263 = vmatpush.bf16.msra.mxu0 0
    %3264 = vmatpush.bf16.msra.mxu0 0
    %3265 = vmatpush.bf16.msra.mxu0 0
    %3266 = vmatpush.bf16.msra.mxu0 %v87
    %3267 = vmatpush.bf16.msra.mxu0 %v86
    %3268 = vmatpush.bf16.msra.mxu0 %v85
    %3269 = vmatpush.bf16.msra.mxu0 %v84
    %3270 = vmatmul.bf16.gmra.mxu0 %v3260
    %v3271 = vpop.f32.mrf.mxu0
    %v3272 = vadd.f32 %v439, %v3271
    %v3273 = vpop.f32.mrf.mxu0
    %3274 = vdwg.mxu0
    %vm3275 = vcmp.gt.f32.partialorder %v3272, 0.0
    %v3276 = vmul.f32 %v3272, 0.01
    %v3277 = vsel %vm3275, %v3272, %v3276
    %v3278 = vpack.c.bf16 %v3277, %v3277
    %v3280 = vsel %vm441, %v3278, 0
    %3282 = vmatpush.bf16.msra.mxu0 0
    %3283 = vmatpush.bf16.msra.mxu0 0
    %3284 = vmatpush.bf16.msra.mxu0 0
    %3285 = vmatpush.bf16.msra.mxu0 0
    %3286 = vmatpush.bf16.msra.mxu0 %v473
    %3287 = vmatpush.bf16.msra.mxu0 %v471
    %3288 = vmatpush.bf16.msra.mxu0 %v469
    %3289 = vmatpush.bf16.msra.mxu0 %v467
    %3290 = vmatmul.bf16.gmra.mxu0 %v3280
    %v3291 = vpop.f32.mrf.mxu0
    %v3292 = vadd.f32 %v483, %v3291
    %v3293 = vpop.f32.mrf.mxu0
    %3294 = vdwg.mxu0
    %v3295 = vmul.f32 %v3292, 0.5
    %v3296 = vmul.f32 %v3295, 1.442695
    %v3297 = vpow.pop %v3296
    %3299 = vrot.lane.b32.xlu0 %v3297, 120
    %v3300 = vpop.permute.xlu0 %3299
    %v3302 = vmul.f32 %v3000, %v3300
    %v3303 = vadd.f32 %v3302, %v3292
    %v3304 = vpack.c.bf16 %v3303, %v3303
    %v3306 = vsel %vm258, %v3304, 0
    %3308 = vmatpush.bf16.msra.mxu0 0
    %3309 = vmatpush.bf16.msra.mxu0 0
    %3310 = vmatpush.bf16.msra.mxu0 0
    %3311 = vmatpush.bf16.msra.mxu0 0
    %3312 = vmatpush.bf16.msra.mxu0 0
    %3313 = vmatpush.bf16.msra.mxu0 0
    %3314 = vmatpush.bf16.msra.mxu0 0
    %3315 = vmatpush.bf16.msra.mxu0 %v524
    %3316 = vmatmul.bf16.gmra.mxu0 %v3306
    %v3317 = vpop.f32.mrf.mxu0
    %v3318 = vadd.f32 %v518, %v3317
    %v3319 = vpop.f32.mrf.mxu0
    %3320 = vdwg.mxu0
    %vm3321 = vcmp.gt.f32.partialorder %v3318, 0.0
    %v3322 = vmul.f32 %v3318, 0.01
    %v3323 = vsel %vm3321, %v3318, %v3322
    %v3324 = vpack.c.bf16 %v3323, %v3323
    %v3326 = vsel %vm173, %v3324, 0
    %3328 = vmatpush.bf16.msra.mxu0 0
    %3329 = vmatpush.bf16.msra.mxu0 0
    %3330 = vmatpush.bf16.msra.mxu0 0
    %3331 = vmatpush.bf16.msra.mxu0 0
    %3332 = vmatpush.bf16.msra.mxu0 0
    %3333 = vmatpush.bf16.msra.mxu0 0
    %3334 = vmatpush.bf16.msra.mxu0 %v553
    %3335 = vmatpush.bf16.msra.mxu0 %v552
    %3336 = vmatmul.bf16.gmra.mxu0 %v3326
    %v3337 = vpop.f32.mrf.mxu0
    %v3338 = vadd.f32 %v557, %v3337
    %v3339 = vpop.f32.mrf.mxu0
    %3340 = vdwg.mxu0
    %vm3341 = vcmp.gt.f32.partialorder %v3338, 0.0
    %v3342 = vmul.f32 %v3338, 0.01
    %v3343 = vsel %vm3341, %v3338, %v3342
    %v3344 = vpack.c.bf16 %v3343, %v3343
    %v3346 = vsel %vm173, %v3344, 0
    %3348 = vmatpush.bf16.msra.mxu0 0
    %3349 = vmatpush.bf16.msra.mxu0 0
    %3350 = vmatpush.bf16.msra.mxu0 0
    %3351 = vmatpush.bf16.msra.mxu0 0
    %3352 = vmatpush.bf16.msra.mxu0 0
    %3353 = vmatpush.bf16.msra.mxu0 0
    %3354 = vmatpush.bf16.msra.mxu0 %v70
    %3355 = vmatpush.bf16.msra.mxu0 %v69
    %3356 = vmatmul.bf16.gmra.mxu0 %v3346
    %v3357 = vpop.f32.mrf.mxu0
    %v3358 = vadd.f32 0.0, %v3357
    %v3359 = vpop.f32.mrf.mxu0
    %3360 = vdwg.mxu0
    %3362 = vrot.lane.b32.xlu0 %v3358, 96
    %v3363 = vpop.permute.xlu0 %3362
    %v3365 = vadd.f32 %v3020, %v3363
    %vm3366 = vcmp.gt.f32.partialorder %v3365, 0.0
    %v3367 = vmul.f32 %v3365, 0.01
    %v3368 = vsel %vm3366, %v3365, %v3367
    %v3369 = vpack.c.bf16 %v3368, %v3368
    %3371 = vrot.lane.b32.xlu0 %v3369, 32
    %v3372 = vpop.permute.xlu0 %3371
    %v3374 = vsel %vm173, %v3372, 0
    %3376 = vmatpush.bf16.msra.mxu0 0
    %3377 = vmatpush.bf16.msra.mxu0 0
    %3378 = vmatpush.bf16.msra.mxu0 0
    %3379 = vmatpush.bf16.msra.mxu0 0
    %3380 = vmatpush.bf16.msra.mxu0 0
    %3381 = vmatpush.bf16.msra.mxu0 0
    %3382 = vmatpush.bf16.msra.mxu0 %v610
    %3383 = vmatpush.bf16.msra.mxu0 %v608
    %3384 = vmatmul.bf16.gmra.mxu0 %v3374
    %v3385 = vpop.f32.mrf.mxu0
    %v3386 = vadd.f32 %v614, %v3385
    %v3387 = vpop.f32.mrf.mxu0
    %3388 = vdwg.mxu0
    %vm3389 = vcmp.gt.f32.partialorder %v3386, 0.0
    %v3390 = vmul.f32 %v3386, 0.01
    %v3391 = vsel %vm3389, %v3386, %v3390
    %v3392 = vpack.c.bf16 %v3391, %v3391
    %v3394 = vsel %vm173, %v3392, 0
    %3396 = vmatpush.bf16.msra.mxu0 0
    %3397 = vmatpush.bf16.msra.mxu0 0
    %3398 = vmatpush.bf16.msra.mxu0 0
    %3399 = vmatpush.bf16.msra.mxu0 0
    %3400 = vmatpush.bf16.msra.mxu0 0
    %3401 = vmatpush.bf16.msra.mxu0 0
    %3402 = vmatpush.bf16.msra.mxu0 %v639
    %3403 = vmatpush.bf16.msra.mxu0 %v637
    %3404 = vmatmul.bf16.gmra.mxu0 %v3394
    %v3405 = vpop.f32.mrf.mxu0
    %v3406 = vadd.f32 %v643, %v3405
    %v3407 = vpop.f32.mrf.mxu0
    %3408 = vdwg.mxu0
    %v3409 = vadd.f32 %v3235, %v3358
    %v3410 = vadd.f32 %v3409, %v3033
    %v3411 = vxor.u32 %v3410, 2147483648
    %v3412 = vmul.f32 %v3411, 1.442695
    %v3413 = vpow.pop %v3412
    %v3414 = vadd.f32 %v3413, 1.0
    %v3415 = vrcp.pop %v3414
    %v3416 = vmul.f32 %v3414, %v3415
    %v3417 = vsub.f32 1.0, %v3416
    %v3418 = vmul.f32 %v3415, %v3417
    %v3419 = vadd.f32 %v3415, %v3418
    %vm3420 = vweird.f32 %v3414
    %vm3421 = vweird.f32 %v3415
    %vm3422 = vmor %vm3420, %vm3421
    %v3423 = vsel %vm3422, %v3415, %v3419
    %v3424 = vand.u32 2147483647, %v3414
    %vm3425 = vcmp.eq.f32.partialorder %v3424, 8.507059e+37
    %v3426 = vand.u32 %v3414, 2147483648
    %v3427 = vor.u32 1.1754944e-38, %v3426
    %v3428 = vsel %vm3425, %v3427, %v3423
    %v3429 = vmul.f32 1.0, %v3428
    %3431 = vrot.lane.b32.xlu0 %v3033, 96
    %v3432 = vpop.permute.xlu0 %3431
    %v3434 = vmul.f32 %v3429, %v3432
    %3436 = vrot.lane.b32.xlu0 %v3434, 32
    %v3437 = vpop.permute.xlu0 %3436
    %v3439 = vadd.f32 %v3409, %v3437
    %v3440 = vtanh.pop %v3439
    %v3441 = vsub.f32 1.0, %v3429
    %3443 = vrot.lane.b32.xlu0 %v3440, 112
    %v3444 = vpop.permute.xlu0 %3443
    %v3446 = vmul.f32 %v3441, %v3444
    %3447 = vrot.lane.b32.xlu0 %v2994, 48
    %v3448 = vpop.permute.xlu0 %3447
    %v3450 = vmul.f32 %v3429, %v3448
    %v3451 = vadd.f32 %v3446, %v3450
    %3453 = vrot.lane.b32.xlu0 %v3292, 16
    %v3454 = vpop.permute.xlu0 %3453
    %v3456 = vsub.f32 %v3292, %v3454
    %3458 = vrot.lane.b32.xlu0 %v3456, 104
    %v3459 = vpop.permute.xlu0 %3458
    %v3461 = vsel %vm228, %v3459, 0.0
    %3462 = vadd.xlane.f32.xlu0 %v3461
    %v3463 = vpop.xlane.xlu0 %3462
    %3464 = vrot.lane.b32.xlu0 %v3292, 112
    %v3465 = vpop.permute.xlu0 %3464
    %v3467 = vsub.f32 %v3292, %v3465
    %v3468 = vmul.f32 %v3467, 1.442695
    %v3469 = vpow.pop %v3468
    %3471 = vrot.lane.b32.xlu0 %v3469, 120
    %v3472 = vpop.permute.xlu0 %3471
    %v3474 = vsel %vm228, %v3472, 0.0
    %3475 = vadd.xlane.f32.xlu0 %v3474
    %v3476 = vpop.xlane.xlu0 %3475
    %v3477 = vmul.f32 %v3467, %v3467
    %v3478 = vmul.f32 %v3292, 1.442695
    %v3479 = vpow.pop %v3478
    %3481 = vrot.lane.b32.xlu0 %v3479, 104
    %v3482 = vpop.permute.xlu0 %3481
    %v3484 = vrcp.pop %v3482
    %v3485 = vmul.f32 %v3482, %v3484
    %v3486 = vsub.f32 1.0, %v3485
    %v3487 = vmul.f32 %v3484, %v3486
    %v3488 = vadd.f32 %v3484, %v3487
    %vm3489 = vweird.f32 %v3482
    %vm3490 = vweird.f32 %v3484
    %vm3491 = vmor %vm3489, %vm3490
    %v3492 = vsel %vm3491, %v3484, %v3488
    %v3493 = vand.u32 2147483647, %v3482
    %vm3494 = vcmp.eq.f32.partialorder %v3493, 8.507059e+37
    %v3495 = vand.u32 %v3482, 2147483648
    %v3496 = vor.u32 1.1754944e-38, %v3495
    %v3497 = vsel %vm3494, %v3496, %v3492
    %v3498 = vmul.f32 %v3477, %v3497
    %v3499 = vsel %vm228, %v3498, 0.0
    %3500 = vadd.xlane.f32.xlu0 %v3499
    %v3501 = vpop.xlane.xlu0 %3500
    %v3502 = vsub.f32 %v3463, 8.0
    %v3503 = vadd.f32 %v3502, %v3476
    %v3504 = vadd.f32 %v3503, %v3501
    %v3505 = vsel %vm754, %v3504, 0.0
    %3506 = vadd.xlane.f32.xlu0 %v3505
    %v3507 = vpop.xlane.xlu0 %3506
    %v3508 = vrot.slane %v3507, 4
    %v3509 = vadd.f32 %v3507, %v3508
    %v3510 = vrot.slane %v3509, 2
    %v3511 = vadd.f32 %v3509, %v3510
    %v3512 = vrot.slane %v3511, 1
    %v3513 = vadd.f32 %v3511, %v3512
    %s3514 = vtos %v3513
    %v3515 = vstv %s3514
    %v3516 = vmul.f32 %v3515, 0.083333336
    %v3517 = vadd.f32 %v2837, %v3516
    %3519 = vrot.lane.b32.xlu0 %v3406, 14
    %v3520 = vpop.permute.xlu0 %3519
    %v3522 = vsub.f32 %v2998, %v3520
    %v3523 = vmul.f32 %v3522, %v3522
    %v3524 = vmul.f32 %v3406, 1.442695
    %v3525 = vpow.pop %v3524
    %3527 = vrot.lane.b32.xlu0 %v3525, 12
    %v3528 = vpop.permute.xlu0 %3527
    %v3530 = vrcp.pop %v3528
    %v3531 = vmul.f32 %v3528, %v3530
    %v3532 = vsub.f32 1.0, %v3531
    %v3533 = vmul.f32 %v3530, %v3532
    %v3534 = vadd.f32 %v3530, %v3533
    %vm3535 = vweird.f32 %v3528
    %vm3536 = vweird.f32 %v3530
    %vm3537 = vmor %vm3535, %vm3536
    %v3538 = vsel %vm3537, %v3530, %v3534
    %v3539 = vand.u32 2147483647, %v3528
    %vm3540 = vcmp.eq.f32.partialorder %v3539, 8.507059e+37
    %v3541 = vand.u32 %v3528, 2147483648
    %v3542 = vor.u32 1.1754944e-38, %v3541
    %v3543 = vsel %vm3540, %v3542, %v3538
    %v3544 = vmul.f32 %v3523, %v3543
    %3546 = vrot.lane.b32.xlu0 %v3544, 114
    %v3547 = vpop.permute.xlu0 %3546
    %v3549 = vsel %vm799, %v3547, 0.0
    %3550 = vadd.xlane.f32.xlu0 %v3549
    %v3551 = vpop.xlane.xlu0 %3550
    %3552 = vrot.lane.b32.xlu0 %v3406, 126
    %v3553 = vpop.permute.xlu0 %3552
    %v3555 = vsel %vm799, %v3553, 0.0
    %3556 = vadd.xlane.f32.xlu0 %v3555
    %v3557 = vpop.xlane.xlu0 %3556
    %v3558 = vadd.f32 %v3551, 3.675754
    %v3559 = vadd.f32 %v3558, %v3557
    %v3560 = vsel %vm754, %v3559, 0.0
    %3561 = vadd.xlane.f32.xlu0 %v3560
    %v3562 = vpop.xlane.xlu0 %3561
    %v3563 = vrot.slane %v3562, 4
    %v3564 = vadd.f32 %v3562, %v3563
    %v3565 = vrot.slane %v3564, 2
    %v3566 = vadd.f32 %v3564, %v3565
    %v3567 = vrot.slane %v3566, 1
    %v3568 = vadd.f32 %v3566, %v3567
    %s3569 = vtos %v3568
    %v3570 = vstv %s3569
    %v3571 = vmul.f32 %v3570, 0.083333336
    %v3572 = vadd.f32 %v2892, %v3571
    %v3573 = vpack.c.bf16 %v3451, %v3451
    %3575 = vrot.lane.b32.xlu0 %v3573, 80
    %v3576 = vpop.permute.xlu0 %3575
    %v3578 = vsel %vm482, %v3576, 0
    %3580 = vmatpush.bf16.msra.mxu0 0
    %3581 = vmatpush.bf16.msra.mxu0 0
    %3582 = vmatpush.bf16.msra.mxu0 0
    %3583 = vmatpush.bf16.msra.mxu0 0
    %3584 = vmatpush.bf16.msra.mxu0 0
    %3585 = vmatpush.bf16.msra.mxu0 0
    %3586 = vmatpush.bf16.msra.mxu0 0
    %3587 = vmatpush.bf16.msra.mxu0 %v830
    %3588 = vmatmul.bf16.gmra.mxu0 %v3578
    %v3589 = vpop.f32.mrf.mxu0
    %v3590 = vadd.f32 0.0, %v3589
    %v3591 = vpop.f32.mrf.mxu0
    %3592 = vdwg.mxu0
    %v3593 = vmul.f32 %v3590, %v111
    %v3594 = vsel %vm228, %v3593, 0.0
    %v3595 = vrot.slane %v3594, 4
    %v3596 = vadd.f32 %v3594, %v3595
    %v3597 = vrot.slane %v3596, 2
    %v3598 = vadd.f32 %v3596, %v3597
    %v3599 = vrot.slane %v3598, 1
    %v3600 = vadd.f32 %v3598, %v3599
    %v3601 = vmul.f32 %v3600, 0.33333334
    %v3602 = vmul.f32 %v111, %v3601
    %v3603 = vmul.f32 %v3590, %v115
    %v3604 = vsel %vm228, %v3603, 0.0
    %v3605 = vrot.slane %v3604, 4
    %v3606 = vadd.f32 %v3604, %v3605
    %v3607 = vrot.slane %v3606, 2
    %v3608 = vadd.f32 %v3606, %v3607
    %v3609 = vrot.slane %v3608, 1
    %v3610 = vadd.f32 %v3608, %v3609
    %v3611 = vmul.f32 %v3610, 0.33333334
    %v3612 = vmul.f32 %v115, %v3611
    %v3613 = vadd.f32 %v3602, %v3612
    %v3614 = vadd.f32 %v3613, %v870
    %v3615 = vmax.f32 %v3614, 0.0
    %v3616 = vpack.c.bf16 %v3615, %v3615
    %v3618 = vsel %vm258, %v3616, 0
    %3620 = vmatpush.bf16.msra.mxu0 0
    %3621 = vmatpush.bf16.msra.mxu0 0
    %3622 = vmatpush.bf16.msra.mxu0 0
    %3623 = vmatpush.bf16.msra.mxu0 0
    %3624 = vmatpush.bf16.msra.mxu0 0
    %3625 = vmatpush.bf16.msra.mxu0 0
    %3626 = vmatpush.bf16.msra.mxu0 0
    %3627 = vmatpush.bf16.msra.mxu0 %v885
    %3628 = vmatmul.bf16.gmra.mxu0 %v3618
    %v3629 = vpop.f32.mrf.mxu0
    %v3630 = vadd.f32 0.0, %v3629
    %v3631 = vpop.f32.mrf.mxu0
    %3632 = vdwg.mxu0
    %v3633 = vmul.f32 %v3630, %v111
    %v3634 = vsel %vm901, %v3633, 0.0
    %v3635 = vrot.slane %v3634, 4
    %v3636 = vadd.f32 %v3634, %v3635
    %v3637 = vrot.slane %v3636, 2
    %v3638 = vadd.f32 %v3636, %v3637
    %v3639 = vrot.slane %v3638, 1
    %v3640 = vadd.f32 %v3638, %v3639
    %v3641 = vmul.f32 %v3640, 0.33333334
    %v3642 = vmul.f32 %v111, %v3641
    %v3643 = vmul.f32 %v3630, %v115
    %v3644 = vsel %vm901, %v3643, 0.0
    %v3645 = vrot.slane %v3644, 4
    %v3646 = vadd.f32 %v3644, %v3645
    %v3647 = vrot.slane %v3646, 2
    %v3648 = vadd.f32 %v3646, %v3647
    %v3649 = vrot.slane %v3648, 1
    %v3650 = vadd.f32 %v3648, %v3649
    %v3651 = vmul.f32 %v3650, 0.33333334
    %v3652 = vmul.f32 %v115, %v3651
    %v3653 = vadd.f32 %v3642, %v3652
    %v3654 = vadd.f32 %v3653, %v923
    %3656 = vrot.lane.b32.xlu0 %v3451, 96
    %v3657 = vpop.permute.xlu0 %3656
    %v3659 = vsel %vm482, %v3654, %v3657
    %v3660 = vpack.c.bf16 %v3659, %v3659
    %v3662 = vsel %vm173, %v3660, 0
    %3664 = vmatpush.bf16.msra.mxu0 0
    %3665 = vmatpush.bf16.msra.mxu0 0
    %3666 = vmatpush.bf16.msra.mxu0 0
    %3667 = vmatpush.bf16.msra.mxu0 0
    %3668 = vmatpush.bf16.msra.mxu0 0
    %3669 = vmatpush.bf16.msra.mxu0 0
    %3670 = vmatpush.bf16.msra.mxu0 %v935
    %3671 = vmatpush.bf16.msra.mxu0 %v933
    %3672 = vmatmul.bf16.gmra.mxu0 %v3662
    %v3673 = vpop.f32.mrf.mxu0
    %v3674 = vadd.f32 %v939, %v3673
    %v3675 = vpop.f32.mrf.mxu0
    %3676 = vdwg.mxu0
    %s3677 = scalar_lea.vmem %s0, 40
    %v3678 = vld [vmem:[%s3677] sm:$0x3f]
    %s3679 = scalar_lea.vmem %s1, 40
    %v3680 = vld [vmem:[%s3679] sm:$0x3f]
    %3682 = vrot.lane.b32.xlu0 %v3674, 17
    %v3683 = vpop.permute.xlu0 %3682
    %v3685 = vsel %vm118, %v3678, %v3683
    %v3686 = vpack.c.bf16 %v3685, %v3685
    %v3688 = vsel %vm121, %v3686, 0
    %3690 = vmatpush.bf16.msra.mxu0 0
    %3691 = vmatpush.bf16.msra.mxu0 0
    %3692 = vmatpush.bf16.msra.mxu0 0
    %3693 = vmatpush.bf16.msra.mxu0 0
    %3694 = vmatpush.bf16.msra.mxu0 0
    %3695 = vmatpush.bf16.msra.mxu0 %v129
    %3696 = vmatpush.bf16.msra.mxu0 %v49
    %3697 = vmatpush.bf16.msra.mxu0 %v47
    %3698 = vmatmul.bf16.gmra.mxu0 %v3688
    %v3699 = vpop.f32.mrf.mxu0
    %v3700 = vadd.f32 0.0, %v3699
    %v3701 = vpop.f32.mrf.mxu0
    %3702 = vdwg.mxu0
    %3703 = vmatpush.bf16.msra.mxu0 0
    %3704 = vmatpush.bf16.msra.mxu0 0
    %3705 = vmatpush.bf16.msra.mxu0 0
    %3706 = vmatpush.bf16.msra.mxu0 0
    %3707 = vmatpush.bf16.msra.mxu0 0
    %3708 = vmatpush.bf16.msra.mxu0 %v132
    %3709 = vmatpush.bf16.msra.mxu0 %v50
    %3710 = vmatpush.bf16.msra.mxu0 %v48
    %3711 = vmatmul.bf16.gmra.mxu0 %v3688
    %v3712 = vpop.f32.mrf.mxu0
    %v3713 = vadd.f32 0.0, %v3712
    %v3714 = vpop.f32.mrf.mxu0
    %3715 = vdwg.mxu0
    %v3716 = vmax.f32 %v3700, 0.0
    %v3717 = vpack.c.bf16 %v3716, %v3716
    %v3719 = vsel %vm173, %v3717, 0
    %3721 = vmatpush.bf16.msra.mxu0 0
    %3722 = vmatpush.bf16.msra.mxu0 0
    %3723 = vmatpush.bf16.msra.mxu0 0
    %3724 = vmatpush.bf16.msra.mxu0 0
    %3725 = vmatpush.bf16.msra.mxu0 0
    %3726 = vmatpush.bf16.msra.mxu0 0
    %3727 = vmatpush.bf16.msra.mxu0 %v167
    %3728 = vmatpush.bf16.msra.mxu0 %v165
    %3729 = vmatmul.bf16.gmra.mxu0 %v3719
    %v3730 = vpop.f32.mrf.mxu0
    %v3731 = vadd.f32 %v171, %v3730
    %v3732 = vpop.f32.mrf.mxu0
    %3733 = vdwg.mxu0
    %v3734 = vsel %vm190, %v3731, -inf
    %3735 = vmax.xlane.f32.xlu0 %v3734
    %v3736 = vpop.xlane.xlu0 %3735
    %v3737 = vsub.f32 %v3731, %v3736
    %v3738 = vmul.f32 %v3737, 1.442695
    %v3739 = vpow.pop %v3738
    %v3740 = vsel %vm190, %v3739, 0.0
    %3741 = vadd.xlane.f32.xlu0 %v3740
    %v3742 = vpop.xlane.xlu0 %3741
    %v3743 = vrcp.pop %v3742
    %v3744 = vmul.f32 %v3739, %v3743
    %v3745 = vpack.c.bf16 %v3744, %v3744
    %v3747 = vsel %vm206, %v3745, 0
    %3749 = vmatpush.bf16.msra.mxu0 0
    %3750 = vmatpush.bf16.msra.mxu0 0
    %3751 = vmatpush.bf16.msra.mxu0 0
    %3752 = vmatpush.bf16.msra.mxu0 0
    %3753 = vmatpush.bf16.msra.mxu0 0
    %3754 = vmatpush.bf16.msra.mxu0 0
    %3755 = vmatpush.bf16.msra.mxu0 0
    %3756 = vmatpush.bf16.msra.mxu0 %v212
    %3757 = vmatmul.bf16.gmra.mxu0 %v3747
    %v3758 = vpop.f32.mrf.mxu0
    %v3759 = vadd.f32 0.0, %v3758
    %v3760 = vpop.f32.mrf.mxu0
    %3761 = vdwg.mxu0
    %v3762 = vmul.f32 %v3759, %v111
    %v3763 = vsel %vm228, %v3762, 0.0
    %v3764 = vrot.slane %v3763, 4
    %v3765 = vadd.f32 %v3763, %v3764
    %v3766 = vrot.slane %v3765, 2
    %v3767 = vadd.f32 %v3765, %v3766
    %v3768 = vrot.slane %v3767, 1
    %v3769 = vadd.f32 %v3767, %v3768
    %v3770 = vmul.f32 %v3769, 0.33333334
    %v3771 = vmul.f32 %v111, %v3770
    %v3772 = vmul.f32 %v3759, %v115
    %v3773 = vsel %vm228, %v3772, 0.0
    %v3774 = vrot.slane %v3773, 4
    %v3775 = vadd.f32 %v3773, %v3774
    %v3776 = vrot.slane %v3775, 2
    %v3777 = vadd.f32 %v3775, %v3776
    %v3778 = vrot.slane %v3777, 1
    %v3779 = vadd.f32 %v3777, %v3778
    %v3780 = vmul.f32 %v3779, 0.33333334
    %v3781 = vmul.f32 %v115, %v3780
    %v3782 = vadd.f32 %v3771, %v3781
    %v3783 = vadd.f32 %v3782, %v250
    %v3784 = vmax.f32 %v3783, 0.0
    %v3785 = vpack.c.bf16 %v3784, %v3784
    %v3787 = vsel %vm258, %v3785, 0
    %3789 = vmatpush.bf16.msra.mxu0 0
    %3790 = vmatpush.bf16.msra.mxu0 0
    %3791 = vmatpush.bf16.msra.mxu0 0
    %3792 = vmatpush.bf16.msra.mxu0 0
    %3793 = vmatpush.bf16.msra.mxu0 0
    %3794 = vmatpush.bf16.msra.mxu0 0
    %3795 = vmatpush.bf16.msra.mxu0 0
    %3796 = vmatpush.bf16.msra.mxu0 %v264
    %3797 = vmatmul.bf16.gmra.mxu0 %v3787
    %v3798 = vpop.f32.mrf.mxu0
    %v3799 = vadd.f32 0.0, %v3798
    %v3800 = vpop.f32.mrf.mxu0
    %3801 = vdwg.mxu0
    %v3802 = vmul.f32 %v3799, %v111
    %v3803 = vsel %vm190, %v3802, 0.0
    %v3804 = vrot.slane %v3803, 4
    %v3805 = vadd.f32 %v3803, %v3804
    %v3806 = vrot.slane %v3805, 2
    %v3807 = vadd.f32 %v3805, %v3806
    %v3808 = vrot.slane %v3807, 1
    %v3809 = vadd.f32 %v3807, %v3808
    %v3810 = vmul.f32 %v3809, 0.33333334
    %v3811 = vmul.f32 %v111, %v3810
    %v3812 = vmul.f32 %v3799, %v115
    %v3813 = vsel %vm190, %v3812, 0.0
    %v3814 = vrot.slane %v3813, 4
    %v3815 = vadd.f32 %v3813, %v3814
    %v3816 = vrot.slane %v3815, 2
    %v3817 = vadd.f32 %v3815, %v3816
    %v3818 = vrot.slane %v3817, 1
    %v3819 = vadd.f32 %v3817, %v3818
    %v3820 = vmul.f32 %v3819, 0.33333334
    %v3821 = vmul.f32 %v115, %v3820
    %v3822 = vadd.f32 %v3811, %v3821
    %v3823 = vadd.f32 %v3822, %v301
    %3825 = vrot.lane.b32.xlu0 %v3823, 4
    %v3826 = vpop.permute.xlu0 %3825
    %v3828 = vsel %vm206, %v3744, %v3826
    %v3829 = vpack.c.bf16 %v3828, %v3828
    %v3831 = vsel %vm258, %v3829, 0
    %3833 = vmatpush.bf16.msra.mxu0 0
    %3834 = vmatpush.bf16.msra.mxu0 0
    %3835 = vmatpush.bf16.msra.mxu0 0
    %3836 = vmatpush.bf16.msra.mxu0 0
    %3837 = vmatpush.bf16.msra.mxu0 0
    %3838 = vmatpush.bf16.msra.mxu0 0
    %3839 = vmatpush.bf16.msra.mxu0 0
    %3840 = vmatpush.bf16.msra.mxu0 %v319
    %3841 = vmatmul.bf16.gmra.mxu0 %v3831
    %v3842 = vpop.f32.mrf.mxu0
    %v3843 = vadd.f32 %v313, %v3842
    %v3844 = vpop.f32.mrf.mxu0
    %3845 = vdwg.mxu0
    %v3846 = vsel %vm190, %v3843, -inf
    %3847 = vmax.xlane.f32.xlu0 %v3846
    %v3848 = vpop.xlane.xlu0 %3847
    %v3849 = vsub.f32 %v3843, %v3848
    %v3850 = vmul.f32 %v3849, 1.442695
    %v3851 = vpow.pop %v3850
    %v3852 = vsel %vm190, %v3851, 0.0
    %3853 = vadd.xlane.f32.xlu0 %v3852
    %v3854 = vpop.xlane.xlu0 %3853
    %v3855 = vrcp.pop %v3854
    %v3856 = vmul.f32 %v3851, %v3855
    %3858 = vrot.lane.b32.xlu0 %v3856, 6
    %v3859 = vpop.permute.xlu0 %3858
    %v3861 = vmul.f32 %v3678, %v3859
    %3863 = vrot.lane.b32.xlu0 %v3861, 122
    %v3864 = vpop.permute.xlu0 %3863
    %v3866 = vsel %vm190, %v3864, 0.0
    %3867 = vadd.xlane.f32.xlu0 %v3866
    %v3868 = vpop.xlane.xlu0 %3867
    %v3869 = vrot.slane %v3868, 4
    %v3870 = vadd.f32 %v3868, %v3869
    %v3871 = vrot.slane %v3870, 2
    %v3872 = vadd.f32 %v3870, %v3871
    %v3873 = vrot.slane %v3872, 1
    %v3874 = vadd.f32 %v3872, %v3873
    %s3875 = vtos %v3874
    %v3876 = vstv %s3875
    %v3877 = vsub.f32 %v3197, %v3876
    %vm3878 = vcmp.gt.f32.partialorder %v3713, 0.0
    %v3879 = vmul.f32 %v3713, 0.01
    %v3880 = vsel %vm3878, %v3713, %v3879
    %v3881 = vpack.c.bf16 %v3880, %v3880
    %v3883 = vsel %vm173, %v3881, 0
    %3885 = vmatpush.bf16.msra.mxu0 0
    %3886 = vmatpush.bf16.msra.mxu0 0
    %3887 = vmatpush.bf16.msra.mxu0 0
    %3888 = vmatpush.bf16.msra.mxu0 0
    %3889 = vmatpush.bf16.msra.mxu0 0
    %3890 = vmatpush.bf16.msra.mxu0 0
    %3891 = vmatpush.bf16.msra.mxu0 %v58
    %3892 = vmatpush.bf16.msra.mxu0 %v57
    %3893 = vmatmul.bf16.gmra.mxu0 %v3883
    %v3894 = vpop.f32.mrf.mxu0
    %v3895 = vadd.f32 %v90, %v3894
    %v3896 = vpop.f32.mrf.mxu0
    %3897 = vdwg.mxu0
    %vm3898 = vcmp.gt.f32.partialorder %v3895, 0.0
    %v3899 = vmul.f32 %v3895, 0.01
    %v3900 = vsel %vm3898, %v3895, %v3899
    %v3901 = vpack.c.bf16 %v3900, %v3900
    %v3903 = vsel %vm173, %v3901, 0
    %3905 = vmatpush.bf16.msra.mxu0 0
    %3906 = vmatpush.bf16.msra.mxu0 0
    %3907 = vmatpush.bf16.msra.mxu0 0
    %3908 = vmatpush.bf16.msra.mxu0 0
    %3909 = vmatpush.bf16.msra.mxu0 0
    %3910 = vmatpush.bf16.msra.mxu0 0
    %3911 = vmatpush.bf16.msra.mxu0 %v395
    %3912 = vmatpush.bf16.msra.mxu0 %v393
    %3913 = vmatmul.bf16.gmra.mxu0 %v3903
    %v3914 = vpop.f32.mrf.mxu0
    %v3915 = vadd.f32 %v399, %v3914
    %v3916 = vpop.f32.mrf.mxu0
    %3917 = vdwg.mxu0
    %3919 = vrot.lane.b32.xlu0 %v3915, 32
    %v3920 = vpop.permute.xlu0 %3919
    %v3922 = vadd.f32 %v3700, %v3920
    %vm3923 = vcmp.gt.f32.partialorder %v3922, 0.0
    %v3924 = vmul.f32 %v3922, 0.01
    %v3925 = vsel %vm3923, %v3922, %v3924
    %vm3926 = vcmp.gt.f32.partialorder %v3700, 0.0
    %v3927 = vmul.f32 %v3700, 0.01
    %v3928 = vsel %vm3926, %v3700, %v3927
    %3930 = vrot.lane.b32.xlu0 %v3925, 96
    %v3931 = vpop.permute.xlu0 %3930
    %3934 = vrot.lane.b32.xlu0 %v3928, 96
    %v3935 = vpop.permute.xlu0 %3934
    %v3937 = vsel %vm173, %v3931, %v3935
    %v3938 = vpack.c.bf16 %v3937, %v3937
    %v3940 = vsel %vm441, %v3938, 0
    %3942 = vmatpush.bf16.msra.mxu0 0
    %3943 = vmatpush.bf16.msra.mxu0 0
    %3944 = vmatpush.bf16.msra.mxu0 0
    %3945 = vmatpush.bf16.msra.mxu0 0
    %3946 = vmatpush.bf16.msra.mxu0 %v87
    %3947 = vmatpush.bf16.msra.mxu0 %v86
    %3948 = vmatpush.bf16.msra.mxu0 %v85
    %3949 = vmatpush.bf16.msra.mxu0 %v84
    %3950 = vmatmul.bf16.gmra.mxu0 %v3940
    %v3951 = vpop.f32.mrf.mxu0
    %v3952 = vadd.f32 %v439, %v3951
    %v3953 = vpop.f32.mrf.mxu0
    %3954 = vdwg.mxu0
    %vm3955 = vcmp.gt.f32.partialorder %v3952, 0.0
    %v3956 = vmul.f32 %v3952, 0.01
    %v3957 = vsel %vm3955, %v3952, %v3956
    %v3958 = vpack.c.bf16 %v3957, %v3957
    %v3960 = vsel %vm441, %v3958, 0
    %3962 = vmatpush.bf16.msra.mxu0 0
    %3963 = vmatpush.bf16.msra.mxu0 0
    %3964 = vmatpush.bf16.msra.mxu0 0
    %3965 = vmatpush.bf16.msra.mxu0 0
    %3966 = vmatpush.bf16.msra.mxu0 %v473
    %3967 = vmatpush.bf16.msra.mxu0 %v471
    %3968 = vmatpush.bf16.msra.mxu0 %v469
    %3969 = vmatpush.bf16.msra.mxu0 %v467
    %3970 = vmatmul.bf16.gmra.mxu0 %v3960
    %v3971 = vpop.f32.mrf.mxu0
    %v3972 = vadd.f32 %v483, %v3971
    %v3973 = vpop.f32.mrf.mxu0
    %3974 = vdwg.mxu0
    %v3975 = vmul.f32 %v3972, 0.5
    %v3976 = vmul.f32 %v3975, 1.442695
    %v3977 = vpow.pop %v3976
    %3979 = vrot.lane.b32.xlu0 %v3977, 120
    %v3980 = vpop.permute.xlu0 %3979
    %v3982 = vmul.f32 %v3680, %v3980
    %v3983 = vadd.f32 %v3982, %v3972
    %v3984 = vpack.c.bf16 %v3983, %v3983
    %v3986 = vsel %vm258, %v3984, 0
    %3988 = vmatpush.bf16.msra.mxu0 0
    %3989 = vmatpush.bf16.msra.mxu0 0
    %3990 = vmatpush.bf16.msra.mxu0 0
    %3991 = vmatpush.bf16.msra.mxu0 0
    %3992 = vmatpush.bf16.msra.mxu0 0
    %3993 = vmatpush.bf16.msra.mxu0 0
    %3994 = vmatpush.bf16.msra.mxu0 0
    %3995 = vmatpush.bf16.msra.mxu0 %v524
    %3996 = vmatmul.bf16.gmra.mxu0 %v3986
    %v3997 = vpop.f32.mrf.mxu0
    %v3998 = vadd.f32 %v518, %v3997
    %v3999 = vpop.f32.mrf.mxu0
    %4000 = vdwg.mxu0
    %vm4001 = vcmp.gt.f32.partialorder %v3998, 0.0
    %v4002 = vmul.f32 %v3998, 0.01
    %v4003 = vsel %vm4001, %v3998, %v4002
    %v4004 = vpack.c.bf16 %v4003, %v4003
    %v4006 = vsel %vm173, %v4004, 0
    %4008 = vmatpush.bf16.msra.mxu0 0
    %4009 = vmatpush.bf16.msra.mxu0 0
    %4010 = vmatpush.bf16.msra.mxu0 0
    %4011 = vmatpush.bf16.msra.mxu0 0
    %4012 = vmatpush.bf16.msra.mxu0 0
    %4013 = vmatpush.bf16.msra.mxu0 0
    %4014 = vmatpush.bf16.msra.mxu0 %v553
    %4015 = vmatpush.bf16.msra.mxu0 %v552
    %4016 = vmatmul.bf16.gmra.mxu0 %v4006
    %v4017 = vpop.f32.mrf.mxu0
    %v4018 = vadd.f32 %v557, %v4017
    %v4019 = vpop.f32.mrf.mxu0
    %4020 = vdwg.mxu0
    %vm4021 = vcmp.gt.f32.partialorder %v4018, 0.0
    %v4022 = vmul.f32 %v4018, 0.01
    %v4023 = vsel %vm4021, %v4018, %v4022
    %v4024 = vpack.c.bf16 %v4023, %v4023
    %v4026 = vsel %vm173, %v4024, 0
    %4028 = vmatpush.bf16.msra.mxu0 0
    %4029 = vmatpush.bf16.msra.mxu0 0
    %4030 = vmatpush.bf16.msra.mxu0 0
    %4031 = vmatpush.bf16.msra.mxu0 0
    %4032 = vmatpush.bf16.msra.mxu0 0
    %4033 = vmatpush.bf16.msra.mxu0 0
    %4034 = vmatpush.bf16.msra.mxu0 %v70
    %4035 = vmatpush.bf16.msra.mxu0 %v69
    %4036 = vmatmul.bf16.gmra.mxu0 %v4026
    %v4037 = vpop.f32.mrf.mxu0
    %v4038 = vadd.f32 0.0, %v4037
    %v4039 = vpop.f32.mrf.mxu0
    %4040 = vdwg.mxu0
    %4042 = vrot.lane.b32.xlu0 %v4038, 96
    %v4043 = vpop.permute.xlu0 %4042
    %v4045 = vadd.f32 %v3700, %v4043
    %vm4046 = vcmp.gt.f32.partialorder %v4045, 0.0
    %v4047 = vmul.f32 %v4045, 0.01
    %v4048 = vsel %vm4046, %v4045, %v4047
    %v4049 = vpack.c.bf16 %v4048, %v4048
    %4051 = vrot.lane.b32.xlu0 %v4049, 32
    %v4052 = vpop.permute.xlu0 %4051
    %v4054 = vsel %vm173, %v4052, 0
    %4056 = vmatpush.bf16.msra.mxu0 0
    %4057 = vmatpush.bf16.msra.mxu0 0
    %4058 = vmatpush.bf16.msra.mxu0 0
    %4059 = vmatpush.bf16.msra.mxu0 0
    %4060 = vmatpush.bf16.msra.mxu0 0
    %4061 = vmatpush.bf16.msra.mxu0 0
    %4062 = vmatpush.bf16.msra.mxu0 %v610
    %4063 = vmatpush.bf16.msra.mxu0 %v608
    %4064 = vmatmul.bf16.gmra.mxu0 %v4054
    %v4065 = vpop.f32.mrf.mxu0
    %v4066 = vadd.f32 %v614, %v4065
    %v4067 = vpop.f32.mrf.mxu0
    %4068 = vdwg.mxu0
    %vm4069 = vcmp.gt.f32.partialorder %v4066, 0.0
    %v4070 = vmul.f32 %v4066, 0.01
    %v4071 = vsel %vm4069, %v4066, %v4070
    %v4072 = vpack.c.bf16 %v4071, %v4071
    %v4074 = vsel %vm173, %v4072, 0
    %4076 = vmatpush.bf16.msra.mxu0 0
    %4077 = vmatpush.bf16.msra.mxu0 0
    %4078 = vmatpush.bf16.msra.mxu0 0
    %4079 = vmatpush.bf16.msra.mxu0 0
    %4080 = vmatpush.bf16.msra.mxu0 0
    %4081 = vmatpush.bf16.msra.mxu0 0
    %4082 = vmatpush.bf16.msra.mxu0 %v639
    %4083 = vmatpush.bf16.msra.mxu0 %v637
    %4084 = vmatmul.bf16.gmra.mxu0 %v4074
    %v4085 = vpop.f32.mrf.mxu0
    %v4086 = vadd.f32 %v643, %v4085
    %v4087 = vpop.f32.mrf.mxu0
    %4088 = vdwg.mxu0
    %v4089 = vadd.f32 %v3915, %v4038
    %v4090 = vadd.f32 %v4089, %v3713
    %v4091 = vxor.u32 %v4090, 2147483648
    %v4092 = vmul.f32 %v4091, 1.442695
    %v4093 = vpow.pop %v4092
    %v4094 = vadd.f32 %v4093, 1.0
    %v4095 = vrcp.pop %v4094
    %v4096 = vmul.f32 %v4094, %v4095
    %v4097 = vsub.f32 1.0, %v4096
    %v4098 = vmul.f32 %v4095, %v4097
    %v4099 = vadd.f32 %v4095, %v4098
    %vm4100 = vweird.f32 %v4094
    %vm4101 = vweird.f32 %v4095
    %vm4102 = vmor %vm4100, %vm4101
    %v4103 = vsel %vm4102, %v4095, %v4099
    %v4104 = vand.u32 2147483647, %v4094
    %vm4105 = vcmp.eq.f32.partialorder %v4104, 8.507059e+37
    %v4106 = vand.u32 %v4094, 2147483648
    %v4107 = vor.u32 1.1754944e-38, %v4106
    %v4108 = vsel %vm4105, %v4107, %v4103
    %v4109 = vmul.f32 1.0, %v4108
    %4111 = vrot.lane.b32.xlu0 %v3713, 96
    %v4112 = vpop.permute.xlu0 %4111
    %v4114 = vmul.f32 %v4109, %v4112
    %4116 = vrot.lane.b32.xlu0 %v4114, 32
    %v4117 = vpop.permute.xlu0 %4116
    %v4119 = vadd.f32 %v4089, %v4117
    %v4120 = vtanh.pop %v4119
    %v4121 = vsub.f32 1.0, %v4109
    %4123 = vrot.lane.b32.xlu0 %v4120, 112
    %v4124 = vpop.permute.xlu0 %4123
    %v4126 = vmul.f32 %v4121, %v4124
    %4127 = vrot.lane.b32.xlu0 %v3674, 48
    %v4128 = vpop.permute.xlu0 %4127
    %v4130 = vmul.f32 %v4109, %v4128
    %v4131 = vadd.f32 %v4126, %v4130
    %4133 = vrot.lane.b32.xlu0 %v3972, 16
    %v4134 = vpop.permute.xlu0 %4133
    %v4136 = vsub.f32 %v3972, %v4134
    %4138 = vrot.lane.b32.xlu0 %v4136, 104
    %v4139 = vpop.permute.xlu0 %4138
    %v4141 = vsel %vm228, %v4139, 0.0
    %4142 = vadd.xlane.f32.xlu0 %v4141
    %v4143 = vpop.xlane.xlu0 %4142
    %4144 = vrot.lane.b32.xlu0 %v3972, 112
    %v4145 = vpop.permute.xlu0 %4144
    %v4147 = vsub.f32 %v3972, %v4145
    %v4148 = vmul.f32 %v4147, 1.442695
    %v4149 = vpow.pop %v4148
    %4151 = vrot.lane.b32.xlu0 %v4149, 120
    %v4152 = vpop.permute.xlu0 %4151
    %v4154 = vsel %vm228, %v4152, 0.0
    %4155 = vadd.xlane.f32.xlu0 %v4154
    %v4156 = vpop.xlane.xlu0 %4155
    %v4157 = vmul.f32 %v4147, %v4147
    %v4158 = vmul.f32 %v3972, 1.442695
    %v4159 = vpow.pop %v4158
    %4161 = vrot.lane.b32.xlu0 %v4159, 104
    %v4162 = vpop.permute.xlu0 %4161
    %v4164 = vrcp.pop %v4162
    %v4165 = vmul.f32 %v4162, %v4164
    %v4166 = vsub.f32 1.0, %v4165
    %v4167 = vmul.f32 %v4164, %v4166
    %v4168 = vadd.f32 %v4164, %v4167
    %vm4169 = vweird.f32 %v4162
    %vm4170 = vweird.f32 %v4164
    %vm4171 = vmor %vm4169, %vm4170
    %v4172 = vsel %vm4171, %v4164, %v4168
    %v4173 = vand.u32 2147483647, %v4162
    %vm4174 = vcmp.eq.f32.partialorder %v4173, 8.507059e+37
    %v4175 = vand.u32 %v4162, 2147483648
    %v4176 = vor.u32 1.1754944e-38, %v4175
    %v4177 = vsel %vm4174, %v4176, %v4172
    %v4178 = vmul.f32 %v4157, %v4177
    %v4179 = vsel %vm228, %v4178, 0.0
    %4180 = vadd.xlane.f32.xlu0 %v4179
    %v4181 = vpop.xlane.xlu0 %4180
    %v4182 = vsub.f32 %v4143, 8.0
    %v4183 = vadd.f32 %v4182, %v4156
    %v4184 = vadd.f32 %v4183, %v4181
    %v4185 = vsel %vm754, %v4184, 0.0
    %4186 = vadd.xlane.f32.xlu0 %v4185
    %v4187 = vpop.xlane.xlu0 %4186
    %v4188 = vrot.slane %v4187, 4
    %v4189 = vadd.f32 %v4187, %v4188
    %v4190 = vrot.slane %v4189, 2
    %v4191 = vadd.f32 %v4189, %v4190
    %v4192 = vrot.slane %v4191, 1
    %v4193 = vadd.f32 %v4191, %v4192
    %s4194 = vtos %v4193
    %v4195 = vstv %s4194
    %v4196 = vmul.f32 %v4195, 0.083333336
    %v4197 = vadd.f32 %v3517, %v4196
    %4199 = vrot.lane.b32.xlu0 %v4086, 14
    %v4200 = vpop.permute.xlu0 %4199
    %v4202 = vsub.f32 %v3678, %v4200
    %v4203 = vmul.f32 %v4202, %v4202
    %v4204 = vmul.f32 %v4086, 1.442695
    %v4205 = vpow.pop %v4204
    %4207 = vrot.lane.b32.xlu0 %v4205, 12
    %v4208 = vpop.permute.xlu0 %4207
    %v4210 = vrcp.pop %v4208
    %v4211 = vmul.f32 %v4208, %v4210
    %v4212 = vsub.f32 1.0, %v4211
    %v4213 = vmul.f32 %v4210, %v4212
    %v4214 = vadd.f32 %v4210, %v4213
    %vm4215 = vweird.f32 %v4208
    %vm4216 = vweird.f32 %v4210
    %vm4217 = vmor %vm4215, %vm4216
    %v4218 = vsel %vm4217, %v4210, %v4214
    %v4219 = vand.u32 2147483647, %v4208
    %vm4220 = vcmp.eq.f32.partialorder %v4219, 8.507059e+37
    %v4221 = vand.u32 %v4208, 2147483648
    %v4222 = vor.u32 1.1754944e-38, %v4221
    %v4223 = vsel %vm4220, %v4222, %v4218
    %v4224 = vmul.f32 %v4203, %v4223
    %4226 = vrot.lane.b32.xlu0 %v4224, 114
    %v4227 = vpop.permute.xlu0 %4226
    %v4229 = vsel %vm799, %v4227, 0.0
    %4230 = vadd.xlane.f32.xlu0 %v4229
    %v4231 = vpop.xlane.xlu0 %4230
    %4232 = vrot.lane.b32.xlu0 %v4086, 126
    %v4233 = vpop.permute.xlu0 %4232
    %v4235 = vsel %vm799, %v4233, 0.0
    %4236 = vadd.xlane.f32.xlu0 %v4235
    %v4237 = vpop.xlane.xlu0 %4236
    %v4238 = vadd.f32 %v4231, 3.675754
    %v4239 = vadd.f32 %v4238, %v4237
    %v4240 = vsel %vm754, %v4239, 0.0
    %4241 = vadd.xlane.f32.xlu0 %v4240
    %v4242 = vpop.xlane.xlu0 %4241
    %v4243 = vrot.slane %v4242, 4
    %v4244 = vadd.f32 %v4242, %v4243
    %v4245 = vrot.slane %v4244, 2
    %v4246 = vadd.f32 %v4244, %v4245
    %v4247 = vrot.slane %v4246, 1
    %v4248 = vadd.f32 %v4246, %v4247
    %s4249 = vtos %v4248
    %v4250 = vstv %s4249
    %v4251 = vmul.f32 %v4250, 0.083333336
    %v4252 = vadd.f32 %v3572, %v4251
    %v4253 = vpack.c.bf16 %v4131, %v4131
    %4255 = vrot.lane.b32.xlu0 %v4253, 80
    %v4256 = vpop.permute.xlu0 %4255
    %v4258 = vsel %vm482, %v4256, 0
    %4260 = vmatpush.bf16.msra.mxu0 0
    %4261 = vmatpush.bf16.msra.mxu0 0
    %4262 = vmatpush.bf16.msra.mxu0 0
    %4263 = vmatpush.bf16.msra.mxu0 0
    %4264 = vmatpush.bf16.msra.mxu0 0
    %4265 = vmatpush.bf16.msra.mxu0 0
    %4266 = vmatpush.bf16.msra.mxu0 0
    %4267 = vmatpush.bf16.msra.mxu0 %v830
    %4268 = vmatmul.bf16.gmra.mxu0 %v4258
    %v4269 = vpop.f32.mrf.mxu0
    %v4270 = vadd.f32 0.0, %v4269
    %v4271 = vpop.f32.mrf.mxu0
    %4272 = vdwg.mxu0
    %v4273 = vmul.f32 %v4270, %v111
    %v4274 = vsel %vm228, %v4273, 0.0
    %v4275 = vrot.slane %v4274, 4
    %v4276 = vadd.f32 %v4274, %v4275
    %v4277 = vrot.slane %v4276, 2
    %v4278 = vadd.f32 %v4276, %v4277
    %v4279 = vrot.slane %v4278, 1
    %v4280 = vadd.f32 %v4278, %v4279
    %v4281 = vmul.f32 %v4280, 0.33333334
    %v4282 = vmul.f32 %v111, %v4281
    %v4283 = vmul.f32 %v4270, %v115
    %v4284 = vsel %vm228, %v4283, 0.0
    %v4285 = vrot.slane %v4284, 4
    %v4286 = vadd.f32 %v4284, %v4285
    %v4287 = vrot.slane %v4286, 2
    %v4288 = vadd.f32 %v4286, %v4287
    %v4289 = vrot.slane %v4288, 1
    %v4290 = vadd.f32 %v4288, %v4289
    %v4291 = vmul.f32 %v4290, 0.33333334
    %v4292 = vmul.f32 %v115, %v4291
    %v4293 = vadd.f32 %v4282, %v4292
    %v4294 = vadd.f32 %v4293, %v870
    %v4295 = vmax.f32 %v4294, 0.0
    %v4296 = vpack.c.bf16 %v4295, %v4295
    %v4298 = vsel %vm258, %v4296, 0
    %4300 = vmatpush.bf16.msra.mxu0 0
    %4301 = vmatpush.bf16.msra.mxu0 0
    %4302 = vmatpush.bf16.msra.mxu0 0
    %4303 = vmatpush.bf16.msra.mxu0 0
    %4304 = vmatpush.bf16.msra.mxu0 0
    %4305 = vmatpush.bf16.msra.mxu0 0
    %4306 = vmatpush.bf16.msra.mxu0 0
    %4307 = vmatpush.bf16.msra.mxu0 %v885
    %4308 = vmatmul.bf16.gmra.mxu0 %v4298
    %v4309 = vpop.f32.mrf.mxu0
    %v4310 = vadd.f32 0.0, %v4309
    %v4311 = vpop.f32.mrf.mxu0
    %4312 = vdwg.mxu0
    %v4313 = vmul.f32 %v4310, %v111
    %v4314 = vsel %vm901, %v4313, 0.0
    %v4315 = vrot.slane %v4314, 4
    %v4316 = vadd.f32 %v4314, %v4315
    %v4317 = vrot.slane %v4316, 2
    %v4318 = vadd.f32 %v4316, %v4317
    %v4319 = vrot.slane %v4318, 1
    %v4320 = vadd.f32 %v4318, %v4319
    %v4321 = vmul.f32 %v4320, 0.33333334
    %v4322 = vmul.f32 %v111, %v4321
    %v4323 = vmul.f32 %v4310, %v115
    %v4324 = vsel %vm901, %v4323, 0.0
    %v4325 = vrot.slane %v4324, 4
    %v4326 = vadd.f32 %v4324, %v4325
    %v4327 = vrot.slane %v4326, 2
    %v4328 = vadd.f32 %v4326, %v4327
    %v4329 = vrot.slane %v4328, 1
    %v4330 = vadd.f32 %v4328, %v4329
    %v4331 = vmul.f32 %v4330, 0.33333334
    %v4332 = vmul.f32 %v115, %v4331
    %v4333 = vadd.f32 %v4322, %v4332
    %v4334 = vadd.f32 %v4333, %v923
    %4336 = vrot.lane.b32.xlu0 %v4131, 96
    %v4337 = vpop.permute.xlu0 %4336
    %v4339 = vsel %vm482, %v4334, %v4337
    %v4340 = vpack.c.bf16 %v4339, %v4339
    %v4342 = vsel %vm173, %v4340, 0
    %4344 = vmatpush.bf16.msra.mxu0 0
    %4345 = vmatpush.bf16.msra.mxu0 0
    %4346 = vmatpush.bf16.msra.mxu0 0
    %4347 = vmatpush.bf16.msra.mxu0 0
    %4348 = vmatpush.bf16.msra.mxu0 0
    %4349 = vmatpush.bf16.msra.mxu0 0
    %4350 = vmatpush.bf16.msra.mxu0 %v935
    %4351 = vmatpush.bf16.msra.mxu0 %v933
    %4352 = vmatmul.bf16.gmra.mxu0 %v4342
    %v4353 = vpop.f32.mrf.mxu0
    %v4354 = vadd.f32 %v939, %v4353
    %v4355 = vpop.f32.mrf.mxu0
    %4356 = vdwg.mxu0
    %s4357 = scalar_lea.vmem %s0, 48
    %v4358 = vld [vmem:[%s4357] sm:$0x3f]
    %s4359 = scalar_lea.vmem %s1, 48
    %v4360 = vld [vmem:[%s4359] sm:$0x3f]
    %4362 = vrot.lane.b32.xlu0 %v4354, 17
    %v4363 = vpop.permute.xlu0 %4362
    %v4365 = vsel %vm118, %v4358, %v4363
    %v4366 = vpack.c.bf16 %v4365, %v4365
    %v4368 = vsel %vm121, %v4366, 0
    %4370 = vmatpush.bf16.msra.mxu0 0
    %4371 = vmatpush.bf16.msra.mxu0 0
    %4372 = vmatpush.bf16.msra.mxu0 0
    %4373 = vmatpush.bf16.msra.mxu0 0
    %4374 = vmatpush.bf16.msra.mxu0 0
    %4375 = vmatpush.bf16.msra.mxu0 %v129
    %4376 = vmatpush.bf16.msra.mxu0 %v49
    %4377 = vmatpush.bf16.msra.mxu0 %v47
    %4378 = vmatmul.bf16.gmra.mxu0 %v4368
    %v4379 = vpop.f32.mrf.mxu0
    %v4380 = vadd.f32 0.0, %v4379
    %v4381 = vpop.f32.mrf.mxu0
    %4382 = vdwg.mxu0
    %4383 = vmatpush.bf16.msra.mxu0 0
    %4384 = vmatpush.bf16.msra.mxu0 0
    %4385 = vmatpush.bf16.msra.mxu0 0
    %4386 = vmatpush.bf16.msra.mxu0 0
    %4387 = vmatpush.bf16.msra.mxu0 0
    %4388 = vmatpush.bf16.msra.mxu0 %v132
    %4389 = vmatpush.bf16.msra.mxu0 %v50
    %4390 = vmatpush.bf16.msra.mxu0 %v48
    %4391 = vmatmul.bf16.gmra.mxu0 %v4368
    %v4392 = vpop.f32.mrf.mxu0
    %v4393 = vadd.f32 0.0, %v4392
    %v4394 = vpop.f32.mrf.mxu0
    %4395 = vdwg.mxu0
    %v4396 = vmax.f32 %v4380, 0.0
    %v4397 = vpack.c.bf16 %v4396, %v4396
    %v4399 = vsel %vm173, %v4397, 0
    %4401 = vmatpush.bf16.msra.mxu0 0
    %4402 = vmatpush.bf16.msra.mxu0 0
    %4403 = vmatpush.bf16.msra.mxu0 0
    %4404 = vmatpush.bf16.msra.mxu0 0
    %4405 = vmatpush.bf16.msra.mxu0 0
    %4406 = vmatpush.bf16.msra.mxu0 0
    %4407 = vmatpush.bf16.msra.mxu0 %v167
    %4408 = vmatpush.bf16.msra.mxu0 %v165
    %4409 = vmatmul.bf16.gmra.mxu0 %v4399
    %v4410 = vpop.f32.mrf.mxu0
    %v4411 = vadd.f32 %v171, %v4410
    %v4412 = vpop.f32.mrf.mxu0
    %4413 = vdwg.mxu0
    %v4414 = vsel %vm190, %v4411, -inf
    %4415 = vmax.xlane.f32.xlu0 %v4414
    %v4416 = vpop.xlane.xlu0 %4415
    %v4417 = vsub.f32 %v4411, %v4416
    %v4418 = vmul.f32 %v4417, 1.442695
    %v4419 = vpow.pop %v4418
    %v4420 = vsel %vm190, %v4419, 0.0
    %4421 = vadd.xlane.f32.xlu0 %v4420
    %v4422 = vpop.xlane.xlu0 %4421
    %v4423 = vrcp.pop %v4422
    %v4424 = vmul.f32 %v4419, %v4423
    %v4425 = vpack.c.bf16 %v4424, %v4424
    %v4427 = vsel %vm206, %v4425, 0
    %4429 = vmatpush.bf16.msra.mxu0 0
    %4430 = vmatpush.bf16.msra.mxu0 0
    %4431 = vmatpush.bf16.msra.mxu0 0
    %4432 = vmatpush.bf16.msra.mxu0 0
    %4433 = vmatpush.bf16.msra.mxu0 0
    %4434 = vmatpush.bf16.msra.mxu0 0
    %4435 = vmatpush.bf16.msra.mxu0 0
    %4436 = vmatpush.bf16.msra.mxu0 %v212
    %4437 = vmatmul.bf16.gmra.mxu0 %v4427
    %v4438 = vpop.f32.mrf.mxu0
    %v4439 = vadd.f32 0.0, %v4438
    %v4440 = vpop.f32.mrf.mxu0
    %4441 = vdwg.mxu0
    %v4442 = vmul.f32 %v4439, %v111
    %v4443 = vsel %vm228, %v4442, 0.0
    %v4444 = vrot.slane %v4443, 4
    %v4445 = vadd.f32 %v4443, %v4444
    %v4446 = vrot.slane %v4445, 2
    %v4447 = vadd.f32 %v4445, %v4446
    %v4448 = vrot.slane %v4447, 1
    %v4449 = vadd.f32 %v4447, %v4448
    %v4450 = vmul.f32 %v4449, 0.33333334
    %v4451 = vmul.f32 %v111, %v4450
    %v4452 = vmul.f32 %v4439, %v115
    %v4453 = vsel %vm228, %v4452, 0.0
    %v4454 = vrot.slane %v4453, 4
    %v4455 = vadd.f32 %v4453, %v4454
    %v4456 = vrot.slane %v4455, 2
    %v4457 = vadd.f32 %v4455, %v4456
    %v4458 = vrot.slane %v4457, 1
    %v4459 = vadd.f32 %v4457, %v4458
    %v4460 = vmul.f32 %v4459, 0.33333334
    %v4461 = vmul.f32 %v115, %v4460
    %v4462 = vadd.f32 %v4451, %v4461
    %v4463 = vadd.f32 %v4462, %v250
    %v4464 = vmax.f32 %v4463, 0.0
    %v4465 = vpack.c.bf16 %v4464, %v4464
    %v4467 = vsel %vm258, %v4465, 0
    %4469 = vmatpush.bf16.msra.mxu0 0
    %4470 = vmatpush.bf16.msra.mxu0 0
    %4471 = vmatpush.bf16.msra.mxu0 0
    %4472 = vmatpush.bf16.msra.mxu0 0
    %4473 = vmatpush.bf16.msra.mxu0 0
    %4474 = vmatpush.bf16.msra.mxu0 0
    %4475 = vmatpush.bf16.msra.mxu0 0
    %4476 = vmatpush.bf16.msra.mxu0 %v264
    %4477 = vmatmul.bf16.gmra.mxu0 %v4467
    %v4478 = vpop.f32.mrf.mxu0
    %v4479 = vadd.f32 0.0, %v4478
    %v4480 = vpop.f32.mrf.mxu0
    %4481 = vdwg.mxu0
    %v4482 = vmul.f32 %v4479, %v111
    %v4483 = vsel %vm190, %v4482, 0.0
    %v4484 = vrot.slane %v4483, 4
    %v4485 = vadd.f32 %v4483, %v4484
    %v4486 = vrot.slane %v4485, 2
    %v4487 = vadd.f32 %v4485, %v4486
    %v4488 = vrot.slane %v4487, 1
    %v4489 = vadd.f32 %v4487, %v4488
    %v4490 = vmul.f32 %v4489, 0.33333334
    %v4491 = vmul.f32 %v111, %v4490
    %v4492 = vmul.f32 %v4479, %v115
    %v4493 = vsel %vm190, %v4492, 0.0
    %v4494 = vrot.slane %v4493, 4
    %v4495 = vadd.f32 %v4493, %v4494
    %v4496 = vrot.slane %v4495, 2
    %v4497 = vadd.f32 %v4495, %v4496
    %v4498 = vrot.slane %v4497, 1
    %v4499 = vadd.f32 %v4497, %v4498
    %v4500 = vmul.f32 %v4499, 0.33333334
    %v4501 = vmul.f32 %v115, %v4500
    %v4502 = vadd.f32 %v4491, %v4501
    %v4503 = vadd.f32 %v4502, %v301
    %4505 = vrot.lane.b32.xlu0 %v4503, 4
    %v4506 = vpop.permute.xlu0 %4505
    %v4508 = vsel %vm206, %v4424, %v4506
    %v4509 = vpack.c.bf16 %v4508, %v4508
    %v4511 = vsel %vm258, %v4509, 0
    %4513 = vmatpush.bf16.msra.mxu0 0
    %4514 = vmatpush.bf16.msra.mxu0 0
    %4515 = vmatpush.bf16.msra.mxu0 0
    %4516 = vmatpush.bf16.msra.mxu0 0
    %4517 = vmatpush.bf16.msra.mxu0 0
    %4518 = vmatpush.bf16.msra.mxu0 0
    %4519 = vmatpush.bf16.msra.mxu0 0
    %4520 = vmatpush.bf16.msra.mxu0 %v319
    %4521 = vmatmul.bf16.gmra.mxu0 %v4511
    %v4522 = vpop.f32.mrf.mxu0
    %v4523 = vadd.f32 %v313, %v4522
    %v4524 = vpop.f32.mrf.mxu0
    %4525 = vdwg.mxu0
    %v4526 = vsel %vm190, %v4523, -inf
    %4527 = vmax.xlane.f32.xlu0 %v4526
    %v4528 = vpop.xlane.xlu0 %4527
    %v4529 = vsub.f32 %v4523, %v4528
    %v4530 = vmul.f32 %v4529, 1.442695
    %v4531 = vpow.pop %v4530
    %v4532 = vsel %vm190, %v4531, 0.0
    %4533 = vadd.xlane.f32.xlu0 %v4532
    %v4534 = vpop.xlane.xlu0 %4533
    %v4535 = vrcp.pop %v4534
    %v4536 = vmul.f32 %v4531, %v4535
    %4538 = vrot.lane.b32.xlu0 %v4536, 6
    %v4539 = vpop.permute.xlu0 %4538
    %v4541 = vmul.f32 %v4358, %v4539
    %4543 = vrot.lane.b32.xlu0 %v4541, 122
    %v4544 = vpop.permute.xlu0 %4543
    %v4546 = vsel %vm190, %v4544, 0.0
    %4547 = vadd.xlane.f32.xlu0 %v4546
    %v4548 = vpop.xlane.xlu0 %4547
    %v4549 = vrot.slane %v4548, 4
    %v4550 = vadd.f32 %v4548, %v4549
    %v4551 = vrot.slane %v4550, 2
    %v4552 = vadd.f32 %v4550, %v4551
    %v4553 = vrot.slane %v4552, 1
    %v4554 = vadd.f32 %v4552, %v4553
    %s4555 = vtos %v4554
    %v4556 = vstv %s4555
    %v4557 = vsub.f32 %v3877, %v4556
    %vm4558 = vcmp.gt.f32.partialorder %v4393, 0.0
    %v4559 = vmul.f32 %v4393, 0.01
    %v4560 = vsel %vm4558, %v4393, %v4559
    %v4561 = vpack.c.bf16 %v4560, %v4560
    %v4563 = vsel %vm173, %v4561, 0
    %4565 = vmatpush.bf16.msra.mxu0 0
    %4566 = vmatpush.bf16.msra.mxu0 0
    %4567 = vmatpush.bf16.msra.mxu0 0
    %4568 = vmatpush.bf16.msra.mxu0 0
    %4569 = vmatpush.bf16.msra.mxu0 0
    %4570 = vmatpush.bf16.msra.mxu0 0
    %4571 = vmatpush.bf16.msra.mxu0 %v58
    %4572 = vmatpush.bf16.msra.mxu0 %v57
    %4573 = vmatmul.bf16.gmra.mxu0 %v4563
    %v4574 = vpop.f32.mrf.mxu0
    %v4575 = vadd.f32 %v90, %v4574
    %v4576 = vpop.f32.mrf.mxu0
    %4577 = vdwg.mxu0
    %vm4578 = vcmp.gt.f32.partialorder %v4575, 0.0
    %v4579 = vmul.f32 %v4575, 0.01
    %v4580 = vsel %vm4578, %v4575, %v4579
    %v4581 = vpack.c.bf16 %v4580, %v4580
    %v4583 = vsel %vm173, %v4581, 0
    %4585 = vmatpush.bf16.msra.mxu0 0
    %4586 = vmatpush.bf16.msra.mxu0 0
    %4587 = vmatpush.bf16.msra.mxu0 0
    %4588 = vmatpush.bf16.msra.mxu0 0
    %4589 = vmatpush.bf16.msra.mxu0 0
    %4590 = vmatpush.bf16.msra.mxu0 0
    %4591 = vmatpush.bf16.msra.mxu0 %v395
    %4592 = vmatpush.bf16.msra.mxu0 %v393
    %4593 = vmatmul.bf16.gmra.mxu0 %v4583
    %v4594 = vpop.f32.mrf.mxu0
    %v4595 = vadd.f32 %v399, %v4594
    %v4596 = vpop.f32.mrf.mxu0
    %4597 = vdwg.mxu0
    %4599 = vrot.lane.b32.xlu0 %v4595, 32
    %v4600 = vpop.permute.xlu0 %4599
    %v4602 = vadd.f32 %v4380, %v4600
    %vm4603 = vcmp.gt.f32.partialorder %v4602, 0.0
    %v4604 = vmul.f32 %v4602, 0.01
    %v4605 = vsel %vm4603, %v4602, %v4604
    %vm4606 = vcmp.gt.f32.partialorder %v4380, 0.0
    %v4607 = vmul.f32 %v4380, 0.01
    %v4608 = vsel %vm4606, %v4380, %v4607
    %4610 = vrot.lane.b32.xlu0 %v4605, 96
    %v4611 = vpop.permute.xlu0 %4610
    %4614 = vrot.lane.b32.xlu0 %v4608, 96
    %v4615 = vpop.permute.xlu0 %4614
    %v4617 = vsel %vm173, %v4611, %v4615
    %v4618 = vpack.c.bf16 %v4617, %v4617
    %v4620 = vsel %vm441, %v4618, 0
    %4622 = vmatpush.bf16.msra.mxu0 0
    %4623 = vmatpush.bf16.msra.mxu0 0
    %4624 = vmatpush.bf16.msra.mxu0 0
    %4625 = vmatpush.bf16.msra.mxu0 0
    %4626 = vmatpush.bf16.msra.mxu0 %v87
    %4627 = vmatpush.bf16.msra.mxu0 %v86
    %4628 = vmatpush.bf16.msra.mxu0 %v85
    %4629 = vmatpush.bf16.msra.mxu0 %v84
    %4630 = vmatmul.bf16.gmra.mxu0 %v4620
    %v4631 = vpop.f32.mrf.mxu0
    %v4632 = vadd.f32 %v439, %v4631
    %v4633 = vpop.f32.mrf.mxu0
    %4634 = vdwg.mxu0
    %vm4635 = vcmp.gt.f32.partialorder %v4632, 0.0
    %v4636 = vmul.f32 %v4632, 0.01
    %v4637 = vsel %vm4635, %v4632, %v4636
    %v4638 = vpack.c.bf16 %v4637, %v4637
    %v4640 = vsel %vm441, %v4638, 0
    %4642 = vmatpush.bf16.msra.mxu0 0
    %4643 = vmatpush.bf16.msra.mxu0 0
    %4644 = vmatpush.bf16.msra.mxu0 0
    %4645 = vmatpush.bf16.msra.mxu0 0
    %4646 = vmatpush.bf16.msra.mxu0 %v473
    %4647 = vmatpush.bf16.msra.mxu0 %v471
    %4648 = vmatpush.bf16.msra.mxu0 %v469
    %4649 = vmatpush.bf16.msra.mxu0 %v467
    %4650 = vmatmul.bf16.gmra.mxu0 %v4640
    %v4651 = vpop.f32.mrf.mxu0
    %v4652 = vadd.f32 %v483, %v4651
    %v4653 = vpop.f32.mrf.mxu0
    %4654 = vdwg.mxu0
    %v4655 = vmul.f32 %v4652, 0.5
    %v4656 = vmul.f32 %v4655, 1.442695
    %v4657 = vpow.pop %v4656
    %4659 = vrot.lane.b32.xlu0 %v4657, 120
    %v4660 = vpop.permute.xlu0 %4659
    %v4662 = vmul.f32 %v4360, %v4660
    %v4663 = vadd.f32 %v4662, %v4652
    %v4664 = vpack.c.bf16 %v4663, %v4663
    %v4666 = vsel %vm258, %v4664, 0
    %4668 = vmatpush.bf16.msra.mxu0 0
    %4669 = vmatpush.bf16.msra.mxu0 0
    %4670 = vmatpush.bf16.msra.mxu0 0
    %4671 = vmatpush.bf16.msra.mxu0 0
    %4672 = vmatpush.bf16.msra.mxu0 0
    %4673 = vmatpush.bf16.msra.mxu0 0
    %4674 = vmatpush.bf16.msra.mxu0 0
    %4675 = vmatpush.bf16.msra.mxu0 %v524
    %4676 = vmatmul.bf16.gmra.mxu0 %v4666
    %v4677 = vpop.f32.mrf.mxu0
    %v4678 = vadd.f32 %v518, %v4677
    %v4679 = vpop.f32.mrf.mxu0
    %4680 = vdwg.mxu0
    %vm4681 = vcmp.gt.f32.partialorder %v4678, 0.0
    %v4682 = vmul.f32 %v4678, 0.01
    %v4683 = vsel %vm4681, %v4678, %v4682
    %v4684 = vpack.c.bf16 %v4683, %v4683
    %v4686 = vsel %vm173, %v4684, 0
    %4688 = vmatpush.bf16.msra.mxu0 0
    %4689 = vmatpush.bf16.msra.mxu0 0
    %4690 = vmatpush.bf16.msra.mxu0 0
    %4691 = vmatpush.bf16.msra.mxu0 0
    %4692 = vmatpush.bf16.msra.mxu0 0
    %4693 = vmatpush.bf16.msra.mxu0 0
    %4694 = vmatpush.bf16.msra.mxu0 %v553
    %4695 = vmatpush.bf16.msra.mxu0 %v552
    %4696 = vmatmul.bf16.gmra.mxu0 %v4686
    %v4697 = vpop.f32.mrf.mxu0
    %v4698 = vadd.f32 %v557, %v4697
    %v4699 = vpop.f32.mrf.mxu0
    %4700 = vdwg.mxu0
    %vm4701 = vcmp.gt.f32.partialorder %v4698, 0.0
    %v4702 = vmul.f32 %v4698, 0.01
    %v4703 = vsel %vm4701, %v4698, %v4702
    %v4704 = vpack.c.bf16 %v4703, %v4703
    %v4706 = vsel %vm173, %v4704, 0
    %4708 = vmatpush.bf16.msra.mxu0 0
    %4709 = vmatpush.bf16.msra.mxu0 0
    %4710 = vmatpush.bf16.msra.mxu0 0
    %4711 = vmatpush.bf16.msra.mxu0 0
    %4712 = vmatpush.bf16.msra.mxu0 0
    %4713 = vmatpush.bf16.msra.mxu0 0
    %4714 = vmatpush.bf16.msra.mxu0 %v70
    %4715 = vmatpush.bf16.msra.mxu0 %v69
    %4716 = vmatmul.bf16.gmra.mxu0 %v4706
    %v4717 = vpop.f32.mrf.mxu0
    %v4718 = vadd.f32 0.0, %v4717
    %v4719 = vpop.f32.mrf.mxu0
    %4720 = vdwg.mxu0
    %4722 = vrot.lane.b32.xlu0 %v4718, 96
    %v4723 = vpop.permute.xlu0 %4722
    %v4725 = vadd.f32 %v4380, %v4723
    %vm4726 = vcmp.gt.f32.partialorder %v4725, 0.0
    %v4727 = vmul.f32 %v4725, 0.01
    %v4728 = vsel %vm4726, %v4725, %v4727
    %v4729 = vpack.c.bf16 %v4728, %v4728
    %4731 = vrot.lane.b32.xlu0 %v4729, 32
    %v4732 = vpop.permute.xlu0 %4731
    %v4734 = vsel %vm173, %v4732, 0
    %4736 = vmatpush.bf16.msra.mxu0 0
    %4737 = vmatpush.bf16.msra.mxu0 0
    %4738 = vmatpush.bf16.msra.mxu0 0
    %4739 = vmatpush.bf16.msra.mxu0 0
    %4740 = vmatpush.bf16.msra.mxu0 0
    %4741 = vmatpush.bf16.msra.mxu0 0
    %4742 = vmatpush.bf16.msra.mxu0 %v610
    %4743 = vmatpush.bf16.msra.mxu0 %v608
    %4744 = vmatmul.bf16.gmra.mxu0 %v4734
    %v4745 = vpop.f32.mrf.mxu0
    %v4746 = vadd.f32 %v614, %v4745
    %v4747 = vpop.f32.mrf.mxu0
    %4748 = vdwg.mxu0
    %vm4749 = vcmp.gt.f32.partialorder %v4746, 0.0
    %v4750 = vmul.f32 %v4746, 0.01
    %v4751 = vsel %vm4749, %v4746, %v4750
    %v4752 = vpack.c.bf16 %v4751, %v4751
    %v4754 = vsel %vm173, %v4752, 0
    %4756 = vmatpush.bf16.msra.mxu0 0
    %4757 = vmatpush.bf16.msra.mxu0 0
    %4758 = vmatpush.bf16.msra.mxu0 0
    %4759 = vmatpush.bf16.msra.mxu0 0
    %4760 = vmatpush.bf16.msra.mxu0 0
    %4761 = vmatpush.bf16.msra.mxu0 0
    %4762 = vmatpush.bf16.msra.mxu0 %v639
    %4763 = vmatpush.bf16.msra.mxu0 %v637
    %4764 = vmatmul.bf16.gmra.mxu0 %v4754
    %v4765 = vpop.f32.mrf.mxu0
    %v4766 = vadd.f32 %v643, %v4765
    %v4767 = vpop.f32.mrf.mxu0
    %4768 = vdwg.mxu0
    %v4769 = vadd.f32 %v4595, %v4718
    %v4770 = vadd.f32 %v4769, %v4393
    %v4771 = vxor.u32 %v4770, 2147483648
    %v4772 = vmul.f32 %v4771, 1.442695
    %v4773 = vpow.pop %v4772
    %v4774 = vadd.f32 %v4773, 1.0
    %v4775 = vrcp.pop %v4774
    %v4776 = vmul.f32 %v4774, %v4775
    %v4777 = vsub.f32 1.0, %v4776
    %v4778 = vmul.f32 %v4775, %v4777
    %v4779 = vadd.f32 %v4775, %v4778
    %vm4780 = vweird.f32 %v4774
    %vm4781 = vweird.f32 %v4775
    %vm4782 = vmor %vm4780, %vm4781
    %v4783 = vsel %vm4782, %v4775, %v4779
    %v4784 = vand.u32 2147483647, %v4774
    %vm4785 = vcmp.eq.f32.partialorder %v4784, 8.507059e+37
    %v4786 = vand.u32 %v4774, 2147483648
    %v4787 = vor.u32 1.1754944e-38, %v4786
    %v4788 = vsel %vm4785, %v4787, %v4783
    %v4789 = vmul.f32 1.0, %v4788
    %4791 = vrot.lane.b32.xlu0 %v4393, 96
    %v4792 = vpop.permute.xlu0 %4791
    %v4794 = vmul.f32 %v4789, %v4792
    %4796 = vrot.lane.b32.xlu0 %v4794, 32
    %v4797 = vpop.permute.xlu0 %4796
    %v4799 = vadd.f32 %v4769, %v4797
    %v4800 = vtanh.pop %v4799
    %v4801 = vsub.f32 1.0, %v4789
    %4803 = vrot.lane.b32.xlu0 %v4800, 112
    %v4804 = vpop.permute.xlu0 %4803
    %v4806 = vmul.f32 %v4801, %v4804
    %4807 = vrot.lane.b32.xlu0 %v4354, 48
    %v4808 = vpop.permute.xlu0 %4807
    %v4810 = vmul.f32 %v4789, %v4808
    %v4811 = vadd.f32 %v4806, %v4810
    %4813 = vrot.lane.b32.xlu0 %v4652, 16
    %v4814 = vpop.permute.xlu0 %4813
    %v4816 = vsub.f32 %v4652, %v4814
    %4818 = vrot.lane.b32.xlu0 %v4816, 104
    %v4819 = vpop.permute.xlu0 %4818
    %v4821 = vsel %vm228, %v4819, 0.0
    %4822 = vadd.xlane.f32.xlu0 %v4821
    %v4823 = vpop.xlane.xlu0 %4822
    %4824 = vrot.lane.b32.xlu0 %v4652, 112
    %v4825 = vpop.permute.xlu0 %4824
    %v4827 = vsub.f32 %v4652, %v4825
    %v4828 = vmul.f32 %v4827, 1.442695
    %v4829 = vpow.pop %v4828
    %4831 = vrot.lane.b32.xlu0 %v4829, 120
    %v4832 = vpop.permute.xlu0 %4831
    %v4834 = vsel %vm228, %v4832, 0.0
    %4835 = vadd.xlane.f32.xlu0 %v4834
    %v4836 = vpop.xlane.xlu0 %4835
    %v4837 = vmul.f32 %v4827, %v4827
    %v4838 = vmul.f32 %v4652, 1.442695
    %v4839 = vpow.pop %v4838
    %4841 = vrot.lane.b32.xlu0 %v4839, 104
    %v4842 = vpop.permute.xlu0 %4841
    %v4844 = vrcp.pop %v4842
    %v4845 = vmul.f32 %v4842, %v4844
    %v4846 = vsub.f32 1.0, %v4845
    %v4847 = vmul.f32 %v4844, %v4846
    %v4848 = vadd.f32 %v4844, %v4847
    %vm4849 = vweird.f32 %v4842
    %vm4850 = vweird.f32 %v4844
    %vm4851 = vmor %vm4849, %vm4850
    %v4852 = vsel %vm4851, %v4844, %v4848
    %v4853 = vand.u32 2147483647, %v4842
    %vm4854 = vcmp.eq.f32.partialorder %v4853, 8.507059e+37
    %v4855 = vand.u32 %v4842, 2147483648
    %v4856 = vor.u32 1.1754944e-38, %v4855
    %v4857 = vsel %vm4854, %v4856, %v4852
    %v4858 = vmul.f32 %v4837, %v4857
    %v4859 = vsel %vm228, %v4858, 0.0
    %4860 = vadd.xlane.f32.xlu0 %v4859
    %v4861 = vpop.xlane.xlu0 %4860
    %v4862 = vsub.f32 %v4823, 8.0
    %v4863 = vadd.f32 %v4862, %v4836
    %v4864 = vadd.f32 %v4863, %v4861
    %v4865 = vsel %vm754, %v4864, 0.0
    %4866 = vadd.xlane.f32.xlu0 %v4865
    %v4867 = vpop.xlane.xlu0 %4866
    %v4868 = vrot.slane %v4867, 4
    %v4869 = vadd.f32 %v4867, %v4868
    %v4870 = vrot.slane %v4869, 2
    %v4871 = vadd.f32 %v4869, %v4870
    %v4872 = vrot.slane %v4871, 1
    %v4873 = vadd.f32 %v4871, %v4872
    %s4874 = vtos %v4873
    %v4875 = vstv %s4874
    %v4876 = vmul.f32 %v4875, 0.083333336
    %v4877 = vadd.f32 %v4197, %v4876
    %4879 = vrot.lane.b32.xlu0 %v4766, 14
    %v4880 = vpop.permute.xlu0 %4879
    %v4882 = vsub.f32 %v4358, %v4880
    %v4883 = vmul.f32 %v4882, %v4882
    %v4884 = vmul.f32 %v4766, 1.442695
    %v4885 = vpow.pop %v4884
    %4887 = vrot.lane.b32.xlu0 %v4885, 12
    %v4888 = vpop.permute.xlu0 %4887
    %v4890 = vrcp.pop %v4888
    %v4891 = vmul.f32 %v4888, %v4890
    %v4892 = vsub.f32 1.0, %v4891
    %v4893 = vmul.f32 %v4890, %v4892
    %v4894 = vadd.f32 %v4890, %v4893
    %vm4895 = vweird.f32 %v4888
    %vm4896 = vweird.f32 %v4890
    %vm4897 = vmor %vm4895, %vm4896
    %v4898 = vsel %vm4897, %v4890, %v4894
    %v4899 = vand.u32 2147483647, %v4888
    %vm4900 = vcmp.eq.f32.partialorder %v4899, 8.507059e+37
    %v4901 = vand.u32 %v4888, 2147483648
    %v4902 = vor.u32 1.1754944e-38, %v4901
    %v4903 = vsel %vm4900, %v4902, %v4898
    %v4904 = vmul.f32 %v4883, %v4903
    %4906 = vrot.lane.b32.xlu0 %v4904, 114
    %v4907 = vpop.permute.xlu0 %4906
    %v4909 = vsel %vm799, %v4907, 0.0
    %4910 = vadd.xlane.f32.xlu0 %v4909
    %v4911 = vpop.xlane.xlu0 %4910
    %4912 = vrot.lane.b32.xlu0 %v4766, 126
    %v4913 = vpop.permute.xlu0 %4912
    %v4915 = vsel %vm799, %v4913, 0.0
    %4916 = vadd.xlane.f32.xlu0 %v4915
    %v4917 = vpop.xlane.xlu0 %4916
    %v4918 = vadd.f32 %v4911, 3.675754
    %v4919 = vadd.f32 %v4918, %v4917
    %v4920 = vsel %vm754, %v4919, 0.0
    %4921 = vadd.xlane.f32.xlu0 %v4920
    %v4922 = vpop.xlane.xlu0 %4921
    %v4923 = vrot.slane %v4922, 4
    %v4924 = vadd.f32 %v4922, %v4923
    %v4925 = vrot.slane %v4924, 2
    %v4926 = vadd.f32 %v4924, %v4925
    %v4927 = vrot.slane %v4926, 1
    %v4928 = vadd.f32 %v4926, %v4927
    %s4929 = vtos %v4928
    %v4930 = vstv %s4929
    %v4931 = vmul.f32 %v4930, 0.083333336
    %v4932 = vadd.f32 %v4252, %v4931
    %v4933 = vpack.c.bf16 %v4811, %v4811
    %4935 = vrot.lane.b32.xlu0 %v4933, 80
    %v4936 = vpop.permute.xlu0 %4935
    %v4938 = vsel %vm482, %v4936, 0
    %4940 = vmatpush.bf16.msra.mxu0 0
    %4941 = vmatpush.bf16.msra.mxu0 0
    %4942 = vmatpush.bf16.msra.mxu0 0
    %4943 = vmatpush.bf16.msra.mxu0 0
    %4944 = vmatpush.bf16.msra.mxu0 0
    %4945 = vmatpush.bf16.msra.mxu0 0
    %4946 = vmatpush.bf16.msra.mxu0 0
    %4947 = vmatpush.bf16.msra.mxu0 %v830
    %4948 = vmatmul.bf16.gmra.mxu0 %v4938
    %v4949 = vpop.f32.mrf.mxu0
    %v4950 = vadd.f32 0.0, %v4949
    %v4951 = vpop.f32.mrf.mxu0
    %4952 = vdwg.mxu0
    %v4953 = vmul.f32 %v4950, %v111
    %v4954 = vsel %vm228, %v4953, 0.0
    %v4955 = vrot.slane %v4954, 4
    %v4956 = vadd.f32 %v4954, %v4955
    %v4957 = vrot.slane %v4956, 2
    %v4958 = vadd.f32 %v4956, %v4957
    %v4959 = vrot.slane %v4958, 1
    %v4960 = vadd.f32 %v4958, %v4959
    %v4961 = vmul.f32 %v4960, 0.33333334
    %v4962 = vmul.f32 %v111, %v4961
    %v4963 = vmul.f32 %v4950, %v115
    %v4964 = vsel %vm228, %v4963, 0.0
    %v4965 = vrot.slane %v4964, 4
    %v4966 = vadd.f32 %v4964, %v4965
    %v4967 = vrot.slane %v4966, 2
    %v4968 = vadd.f32 %v4966, %v4967
    %v4969 = vrot.slane %v4968, 1
    %v4970 = vadd.f32 %v4968, %v4969
    %v4971 = vmul.f32 %v4970, 0.33333334
    %v4972 = vmul.f32 %v115, %v4971
    %v4973 = vadd.f32 %v4962, %v4972
    %v4974 = vadd.f32 %v4973, %v870
    %v4975 = vmax.f32 %v4974, 0.0
    %v4976 = vpack.c.bf16 %v4975, %v4975
    %v4978 = vsel %vm258, %v4976, 0
    %4980 = vmatpush.bf16.msra.mxu0 0
    %4981 = vmatpush.bf16.msra.mxu0 0
    %4982 = vmatpush.bf16.msra.mxu0 0
    %4983 = vmatpush.bf16.msra.mxu0 0
    %4984 = vmatpush.bf16.msra.mxu0 0
    %4985 = vmatpush.bf16.msra.mxu0 0
    %4986 = vmatpush.bf16.msra.mxu0 0
    %4987 = vmatpush.bf16.msra.mxu0 %v885
    %4988 = vmatmul.bf16.gmra.mxu0 %v4978
    %v4989 = vpop.f32.mrf.mxu0
    %v4990 = vadd.f32 0.0, %v4989
    %v4991 = vpop.f32.mrf.mxu0
    %4992 = vdwg.mxu0
    %v4993 = vmul.f32 %v4990, %v111
    %v4994 = vsel %vm901, %v4993, 0.0
    %v4995 = vrot.slane %v4994, 4
    %v4996 = vadd.f32 %v4994, %v4995
    %v4997 = vrot.slane %v4996, 2
    %v4998 = vadd.f32 %v4996, %v4997
    %v4999 = vrot.slane %v4998, 1
    %v5000 = vadd.f32 %v4998, %v4999
    %v5001 = vmul.f32 %v5000, 0.33333334
    %v5002 = vmul.f32 %v111, %v5001
    %v5003 = vmul.f32 %v4990, %v115
    %v5004 = vsel %vm901, %v5003, 0.0
    %v5005 = vrot.slane %v5004, 4
    %v5006 = vadd.f32 %v5004, %v5005
    %v5007 = vrot.slane %v5006, 2
    %v5008 = vadd.f32 %v5006, %v5007
    %v5009 = vrot.slane %v5008, 1
    %v5010 = vadd.f32 %v5008, %v5009
    %v5011 = vmul.f32 %v5010, 0.33333334
    %v5012 = vmul.f32 %v115, %v5011
    %v5013 = vadd.f32 %v5002, %v5012
    %v5014 = vadd.f32 %v5013, %v923
    %5016 = vrot.lane.b32.xlu0 %v4811, 96
    %v5017 = vpop.permute.xlu0 %5016
    %v5019 = vsel %vm482, %v5014, %v5017
    %v5020 = vpack.c.bf16 %v5019, %v5019
    %v5022 = vsel %vm173, %v5020, 0
    %5024 = vmatpush.bf16.msra.mxu0 0
    %5025 = vmatpush.bf16.msra.mxu0 0
    %5026 = vmatpush.bf16.msra.mxu0 0
    %5027 = vmatpush.bf16.msra.mxu0 0
    %5028 = vmatpush.bf16.msra.mxu0 0
    %5029 = vmatpush.bf16.msra.mxu0 0
    %5030 = vmatpush.bf16.msra.mxu0 %v935
    %5031 = vmatpush.bf16.msra.mxu0 %v933
    %5032 = vmatmul.bf16.gmra.mxu0 %v5022
    %v5033 = vpop.f32.mrf.mxu0
    %v5034 = vadd.f32 %v939, %v5033
    %v5035 = vpop.f32.mrf.mxu0
    %5036 = vdwg.mxu0
    %vm5037 = vcmask 7168
    %v5038 = vsel %vm5037, %v4877, %v4932
    %vm5039 = vcmask 15360
    %v5040 = vsel %vm5039, %v5038, %v4557
    %vm5041 = vcmask 23552
    %v5042 = vsel %vm5041, %v5040, 0.0
    %vm5043 = vcmask 24576
    %5044 = vst.msk [vmem:[#allocation5] sm:$0x1] %vm5043, %v5042
    %5045 = vst.msk [vmem:[%s5] sm:$0x3f] %vm901, %v5034
    // Predicated region
    $region22: #{tpu_custom_call.1} parent=1 // pred_check
      _
    $region23: #{tpu_custom_call.1} parent=1 // pred_check_branch
      %5047 = sbr.rel (0) target = $region25
    $region24: #{tpu_custom_call.1} parent=1 // pred_region
      %5049 = vsyncadd [#allocation4], 0
      %s5051 = sshll.u32 [#allocation5], 4
      %s5052 = int_to_ptr.vmem [resolvable:$true] %s5051
      %s5053 = sshll.u32 %s4, 4
      %s5054 = int_to_ptr.hbm [resolvable:$true] %s5053
      %5056 = dma.vmem_to_hbm [thread:$0]  %s5052, 16, %s5054, [#allocation4]
    $region25: #{tpu_custom_call.1} parent=1 // pred_fallthru
      _
    // Predicated region
    $region26: #{tpu_custom_call.1} parent=1 // pred_check
      _
    $region27: #{tpu_custom_call.1} parent=1 // pred_check_branch
      %5058 = sbr.rel (0) target = $region29
    $region28: #{tpu_custom_call.1} parent=1 // pred_region
      _
    $region29: #{tpu_custom_call.1} parent=1 // pred_fallthru
      _
    // Predicated region
    $region30: #{tpu_custom_call.1} parent=1 // pred_check
      _
    $region31: #{tpu_custom_call.1} parent=1 // pred_check_branch
      %5060 = sbr.rel (0) target = $region33
    $region32: #{tpu_custom_call.1} parent=1 // pred_region
      %5062 = dma.done [#allocation4], 16
    $region33: #{tpu_custom_call.1} parent=1 // pred_fallthru
      _
    // Predicated region
    $region34: #{tpu_custom_call.1} parent=1 // pred_check
      _
    $region35: #{tpu_custom_call.1} parent=1 // pred_check_branch
      %5064 = sbr.rel (0) target = $region37
    $region36: #{tpu_custom_call.1} parent=1 // pred_region
      _
    $region37: #{tpu_custom_call.1} parent=1 // pred_fallthru
      _
    %5065 = vsyncpa [#allocation3], 1
    %5066 = vsyncpa [#allocation4], 1

</llo_original>
